<compile_context>
chip_gen: v6e
topology: v6e:2x2x1
jax: 0.10.0
libtpu: 0.0.40
codegen_flags: <defaults>
</compile_context>

<pallas_src>
import functools

import jax
import jax.numpy as jnp
from jax.experimental import pallas as pl
from jax.experimental.pallas import tpu as pltpu


# ------------------------- fused conv-branch kernel --------------------------

def conv_branch_kernel(ids_ref, emb_ref, w1_ref, b1_ref, w2_ref, b2_ref,
                       w3_ref, b3_ref, o_ref, *, K, V):
    # ids_ref: (1, L, 1) int32 token ids for the current sample.
    # emb_ref: (V, 128) bf16 embedding table (resident in VMEM across steps).
    # w*_ref : (K*Cin, Cout) bf16 -- PyTorch Conv1d weight (Cout, Cin, K)
    #          permuted to (K, Cin, Cout) and flattened for im2col.
    # b*_ref : (1, Cout) f32.   o_ref: (1, 1, Cout) f32 max-pooled features.
    L = ids_ref.shape[1]

    # nn.Embedding lookup as a one-hot matmul (exact: selects one bf16 row).
    ids = ids_ref[0]                                              # (L, 1) int32
    onehot = (ids == jax.lax.broadcasted_iota(jnp.int32, (L, V), 1)
              ).astype(jnp.bfloat16)                              # (L, V)
    h = jnp.dot(onehot, emb_ref[...],
                preferred_element_type=jnp.float32).astype(jnp.bfloat16)

    def conv_relu(h, w_ref, b_ref):
        # h: (L_in, C_in) bf16.  Conv1d == im2col matmul: column block k of the
        # slab holds the input shifted by tap k, matching weight row k*Cin+ci.
        L_in, _ = h.shape
        L_out = L_in - K + 1
        cols = jnp.concatenate([h[k:k + L_out, :] for k in range(K)], axis=-1)
        y = jnp.dot(cols, w_ref[...], preferred_element_type=jnp.float32)
        return jnp.maximum(y + b_ref[...], 0.0)                   # f32 epilogue

    h = conv_relu(h, w1_ref, b1_ref).astype(jnp.bfloat16)
    h = conv_relu(h, w2_ref, b2_ref).astype(jnp.bfloat16)
    h = conv_relu(h, w3_ref, b3_ref)                              # f32 (L3, C3)
    # Global max pool over the sequence dim (== torch.max(x, 2)).
    o_ref[0] = jnp.max(h, axis=0, keepdims=True)


def conv_branch(ids, emb, w1, b1, w2, b2, w3, b3, *, K):
    # ids: (B, L, 1) int32.  Returns (B, Cout3) f32 pooled features.
    B, L, _ = ids.shape
    V = emb.shape[0]
    Cout = w3.shape[1]

    def resident(a):            # constant index_map -> fetched once, stays in VMEM
        nd = a.ndim
        return pl.BlockSpec(a.shape, lambda b: (0,) * nd)

    out = pl.pallas_call(
        functools.partial(conv_branch_kernel, K=K, V=V),
        out_shape=jax.ShapeDtypeStruct((B, 1, Cout), jnp.float32),
        grid=(B,),
        in_specs=[pl.BlockSpec((1, L, 1), lambda b: (b, 0, 0)),
                  resident(emb),
                  resident(w1), resident(b1),
                  resident(w2), resident(b2),
                  resident(w3), resident(b3)],
        out_specs=pl.BlockSpec((1, 1, Cout), lambda b: (b, 0, 0)),
        compiler_params=pltpu.CompilerParams(
            dimension_semantics=("parallel",),       # megacore split on v7x
            vmem_limit_bytes=32 * 1024 * 1024),      # v7x-safe (64 MiB physical)
    )(ids, emb, w1, b1, w2, b2, w3, b3)
    return out.reshape(B, Cout)


# --------------------------- fused FC-stack kernel ---------------------------

def fc_stack_kernel(smi_ref, prot_ref, u1_ref, u2_ref,
                    w1s_ref, w1p_ref, b1_ref, w2_ref, b2_ref,
                    w3_ref, b3_ref, w4_ref, b4_ref, o_ref):
    def dense(h, w_ref, b_ref):
        return jnp.dot(h.astype(jnp.bfloat16), w_ref[...],
                       preferred_element_type=jnp.float32) + b_ref[...]

    def dropout(h, u_ref, p=0.1):
        # F.dropout(p=0.1) with its training=True default.  Uniforms are drawn
        # host-side (jax.random) so the kernel also runs under interpret mode;
        # in-kernel cost is one compare + select per element.
        return jnp.where(u_ref[...] >= p, h * (1.0 / (1.0 - p)), 0.0)

    # fc1 over concat(smi, prot) expressed as a split matmul -> no in-kernel
    # lane-relayout concatenation of the two 96-wide feature slabs.
    h = jnp.dot(smi_ref[...].astype(jnp.bfloat16), w1s_ref[...],
                preferred_element_type=jnp.float32)
    h += jnp.dot(prot_ref[...].astype(jnp.bfloat16), w1p_ref[...],
                 preferred_element_type=jnp.float32)
    h = jnp.maximum(h + b1_ref[...], 0.0)
    h = dropout(h, u1_ref)
    h = jnp.maximum(dense(h, w2_ref, b2_ref), 0.0)
    h = dropout(h, u2_ref)
    h = jnp.maximum(dense(h, w3_ref, b3_ref), 0.0)
    o_ref[...] = dense(h, w4_ref, b4_ref)


def fc_stack(smi_feat, prot_feat, u1, u2,
             w1s, w1p, b1, w2, b2, w3, b3, w4, b4):
    B = smi_feat.shape[0]

    def full(a):
        nd = a.ndim
        return pl.BlockSpec(a.shape, lambda i: (0,) * nd)

    args = (smi_feat, prot_feat, u1, u2, w1s, w1p, b1, w2, b2, w3, b3, w4, b4)
    # TODO(synk): with grid=(1,) the resident weights gain nothing from double
    # buffering; pipeline_mode=pl.Buffered(1) on the weight specs would halve
    # their VMEM footprint if it ever becomes tight.
    return pl.pallas_call(
        fc_stack_kernel,
        out_shape=jax.ShapeDtypeStruct((B, 1), jnp.float32),
        grid=(1,),
        in_specs=[full(a) for a in args],
        out_specs=pl.BlockSpec((B, 1), lambda i: (0, 0)),
        compiler_params=pltpu.CompilerParams(
            dimension_semantics=("arbitrary",),
            vmem_limit_bytes=32 * 1024 * 1024),
    )(*args)


# --------------------------- parameters & forward ----------------------------

def init_params(key):
    ks = jax.random.split(key, 23)
    bf16 = jnp.bfloat16

    def rnd(k, shape, dtype=jnp.float32):
        return (jax.random.normal(k, shape, jnp.float32) * 0.1).astype(dtype)

    # Conv weights stored pre-flattened to im2col layout (K*Cin, Cout); this is
    # the PyTorch (Cout, Cin, K) weight permuted to (K, Cin, Cout) and reshaped.
    # Matmul inputs are bf16; biases stay f32 (f32 epilogue in-kernel).
    return {
        "smi_emb":  rnd(ks[0], (65, 128), bf16),
        "prot_emb": rnd(ks[1], (26, 128), bf16),
        "c1s_w": rnd(ks[2], (4 * 128, 32), bf16),  "c1s_b": rnd(ks[3], (1, 32)),
        "c2s_w": rnd(ks[4], (4 * 32, 64), bf16),   "c2s_b": rnd(ks[5], (1, 64)),
        "c3s_w": rnd(ks[6], (4 * 64, 96), bf16),   "c3s_b": rnd(ks[7], (1, 96)),
        "c1p_w": rnd(ks[8], (8 * 128, 32), bf16),  "c1p_b": rnd(ks[9], (1, 32)),
        "c2p_w": rnd(ks[10], (8 * 32, 64), bf16),  "c2p_b": rnd(ks[11], (1, 64)),
        "c3p_w": rnd(ks[12], (8 * 64, 96), bf16),  "c3p_b": rnd(ks[13], (1, 96)),
        # fc1 weight (192, 1024) split into its smi[0:96] / prot[96:192] rows.
        "fc1_smi_w":  rnd(ks[14], (96, 1024), bf16),
        "fc1_prot_w": rnd(ks[15], (96, 1024), bf16),
        "fc1_b": rnd(ks[16], (1, 1024)),
        "fc2_w": rnd(ks[17], (1024, 1024), bf16),  "fc2_b": rnd(ks[18], (1, 1024)),
        "fc3_w": rnd(ks[19], (1024, 512), bf16),   "fc3_b": rnd(ks[20], (1, 512)),
        "fc4_w": rnd(ks[21], (512, 1), bf16),      "fc4_b": rnd(ks[22], (1, 1)),
    }


def net_forward(params, XD, XT, dropout_key):
    B = XD.shape[0]

    smi_feat = conv_branch(XD[..., None].astype(jnp.int32), params["smi_emb"],
                           params["c1s_w"], params["c1s_b"],
                           params["c2s_w"], params["c2s_b"],
                           params["c3s_w"], params["c3s_b"], K=4)    # (B, 96)
    prot_feat = conv_branch(XT[..., None].astype(jnp.int32), params["prot_emb"],
                            params["c1p_w"], params["c1p_b"],
                            params["c2p_w"], params["c2p_b"],
                            params["c3p_w"], params["c3p_b"], K=8)   # (B, 96)

    k1, k2 = jax.random.split(dropout_key)
    u1 = jax.random.uniform(k1, (B, 1024), jnp.float32)
    u2 = jax.random.uniform(k2, (B, 1024), jnp.float32)

    return fc_stack(smi_feat, prot_feat, u1, u2,
                    params["fc1_smi_w"], params["fc1_prot_w"], params["fc1_b"],
                    params["fc2_w"], params["fc2_b"],
                    params["fc3_w"], params["fc3_b"],
                    params["fc4_w"], params["fc4_b"])                # (B, 1)


# ----------------------------------- main ------------------------------------

if __name__ == "__main__":
    key = jax.random.PRNGKey(0)
    pkey, xd_key, xt_key, dkey = jax.random.split(key, 4)

    params = init_params(pkey)

    B, Ls, Lp = 2, 32, 64   # small synthetic token sequences
    XD = jax.random.randint(xd_key, (B, Ls), 0, 65, dtype=jnp.int32)
    XT = jax.random.randint(xt_key, (B, Lp), 0, 26, dtype=jnp.int32)

    out = jax.jit(net_forward)(params, XD, XT, dkey)
    out = jax.block_until_ready(out)
    assert out.shape == (B, 1), out.shape
    print("KERNEL_OK")
</pallas_src>

<mosaic_0001>
module attributes {stable_mosaic.version = 11 : i64} {
  func.func @conv_branch_kernel(%arg0: i32, %arg1: memref<1x32x1xi32, #tpu.memory_space<vmem>>, %arg2: memref<65x128xbf16, #tpu.memory_space<vmem>>, %arg3: memref<512x32xbf16, #tpu.memory_space<vmem>>, %arg4: memref<1x32xf32, #tpu.memory_space<vmem>>, %arg5: memref<128x64xbf16, #tpu.memory_space<vmem>>, %arg6: memref<1x64xf32, #tpu.memory_space<vmem>>, %arg7: memref<256x96xbf16, #tpu.memory_space<vmem>>, %arg8: memref<1x96xf32, #tpu.memory_space<vmem>>, %arg9: memref<1x1x96xf32, #tpu.memory_space<vmem>>) attributes {dimension_semantics = [#tpu.dimension_semantics<parallel>], iteration_bounds = array<i64: 2>, scalar_prefetch = 0 : i64, scratch_operands = 0 : i64, tpu.core_type = #tpu.core_type<tc>, window_params = [{transform_indices = @transform_0, window_bounds = array<i64: 1, 32, 1>}, {pipeline_mode = #tpu.pipeline_mode<synchronous>, transform_indices = @transform_1, window_bounds = array<i64: 65, 128>}, {pipeline_mode = #tpu.pipeline_mode<synchronous>, transform_indices = @transform_2, window_bounds = array<i64: 512, 32>}, {pipeline_mode = #tpu.pipeline_mode<synchronous>, transform_indices = @transform_3, window_bounds = array<i64: 1, 32>}, {pipeline_mode = #tpu.pipeline_mode<synchronous>, transform_indices = @transform_4, window_bounds = array<i64: 128, 64>}, {pipeline_mode = #tpu.pipeline_mode<synchronous>, transform_indices = @transform_5, window_bounds = array<i64: 1, 64>}, {pipeline_mode = #tpu.pipeline_mode<synchronous>, transform_indices = @transform_6, window_bounds = array<i64: 256, 96>}, {pipeline_mode = #tpu.pipeline_mode<synchronous>, transform_indices = @transform_7, window_bounds = array<i64: 1, 96>}, {transform_indices = @transform_8, window_bounds = array<i64: 1, 1, 96>}]} {
    %c0 = arith.constant 0 : index
    %c0_0 = arith.constant 0 : index
    %c0_1 = arith.constant 0 : index
    %0 = vector.load %arg1[%c0, %c0_0, %c0_1] : memref<1x32x1xi32, #tpu.memory_space<vmem>>, vector<1x32x1xi32>
    %1 = vector.shape_cast %0 : vector<1x32x1xi32> to vector<32x1xi32>
    %2 = tpu.iota {dimensions = array<i32: 1>} : vector<32x65xi32>
    %3 = vector.broadcast %1 : vector<32x1xi32> to vector<32x65xi32>
    %4 = arith.cmpi eq, %3, %2 : vector<32x65xi32>
    %5 = arith.extui %4 : vector<32x65xi1> to vector<32x65xi32>
    %6 = arith.sitofp %5 : vector<32x65xi32> to vector<32x65xf32>
    %7 = arith.truncf %6 : vector<32x65xf32> to vector<32x65xbf16>
    %c0_2 = arith.constant 0 : index
    %c0_3 = arith.constant 0 : index
    %8 = vector.load %arg2[%c0_2, %c0_3] : memref<65x128xbf16, #tpu.memory_space<vmem>>, vector<65x128xbf16>
    %cst = arith.constant dense<0.000000e+00> : vector<32x128xf32>
    %9 = tpu.matmul %7, %8, %cst {dimension_numbers = #tpu.dot_dimension_numbers<[1], [0], [0], [1], [0, 0, 1, 1], [], []>} : vector<32x65xbf16>, vector<65x128xbf16>, vector<32x128xf32> -> vector<32x128xf32>
    %10 = arith.truncf %9 : vector<32x128xf32> to vector<32x128xbf16>
    %11 = vector.extract_strided_slice %10 {offsets = [0, 0], sizes = [29, 128], strides = [1, 1]} : vector<32x128xbf16> to vector<29x128xbf16>
    %12 = vector.extract_strided_slice %10 {offsets = [1, 0], sizes = [29, 128], strides = [1, 1]} : vector<32x128xbf16> to vector<29x128xbf16>
    %13 = vector.extract_strided_slice %10 {offsets = [2, 0], sizes = [29, 128], strides = [1, 1]} : vector<32x128xbf16> to vector<29x128xbf16>
    %14 = vector.extract_strided_slice %10 {offsets = [3, 0], sizes = [29, 128], strides = [1, 1]} : vector<32x128xbf16> to vector<29x128xbf16>
    %15 = tpu.concatenate %11, %12, %13, %14 in 1 : vector<29x128xbf16>, vector<29x128xbf16>, vector<29x128xbf16>, vector<29x128xbf16> -> vector<29x512xbf16>
    %c0_4 = arith.constant 0 : index
    %c0_5 = arith.constant 0 : index
    %16 = vector.load %arg3[%c0_4, %c0_5] : memref<512x32xbf16, #tpu.memory_space<vmem>>, vector<512x32xbf16>
    %cst_6 = arith.constant dense<0.000000e+00> : vector<29x32xf32>
    %17 = tpu.matmul %15, %16, %cst_6 {dimension_numbers = #tpu.dot_dimension_numbers<[1], [0], [0], [1], [0, 0, 1, 1], [], []>} : vector<29x512xbf16>, vector<512x32xbf16>, vector<29x32xf32> -> vector<29x32xf32>
    %c0_7 = arith.constant 0 : index
    %c0_8 = arith.constant 0 : index
    %18 = vector.load %arg4[%c0_7, %c0_8] : memref<1x32xf32, #tpu.memory_space<vmem>>, vector<1x32xf32>
    %19 = vector.broadcast %18 : vector<1x32xf32> to vector<29x32xf32>
    %20 = arith.addf %17, %19 : vector<29x32xf32>
    %cst_9 = arith.constant 0.000000e+00 : f32
    %21 = vector.broadcast %cst_9 : f32 to vector<29x32xf32>
    %22 = arith.maximumf %20, %21 : vector<29x32xf32>
    %23 = arith.truncf %22 : vector<29x32xf32> to vector<29x32xbf16>
    %24 = vector.extract_strided_slice %23 {offsets = [0, 0], sizes = [26, 32], strides = [1, 1]} : vector<29x32xbf16> to vector<26x32xbf16>
    %25 = vector.extract_strided_slice %23 {offsets = [1, 0], sizes = [26, 32], strides = [1, 1]} : vector<29x32xbf16> to vector<26x32xbf16>
    %26 = vector.extract_strided_slice %23 {offsets = [2, 0], sizes = [26, 32], strides = [1, 1]} : vector<29x32xbf16> to vector<26x32xbf16>
    %27 = vector.extract_strided_slice %23 {offsets = [3, 0], sizes = [26, 32], strides = [1, 1]} : vector<29x32xbf16> to vector<26x32xbf16>
    %28 = tpu.concatenate %24, %25, %26, %27 in 1 : vector<26x32xbf16>, vector<26x32xbf16>, vector<26x32xbf16>, vector<26x32xbf16> -> vector<26x128xbf16>
    %c0_10 = arith.constant 0 : index
    %c0_11 = arith.constant 0 : index
    %29 = vector.load %arg5[%c0_10, %c0_11] : memref<128x64xbf16, #tpu.memory_space<vmem>>, vector<128x64xbf16>
    %cst_12 = arith.constant dense<0.000000e+00> : vector<26x64xf32>
    %30 = tpu.matmul %28, %29, %cst_12 {dimension_numbers = #tpu.dot_dimension_numbers<[1], [0], [0], [1], [0, 0, 1, 1], [], []>} : vector<26x128xbf16>, vector<128x64xbf16>, vector<26x64xf32> -> vector<26x64xf32>
    %c0_13 = arith.constant 0 : index
    %c0_14 = arith.constant 0 : index
    %31 = vector.load %arg6[%c0_13, %c0_14] : memref<1x64xf32, #tpu.memory_space<vmem>>, vector<1x64xf32>
    %32 = vector.broadcast %31 : vector<1x64xf32> to vector<26x64xf32>
    %33 = arith.addf %30, %32 : vector<26x64xf32>
    %cst_15 = arith.constant 0.000000e+00 : f32
    %34 = vector.broadcast %cst_15 : f32 to vector<26x64xf32>
    %35 = arith.maximumf %33, %34 : vector<26x64xf32>
    %36 = arith.truncf %35 : vector<26x64xf32> to vector<26x64xbf16>
    %37 = vector.extract_strided_slice %36 {offsets = [0, 0], sizes = [23, 64], strides = [1, 1]} : vector<26x64xbf16> to vector<23x64xbf16>
    %38 = vector.extract_strided_slice %36 {offsets = [1, 0], sizes = [23, 64], strides = [1, 1]} : vector<26x64xbf16> to vector<23x64xbf16>
    %39 = vector.extract_strided_slice %36 {offsets = [2, 0], sizes = [23, 64], strides = [1, 1]} : vector<26x64xbf16> to vector<23x64xbf16>
    %40 = vector.extract_strided_slice %36 {offsets = [3, 0], sizes = [23, 64], strides = [1, 1]} : vector<26x64xbf16> to vector<23x64xbf16>
    %41 = tpu.concatenate %37, %38, %39, %40 in 1 : vector<23x64xbf16>, vector<23x64xbf16>, vector<23x64xbf16>, vector<23x64xbf16> -> vector<23x256xbf16>
    %c0_16 = arith.constant 0 : index
    %c0_17 = arith.constant 0 : index
    %42 = vector.load %arg7[%c0_16, %c0_17] : memref<256x96xbf16, #tpu.memory_space<vmem>>, vector<256x96xbf16>
    %cst_18 = arith.constant dense<0.000000e+00> : vector<23x96xf32>
    %43 = tpu.matmul %41, %42, %cst_18 {dimension_numbers = #tpu.dot_dimension_numbers<[1], [0], [0], [1], [0, 0, 1, 1], [], []>} : vector<23x256xbf16>, vector<256x96xbf16>, vector<23x96xf32> -> vector<23x96xf32>
    %c0_19 = arith.constant 0 : index
    %c0_20 = arith.constant 0 : index
    %44 = vector.load %arg8[%c0_19, %c0_20] : memref<1x96xf32, #tpu.memory_space<vmem>>, vector<1x96xf32>
    %45 = vector.broadcast %44 : vector<1x96xf32> to vector<23x96xf32>
    %46 = arith.addf %43, %45 : vector<23x96xf32>
    %cst_21 = arith.constant 0.000000e+00 : f32
    %47 = vector.broadcast %cst_21 : f32 to vector<23x96xf32>
    %48 = arith.maximumf %46, %47 : vector<23x96xf32>
    %cst_22 = arith.constant dense<0xFF800000> : vector<96xf32>
    %49 = vector.multi_reduction <maximumf>, %48, %cst_22 [0] : vector<23x96xf32> to vector<96xf32>
    %50 = vector.shape_cast %49 : vector<96xf32> to vector<1x96xf32>
    %c0_23 = arith.constant 0 : index
    %c0_24 = arith.constant 0 : index
    %c0_25 = arith.constant 0 : index
    %51 = vector.load %arg9[%c0_23, %c0_24, %c0_25] : memref<1x1x96xf32, #tpu.memory_space<vmem>>, vector<1x1x96xf32>
    %52 = vector.shape_cast %51 : vector<1x1x96xf32> to vector<1x96xf32>
    %53 = vector.shape_cast %50 : vector<1x96xf32> to vector<1x1x96xf32>
    tpu.vector_store %arg9[%c0_23, %c0_24, %c0_25], %53 {strides = array<i32>} : memref<1x1x96xf32, #tpu.memory_space<vmem>>, vector<1x1x96xf32>,
    return
  }
  func.func @transform_0(%arg0: i32) -> (i32, i32, i32) {
    %c0_i32 = arith.constant 0 : i32
    %c0_i32_0 = arith.constant 0 : i32
    %c0_i32_1 = arith.constant 0 : i32
    return %arg0, %c0_i32, %c0_i32_0 : i32, i32, i32
  }
  func.func @transform_1(%arg0: i32) -> (i32, i32) {
    %c0_i32 = arith.constant 0 : i32
    %c0_i32_0 = arith.constant 0 : i32
    %c0_i32_1 = arith.constant 0 : i32
    return %c0_i32, %c0_i32_0 : i32, i32
  }
  func.func @transform_2(%arg0: i32) -> (i32, i32) {
    %c0_i32 = arith.constant 0 : i32
    %c0_i32_0 = arith.constant 0 : i32
    %c0_i32_1 = arith.constant 0 : i32
    return %c0_i32, %c0_i32_0 : i32, i32
  }
  func.func @transform_3(%arg0: i32) -> (i32, i32) {
    %c0_i32 = arith.constant 0 : i32
    %c0_i32_0 = arith.constant 0 : i32
    %c0_i32_1 = arith.constant 0 : i32
    return %c0_i32, %c0_i32_0 : i32, i32
  }
  func.func @transform_4(%arg0: i32) -> (i32, i32) {
    %c0_i32 = arith.constant 0 : i32
    %c0_i32_0 = arith.constant 0 : i32
    %c0_i32_1 = arith.constant 0 : i32
    return %c0_i32, %c0_i32_0 : i32, i32
  }
  func.func @transform_5(%arg0: i32) -> (i32, i32) {
    %c0_i32 = arith.constant 0 : i32
    %c0_i32_0 = arith.constant 0 : i32
    %c0_i32_1 = arith.constant 0 : i32
    return %c0_i32, %c0_i32_0 : i32, i32
  }
  func.func @transform_6(%arg0: i32) -> (i32, i32) {
    %c0_i32 = arith.constant 0 : i32
    %c0_i32_0 = arith.constant 0 : i32
    %c0_i32_1 = arith.constant 0 : i32
    return %c0_i32, %c0_i32_0 : i32, i32
  }
  func.func @transform_7(%arg0: i32) -> (i32, i32) {
    %c0_i32 = arith.constant 0 : i32
    %c0_i32_0 = arith.constant 0 : i32
    %c0_i32_1 = arith.constant 0 : i32
    return %c0_i32, %c0_i32_0 : i32, i32
  }
  func.func @transform_8(%arg0: i32) -> (i32, i32, i32) {
    %c0_i32 = arith.constant 0 : i32
    %c0_i32_0 = arith.constant 0 : i32
    %c0_i32_1 = arith.constant 0 : i32
    return %arg0, %c0_i32, %c0_i32_0 : i32, i32, i32
  }
}

module attributes {stable_mosaic.version = 11 : i64} {
  func.func @conv_branch_kernel(%arg0: i32, %arg1: memref<1x64x1xi32, #tpu.memory_space<vmem>>, %arg2: memref<26x128xbf16, #tpu.memory_space<vmem>>, %arg3: memref<1024x32xbf16, #tpu.memory_space<vmem>>, %arg4: memref<1x32xf32, #tpu.memory_space<vmem>>, %arg5: memref<256x64xbf16, #tpu.memory_space<vmem>>, %arg6: memref<1x64xf32, #tpu.memory_space<vmem>>, %arg7: memref<512x96xbf16, #tpu.memory_space<vmem>>, %arg8: memref<1x96xf32, #tpu.memory_space<vmem>>, %arg9: memref<1x1x96xf32, #tpu.memory_space<vmem>>) attributes {dimension_semantics = [#tpu.dimension_semantics<parallel>], iteration_bounds = array<i64: 2>, scalar_prefetch = 0 : i64, scratch_operands = 0 : i64, tpu.core_type = #tpu.core_type<tc>, window_params = [{transform_indices = @transform_0, window_bounds = array<i64: 1, 64, 1>}, {pipeline_mode = #tpu.pipeline_mode<synchronous>, transform_indices = @transform_1, window_bounds = array<i64: 26, 128>}, {pipeline_mode = #tpu.pipeline_mode<synchronous>, transform_indices = @transform_2, window_bounds = array<i64: 1024, 32>}, {pipeline_mode = #tpu.pipeline_mode<synchronous>, transform_indices = @transform_3, window_bounds = array<i64: 1, 32>}, {pipeline_mode = #tpu.pipeline_mode<synchronous>, transform_indices = @transform_4, window_bounds = array<i64: 256, 64>}, {pipeline_mode = #tpu.pipeline_mode<synchronous>, transform_indices = @transform_5, window_bounds = array<i64: 1, 64>}, {pipeline_mode = #tpu.pipeline_mode<synchronous>, transform_indices = @transform_6, window_bounds = array<i64: 512, 96>}, {pipeline_mode = #tpu.pipeline_mode<synchronous>, transform_indices = @transform_7, window_bounds = array<i64: 1, 96>}, {transform_indices = @transform_8, window_bounds = array<i64: 1, 1, 96>}]} {
    %c0 = arith.constant 0 : index
    %c0_0 = arith.constant 0 : index
    %c0_1 = arith.constant 0 : index
    %0 = vector.load %arg1[%c0, %c0_0, %c0_1] : memref<1x64x1xi32, #tpu.memory_space<vmem>>, vector<1x64x1xi32>
    %1 = vector.shape_cast %0 : vector<1x64x1xi32> to vector<64x1xi32>
    %2 = tpu.iota {dimensions = array<i32: 1>} : vector<64x26xi32>
    %3 = vector.broadcast %1 : vector<64x1xi32> to vector<64x26xi32>
    %4 = arith.cmpi eq, %3, %2 : vector<64x26xi32>
    %5 = arith.extui %4 : vector<64x26xi1> to vector<64x26xi32>
    %6 = arith.sitofp %5 : vector<64x26xi32> to vector<64x26xf32>
    %7 = arith.truncf %6 : vector<64x26xf32> to vector<64x26xbf16>
    %c0_2 = arith.constant 0 : index
    %c0_3 = arith.constant 0 : index
    %8 = vector.load %arg2[%c0_2, %c0_3] : memref<26x128xbf16, #tpu.memory_space<vmem>>, vector<26x128xbf16>
    %cst = arith.constant dense<0.000000e+00> : vector<64x128xf32>
    %9 = tpu.matmul %7, %8, %cst {dimension_numbers = #tpu.dot_dimension_numbers<[1], [0], [0], [1], [0, 0, 1, 1], [], []>} : vector<64x26xbf16>, vector<26x128xbf16>, vector<64x128xf32> -> vector<64x128xf32>
    %10 = arith.truncf %9 : vector<64x128xf32> to vector<64x128xbf16>
    %11 = vector.extract_strided_slice %10 {offsets = [0, 0], sizes = [57, 128], strides = [1, 1]} : vector<64x128xbf16> to vector<57x128xbf16>
    %12 = vector.extract_strided_slice %10 {offsets = [1, 0], sizes = [57, 128], strides = [1, 1]} : vector<64x128xbf16> to vector<57x128xbf16>
    %13 = vector.extract_strided_slice %10 {offsets = [2, 0], sizes = [57, 128], strides = [1, 1]} : vector<64x128xbf16> to vector<57x128xbf16>
    %14 = vector.extract_strided_slice %10 {offsets = [3, 0], sizes = [57, 128], strides = [1, 1]} : vector<64x128xbf16> to vector<57x128xbf16>
    %15 = vector.extract_strided_slice %10 {offsets = [4, 0], sizes = [57, 128], strides = [1, 1]} : vector<64x128xbf16> to vector<57x128xbf16>
    %16 = vector.extract_strided_slice %10 {offsets = [5, 0], sizes = [57, 128], strides = [1, 1]} : vector<64x128xbf16> to vector<57x128xbf16>
    %17 = vector.extract_strided_slice %10 {offsets = [6, 0], sizes = [57, 128], strides = [1, 1]} : vector<64x128xbf16> to vector<57x128xbf16>
    %18 = vector.extract_strided_slice %10 {offsets = [7, 0], sizes = [57, 128], strides = [1, 1]} : vector<64x128xbf16> to vector<57x128xbf16>
    %19 = tpu.concatenate %11, %12, %13, %14, %15, %16, %17, %18 in 1 : vector<57x128xbf16>, vector<57x128xbf16>, vector<57x128xbf16>, vector<57x128xbf16>, vector<57x128xbf16>, vector<57x128xbf16>, vector<57x128xbf16>, vector<57x128xbf16> -> vector<57x1024xbf16>
    %c0_4 = arith.constant 0 : index
    %c0_5 = arith.constant 0 : index
    %20 = vector.load %arg3[%c0_4, %c0_5] : memref<1024x32xbf16, #tpu.memory_space<vmem>>, vector<1024x32xbf16>
    %cst_6 = arith.constant dense<0.000000e+00> : vector<57x32xf32>
    %21 = tpu.matmul %19, %20, %cst_6 {dimension_numbers = #tpu.dot_dimension_numbers<[1], [0], [0], [1], [0, 0, 1, 1], [], []>} : vector<57x1024xbf16>, vector<1024x32xbf16>, vector<57x32xf32> -> vector<57x32xf32>
    %c0_7 = arith.constant 0 : index
    %c0_8 = arith.constant 0 : index
    %22 = vector.load %arg4[%c0_7, %c0_8] : memref<1x32xf32, #tpu.memory_space<vmem>>, vector<1x32xf32>
    %23 = vector.broadcast %22 : vector<1x32xf32> to vector<57x32xf32>
    %24 = arith.addf %21, %23 : vector<57x32xf32>
    %cst_9 = arith.constant 0.000000e+00 : f32
    %25 = vector.broadcast %cst_9 : f32 to vector<57x32xf32>
    %26 = arith.maximumf %24, %25 : vector<57x32xf32>
    %27 = arith.truncf %26 : vector<57x32xf32> to vector<57x32xbf16>
    %28 = vector.extract_strided_slice %27 {offsets = [0, 0], sizes = [50, 32], strides = [1, 1]} : vector<57x32xbf16> to vector<50x32xbf16>
    %29 = vector.extract_strided_slice %27 {offsets = [1, 0], sizes = [50, 32], strides = [1, 1]} : vector<57x32xbf16> to vector<50x32xbf16>
    %30 = vector.extract_strided_slice %27 {offsets = [2, 0], sizes = [50, 32], strides = [1, 1]} : vector<57x32xbf16> to vector<50x32xbf16>
    %31 = vector.extract_strided_slice %27 {offsets = [3, 0], sizes = [50, 32], strides = [1, 1]} : vector<57x32xbf16> to vector<50x32xbf16>
    %32 = vector.extract_strided_slice %27 {offsets = [4, 0], sizes = [50, 32], strides = [1, 1]} : vector<57x32xbf16> to vector<50x32xbf16>
    %33 = vector.extract_strided_slice %27 {offsets = [5, 0], sizes = [50, 32], strides = [1, 1]} : vector<57x32xbf16> to vector<50x32xbf16>
    %34 = vector.extract_strided_slice %27 {offsets = [6, 0], sizes = [50, 32], strides = [1, 1]} : vector<57x32xbf16> to vector<50x32xbf16>
    %35 = vector.extract_strided_slice %27 {offsets = [7, 0], sizes = [50, 32], strides = [1, 1]} : vector<57x32xbf16> to vector<50x32xbf16>
    %36 = tpu.concatenate %28, %29, %30, %31, %32, %33, %34, %35 in 1 : vector<50x32xbf16>, vector<50x32xbf16>, vector<50x32xbf16>, vector<50x32xbf16>, vector<50x32xbf16>, vector<50x32xbf16>, vector<50x32xbf16>, vector<50x32xbf16> -> vector<50x256xbf16>
    %c0_10 = arith.constant 0 : index
    %c0_11 = arith.constant 0 : index
    %37 = vector.load %arg5[%c0_10, %c0_11] : memref<256x64xbf16, #tpu.memory_space<vmem>>, vector<256x64xbf16>
    %cst_12 = arith.constant dense<0.000000e+00> : vector<50x64xf32>
    %38 = tpu.matmul %36, %37, %cst_12 {dimension_numbers = #tpu.dot_dimension_numbers<[1], [0], [0], [1], [0, 0, 1, 1], [], []>} : vector<50x256xbf16>, vector<256x64xbf16>, vector<50x64xf32> -> vector<50x64xf32>
    %c0_13 = arith.constant 0 : index
    %c0_14 = arith.constant 0 : index
    %39 = vector.load %arg6[%c0_13, %c0_14] : memref<1x64xf32, #tpu.memory_space<vmem>>, vector<1x64xf32>
    %40 = vector.broadcast %39 : vector<1x64xf32> to vector<50x64xf32>
    %41 = arith.addf %38, %40 : vector<50x64xf32>
    %cst_15 = arith.constant 0.000000e+00 : f32
    %42 = vector.broadcast %cst_15 : f32 to vector<50x64xf32>
    %43 = arith.maximumf %41, %42 : vector<50x64xf32>
    %44 = arith.truncf %43 : vector<50x64xf32> to vector<50x64xbf16>
    %45 = vector.extract_strided_slice %44 {offsets = [0, 0], sizes = [43, 64], strides = [1, 1]} : vector<50x64xbf16> to vector<43x64xbf16>
    %46 = vector.extract_strided_slice %44 {offsets = [1, 0], sizes = [43, 64], strides = [1, 1]} : vector<50x64xbf16> to vector<43x64xbf16>
    %47 = vector.extract_strided_slice %44 {offsets = [2, 0], sizes = [43, 64], strides = [1, 1]} : vector<50x64xbf16> to vector<43x64xbf16>
    %48 = vector.extract_strided_slice %44 {offsets = [3, 0], sizes = [43, 64], strides = [1, 1]} : vector<50x64xbf16> to vector<43x64xbf16>
    %49 = vector.extract_strided_slice %44 {offsets = [4, 0], sizes = [43, 64], strides = [1, 1]} : vector<50x64xbf16> to vector<43x64xbf16>
    %50 = vector.extract_strided_slice %44 {offsets = [5, 0], sizes = [43, 64], strides = [1, 1]} : vector<50x64xbf16> to vector<43x64xbf16>
    %51 = vector.extract_strided_slice %44 {offsets = [6, 0], sizes = [43, 64], strides = [1, 1]} : vector<50x64xbf16> to vector<43x64xbf16>
    %52 = vector.extract_strided_slice %44 {offsets = [7, 0], sizes = [43, 64], strides = [1, 1]} : vector<50x64xbf16> to vector<43x64xbf16>
    %53 = tpu.concatenate %45, %46, %47, %48, %49, %50, %51, %52 in 1 : vector<43x64xbf16>, vector<43x64xbf16>, vector<43x64xbf16>, vector<43x64xbf16>, vector<43x64xbf16>, vector<43x64xbf16>, vector<43x64xbf16>, vector<43x64xbf16> -> vector<43x512xbf16>
    %c0_16 = arith.constant 0 : index
    %c0_17 = arith.constant 0 : index
    %54 = vector.load %arg7[%c0_16, %c0_17] : memref<512x96xbf16, #tpu.memory_space<vmem>>, vector<512x96xbf16>
    %cst_18 = arith.constant dense<0.000000e+00> : vector<43x96xf32>
    %55 = tpu.matmul %53, %54, %cst_18 {dimension_numbers = #tpu.dot_dimension_numbers<[1], [0], [0], [1], [0, 0, 1, 1], [], []>} : vector<43x512xbf16>, vector<512x96xbf16>, vector<43x96xf32> -> vector<43x96xf32>
    %c0_19 = arith.constant 0 : index
    %c0_20 = arith.constant 0 : index
    %56 = vector.load %arg8[%c0_19, %c0_20] : memref<1x96xf32, #tpu.memory_space<vmem>>, vector<1x96xf32>
    %57 = vector.broadcast %56 : vector<1x96xf32> to vector<43x96xf32>
    %58 = arith.addf %55, %57 : vector<43x96xf32>
    %cst_21 = arith.constant 0.000000e+00 : f32
    %59 = vector.broadcast %cst_21 : f32 to vector<43x96xf32>
    %60 = arith.maximumf %58, %59 : vector<43x96xf32>
    %cst_22 = arith.constant dense<0xFF800000> : vector<96xf32>
    %61 = vector.multi_reduction <maximumf>, %60, %cst_22 [0] : vector<43x96xf32> to vector<96xf32>
    %62 = vector.shape_cast %61 : vector<96xf32> to vector<1x96xf32>
    %c0_23 = arith.constant 0 : index
    %c0_24 = arith.constant 0 : index
    %c0_25 = arith.constant 0 : index
    %63 = vector.load %arg9[%c0_23, %c0_24, %c0_25] : memref<1x1x96xf32, #tpu.memory_space<vmem>>, vector<1x1x96xf32>
    %64 = vector.shape_cast %63 : vector<1x1x96xf32> to vector<1x96xf32>
    %65 = vector.shape_cast %62 : vector<1x96xf32> to vector<1x1x96xf32>
    tpu.vector_store %arg9[%c0_23, %c0_24, %c0_25], %65 {strides = array<i32>} : memref<1x1x96xf32, #tpu.memory_space<vmem>>, vector<1x1x96xf32>,
    return
  }
  func.func @transform_0(%arg0: i32) -> (i32, i32, i32) {
    %c0_i32 = arith.constant 0 : i32
    %c0_i32_0 = arith.constant 0 : i32
    %c0_i32_1 = arith.constant 0 : i32
    return %arg0, %c0_i32, %c0_i32_0 : i32, i32, i32
  }
  func.func @transform_1(%arg0: i32) -> (i32, i32) {
    %c0_i32 = arith.constant 0 : i32
    %c0_i32_0 = arith.constant 0 : i32
    %c0_i32_1 = arith.constant 0 : i32
    return %c0_i32, %c0_i32_0 : i32, i32
  }
  func.func @transform_2(%arg0: i32) -> (i32, i32) {
    %c0_i32 = arith.constant 0 : i32
    %c0_i32_0 = arith.constant 0 : i32
    %c0_i32_1 = arith.constant 0 : i32
    return %c0_i32, %c0_i32_0 : i32, i32
  }
  func.func @transform_3(%arg0: i32) -> (i32, i32) {
    %c0_i32 = arith.constant 0 : i32
    %c0_i32_0 = arith.constant 0 : i32
    %c0_i32_1 = arith.constant 0 : i32
    return %c0_i32, %c0_i32_0 : i32, i32
  }
  func.func @transform_4(%arg0: i32) -> (i32, i32) {
    %c0_i32 = arith.constant 0 : i32
    %c0_i32_0 = arith.constant 0 : i32
    %c0_i32_1 = arith.constant 0 : i32
    return %c0_i32, %c0_i32_0 : i32, i32
  }
  func.func @transform_5(%arg0: i32) -> (i32, i32) {
    %c0_i32 = arith.constant 0 : i32
    %c0_i32_0 = arith.constant 0 : i32
    %c0_i32_1 = arith.constant 0 : i32
    return %c0_i32, %c0_i32_0 : i32, i32
  }
  func.func @transform_6(%arg0: i32) -> (i32, i32) {
    %c0_i32 = arith.constant 0 : i32
    %c0_i32_0 = arith.constant 0 : i32
    %c0_i32_1 = arith.constant 0 : i32
    return %c0_i32, %c0_i32_0 : i32, i32
  }
  func.func @transform_7(%arg0: i32) -> (i32, i32) {
    %c0_i32 = arith.constant 0 : i32
    %c0_i32_0 = arith.constant 0 : i32
    %c0_i32_1 = arith.constant 0 : i32
    return %c0_i32, %c0_i32_0 : i32, i32
  }
  func.func @transform_8(%arg0: i32) -> (i32, i32, i32) {
    %c0_i32 = arith.constant 0 : i32
    %c0_i32_0 = arith.constant 0 : i32
    %c0_i32_1 = arith.constant 0 : i32
    return %arg0, %c0_i32, %c0_i32_0 : i32, i32, i32
  }
}

module attributes {stable_mosaic.version = 11 : i64} {
  func.func @fc_stack_kernel(%arg0: i32, %arg1: memref<2x96xf32, #tpu.memory_space<vmem>>, %arg2: memref<2x96xf32, #tpu.memory_space<vmem>>, %arg3: memref<2x1024xf32, #tpu.memory_space<vmem>>, %arg4: memref<2x1024xf32, #tpu.memory_space<vmem>>, %arg5: memref<96x1024xbf16, #tpu.memory_space<vmem>>, %arg6: memref<96x1024xbf16, #tpu.memory_space<vmem>>, %arg7: memref<1x1024xf32, #tpu.memory_space<vmem>>, %arg8: memref<1024x1024xbf16, #tpu.memory_space<vmem>>, %arg9: memref<1x1024xf32, #tpu.memory_space<vmem>>, %arg10: memref<1024x512xbf16, #tpu.memory_space<vmem>>, %arg11: memref<1x512xf32, #tpu.memory_space<vmem>>, %arg12: memref<512x1xbf16, #tpu.memory_space<vmem>>, %arg13: memref<1x1xf32, #tpu.memory_space<vmem>>, %arg14: memref<2x1xf32, #tpu.memory_space<vmem>>) attributes {dimension_semantics = [#tpu.dimension_semantics<arbitrary>], iteration_bounds = array<i64: 1>, scalar_prefetch = 0 : i64, scratch_operands = 0 : i64, tpu.core_type = #tpu.core_type<tc>, window_params = [{pipeline_mode = #tpu.pipeline_mode<synchronous>, transform_indices = @transform_0, window_bounds = array<i64: 2, 96>}, {pipeline_mode = #tpu.pipeline_mode<synchronous>, transform_indices = @transform_1, window_bounds = array<i64: 2, 96>}, {pipeline_mode = #tpu.pipeline_mode<synchronous>, transform_indices = @transform_2, window_bounds = array<i64: 2, 1024>}, {pipeline_mode = #tpu.pipeline_mode<synchronous>, transform_indices = @transform_3, window_bounds = array<i64: 2, 1024>}, {pipeline_mode = #tpu.pipeline_mode<synchronous>, transform_indices = @transform_4, window_bounds = array<i64: 96, 1024>}, {pipeline_mode = #tpu.pipeline_mode<synchronous>, transform_indices = @transform_5, window_bounds = array<i64: 96, 1024>}, {pipeline_mode = #tpu.pipeline_mode<synchronous>, transform_indices = @transform_6, window_bounds = array<i64: 1, 1024>}, {pipeline_mode = #tpu.pipeline_mode<synchronous>, transform_indices = @transform_7, window_bounds = array<i64: 1024, 1024>}, {pipeline_mode = #tpu.pipeline_mode<synchronous>, transform_indices = @transform_8, window_bounds = array<i64: 1, 1024>}, {pipeline_mode = #tpu.pipeline_mode<synchronous>, transform_indices = @transform_9, window_bounds = array<i64: 1024, 512>}, {pipeline_mode = #tpu.pipeline_mode<synchronous>, transform_indices = @transform_10, window_bounds = array<i64: 1, 512>}, {pipeline_mode = #tpu.pipeline_mode<synchronous>, transform_indices = @transform_11, window_bounds = array<i64: 512, 1>}, {pipeline_mode = #tpu.pipeline_mode<synchronous>, transform_indices = @transform_12, window_bounds = array<i64: 1, 1>}, {pipeline_mode = #tpu.pipeline_mode<synchronous>, transform_indices = @transform_13, window_bounds = array<i64: 2, 1>}]} {
    %c0 = arith.constant 0 : index
    %c0_0 = arith.constant 0 : index
    %0 = vector.load %arg1[%c0, %c0_0] : memref<2x96xf32, #tpu.memory_space<vmem>>, vector<2x96xf32>
    %1 = arith.truncf %0 : vector<2x96xf32> to vector<2x96xbf16>
    %c0_1 = arith.constant 0 : index
    %c0_2 = arith.constant 0 : index
    %2 = vector.load %arg5[%c0_1, %c0_2] : memref<96x1024xbf16, #tpu.memory_space<vmem>>, vector<96x1024xbf16>
    %cst = arith.constant dense<0.000000e+00> : vector<2x1024xf32>
    %3 = tpu.matmul %1, %2, %cst {dimension_numbers = #tpu.dot_dimension_numbers<[1], [0], [0], [1], [0, 0, 1, 1], [], []>} : vector<2x96xbf16>, vector<96x1024xbf16>, vector<2x1024xf32> -> vector<2x1024xf32>
    %c0_3 = arith.constant 0 : index
    %c0_4 = arith.constant 0 : index
    %4 = vector.load %arg2[%c0_3, %c0_4] : memref<2x96xf32, #tpu.memory_space<vmem>>, vector<2x96xf32>
    %5 = arith.truncf %4 : vector<2x96xf32> to vector<2x96xbf16>
    %c0_5 = arith.constant 0 : index
    %c0_6 = arith.constant 0 : index
    %6 = vector.load %arg6[%c0_5, %c0_6] : memref<96x1024xbf16, #tpu.memory_space<vmem>>, vector<96x1024xbf16>
    %cst_7 = arith.constant dense<0.000000e+00> : vector<2x1024xf32>
    %7 = tpu.matmul %5, %6, %cst_7 {dimension_numbers = #tpu.dot_dimension_numbers<[1], [0], [0], [1], [0, 0, 1, 1], [], []>} : vector<2x96xbf16>, vector<96x1024xbf16>, vector<2x1024xf32> -> vector<2x1024xf32>
    %8 = arith.addf %3, %7 : vector<2x1024xf32>
    %c0_8 = arith.constant 0 : index
    %c0_9 = arith.constant 0 : index
    %9 = vector.load %arg7[%c0_8, %c0_9] : memref<1x1024xf32, #tpu.memory_space<vmem>>, vector<1x1024xf32>
    %10 = vector.broadcast %9 : vector<1x1024xf32> to vector<2x1024xf32>
    %11 = arith.addf %8, %10 : vector<2x1024xf32>
    %cst_10 = arith.constant 0.000000e+00 : f32
    %12 = vector.broadcast %cst_10 : f32 to vector<2x1024xf32>
    %13 = arith.maximumf %11, %12 : vector<2x1024xf32>
    %c0_11 = arith.constant 0 : index
    %c0_12 = arith.constant 0 : index
    %14 = vector.load %arg3[%c0_11, %c0_12] : memref<2x1024xf32, #tpu.memory_space<vmem>>, vector<2x1024xf32>
    %cst_13 = arith.constant 1.000000e-01 : f32
    %15 = vector.broadcast %cst_13 : f32 to vector<2x1024xf32>
    %16 = arith.cmpf oge, %14, %15 : vector<2x1024xf32>
    %cst_14 = arith.constant 1.11111116 : f32
    %17 = vector.broadcast %cst_14 : f32 to vector<2x1024xf32>
    %18 = arith.mulf %13, %17 : vector<2x1024xf32>
    %cst_15 = arith.constant 0.000000e+00 : f32
    %19 = vector.broadcast %cst_15 : f32 to vector<2x1024xf32>
    %20 = arith.select %16, %18, %19 : vector<2x1024xi1>, vector<2x1024xf32>
    %21 = arith.truncf %20 : vector<2x1024xf32> to vector<2x1024xbf16>
    %c0_16 = arith.constant 0 : index
    %c0_17 = arith.constant 0 : index
    %22 = vector.load %arg8[%c0_16, %c0_17] : memref<1024x1024xbf16, #tpu.memory_space<vmem>>, vector<1024x1024xbf16>
    %cst_18 = arith.constant dense<0.000000e+00> : vector<2x1024xf32>
    %23 = tpu.matmul %21, %22, %cst_18 {dimension_numbers = #tpu.dot_dimension_numbers<[1], [0], [0], [1], [0, 0, 1, 1], [], []>} : vector<2x1024xbf16>, vector<1024x1024xbf16>, vector<2x1024xf32> -> vector<2x1024xf32>
    %c0_19 = arith.constant 0 : index
    %c0_20 = arith.constant 0 : index
    %24 = vector.load %arg9[%c0_19, %c0_20] : memref<1x1024xf32, #tpu.memory_space<vmem>>, vector<1x1024xf32>
    %25 = vector.broadcast %24 : vector<1x1024xf32> to vector<2x1024xf32>
    %26 = arith.addf %23, %25 : vector<2x1024xf32>
    %cst_21 = arith.constant 0.000000e+00 : f32
    %27 = vector.broadcast %cst_21 : f32 to vector<2x1024xf32>
    %28 = arith.maximumf %26, %27 : vector<2x1024xf32>
    %c0_22 = arith.constant 0 : index
    %c0_23 = arith.constant 0 : index
    %29 = vector.load %arg4[%c0_22, %c0_23] : memref<2x1024xf32, #tpu.memory_space<vmem>>, vector<2x1024xf32>
    %cst_24 = arith.constant 1.000000e-01 : f32
    %30 = vector.broadcast %cst_24 : f32 to vector<2x1024xf32>
    %31 = arith.cmpf oge, %29, %30 : vector<2x1024xf32>
    %cst_25 = arith.constant 1.11111116 : f32
    %32 = vector.broadcast %cst_25 : f32 to vector<2x1024xf32>
    %33 = arith.mulf %28, %32 : vector<2x1024xf32>
    %cst_26 = arith.constant 0.000000e+00 : f32
    %34 = vector.broadcast %cst_26 : f32 to vector<2x1024xf32>
    %35 = arith.select %31, %33, %34 : vector<2x1024xi1>, vector<2x1024xf32>
    %36 = arith.truncf %35 : vector<2x1024xf32> to vector<2x1024xbf16>
    %c0_27 = arith.constant 0 : index
    %c0_28 = arith.constant 0 : index
    %37 = vector.load %arg10[%c0_27, %c0_28] : memref<1024x512xbf16, #tpu.memory_space<vmem>>, vector<1024x512xbf16>
    %cst_29 = arith.constant dense<0.000000e+00> : vector<2x512xf32>
    %38 = tpu.matmul %36, %37, %cst_29 {dimension_numbers = #tpu.dot_dimension_numbers<[1], [0], [0], [1], [0, 0, 1, 1], [], []>} : vector<2x1024xbf16>, vector<1024x512xbf16>, vector<2x512xf32> -> vector<2x512xf32>
    %c0_30 = arith.constant 0 : index
    %c0_31 = arith.constant 0 : index
    %39 = vector.load %arg11[%c0_30, %c0_31] : memref<1x512xf32, #tpu.memory_space<vmem>>, vector<1x512xf32>
    %40 = vector.broadcast %39 : vector<1x512xf32> to vector<2x512xf32>
    %41 = arith.addf %38, %40 : vector<2x512xf32>
    %cst_32 = arith.constant 0.000000e+00 : f32
    %42 = vector.broadcast %cst_32 : f32 to vector<2x512xf32>
    %43 = arith.maximumf %41, %42 : vector<2x512xf32>
    %44 = arith.truncf %43 : vector<2x512xf32> to vector<2x512xbf16>
    %c0_33 = arith.constant 0 : index
    %c0_34 = arith.constant 0 : index
    %45 = vector.load %arg12[%c0_33, %c0_34] : memref<512x1xbf16, #tpu.memory_space<vmem>>, vector<512x1xbf16>
    %cst_35 = arith.constant dense<0.000000e+00> : vector<2x1xf32>
    %46 = tpu.matmul %44, %45, %cst_35 {dimension_numbers = #tpu.dot_dimension_numbers<[1], [0], [0], [1], [0, 0, 1, 1], [], []>} : vector<2x512xbf16>, vector<512x1xbf16>, vector<2x1xf32> -> vector<2x1xf32>
    %c0_36 = arith.constant 0 : index
    %c0_37 = arith.constant 0 : index
    %47 = vector.load %arg13[%c0_36, %c0_37] : memref<1x1xf32, #tpu.memory_space<vmem>>, vector<1x1xf32>
    %48 = vector.broadcast %47 : vector<1x1xf32> to vector<2x1xf32>
    %49 = arith.addf %46, %48 : vector<2x1xf32>
    %c0_38 = arith.constant 0 : index
    %c0_39 = arith.constant 0 : index
    %50 = vector.load %arg14[%c0_38, %c0_39] : memref<2x1xf32, #tpu.memory_space<vmem>>, vector<2x1xf32>
    tpu.vector_store %arg14[%c0_38, %c0_39], %49 {strides = array<i32>} : memref<2x1xf32, #tpu.memory_space<vmem>>, vector<2x1xf32>,
    return
  }
  func.func @transform_0(%arg0: i32) -> (i32, i32) {
    %c0_i32 = arith.constant 0 : i32
    %c0_i32_0 = arith.constant 0 : i32
    %c0_i32_1 = arith.constant 0 : i32
    return %c0_i32, %c0_i32_0 : i32, i32
  }
  func.func @transform_1(%arg0: i32) -> (i32, i32) {
    %c0_i32 = arith.constant 0 : i32
    %c0_i32_0 = arith.constant 0 : i32
    %c0_i32_1 = arith.constant 0 : i32
    return %c0_i32, %c0_i32_0 : i32, i32
  }
  func.func @transform_2(%arg0: i32) -> (i32, i32) {
    %c0_i32 = arith.constant 0 : i32
    %c0_i32_0 = arith.constant 0 : i32
    %c0_i32_1 = arith.constant 0 : i32
    return %c0_i32, %c0_i32_0 : i32, i32
  }
  func.func @transform_3(%arg0: i32) -> (i32, i32) {
    %c0_i32 = arith.constant 0 : i32
    %c0_i32_0 = arith.constant 0 : i32
    %c0_i32_1 = arith.constant 0 : i32
    return %c0_i32, %c0_i32_0 : i32, i32
  }
  func.func @transform_4(%arg0: i32) -> (i32, i32) {
    %c0_i32 = arith.constant 0 : i32
    %c0_i32_0 = arith.constant 0 : i32
    %c0_i32_1 = arith.constant 0 : i32
    return %c0_i32, %c0_i32_0 : i32, i32
  }
  func.func @transform_5(%arg0: i32) -> (i32, i32) {
    %c0_i32 = arith.constant 0 : i32
    %c0_i32_0 = arith.constant 0 : i32
    %c0_i32_1 = arith.constant 0 : i32
    return %c0_i32, %c0_i32_0 : i32, i32
  }
  func.func @transform_6(%arg0: i32) -> (i32, i32) {
    %c0_i32 = arith.constant 0 : i32
    %c0_i32_0 = arith.constant 0 : i32
    %c0_i32_1 = arith.constant 0 : i32
    return %c0_i32, %c0_i32_0 : i32, i32
  }
  func.func @transform_7(%arg0: i32) -> (i32, i32) {
    %c0_i32 = arith.constant 0 : i32
    %c0_i32_0 = arith.constant 0 : i32
    %c0_i32_1 = arith.constant 0 : i32
    return %c0_i32, %c0_i32_0 : i32, i32
  }
  func.func @transform_8(%arg0: i32) -> (i32, i32) {
    %c0_i32 = arith.constant 0 : i32
    %c0_i32_0 = arith.constant 0 : i32
    %c0_i32_1 = arith.constant 0 : i32
    return %c0_i32, %c0_i32_0 : i32, i32
  }
  func.func @transform_9(%arg0: i32) -> (i32, i32) {
    %c0_i32 = arith.constant 0 : i32
    %c0_i32_0 = arith.constant 0 : i32
    %c0_i32_1 = arith.constant 0 : i32
    return %c0_i32, %c0_i32_0 : i32, i32
  }
  func.func @transform_10(%arg0: i32) -> (i32, i32) {
    %c0_i32 = arith.constant 0 : i32
    %c0_i32_0 = arith.constant 0 : i32
    %c0_i32_1 = arith.constant 0 : i32
    return %c0_i32, %c0_i32_0 : i32, i32
  }
  func.func @transform_11(%arg0: i32) -> (i32, i32) {
    %c0_i32 = arith.constant 0 : i32
    %c0_i32_0 = arith.constant 0 : i32
    %c0_i32_1 = arith.constant 0 : i32
    return %c0_i32, %c0_i32_0 : i32, i32
  }
  func.func @transform_12(%arg0: i32) -> (i32, i32) {
    %c0_i32 = arith.constant 0 : i32
    %c0_i32_0 = arith.constant 0 : i32
    %c0_i32_1 = arith.constant 0 : i32
    return %c0_i32, %c0_i32_0 : i32, i32
  }
  func.func @transform_13(%arg0: i32) -> (i32, i32) {
    %c0_i32 = arith.constant 0 : i32
    %c0_i32_0 = arith.constant 0 : i32
    %c0_i32_1 = arith.constant 0 : i32
    return %c0_i32, %c0_i32_0 : i32, i32
  }
}

</mosaic_0001>

<llo_original>
// kernel: net_forward.3
$region0: #{net_forward.3}
  #allocation0 [shape = 'u32[]', space=smem, size = 0x4, offset = 0x4, fixed_abs, tag = 'smem constant byte address 0x4 - core index']
  #allocation1 [shape = 'u32[144,128]{1,0:T(1,128)}', space=vmem, size = 0x12000, scoped, tag = 'internal scratch']
  %s0 = inlined_call_operand.vmem [shape: s32[2,32,1], index: 0, kind: input, shape index: {}]
  %s1 = inlined_call_operand.hbm [shape: bf16[65,128], index: 1, kind: input, shape index: {}]
  %s2 = inlined_call_operand.vmem [shape: bf16[512,32], index: 2, kind: input, shape index: {}]
  %s3 = inlined_call_operand.hbm [shape: f32[1,32], index: 3, kind: input, shape index: {}]
  %s4 = inlined_call_operand.vmem [shape: bf16[128,64], index: 4, kind: input, shape index: {}]
  %s5 = inlined_call_operand.hbm [shape: f32[1,64], index: 5, kind: input, shape index: {}]
  %s6 = inlined_call_operand.vmem [shape: bf16[256,96], index: 6, kind: input, shape index: {}]
  %s7 = inlined_call_operand.hbm [shape: f32[1,96], index: 7, kind: input, shape index: {}]
  %s8 = inlined_call_operand.vmem [shape: f32[2,1,96], index: 8, kind: output, shape index: {}]
  %s9 = sld [smem:[#allocation0]]
  $region81: #{net_forward.3} parent=0
    _
  %s11 = ssub.s32 1, %s9
  %s12 = scalar_select 0, %s11, %s9
  $region1: #{net_forward.3} parent=0
    #allocation2 [shape = 'u8[18432]{0}', space=vmem, size = 0x4800, scoped, tag = 'input window, operand 1, single buffered']
    #allocation3 [shape = 's32[2]{0}', space=sflag, size = 0x8, scoped, tag = 'scoped memory for net_forward.3']
    #allocation4 [shape = 'u8[512]{0}', space=vmem, size = 0x400, scoped, tag = 'input window, operand 3, single buffered']
    #allocation5 [shape = 's32[1]{0}', space=sflag, size = 0x4, scoped, tag = 'scoped memory for net_forward.3']
    #allocation6 [shape = 'u8[512]{0}', space=vmem, size = 0x400, scoped, tag = 'input window, operand 5, single buffered']
    #allocation7 [shape = 'u8[512]{0}', space=vmem, size = 0x400, scoped, tag = 'input window, operand 7, single buffered']
    #allocation8 [shape = 's32[1]{0}', space=sflag, size = 0x4, scoped, tag = 'scoped memory for net_forward.3']
    %13 = vsyncpa [#allocation3], 0
    %14 = vsyncpa [#allocation5], 0
    %15 = vsyncpa [#allocation8], 0
    loop: start=0, step=1, limit=4
    $region2: #{net_forward.3} parent=1 // loop_pre_header
      _
    $region3: #{net_forward.3} parent=1 // loop_header
      %s17 = sphi 0, %s21
      %p18 = scmp.ge.s32.totalorder %s17, 4
      %s27 = sphi 0, %s29
      %s30 = sphi 0, %s27
      %s31 = sphi 0, %s30
      %s47 = sphi 0, %s31
      %s51 = sphi 0, %s51
      %s53 = sphi 0, %s51
      %s54 = sphi 0, %s53
      %s68 = sphi 0, %s54
      %s72 = sphi 0, %s72
      %s74 = sphi 0, %s72
      %s75 = sphi 0, %s74
      %s89 = sphi 0, %s75
      %s93 = sphi 0, %s93
      %s95 = sphi 0, %s93
      %s96 = sphi 0, %s95
      %s110 = sphi 0, %s96
      %s114 = sphi 0, %s114
      %s116 = sphi 0, %s114
      %s117 = sphi 0, %s116
      %s131 = sphi 0, %s117
      %s135 = sphi 0, %s135
      %s137 = sphi 0, %s135
      %s138 = sphi 0, %s137
      %s152 = sphi 0, %s138
      %s156 = sphi 0, %s156
      %s158 = sphi 0, %s156
      %s159 = sphi 0, %s158
      %s173 = sphi 0, %s159
      %s177 = sphi 0, %s177
      %s179 = sphi 0, %s177
      %s180 = sphi 0, %s179
      %s194 = sphi 0, %s180
      %s200 = sphi 0, %s202
      %s203 = sphi 0, %s200
      %s204 = sphi 0, %s203
      %s220 = sphi 0, %s204
    $region4: #{net_forward.3} parent=1 // loop_header_branch
      %20 = sbr.rel (%p18) target = $region8
    $region5: #{net_forward.3} parent=1 // loop_body
      %s22 = ssub.s32 %s17, 1
      %s23 = ssub.s32 %s17, 2
      %s24 = sadd.s32 %s17, 1
      %s25 = ssub.s32 %s17, %s24
      %p26 = scmp.eq.s32.totalorder %s25, 0
      %s28 = sadd.s32 %s27, 1
      %s29 = scalar_select %p26, %s27, %s28
      %p32 = pneg %p26
      %p33 = scmp.eq.s32.totalorder %s17, 1
      %p34 = por %p32, %p33
      %p35 = scmp.ne.s32.totalorder %s27, %s30
      %p36 = scmp.eq.s32.totalorder %s17, 0
      %p37 = por %p35, %p36
      %p38 = scmp.ne.s32.totalorder %s27, %s30
      %p39 = scmp.eq.s32.totalorder %s22, 1
      %p40 = por %p38, %p39
      %p41 = scmp.ne.s32.totalorder %s30, %s31
      %p42 = scmp.eq.s32.totalorder %s22, 0
      %p43 = por %p41, %p42
      %p44 = scmp.ne.s32.totalorder %s30, %s31
      %p45 = scmp.eq.s32.totalorder %s23, 1
      %p46 = por %p44, %p45
      %p48 = scmp.ne.s32.totalorder %s31, %s47
      %p49 = scmp.eq.s32.totalorder %s23, 0
      %p50 = por %p48, %p49
      %s52 = sadd.s32 %s51, 1
      %p55 = scmp.eq.s32.totalorder %s17, 1
      %p56 = scmp.ne.s32.totalorder %s51, %s53
      %p57 = scmp.eq.s32.totalorder %s17, 0
      %p58 = por %p56, %p57
      %p59 = scmp.ne.s32.totalorder %s51, %s53
      %p60 = scmp.eq.s32.totalorder %s22, 1
      %p61 = por %p59, %p60
      %p62 = scmp.ne.s32.totalorder %s53, %s54
      %p63 = scmp.eq.s32.totalorder %s22, 0
      %p64 = por %p62, %p63
      %p65 = scmp.ne.s32.totalorder %s53, %s54
      %p66 = scmp.eq.s32.totalorder %s23, 1
      %p67 = por %p65, %p66
      %p69 = scmp.ne.s32.totalorder %s54, %s68
      %p70 = scmp.eq.s32.totalorder %s23, 0
      %p71 = por %p69, %p70
      %s73 = sadd.s32 %s72, 1
      %p76 = scmp.eq.s32.totalorder %s17, 1
      %p77 = scmp.ne.s32.totalorder %s72, %s74
      %p78 = scmp.eq.s32.totalorder %s17, 0
      %p79 = por %p77, %p78
      %p80 = scmp.ne.s32.totalorder %s72, %s74
      %p81 = scmp.eq.s32.totalorder %s22, 1
      %p82 = por %p80, %p81
      %p83 = scmp.ne.s32.totalorder %s74, %s75
      %p84 = scmp.eq.s32.totalorder %s22, 0
      %p85 = por %p83, %p84
      %p86 = scmp.ne.s32.totalorder %s74, %s75
      %p87 = scmp.eq.s32.totalorder %s23, 1
      %p88 = por %p86, %p87
      %p90 = scmp.ne.s32.totalorder %s75, %s89
      %p91 = scmp.eq.s32.totalorder %s23, 0
      %p92 = por %p90, %p91
      %s94 = sadd.s32 %s93, 1
      %p97 = scmp.eq.s32.totalorder %s17, 1
      %p98 = scmp.ne.s32.totalorder %s93, %s95
      %p99 = scmp.eq.s32.totalorder %s17, 0
      %p100 = por %p98, %p99
      %p101 = scmp.ne.s32.totalorder %s93, %s95
      %p102 = scmp.eq.s32.totalorder %s22, 1
      %p103 = por %p101, %p102
      %p104 = scmp.ne.s32.totalorder %s95, %s96
      %p105 = scmp.eq.s32.totalorder %s22, 0
      %p106 = por %p104, %p105
      %p107 = scmp.ne.s32.totalorder %s95, %s96
      %p108 = scmp.eq.s32.totalorder %s23, 1
      %p109 = por %p107, %p108
      %p111 = scmp.ne.s32.totalorder %s96, %s110
      %p112 = scmp.eq.s32.totalorder %s23, 0
      %p113 = por %p111, %p112
      %s115 = sadd.s32 %s114, 1
      %p118 = scmp.eq.s32.totalorder %s17, 1
      %p119 = scmp.ne.s32.totalorder %s114, %s116
      %p120 = scmp.eq.s32.totalorder %s17, 0
      %p121 = por %p119, %p120
      %p122 = scmp.ne.s32.totalorder %s114, %s116
      %p123 = scmp.eq.s32.totalorder %s22, 1
      %p124 = por %p122, %p123
      %p125 = scmp.ne.s32.totalorder %s116, %s117
      %p126 = scmp.eq.s32.totalorder %s22, 0
      %p127 = por %p125, %p126
      %p128 = scmp.ne.s32.totalorder %s116, %s117
      %p129 = scmp.eq.s32.totalorder %s23, 1
      %p130 = por %p128, %p129
      %p132 = scmp.ne.s32.totalorder %s117, %s131
      %p133 = scmp.eq.s32.totalorder %s23, 0
      %p134 = por %p132, %p133
      %s136 = sadd.s32 %s135, 1
      %p139 = scmp.eq.s32.totalorder %s17, 1
      %p140 = scmp.ne.s32.totalorder %s135, %s137
      %p141 = scmp.eq.s32.totalorder %s17, 0
      %p142 = por %p140, %p141
      %p143 = scmp.ne.s32.totalorder %s135, %s137
      %p144 = scmp.eq.s32.totalorder %s22, 1
      %p145 = por %p143, %p144
      %p146 = scmp.ne.s32.totalorder %s137, %s138
      %p147 = scmp.eq.s32.totalorder %s22, 0
      %p148 = por %p146, %p147
      %p149 = scmp.ne.s32.totalorder %s137, %s138
      %p150 = scmp.eq.s32.totalorder %s23, 1
      %p151 = por %p149, %p150
      %p153 = scmp.ne.s32.totalorder %s138, %s152
      %p154 = scmp.eq.s32.totalorder %s23, 0
      %p155 = por %p153, %p154
      %s157 = sadd.s32 %s156, 1
      %p160 = scmp.eq.s32.totalorder %s17, 1
      %p161 = scmp.ne.s32.totalorder %s156, %s158
      %p162 = scmp.eq.s32.totalorder %s17, 0
      %p163 = por %p161, %p162
      %p164 = scmp.ne.s32.totalorder %s156, %s158
      %p165 = scmp.eq.s32.totalorder %s22, 1
      %p166 = por %p164, %p165
      %p167 = scmp.ne.s32.totalorder %s158, %s159
      %p168 = scmp.eq.s32.totalorder %s22, 0
      %p169 = por %p167, %p168
      %p170 = scmp.ne.s32.totalorder %s158, %s159
      %p171 = scmp.eq.s32.totalorder %s23, 1
      %p172 = por %p170, %p171
      %p174 = scmp.ne.s32.totalorder %s159, %s173
      %p175 = scmp.eq.s32.totalorder %s23, 0
      %p176 = por %p174, %p175
      %s178 = sadd.s32 %s177, 1
      %p181 = scmp.eq.s32.totalorder %s17, 1
      %p182 = scmp.ne.s32.totalorder %s177, %s179
      %p183 = scmp.eq.s32.totalorder %s17, 0
      %p184 = por %p182, %p183
      %p185 = scmp.ne.s32.totalorder %s177, %s179
      %p186 = scmp.eq.s32.totalorder %s22, 1
      %p187 = por %p185, %p186
      %p188 = scmp.ne.s32.totalorder %s179, %s180
      %p189 = scmp.eq.s32.totalorder %s22, 0
      %p190 = por %p188, %p189
      %p191 = scmp.ne.s32.totalorder %s179, %s180
      %p192 = scmp.eq.s32.totalorder %s23, 1
      %p193 = por %p191, %p192
      %p195 = scmp.ne.s32.totalorder %s180, %s194
      %p196 = scmp.eq.s32.totalorder %s23, 0
      %p197 = por %p195, %p196
      %s198 = ssub.s32 %s17, %s24
      %p199 = scmp.eq.s32.totalorder %s198, 0
      %s201 = sadd.s32 %s200, 1
      %s202 = scalar_select %p199, %s200, %s201
      %p205 = pneg %p199
      %p206 = scmp.eq.s32.totalorder %s17, 1
      %p207 = por %p205, %p206
      %p208 = scmp.ne.s32.totalorder %s200, %s203
      %p209 = scmp.eq.s32.totalorder %s17, 0
      %p210 = por %p208, %p209
      %p211 = scmp.ne.s32.totalorder %s200, %s203
      %p212 = scmp.eq.s32.totalorder %s22, 1
      %p213 = por %p211, %p212
      %p214 = scmp.ne.s32.totalorder %s203, %s204
      %p215 = scmp.eq.s32.totalorder %s22, 0
      %p216 = por %p214, %p215
      %p217 = scmp.ne.s32.totalorder %s203, %s204
      %p218 = scmp.eq.s32.totalorder %s23, 1
      %p219 = por %p217, %p218
      %p221 = scmp.ne.s32.totalorder %s204, %s220
      %p222 = scmp.eq.s32.totalorder %s23, 0
      %p223 = por %p221, %p222
      %p224 = scmp.le.s32.totalorder 1, %s17
      %p225 = scmp.lt.s32.totalorder %s17, 3
      %p226 = pnand %p224, %p225
      %p227 = pneg %p226
      // Predicated region
      $region9: #{net_forward.3} parent=5 // pred_check
        _
      $region10: #{net_forward.3} parent=5 // pred_check_branch
        %229 = sbr.rel (%p226) target = $region12
      $region11: #{net_forward.3} parent=5 // pred_region
        %s230 = ssub.s32 %s17, 1
        // Predicated region
        $region13: #{net_forward.3} parent=11 // pred_check
          %p231 = pneg %p64
        $region14: #{net_forward.3} parent=11 // pred_check_branch
          %233 = sbr.rel (%p231) target = $region16
        $region15: #{net_forward.3} parent=11 // pred_region
          %s235 = ssub.s32 576, 576
          %236 = vsyncadd [#allocation3], %s235
          %s237 = sshll.u32 [#allocation2], 4
          %s238 = int_to_ptr.vmem [resolvable:$true] %s237
          %243 = dma.hbm_to_vmem [thread:$0]  %s1, 576, %s238, [#allocation3], 64, 64, 4
        $region16: #{net_forward.3} parent=11 // pred_fallthru
          _
        // Predicated region
        $region17: #{net_forward.3} parent=11 // pred_check
          %p244 = pneg %p85
        $region18: #{net_forward.3} parent=11 // pred_check_branch
          %246 = sbr.rel (%p244) target = $region20
        $region19: #{net_forward.3} parent=11 // pred_region
          _
        $region20: #{net_forward.3} parent=11 // pred_fallthru
          _
        // Predicated region
        $region21: #{net_forward.3} parent=11 // pred_check
          %p247 = pneg %p106
        $region22: #{net_forward.3} parent=11 // pred_check_branch
          %249 = sbr.rel (%p247) target = $region24
        $region23: #{net_forward.3} parent=11 // pred_region
          %s251 = ssub.s32 16, 16
          %252 = vsyncadd [#allocation5], %s251
          %s254 = sshll.u32 [#allocation4], 4
          %s255 = int_to_ptr.vmem [resolvable:$true] %s254
          %257 = dma.hbm_to_vmem [thread:$0]  %s3, 16, %s255, [#allocation5]
        $region24: #{net_forward.3} parent=11 // pred_fallthru
          _
        // Predicated region
        $region25: #{net_forward.3} parent=11 // pred_check
          %p258 = pneg %p127
        $region26: #{net_forward.3} parent=11 // pred_check_branch
          %260 = sbr.rel (%p258) target = $region28
        $region27: #{net_forward.3} parent=11 // pred_region
          _
        $region28: #{net_forward.3} parent=11 // pred_fallthru
          _
        // Predicated region
        $region29: #{net_forward.3} parent=11 // pred_check
          %p261 = pneg %p148
        $region30: #{net_forward.3} parent=11 // pred_check_branch
          %263 = sbr.rel (%p261) target = $region32
        $region31: #{net_forward.3} parent=11 // pred_region
          %s265 = ssub.s32 16, 16
          %266 = vsyncadd [#allocation5], %s265
          %s268 = sshll.u32 [#allocation6], 4
          %s269 = int_to_ptr.vmem [resolvable:$true] %s268
          %271 = dma.hbm_to_vmem [thread:$0]  %s5, 16, %s269, [#allocation5]
        $region32: #{net_forward.3} parent=11 // pred_fallthru
          _
        // Predicated region
        $region33: #{net_forward.3} parent=11 // pred_check
          %p272 = pneg %p169
        $region34: #{net_forward.3} parent=11 // pred_check_branch
          %274 = sbr.rel (%p272) target = $region36
        $region35: #{net_forward.3} parent=11 // pred_region
          _
        $region36: #{net_forward.3} parent=11 // pred_fallthru
          _
        // Predicated region
        $region37: #{net_forward.3} parent=11 // pred_check
          %p275 = pneg %p190
        $region38: #{net_forward.3} parent=11 // pred_check_branch
          %277 = sbr.rel (%p275) target = $region40
        $region39: #{net_forward.3} parent=11 // pred_region
          %s279 = ssub.s32 16, 16
          %280 = vsyncadd [#allocation8], %s279
          %s282 = sshll.u32 [#allocation7], 4
          %s283 = int_to_ptr.vmem [resolvable:$true] %s282
          %285 = dma.hbm_to_vmem [thread:$0]  %s7, 16, %s283, [#allocation8]
        $region40: #{net_forward.3} parent=11 // pred_fallthru
          _
      $region12: #{net_forward.3} parent=5 // pred_fallthru
        _
      %p286 = scmp.lt.s32.totalorder %s17, 2
      // Predicated region
      $region41: #{net_forward.3} parent=5 // pred_check
        %p287 = pneg %p286
      $region42: #{net_forward.3} parent=5 // pred_check_branch
        %289 = sbr.rel (%p287) target = $region44
      $region43: #{net_forward.3} parent=5 // pred_region
        // Predicated region
        $region45: #{net_forward.3} parent=43 // pred_check
          %p290 = pneg %p37
        $region46: #{net_forward.3} parent=43 // pred_check_branch
          %292 = sbr.rel (%p290) target = $region48
        $region47: #{net_forward.3} parent=43 // pred_region
          %p293 = scmp.lt.s32.totalorder %s17, 1
          %s294 = scalar_select %p293, %s17, 1
          %s295 = smul.addr %s294, 4
          %s296 = smul.addr %s295, 8
          %s297 = scalar_lea.vmem %s0, %s296
        $region48: #{net_forward.3} parent=43 // pred_fallthru
          _
      $region44: #{net_forward.3} parent=5 // pred_fallthru
        _
      %p298 = scmp.le.s32.totalorder 1, %s17
      %p299 = scmp.lt.s32.totalorder %s17, 3
      %p300 = pnand %p298, %p299
      %p301 = pneg %p300
      // Predicated region
      $region49: #{net_forward.3} parent=5 // pred_check
        _
      $region50: #{net_forward.3} parent=5 // pred_check_branch
        %303 = sbr.rel (%p300) target = $region52
      $region51: #{net_forward.3} parent=5 // pred_region
        %s304 = ssub.s32 %s17, 1
        // Predicated region
        $region53: #{net_forward.3} parent=51 // pred_check
          %p305 = pneg %p64
        $region54: #{net_forward.3} parent=51 // pred_check_branch
          %307 = sbr.rel (%p305) target = $region56
        $region55: #{net_forward.3} parent=51 // pred_region
          %308 = dma.done [#allocation3], 576
        $region56: #{net_forward.3} parent=51 // pred_fallthru
          _
        // Predicated region
        $region57: #{net_forward.3} parent=51 // pred_check
          %p309 = pneg %p106
        $region58: #{net_forward.3} parent=51 // pred_check_branch
          %311 = sbr.rel (%p309) target = $region60
        $region59: #{net_forward.3} parent=51 // pred_region
          %312 = dma.done [#allocation5], 16
        $region60: #{net_forward.3} parent=51 // pred_fallthru
          _
        // Predicated region
        $region61: #{net_forward.3} parent=51 // pred_check
          %p313 = pneg %p148
        $region62: #{net_forward.3} parent=51 // pred_check_branch
          %315 = sbr.rel (%p313) target = $region64
        $region63: #{net_forward.3} parent=51 // pred_region
          %316 = dma.done [#allocation5], 16
        $region64: #{net_forward.3} parent=51 // pred_fallthru
          _
        // Predicated region
        $region65: #{net_forward.3} parent=51 // pred_check
          %p317 = pneg %p190
        $region66: #{net_forward.3} parent=51 // pred_check_branch
          %319 = sbr.rel (%p317) target = $region68
        $region67: #{net_forward.3} parent=51 // pred_region
          %320 = dma.done [#allocation8], 16
        $region68: #{net_forward.3} parent=51 // pred_fallthru
          _
        %p321 = scmp.lt.s32.totalorder %s22, 1
        %s322 = scalar_select %p321, %s22, 1
        %s323 = smul.addr %s322, 4
        %s324 = smul.addr %s323, 8
        %s325 = scalar_lea.vmem %s0, %s324
        %p326 = pneg %p43
        %p327 = pneg %p40
        %p328 = pneg %p64
        %p329 = pneg %p61
        %p330 = pneg %p85
        %p331 = pneg %p82
        %p332 = pneg %p106
        %p333 = pneg %p103
        %p334 = pneg %p127
        %p335 = pneg %p124
        %p336 = pneg %p148
        %p337 = pneg %p145
        %p338 = pneg %p169
        %p339 = pneg %p166
        %p340 = pneg %p190
        %p341 = pneg %p187
        %p342 = pneg %p216
        %p343 = pneg %p213
        %p344 = scmp.lt.s32.totalorder %s22, 1
        %s345 = scalar_select %p344, %s22, 1
        %s346 = scalar_lea.vmem %s8, %s345
        %p347 = scmp.lt.s32.totalorder %s22, 1
        %s348 = scalar_select %p347, %s22, 1
        %s349 = smul.addr %s348, 4
        %s350 = smul.addr %s349, 8
        %s351 = scalar_lea.vmem %s0, %s350
        %p352 = scmp.lt.s32.totalorder %s22, 1
        %s353 = scalar_select %p352, %s22, 1
        %s354 = scalar_lea.vmem %s8, %s353
        %v356 = vld [vmem:[%s351] sm:$0xff]
        %v357 = vld [vmem:[%s351 + $0x8] sm:$0xff]
        %v358 = vld [vmem:[%s351 + $0x10] sm:$0xff]
        %v359 = vld [vmem:[%s351 + $0x18] sm:$0xff]
        %v360 = vlaneseq
        %v361 = vand.u32 %v360, 127
        %362 = vset.pattern.permute.xlu0 0
        %363 = vperm.xlu0 %362, %v356
        %v364 = vpop.permute.xlu0 %363
        %365 = vset.pattern.permute.xlu0 0
        %366 = vperm.xlu0 %365, %v357
        %v367 = vpop.permute.xlu0 %366
        %368 = vset.pattern.permute.xlu0 0
        %369 = vperm.xlu0 %368, %v358
        %v370 = vpop.permute.xlu0 %369
        %371 = vset.pattern.permute.xlu0 0
        %372 = vperm.xlu0 %371, %v359
        %v373 = vpop.permute.xlu0 %372
        %vm374 = vcmp.eq.s32.totalorder %v364, %v361
        %vm375 = vcmp.eq.s32.totalorder %v367, %v361
        %vm376 = vcmp.eq.s32.totalorder %v370, %v361
        %vm377 = vcmp.eq.s32.totalorder %v373, %v361
        %v378 = vsel %vm374, 1, 0
        %v379 = vsel %vm375, 1, 0
        %v380 = vsel %vm376, 1, 0
        %v381 = vsel %vm377, 1, 0
        %v382 = vcvt.s32.f32 %v378
        %v383 = vcvt.s32.f32 %v379
        %v384 = vcvt.s32.f32 %v380
        %v385 = vcvt.s32.f32 %v381
        %v386 = vpack.c.bf16 %v383, %v382
        %v387 = vpack.c.bf16 %v385, %v384
        %v388 = vld [vmem:[#allocation2] sm:$0xf]
        %v389 = vld [vmem:[#allocation2 + $0x4] sm:$0xf]
        %v390 = vld [vmem:[#allocation2 + $0x8] sm:$0xf]
        %v391 = vld [vmem:[#allocation2 + $0xc] sm:$0xf]
        %v392 = vld [vmem:[#allocation2 + $0x10] sm:$0xf]
        %v393 = vld [vmem:[#allocation2 + $0x14] sm:$0xf]
        %v394 = vld [vmem:[#allocation2 + $0x18] sm:$0xf]
        %v395 = vld [vmem:[#allocation2 + $0x1c] sm:$0xf]
        %v396 = vld [vmem:[#allocation2 + $0x20] sm:$0x1]
        %v406 = vunpack.c.l.b16 %v388
        %v407 = vunpack.c.l.b16 %v389
        %v408 = vunpack.c.l.b16 %v390
        %v409 = vunpack.c.l.b16 %v391
        %v410 = vunpack.c.l.b16 %v392
        %v411 = vunpack.c.l.b16 %v393
        %v412 = vunpack.c.l.b16 %v394
        %v413 = vunpack.c.l.b16 %v395
        %v414 = vunpack.c.l.b16 %v396
        %v415 = vpack.c.b16 %v407, %v406
        %v416 = vpack.c.b16 %v409, %v408
        %v417 = vpack.c.b16 %v411, %v410
        %v418 = vpack.c.b16 %v413, %v412
        %v419 = vpack.c.b16 %v414, %v414
        %vm424 = vcmask 531456
        %v426 = vsel %vm424, %v386, 0
        %v429 = vsel %vm424, %v387, 0
        %vm431 = vcmask 1040384
        %v432 = vsel 0, 4294967295, 65535
        %v433 = vsel %vm431, %v432, 0
        %v435 = vand.u32 %v419, %v433
        %437 = vmatprep.subr.bf16.mxu0 0
        %438 = vmatpush1.bf16.msra.mxu0 0
        %439 = vmatprep.subr.bf16.mxu0 0
        %440 = vmatpush1.bf16.msra.mxu0 0
        %441 = vmatprep.subr.bf16.mxu0 0
        %442 = vmatpush1.bf16.msra.mxu0 0
        %443 = vmatprep.subr.bf16.mxu0 0
        %444 = vmatpush1.bf16.msra.mxu0 %v435
        %445 = vmatprep.subr.bf16.mxu0 0
        %446 = vmatpush1.bf16.msra.mxu0 %v418
        %447 = vmatprep.subr.bf16.mxu0 0
        %448 = vmatpush1.bf16.msra.mxu0 %v417
        %449 = vmatprep.subr.bf16.mxu0 0
        %450 = vmatpush1.bf16.msra.mxu0 %v416
        %451 = vmatprep.subr.bf16.mxu0 0
        %452 = vmatpush1.bf16.msra.mxu0 %v415
        %453 = vmatprep.subr.bf16.mxu0 0
        %454 = vmatpush2.bf16.msra.mxu0 0
        %455 = vmatprep.subr.bf16.mxu0 0
        %456 = vmatpush2.bf16.msra.mxu0 0
        %457 = vmatprep.subr.bf16.mxu0 0
        %458 = vmatpush2.bf16.msra.mxu0 0
        %459 = vmatprep.subr.bf16.mxu0 0
        %460 = vmatpush2.bf16.msra.mxu0 0
        %461 = vmatprep.subr.bf16.mxu0 0
        %462 = vmatpush2.bf16.msra.mxu0 0
        %463 = vmatprep.subr.bf16.mxu0 0
        %464 = vmatpush2.bf16.msra.mxu0 0
        %465 = vmatprep.subr.bf16.mxu0 0
        %466 = vmatpush2.bf16.msra.mxu0 0
        %467 = vmatprep.subr.bf16.mxu0 0
        %468 = vmatpush2.bf16.msra.mxu0 0
        %469 = vmatprep.mubr.bf16.mxu0 0
        %470 = vmatmul.mubr.bf16.gmra.mxu0 %v426
        %v471 = vpop.f32.mrf.mxu0
        %v472 = vadd.f32 0.0, %v471
        %v473 = vpop.f32.mrf.mxu0
        %v474 = vpop.f32.mrf.mxu0
        %v475 = vadd.f32 0.0, %v474
        %v476 = vpop.f32.mrf.mxu0
        %477 = vmatprep.mubr.bf16.mxu0 0
        %478 = vmatmul.mubr.bf16.gmra.mxu0 %v429
        %v479 = vpop.f32.mrf.mxu0
        %v480 = vadd.f32 0.0, %v479
        %v481 = vpop.f32.mrf.mxu0
        %v482 = vpop.f32.mrf.mxu0
        %v483 = vadd.f32 0.0, %v482
        %v484 = vpop.f32.mrf.mxu0
        %485 = vdwg.mxu0
        %v486 = vpack.c.bf16 %v475, %v472
        %v487 = vpack.c.bf16 %v483, %v480
        %vm488 = vsmask.f32 7424
        %v490 = vshrl.u32 %v486, 16
        %v492 = vshll.u32 %v486, 16
        %v494 = vrot.slane %v492, 1
        %v495 = vor.u32 %v490, %v494
        %v497 = vshll.u32 %v487, 16
        %v499 = vrot.slane %v497, 1
        %v500 = vsel %vm488, %v495, %v499
        %v501 = vshrl.u32 %v487, 16
        %v503 = vor.u32 %v501, %v499
        %vm508 = vcmask 1046528
        %v509 = vrot.slane %v486, 1
        %v510 = vrot.slane %v487, 1
        %v511 = vsel %vm508, %v509, %v510
        %vm514 = vsmask.f32 6400
        %v515 = vrot.slane %v490, 1
        %v516 = vrot.slane %v492, 2
        %v517 = vor.u32 %v515, %v516
        %v518 = vrot.slane %v501, 1
        %v519 = vrot.slane %v497, 2
        %v520 = vor.u32 %v518, %v519
        %v521 = vsel %vm514, %v517, %v520
        %v524 = vld [vmem:[%s2] sm:$0xf]
        %v525 = vld [vmem:[%s2 + $0x4] sm:$0xf]
        %v526 = vld [vmem:[%s2 + $0x8] sm:$0xf]
        %v527 = vld [vmem:[%s2 + $0xc] sm:$0xf]
        %v528 = vld [vmem:[%s2 + $0x10] sm:$0xf]
        %v529 = vld [vmem:[%s2 + $0x14] sm:$0xf]
        %v530 = vld [vmem:[%s2 + $0x18] sm:$0xf]
        %v531 = vld [vmem:[%s2 + $0x1c] sm:$0xf]
        %v532 = vld [vmem:[%s2 + $0x20] sm:$0xf]
        %v533 = vld [vmem:[%s2 + $0x24] sm:$0xf]
        %v534 = vld [vmem:[%s2 + $0x28] sm:$0xf]
        %v535 = vld [vmem:[%s2 + $0x2c] sm:$0xf]
        %v536 = vld [vmem:[%s2 + $0x30] sm:$0xf]
        %v537 = vld [vmem:[%s2 + $0x34] sm:$0xf]
        %v538 = vld [vmem:[%s2 + $0x38] sm:$0xf]
        %v539 = vld [vmem:[%s2 + $0x3c] sm:$0xf]
        %v540 = vld [vmem:[%s2 + $0x40] sm:$0xf]
        %v541 = vld [vmem:[%s2 + $0x44] sm:$0xf]
        %v542 = vld [vmem:[%s2 + $0x48] sm:$0xf]
        %v543 = vld [vmem:[%s2 + $0x4c] sm:$0xf]
        %v544 = vld [vmem:[%s2 + $0x50] sm:$0xf]
        %v545 = vld [vmem:[%s2 + $0x54] sm:$0xf]
        %v546 = vld [vmem:[%s2 + $0x58] sm:$0xf]
        %v547 = vld [vmem:[%s2 + $0x5c] sm:$0xf]
        %v548 = vld [vmem:[%s2 + $0x60] sm:$0xf]
        %v549 = vld [vmem:[%s2 + $0x64] sm:$0xf]
        %v550 = vld [vmem:[%s2 + $0x68] sm:$0xf]
        %v551 = vld [vmem:[%s2 + $0x6c] sm:$0xf]
        %v552 = vld [vmem:[%s2 + $0x70] sm:$0xf]
        %v553 = vld [vmem:[%s2 + $0x74] sm:$0xf]
        %v554 = vld [vmem:[%s2 + $0x78] sm:$0xf]
        %v555 = vld [vmem:[%s2 + $0x7c] sm:$0xf]
        %v556 = vld [vmem:[%s2 + $0x80] sm:$0xf]
        %v557 = vld [vmem:[%s2 + $0x84] sm:$0xf]
        %v558 = vld [vmem:[%s2 + $0x88] sm:$0xf]
        %v559 = vld [vmem:[%s2 + $0x8c] sm:$0xf]
        %v560 = vld [vmem:[%s2 + $0x90] sm:$0xf]
        %v561 = vld [vmem:[%s2 + $0x94] sm:$0xf]
        %v562 = vld [vmem:[%s2 + $0x98] sm:$0xf]
        %v563 = vld [vmem:[%s2 + $0x9c] sm:$0xf]
        %v564 = vld [vmem:[%s2 + $0xa0] sm:$0xf]
        %v565 = vld [vmem:[%s2 + $0xa4] sm:$0xf]
        %v566 = vld [vmem:[%s2 + $0xa8] sm:$0xf]
        %v567 = vld [vmem:[%s2 + $0xac] sm:$0xf]
        %v568 = vld [vmem:[%s2 + $0xb0] sm:$0xf]
        %v569 = vld [vmem:[%s2 + $0xb4] sm:$0xf]
        %v570 = vld [vmem:[%s2 + $0xb8] sm:$0xf]
        %v571 = vld [vmem:[%s2 + $0xbc] sm:$0xf]
        %v572 = vld [vmem:[%s2 + $0xc0] sm:$0xf]
        %v573 = vld [vmem:[%s2 + $0xc4] sm:$0xf]
        %v574 = vld [vmem:[%s2 + $0xc8] sm:$0xf]
        %v575 = vld [vmem:[%s2 + $0xcc] sm:$0xf]
        %v576 = vld [vmem:[%s2 + $0xd0] sm:$0xf]
        %v577 = vld [vmem:[%s2 + $0xd4] sm:$0xf]
        %v578 = vld [vmem:[%s2 + $0xd8] sm:$0xf]
        %v579 = vld [vmem:[%s2 + $0xdc] sm:$0xf]
        %v580 = vld [vmem:[%s2 + $0xe0] sm:$0xf]
        %v581 = vld [vmem:[%s2 + $0xe4] sm:$0xf]
        %v582 = vld [vmem:[%s2 + $0xe8] sm:$0xf]
        %v583 = vld [vmem:[%s2 + $0xec] sm:$0xf]
        %v584 = vld [vmem:[%s2 + $0xf0] sm:$0xf]
        %v585 = vld [vmem:[%s2 + $0xf4] sm:$0xf]
        %v586 = vld [vmem:[%s2 + $0xf8] sm:$0xf]
        %v587 = vld [vmem:[%s2 + $0xfc] sm:$0xf]
        %v588 = vld [vmem:[#allocation4] sm:$0x1]
        %v590 = vlaneseq
        %v591 = vshrl.u32 %v590, 7
        %v592 = vsub.s32 0, %v591
        %v593 = vrot.slane %v588, %v592
        %v659 = vunpack.c.l.b16 %v524
        %v660 = vunpack.c.l.b16 %v525
        %v661 = vunpack.c.l.b16 %v526
        %v662 = vunpack.c.l.b16 %v527
        %v663 = vunpack.c.l.b16 %v528
        %v664 = vunpack.c.l.b16 %v529
        %v665 = vunpack.c.l.b16 %v530
        %v666 = vunpack.c.l.b16 %v531
        %v667 = vunpack.c.l.b16 %v532
        %v668 = vunpack.c.l.b16 %v533
        %v669 = vunpack.c.l.b16 %v534
        %v670 = vunpack.c.l.b16 %v535
        %v671 = vunpack.c.l.b16 %v536
        %v672 = vunpack.c.l.b16 %v537
        %v673 = vunpack.c.l.b16 %v538
        %v674 = vunpack.c.l.b16 %v539
        %v675 = vunpack.c.l.b16 %v540
        %v676 = vunpack.c.l.b16 %v541
        %v677 = vunpack.c.l.b16 %v542
        %v678 = vunpack.c.l.b16 %v543
        %v679 = vunpack.c.l.b16 %v544
        %v680 = vunpack.c.l.b16 %v545
        %v681 = vunpack.c.l.b16 %v546
        %v682 = vunpack.c.l.b16 %v547
        %v683 = vunpack.c.l.b16 %v548
        %v684 = vunpack.c.l.b16 %v549
        %v685 = vunpack.c.l.b16 %v550
        %v686 = vunpack.c.l.b16 %v551
        %v687 = vunpack.c.l.b16 %v552
        %v688 = vunpack.c.l.b16 %v553
        %v689 = vunpack.c.l.b16 %v554
        %v690 = vunpack.c.l.b16 %v555
        %v691 = vunpack.c.l.b16 %v556
        %v692 = vunpack.c.l.b16 %v557
        %v693 = vunpack.c.l.b16 %v558
        %v694 = vunpack.c.l.b16 %v559
        %v695 = vunpack.c.l.b16 %v560
        %v696 = vunpack.c.l.b16 %v561
        %v697 = vunpack.c.l.b16 %v562
        %v698 = vunpack.c.l.b16 %v563
        %v699 = vunpack.c.l.b16 %v564
        %v700 = vunpack.c.l.b16 %v565
        %v701 = vunpack.c.l.b16 %v566
        %v702 = vunpack.c.l.b16 %v567
        %v703 = vunpack.c.l.b16 %v568
        %v704 = vunpack.c.l.b16 %v569
        %v705 = vunpack.c.l.b16 %v570
        %v706 = vunpack.c.l.b16 %v571
        %v707 = vunpack.c.l.b16 %v572
        %v708 = vunpack.c.l.b16 %v573
        %v709 = vunpack.c.l.b16 %v574
        %v710 = vunpack.c.l.b16 %v575
        %v711 = vunpack.c.l.b16 %v576
        %v712 = vunpack.c.l.b16 %v577
        %v713 = vunpack.c.l.b16 %v578
        %v714 = vunpack.c.l.b16 %v579
        %v715 = vunpack.c.l.b16 %v580
        %v716 = vunpack.c.l.b16 %v581
        %v717 = vunpack.c.l.b16 %v582
        %v718 = vunpack.c.l.b16 %v583
        %v719 = vunpack.c.l.b16 %v584
        %v720 = vunpack.c.l.b16 %v585
        %v721 = vunpack.c.l.b16 %v586
        %v722 = vunpack.c.l.b16 %v587
        %v723 = vpack.c.b16 %v660, %v659
        %v724 = vpack.c.b16 %v662, %v661
        %v725 = vpack.c.b16 %v664, %v663
        %v726 = vpack.c.b16 %v666, %v665
        %v727 = vpack.c.b16 %v668, %v667
        %v728 = vpack.c.b16 %v670, %v669
        %v729 = vpack.c.b16 %v672, %v671
        %v730 = vpack.c.b16 %v674, %v673
        %v731 = vpack.c.b16 %v676, %v675
        %v732 = vpack.c.b16 %v678, %v677
        %v733 = vpack.c.b16 %v680, %v679
        %v734 = vpack.c.b16 %v682, %v681
        %v735 = vpack.c.b16 %v684, %v683
        %v736 = vpack.c.b16 %v686, %v685
        %v737 = vpack.c.b16 %v688, %v687
        %v738 = vpack.c.b16 %v690, %v689
        %v739 = vpack.c.b16 %v692, %v691
        %v740 = vpack.c.b16 %v694, %v693
        %v741 = vpack.c.b16 %v696, %v695
        %v742 = vpack.c.b16 %v698, %v697
        %v743 = vpack.c.b16 %v700, %v699
        %v744 = vpack.c.b16 %v702, %v701
        %v745 = vpack.c.b16 %v704, %v703
        %v746 = vpack.c.b16 %v706, %v705
        %v747 = vpack.c.b16 %v708, %v707
        %v748 = vpack.c.b16 %v710, %v709
        %v749 = vpack.c.b16 %v712, %v711
        %v750 = vpack.c.b16 %v714, %v713
        %v751 = vpack.c.b16 %v716, %v715
        %v752 = vpack.c.b16 %v718, %v717
        %v753 = vpack.c.b16 %v720, %v719
        %v754 = vpack.c.b16 %v722, %v721
        %787 = vmatprep.subr.bf16.mxu0 0
        %788 = vmatpush1.bf16.msra.mxu0 %v730
        %789 = vmatprep.subr.bf16.mxu0 0
        %790 = vmatpush1.bf16.msra.mxu0 %v729
        %791 = vmatprep.subr.bf16.mxu0 0
        %792 = vmatpush1.bf16.msra.mxu0 %v728
        %793 = vmatprep.subr.bf16.mxu0 0
        %794 = vmatpush1.bf16.msra.mxu0 %v727
        %795 = vmatprep.subr.bf16.mxu0 0
        %796 = vmatpush1.bf16.msra.mxu0 %v726
        %797 = vmatprep.subr.bf16.mxu0 0
        %798 = vmatpush1.bf16.msra.mxu0 %v725
        %799 = vmatprep.subr.bf16.mxu0 0
        %800 = vmatpush1.bf16.msra.mxu0 %v724
        %801 = vmatprep.subr.bf16.mxu0 0
        %802 = vmatpush1.bf16.msra.mxu0 %v723
        %803 = vmatprep.subr.bf16.mxu0 0
        %804 = vmatpush2.bf16.msra.mxu0 %v738
        %805 = vmatprep.subr.bf16.mxu0 0
        %806 = vmatpush2.bf16.msra.mxu0 %v737
        %807 = vmatprep.subr.bf16.mxu0 0
        %808 = vmatpush2.bf16.msra.mxu0 %v736
        %809 = vmatprep.subr.bf16.mxu0 0
        %810 = vmatpush2.bf16.msra.mxu0 %v735
        %811 = vmatprep.subr.bf16.mxu0 0
        %812 = vmatpush2.bf16.msra.mxu0 %v734
        %813 = vmatprep.subr.bf16.mxu0 0
        %814 = vmatpush2.bf16.msra.mxu0 %v733
        %815 = vmatprep.subr.bf16.mxu0 0
        %816 = vmatpush2.bf16.msra.mxu0 %v732
        %817 = vmatprep.subr.bf16.mxu0 0
        %818 = vmatpush2.bf16.msra.mxu0 %v731
        %819 = vmatprep.mubr.bf16.mxu0 %v500
        %820 = vmatmul.mubr.bf16.gmra.mxu0 %v486
        %v821 = vpop.f32.mrf.mxu0
        %v822 = vadd.f32 %v593, %v821
        %v823 = vpop.f32.mrf.mxu0
        %v824 = vpop.f32.mrf.mxu0
        %v825 = vadd.f32 %v593, %v824
        %v826 = vpop.f32.mrf.mxu0
        %827 = vmatprep.mubr.bf16.mxu0 %v503
        %828 = vmatmul.mubr.bf16.gmra.mxu0 %v487
        %v829 = vpop.f32.mrf.mxu0
        %v830 = vadd.f32 %v593, %v829
        %v831 = vpop.f32.mrf.mxu0
        %v832 = vpop.f32.mrf.mxu0
        %v833 = vadd.f32 %v593, %v832
        %v834 = vpop.f32.mrf.mxu0
        %835 = vdwg.mxu0
        %836 = vmatprep.subr.bf16.mxu0 0
        %837 = vmatpush1.bf16.msra.mxu0 %v746
        %838 = vmatprep.subr.bf16.mxu0 0
        %839 = vmatpush1.bf16.msra.mxu0 %v745
        %840 = vmatprep.subr.bf16.mxu0 0
        %841 = vmatpush1.bf16.msra.mxu0 %v744
        %842 = vmatprep.subr.bf16.mxu0 0
        %843 = vmatpush1.bf16.msra.mxu0 %v743
        %844 = vmatprep.subr.bf16.mxu0 0
        %845 = vmatpush1.bf16.msra.mxu0 %v742
        %846 = vmatprep.subr.bf16.mxu0 0
        %847 = vmatpush1.bf16.msra.mxu0 %v741
        %848 = vmatprep.subr.bf16.mxu0 0
        %849 = vmatpush1.bf16.msra.mxu0 %v740
        %850 = vmatprep.subr.bf16.mxu0 0
        %851 = vmatpush1.bf16.msra.mxu0 %v739
        %852 = vmatprep.subr.bf16.mxu0 0
        %853 = vmatpush2.bf16.msra.mxu0 %v754
        %854 = vmatprep.subr.bf16.mxu0 0
        %855 = vmatpush2.bf16.msra.mxu0 %v753
        %856 = vmatprep.subr.bf16.mxu0 0
        %857 = vmatpush2.bf16.msra.mxu0 %v752
        %858 = vmatprep.subr.bf16.mxu0 0
        %859 = vmatpush2.bf16.msra.mxu0 %v751
        %860 = vmatprep.subr.bf16.mxu0 0
        %861 = vmatpush2.bf16.msra.mxu0 %v750
        %862 = vmatprep.subr.bf16.mxu0 0
        %863 = vmatpush2.bf16.msra.mxu0 %v749
        %864 = vmatprep.subr.bf16.mxu0 0
        %865 = vmatpush2.bf16.msra.mxu0 %v748
        %866 = vmatprep.subr.bf16.mxu0 0
        %867 = vmatpush2.bf16.msra.mxu0 %v747
        %868 = vmatprep.mubr.bf16.mxu0 %v521
        %869 = vmatmul.mubr.bf16.gmra.mxu0 %v511
        %v870 = vpop.f32.mrf.mxu0
        %v871 = vadd.f32 %v822, %v870
        %v872 = vpop.f32.mrf.mxu0
        %v873 = vpop.f32.mrf.mxu0
        %v874 = vadd.f32 %v825, %v873
        %v875 = vpop.f32.mrf.mxu0
        %876 = vmatprep.mubr.bf16.mxu0 %v520
        %877 = vmatmul.mubr.bf16.gmra.mxu0 %v510
        %v878 = vpop.f32.mrf.mxu0
        %v879 = vadd.f32 %v830, %v878
        %v880 = vpop.f32.mrf.mxu0
        %v881 = vpop.f32.mrf.mxu0
        %v882 = vadd.f32 %v833, %v881
        %v883 = vpop.f32.mrf.mxu0
        %884 = vdwg.mxu0
        %v885 = vmax.f32 %v871, 0.0
        %v886 = vmax.f32 %v874, 0.0
        %v887 = vmax.f32 %v879, 0.0
        %v888 = vmax.f32 %v882, 0.0
        %v889 = vpack.c.bf16 %v886, %v885
        %v890 = vpack.c.bf16 %v888, %v887
        %v892 = vshrl.u32 %v889, 16
        %v894 = vshll.u32 %v889, 16
        %v896 = vrot.slane %v894, 1
        %v897 = vor.u32 %v892, %v896
        %v899 = vshll.u32 %v890, 16
        %v901 = vrot.slane %v899, 1
        %v902 = vsel %vm488, %v897, %v901
        %v903 = vshrl.u32 %v890, 16
        %v905 = vor.u32 %v903, %v901
        %906 = vrot.lane.b32.xlu0 %v902, 32
        %v907 = vpop.permute.xlu0 %906
        %908 = vrot.lane.b32.xlu0 %v905, 32
        %v909 = vpop.permute.xlu0 %908
        %v912 = vrot.slane %v889, 1
        %v913 = vrot.slane %v890, 1
        %v914 = vsel %vm508, %v912, %v913
        %915 = vrot.lane.b32.xlu0 %v914, 64
        %v916 = vpop.permute.xlu0 %915
        %917 = vrot.lane.b32.xlu0 %v913, 64
        %v918 = vpop.permute.xlu0 %917
        %v919 = vrot.slane %v892, 1
        %v920 = vrot.slane %v894, 2
        %v921 = vor.u32 %v919, %v920
        %v922 = vrot.slane %v903, 1
        %v923 = vrot.slane %v899, 2
        %v924 = vor.u32 %v922, %v923
        %v925 = vsel %vm514, %v921, %v924
        %926 = vrot.lane.b32.xlu0 %v925, 96
        %v927 = vpop.permute.xlu0 %926
        %928 = vrot.lane.b32.xlu0 %v924, 96
        %v929 = vpop.permute.xlu0 %928
        %vm930 = vcmask 261120
        %v932 = vsel %vm930, %v889, %v907
        %v934 = vsel %vm930, %v890, %v909
        %vm935 = vcmask 523264
        %v937 = vsel %vm935, %v932, %v916
        %v939 = vsel %vm935, %v934, %v918
        %vm940 = vcmask 785408
        %v942 = vsel %vm940, %v937, %v927
        %v945 = vsel %vm940, %v939, %v929
        %v947 = vld [vmem:[%s4] sm:$0xf]
        %v948 = vld [vmem:[%s4 + $0x4] sm:$0xf]
        %v949 = vld [vmem:[%s4 + $0x8] sm:$0xf]
        %v950 = vld [vmem:[%s4 + $0xc] sm:$0xf]
        %v951 = vld [vmem:[%s4 + $0x10] sm:$0xf]
        %v952 = vld [vmem:[%s4 + $0x14] sm:$0xf]
        %v953 = vld [vmem:[%s4 + $0x18] sm:$0xf]
        %v954 = vld [vmem:[%s4 + $0x1c] sm:$0xf]
        %v955 = vld [vmem:[%s4 + $0x20] sm:$0xf]
        %v956 = vld [vmem:[%s4 + $0x24] sm:$0xf]
        %v957 = vld [vmem:[%s4 + $0x28] sm:$0xf]
        %v958 = vld [vmem:[%s4 + $0x2c] sm:$0xf]
        %v959 = vld [vmem:[%s4 + $0x30] sm:$0xf]
        %v960 = vld [vmem:[%s4 + $0x34] sm:$0xf]
        %v961 = vld [vmem:[%s4 + $0x38] sm:$0xf]
        %v962 = vld [vmem:[%s4 + $0x3c] sm:$0xf]
        %v963 = vld [vmem:[#allocation6] sm:$0x1]
        %v965 = vlaneseq
        %v966 = vshrl.u32 %v965, 7
        %v967 = vsub.s32 0, %v966
        %v968 = vrot.slane %v963, %v967
        %v986 = vunpack.c.l.b16 %v947
        %v987 = vunpack.c.l.b16 %v948
        %v988 = vunpack.c.l.b16 %v949
        %v989 = vunpack.c.l.b16 %v950
        %v990 = vunpack.c.l.b16 %v951
        %v991 = vunpack.c.l.b16 %v952
        %v992 = vunpack.c.l.b16 %v953
        %v993 = vunpack.c.l.b16 %v954
        %v994 = vunpack.c.l.b16 %v955
        %v995 = vunpack.c.l.b16 %v956
        %v996 = vunpack.c.l.b16 %v957
        %v997 = vunpack.c.l.b16 %v958
        %v998 = vunpack.c.l.b16 %v959
        %v999 = vunpack.c.l.b16 %v960
        %v1000 = vunpack.c.l.b16 %v961
        %v1001 = vunpack.c.l.b16 %v962
        %v1002 = vpack.c.b16 %v987, %v986
        %v1003 = vpack.c.b16 %v989, %v988
        %v1004 = vpack.c.b16 %v991, %v990
        %v1005 = vpack.c.b16 %v993, %v992
        %v1006 = vpack.c.b16 %v995, %v994
        %v1007 = vpack.c.b16 %v997, %v996
        %v1008 = vpack.c.b16 %v999, %v998
        %v1009 = vpack.c.b16 %v1001, %v1000
        %1018 = vmatprep.subr.bf16.mxu0 0
        %1019 = vmatpush1.bf16.msra.mxu0 %v1009
        %1020 = vmatprep.subr.bf16.mxu0 0
        %1021 = vmatpush1.bf16.msra.mxu0 %v1008
        %1022 = vmatprep.subr.bf16.mxu0 0
        %1023 = vmatpush1.bf16.msra.mxu0 %v1007
        %1024 = vmatprep.subr.bf16.mxu0 0
        %1025 = vmatpush1.bf16.msra.mxu0 %v1006
        %1026 = vmatprep.subr.bf16.mxu0 0
        %1027 = vmatpush1.bf16.msra.mxu0 %v1005
        %1028 = vmatprep.subr.bf16.mxu0 0
        %1029 = vmatpush1.bf16.msra.mxu0 %v1004
        %1030 = vmatprep.subr.bf16.mxu0 0
        %1031 = vmatpush1.bf16.msra.mxu0 %v1003
        %1032 = vmatprep.subr.bf16.mxu0 0
        %1033 = vmatpush1.bf16.msra.mxu0 %v1002
        %1034 = vmatprep.subr.bf16.mxu0 0
        %1035 = vmatpush2.bf16.msra.mxu0 0
        %1036 = vmatprep.subr.bf16.mxu0 0
        %1037 = vmatpush2.bf16.msra.mxu0 0
        %1038 = vmatprep.subr.bf16.mxu0 0
        %1039 = vmatpush2.bf16.msra.mxu0 0
        %1040 = vmatprep.subr.bf16.mxu0 0
        %1041 = vmatpush2.bf16.msra.mxu0 0
        %1042 = vmatprep.subr.bf16.mxu0 0
        %1043 = vmatpush2.bf16.msra.mxu0 0
        %1044 = vmatprep.subr.bf16.mxu0 0
        %1045 = vmatpush2.bf16.msra.mxu0 0
        %1046 = vmatprep.subr.bf16.mxu0 0
        %1047 = vmatpush2.bf16.msra.mxu0 0
        %1048 = vmatprep.subr.bf16.mxu0 0
        %1049 = vmatpush2.bf16.msra.mxu0 0
        %1050 = vmatprep.mubr.bf16.mxu0 0
        %1051 = vmatmul.mubr.bf16.gmra.mxu0 %v942
        %v1052 = vpop.f32.mrf.mxu0
        %v1053 = vadd.f32 %v968, %v1052
        %v1054 = vpop.f32.mrf.mxu0
        %v1055 = vpop.f32.mrf.mxu0
        %v1056 = vadd.f32 %v968, %v1055
        %v1057 = vpop.f32.mrf.mxu0
        %1058 = vmatprep.mubr.bf16.mxu0 0
        %1059 = vmatmul.mubr.bf16.gmra.mxu0 %v945
        %v1060 = vpop.f32.mrf.mxu0
        %v1061 = vadd.f32 %v968, %v1060
        %v1062 = vpop.f32.mrf.mxu0
        %v1063 = vpop.f32.mrf.mxu0
        %v1064 = vadd.f32 %v968, %v1063
        %v1065 = vpop.f32.mrf.mxu0
        %1066 = vdwg.mxu0
        %v1067 = vmax.f32 %v1053, 0.0
        %v1068 = vmax.f32 %v1056, 0.0
        %v1069 = vmax.f32 %v1061, 0.0
        %v1070 = vmax.f32 %v1064, 0.0
        %v1071 = vpack.c.bf16 %v1068, %v1067
        %v1072 = vpack.c.bf16 %v1070, %v1069
        %v1074 = vshrl.u32 %v1071, 16
        %v1076 = vshll.u32 %v1071, 16
        %v1078 = vrot.slane %v1076, 1
        %v1079 = vor.u32 %v1074, %v1078
        %v1081 = vshll.u32 %v1072, 16
        %v1083 = vrot.slane %v1081, 1
        %v1084 = vsel %vm488, %v1079, %v1083
        %v1085 = vshrl.u32 %v1072, 16
        %v1087 = vor.u32 %v1085, %v1083
        %1088 = vrot.lane.b32.xlu0 %v1084, 64
        %v1089 = vpop.permute.xlu0 %1088
        %1090 = vrot.lane.b32.xlu0 %v1087, 64
        %v1091 = vpop.permute.xlu0 %1090
        %v1094 = vrot.slane %v1071, 1
        %v1095 = vrot.slane %v1072, 1
        %v1096 = vsel %vm508, %v1094, %v1095
        %v1097 = vrot.slane %v1074, 1
        %v1098 = vrot.slane %v1076, 2
        %v1099 = vor.u32 %v1097, %v1098
        %v1100 = vrot.slane %v1085, 1
        %v1101 = vrot.slane %v1081, 2
        %v1102 = vor.u32 %v1100, %v1101
        %v1103 = vsel %vm514, %v1099, %v1102
        %1104 = vrot.lane.b32.xlu0 %v1103, 64
        %v1105 = vpop.permute.xlu0 %1104
        %1106 = vrot.lane.b32.xlu0 %v1102, 64
        %v1107 = vpop.permute.xlu0 %1106
        %v1109 = vsel %vm935, %v1071, %v1089
        %v1112 = vsel %vm935, %v1072, %v1091
        %v1116 = vsel %vm935, %v1096, %v1105
        %v1120 = vsel %vm935, %v1095, %v1107
        %v1122 = vld [vmem:[%s6] sm:$0xf]
        %v1123 = vld [vmem:[%s6 + $0x4] sm:$0xf]
        %v1124 = vld [vmem:[%s6 + $0x8] sm:$0xf]
        %v1125 = vld [vmem:[%s6 + $0xc] sm:$0xf]
        %v1126 = vld [vmem:[%s6 + $0x10] sm:$0xf]
        %v1127 = vld [vmem:[%s6 + $0x14] sm:$0xf]
        %v1128 = vld [vmem:[%s6 + $0x18] sm:$0xf]
        %v1129 = vld [vmem:[%s6 + $0x1c] sm:$0xf]
        %v1130 = vld [vmem:[%s6 + $0x20] sm:$0xf]
        %v1131 = vld [vmem:[%s6 + $0x24] sm:$0xf]
        %v1132 = vld [vmem:[%s6 + $0x28] sm:$0xf]
        %v1133 = vld [vmem:[%s6 + $0x2c] sm:$0xf]
        %v1134 = vld [vmem:[%s6 + $0x30] sm:$0xf]
        %v1135 = vld [vmem:[%s6 + $0x34] sm:$0xf]
        %v1136 = vld [vmem:[%s6 + $0x38] sm:$0xf]
        %v1137 = vld [vmem:[%s6 + $0x3c] sm:$0xf]
        %v1138 = vld [vmem:[%s6 + $0x40] sm:$0xf]
        %v1139 = vld [vmem:[%s6 + $0x44] sm:$0xf]
        %v1140 = vld [vmem:[%s6 + $0x48] sm:$0xf]
        %v1141 = vld [vmem:[%s6 + $0x4c] sm:$0xf]
        %v1142 = vld [vmem:[%s6 + $0x50] sm:$0xf]
        %v1143 = vld [vmem:[%s6 + $0x54] sm:$0xf]
        %v1144 = vld [vmem:[%s6 + $0x58] sm:$0xf]
        %v1145 = vld [vmem:[%s6 + $0x5c] sm:$0xf]
        %v1146 = vld [vmem:[%s6 + $0x60] sm:$0xf]
        %v1147 = vld [vmem:[%s6 + $0x64] sm:$0xf]
        %v1148 = vld [vmem:[%s6 + $0x68] sm:$0xf]
        %v1149 = vld [vmem:[%s6 + $0x6c] sm:$0xf]
        %v1150 = vld [vmem:[%s6 + $0x70] sm:$0xf]
        %v1151 = vld [vmem:[%s6 + $0x74] sm:$0xf]
        %v1152 = vld [vmem:[%s6 + $0x78] sm:$0xf]
        %v1153 = vld [vmem:[%s6 + $0x7c] sm:$0xf]
        %v1154 = vld [vmem:[#allocation7] sm:$0x1]
        %v1156 = vlaneseq
        %v1157 = vshrl.u32 %v1156, 7
        %v1158 = vsub.s32 0, %v1157
        %v1159 = vrot.slane %v1154, %v1158
        %v1193 = vunpack.c.l.b16 %v1122
        %v1194 = vunpack.c.l.b16 %v1123
        %v1195 = vunpack.c.l.b16 %v1124
        %v1196 = vunpack.c.l.b16 %v1125
        %v1197 = vunpack.c.l.b16 %v1126
        %v1198 = vunpack.c.l.b16 %v1127
        %v1199 = vunpack.c.l.b16 %v1128
        %v1200 = vunpack.c.l.b16 %v1129
        %v1201 = vunpack.c.l.b16 %v1130
        %v1202 = vunpack.c.l.b16 %v1131
        %v1203 = vunpack.c.l.b16 %v1132
        %v1204 = vunpack.c.l.b16 %v1133
        %v1205 = vunpack.c.l.b16 %v1134
        %v1206 = vunpack.c.l.b16 %v1135
        %v1207 = vunpack.c.l.b16 %v1136
        %v1208 = vunpack.c.l.b16 %v1137
        %v1209 = vunpack.c.l.b16 %v1138
        %v1210 = vunpack.c.l.b16 %v1139
        %v1211 = vunpack.c.l.b16 %v1140
        %v1212 = vunpack.c.l.b16 %v1141
        %v1213 = vunpack.c.l.b16 %v1142
        %v1214 = vunpack.c.l.b16 %v1143
        %v1215 = vunpack.c.l.b16 %v1144
        %v1216 = vunpack.c.l.b16 %v1145
        %v1217 = vunpack.c.l.b16 %v1146
        %v1218 = vunpack.c.l.b16 %v1147
        %v1219 = vunpack.c.l.b16 %v1148
        %v1220 = vunpack.c.l.b16 %v1149
        %v1221 = vunpack.c.l.b16 %v1150
        %v1222 = vunpack.c.l.b16 %v1151
        %v1223 = vunpack.c.l.b16 %v1152
        %v1224 = vunpack.c.l.b16 %v1153
        %v1225 = vpack.c.b16 %v1194, %v1193
        %v1226 = vpack.c.b16 %v1196, %v1195
        %v1227 = vpack.c.b16 %v1198, %v1197
        %v1228 = vpack.c.b16 %v1200, %v1199
        %v1229 = vpack.c.b16 %v1202, %v1201
        %v1230 = vpack.c.b16 %v1204, %v1203
        %v1231 = vpack.c.b16 %v1206, %v1205
        %v1232 = vpack.c.b16 %v1208, %v1207
        %v1233 = vpack.c.b16 %v1210, %v1209
        %v1234 = vpack.c.b16 %v1212, %v1211
        %v1235 = vpack.c.b16 %v1214, %v1213
        %v1236 = vpack.c.b16 %v1216, %v1215
        %v1237 = vpack.c.b16 %v1218, %v1217
        %v1238 = vpack.c.b16 %v1220, %v1219
        %v1239 = vpack.c.b16 %v1222, %v1221
        %v1240 = vpack.c.b16 %v1224, %v1223
        %1257 = vmatprep.subr.bf16.mxu0 0
        %1258 = vmatpush1.bf16.msra.mxu0 %v1232
        %1259 = vmatprep.subr.bf16.mxu0 0
        %1260 = vmatpush1.bf16.msra.mxu0 %v1231
        %1261 = vmatprep.subr.bf16.mxu0 0
        %1262 = vmatpush1.bf16.msra.mxu0 %v1230
        %1263 = vmatprep.subr.bf16.mxu0 0
        %1264 = vmatpush1.bf16.msra.mxu0 %v1229
        %1265 = vmatprep.subr.bf16.mxu0 0
        %1266 = vmatpush1.bf16.msra.mxu0 %v1228
        %1267 = vmatprep.subr.bf16.mxu0 0
        %1268 = vmatpush1.bf16.msra.mxu0 %v1227
        %1269 = vmatprep.subr.bf16.mxu0 0
        %1270 = vmatpush1.bf16.msra.mxu0 %v1226
        %1271 = vmatprep.subr.bf16.mxu0 0
        %1272 = vmatpush1.bf16.msra.mxu0 %v1225
        %1273 = vmatprep.subr.bf16.mxu0 0
        %1274 = vmatpush2.bf16.msra.mxu0 %v1240
        %1275 = vmatprep.subr.bf16.mxu0 0
        %1276 = vmatpush2.bf16.msra.mxu0 %v1239
        %1277 = vmatprep.subr.bf16.mxu0 0
        %1278 = vmatpush2.bf16.msra.mxu0 %v1238
        %1279 = vmatprep.subr.bf16.mxu0 0
        %1280 = vmatpush2.bf16.msra.mxu0 %v1237
        %1281 = vmatprep.subr.bf16.mxu0 0
        %1282 = vmatpush2.bf16.msra.mxu0 %v1236
        %1283 = vmatprep.subr.bf16.mxu0 0
        %1284 = vmatpush2.bf16.msra.mxu0 %v1235
        %1285 = vmatprep.subr.bf16.mxu0 0
        %1286 = vmatpush2.bf16.msra.mxu0 %v1234
        %1287 = vmatprep.subr.bf16.mxu0 0
        %1288 = vmatpush2.bf16.msra.mxu0 %v1233
        %1289 = vmatprep.mubr.bf16.mxu0 %v1116
        %1290 = vmatmul.mubr.bf16.gmra.mxu0 %v1109
        %v1291 = vpop.f32.mrf.mxu0
        %v1292 = vadd.f32 %v1159, %v1291
        %v1293 = vpop.f32.mrf.mxu0
        %v1294 = vpop.f32.mrf.mxu0
        %v1295 = vadd.f32 %v1159, %v1294
        %v1296 = vpop.f32.mrf.mxu0
        %1297 = vmatprep.mubr.bf16.mxu0 %v1120
        %1298 = vmatmul.mubr.bf16.gmra.mxu0 %v1112
        %v1299 = vpop.f32.mrf.mxu0
        %v1300 = vadd.f32 %v1159, %v1299
        %v1301 = vpop.f32.mrf.mxu0
        %v1302 = vpop.f32.mrf.mxu0
        %v1303 = vpop.f32.mrf.mxu0
        %1304 = vdwg.mxu0
        %v1305 = vmax.f32 %v1292, 0.0
        %v1306 = vmax.f32 %v1295, 0.0
        %v1307 = vmax.f32 %v1300, 0.0
        %v1308 = vsel %vm940, %v1305, -inf
        %v1309 = vsel %vm940, %v1306, -inf
        %vm1310 = vcmask 784384
        %v1311 = vsel %vm1310, %v1307, -inf
        %v1312 = vmax.f32 %v1308, %v1309
        %v1313 = vmax.f32 %v1312, %v1311
        %v1314 = vrot.slane %v1313, 4
        %v1315 = vmax.f32 %v1313, %v1314
        %v1316 = vrot.slane %v1315, 2
        %v1317 = vmax.f32 %v1315, %v1316
        %v1318 = vrot.slane %v1317, 1
        %v1319 = vmax.f32 %v1317, %v1318
        %vm1320 = vcmask 778240
        %1321 = vst.msk [vmem:[%s354] sm:$0x1] %vm1320, %v1319
        %p1322 = scmp.lt.s32.totalorder %s22, 1
        %s1323 = scalar_select %p1322, %s22, 1
        %s1324 = scalar_lea.vmem %s8, %s1323
        // Predicated region
        $region69: #{net_forward.3} parent=51 // pred_check
          %p1325 = pneg %p213
        $region70: #{net_forward.3} parent=51 // pred_check_branch
          %1327 = sbr.rel (%p1325) target = $region72
        $region71: #{net_forward.3} parent=51 // pred_region
          _
        $region72: #{net_forward.3} parent=51 // pred_fallthru
          _
      $region52: #{net_forward.3} parent=5 // pred_fallthru
        _
      %p1328 = scmp.le.s32.totalorder 2, %s17
      // Predicated region
      $region73: #{net_forward.3} parent=5 // pred_check
        %p1329 = pneg %p1328
      $region74: #{net_forward.3} parent=5 // pred_check_branch
        %1331 = sbr.rel (%p1329) target = $region76
      $region75: #{net_forward.3} parent=5 // pred_region
        %s1332 = ssub.s32 %s17, 2
        // Predicated region
        $region77: #{net_forward.3} parent=75 // pred_check
          %p1333 = pneg %p219
        $region78: #{net_forward.3} parent=75 // pred_check_branch
          %1335 = sbr.rel (%p1333) target = $region80
        $region79: #{net_forward.3} parent=75 // pred_region
          %p1336 = scmp.lt.s32.totalorder %s23, 1
          %s1337 = scalar_select %p1336, %s23, 1
          %s1338 = scalar_lea.vmem %s8, %s1337
        $region80: #{net_forward.3} parent=75 // pred_fallthru
          _
      $region76: #{net_forward.3} parent=5 // pred_fallthru
        _
    $region6: #{net_forward.3} parent=1 // loop_footer
      %s21 = sadd.s32 1, %s17
    $region7: #{net_forward.3} parent=1 // loop_footer_branch
      %16 = sbr.rel target = $region3
    $region8: #{net_forward.3} parent=1 // loop_exit
      _
    %1339 = vsyncpa [#allocation3], 1
    %s1340 = scalar_lea.sflag [#allocation3], 1
    %1341 = vsyncpa %s1340, 1
    %1342 = vsyncpa [#allocation5], 1
    %1343 = vsyncpa [#allocation8], 1

// kernel: net_forward.4
$region0: #{net_forward.4}
  #allocation0 [shape = 'u32[]', space=smem, size = 0x4, offset = 0x4, fixed_abs, tag = 'smem constant byte address 0x4 - core index']
  #allocation1 [shape = 'u32[144,128]{1,0:T(1,128)}', space=vmem, size = 0x12000, scoped, tag = 'internal scratch']
  %s0 = inlined_call_operand.vmem [shape: s32[2,64,1], index: 0, kind: input, shape index: {}]
  %s1 = inlined_call_operand.hbm [shape: bf16[26,128], index: 1, kind: input, shape index: {}]
  %s2 = inlined_call_operand.vmem [shape: bf16[1024,32], index: 2, kind: input, shape index: {}]
  %s3 = inlined_call_operand.hbm [shape: f32[1,32], index: 3, kind: input, shape index: {}]
  %s4 = inlined_call_operand.vmem [shape: bf16[256,64], index: 4, kind: input, shape index: {}]
  %s5 = inlined_call_operand.hbm [shape: f32[1,64], index: 5, kind: input, shape index: {}]
  %s6 = inlined_call_operand.vmem [shape: bf16[512,96], index: 6, kind: input, shape index: {}]
  %s7 = inlined_call_operand.hbm [shape: f32[1,96], index: 7, kind: input, shape index: {}]
  %s8 = inlined_call_operand.vmem [shape: f32[2,1,96], index: 8, kind: output, shape index: {}]
  %s9 = sld [smem:[#allocation0]]
  $region81: #{net_forward.4} parent=0
    _
  %s11 = ssub.s32 1, %s9
  %s12 = scalar_select 0, %s11, %s9
  $region1: #{net_forward.4} parent=0
    #allocation2 [shape = 'u8[8192]{0}', space=vmem, size = 0x2000, scoped, tag = 'input window, operand 1, single buffered']
    #allocation3 [shape = 's32[2]{0}', space=sflag, size = 0x8, scoped, tag = 'scoped memory for net_forward.4']
    #allocation4 [shape = 'u8[512]{0}', space=vmem, size = 0x400, scoped, tag = 'input window, operand 3, single buffered']
    #allocation5 [shape = 's32[1]{0}', space=sflag, size = 0x4, scoped, tag = 'scoped memory for net_forward.4']
    #allocation6 [shape = 'u8[512]{0}', space=vmem, size = 0x400, scoped, tag = 'input window, operand 5, single buffered']
    #allocation7 [shape = 'u8[512]{0}', space=vmem, size = 0x400, scoped, tag = 'input window, operand 7, single buffered']
    #allocation8 [shape = 's32[1]{0}', space=sflag, size = 0x4, scoped, tag = 'scoped memory for net_forward.4']
    %13 = vsyncpa [#allocation3], 0
    %14 = vsyncpa [#allocation5], 0
    %15 = vsyncpa [#allocation8], 0
    loop: start=0, step=1, limit=4
    $region2: #{net_forward.4} parent=1 // loop_pre_header
      _
    $region3: #{net_forward.4} parent=1 // loop_header
      %s17 = sphi 0, %s21
      %p18 = scmp.ge.s32.totalorder %s17, 4
      %s27 = sphi 0, %s29
      %s30 = sphi 0, %s27
      %s31 = sphi 0, %s30
      %s47 = sphi 0, %s31
      %s51 = sphi 0, %s51
      %s53 = sphi 0, %s51
      %s54 = sphi 0, %s53
      %s68 = sphi 0, %s54
      %s72 = sphi 0, %s72
      %s74 = sphi 0, %s72
      %s75 = sphi 0, %s74
      %s89 = sphi 0, %s75
      %s93 = sphi 0, %s93
      %s95 = sphi 0, %s93
      %s96 = sphi 0, %s95
      %s110 = sphi 0, %s96
      %s114 = sphi 0, %s114
      %s116 = sphi 0, %s114
      %s117 = sphi 0, %s116
      %s131 = sphi 0, %s117
      %s135 = sphi 0, %s135
      %s137 = sphi 0, %s135
      %s138 = sphi 0, %s137
      %s152 = sphi 0, %s138
      %s156 = sphi 0, %s156
      %s158 = sphi 0, %s156
      %s159 = sphi 0, %s158
      %s173 = sphi 0, %s159
      %s177 = sphi 0, %s177
      %s179 = sphi 0, %s177
      %s180 = sphi 0, %s179
      %s194 = sphi 0, %s180
      %s200 = sphi 0, %s202
      %s203 = sphi 0, %s200
      %s204 = sphi 0, %s203
      %s220 = sphi 0, %s204
    $region4: #{net_forward.4} parent=1 // loop_header_branch
      %20 = sbr.rel (%p18) target = $region8
    $region5: #{net_forward.4} parent=1 // loop_body
      %s22 = ssub.s32 %s17, 1
      %s23 = ssub.s32 %s17, 2
      %s24 = sadd.s32 %s17, 1
      %s25 = ssub.s32 %s17, %s24
      %p26 = scmp.eq.s32.totalorder %s25, 0
      %s28 = sadd.s32 %s27, 1
      %s29 = scalar_select %p26, %s27, %s28
      %p32 = pneg %p26
      %p33 = scmp.eq.s32.totalorder %s17, 1
      %p34 = por %p32, %p33
      %p35 = scmp.ne.s32.totalorder %s27, %s30
      %p36 = scmp.eq.s32.totalorder %s17, 0
      %p37 = por %p35, %p36
      %p38 = scmp.ne.s32.totalorder %s27, %s30
      %p39 = scmp.eq.s32.totalorder %s22, 1
      %p40 = por %p38, %p39
      %p41 = scmp.ne.s32.totalorder %s30, %s31
      %p42 = scmp.eq.s32.totalorder %s22, 0
      %p43 = por %p41, %p42
      %p44 = scmp.ne.s32.totalorder %s30, %s31
      %p45 = scmp.eq.s32.totalorder %s23, 1
      %p46 = por %p44, %p45
      %p48 = scmp.ne.s32.totalorder %s31, %s47
      %p49 = scmp.eq.s32.totalorder %s23, 0
      %p50 = por %p48, %p49
      %s52 = sadd.s32 %s51, 1
      %p55 = scmp.eq.s32.totalorder %s17, 1
      %p56 = scmp.ne.s32.totalorder %s51, %s53
      %p57 = scmp.eq.s32.totalorder %s17, 0
      %p58 = por %p56, %p57
      %p59 = scmp.ne.s32.totalorder %s51, %s53
      %p60 = scmp.eq.s32.totalorder %s22, 1
      %p61 = por %p59, %p60
      %p62 = scmp.ne.s32.totalorder %s53, %s54
      %p63 = scmp.eq.s32.totalorder %s22, 0
      %p64 = por %p62, %p63
      %p65 = scmp.ne.s32.totalorder %s53, %s54
      %p66 = scmp.eq.s32.totalorder %s23, 1
      %p67 = por %p65, %p66
      %p69 = scmp.ne.s32.totalorder %s54, %s68
      %p70 = scmp.eq.s32.totalorder %s23, 0
      %p71 = por %p69, %p70
      %s73 = sadd.s32 %s72, 1
      %p76 = scmp.eq.s32.totalorder %s17, 1
      %p77 = scmp.ne.s32.totalorder %s72, %s74
      %p78 = scmp.eq.s32.totalorder %s17, 0
      %p79 = por %p77, %p78
      %p80 = scmp.ne.s32.totalorder %s72, %s74
      %p81 = scmp.eq.s32.totalorder %s22, 1
      %p82 = por %p80, %p81
      %p83 = scmp.ne.s32.totalorder %s74, %s75
      %p84 = scmp.eq.s32.totalorder %s22, 0
      %p85 = por %p83, %p84
      %p86 = scmp.ne.s32.totalorder %s74, %s75
      %p87 = scmp.eq.s32.totalorder %s23, 1
      %p88 = por %p86, %p87
      %p90 = scmp.ne.s32.totalorder %s75, %s89
      %p91 = scmp.eq.s32.totalorder %s23, 0
      %p92 = por %p90, %p91
      %s94 = sadd.s32 %s93, 1
      %p97 = scmp.eq.s32.totalorder %s17, 1
      %p98 = scmp.ne.s32.totalorder %s93, %s95
      %p99 = scmp.eq.s32.totalorder %s17, 0
      %p100 = por %p98, %p99
      %p101 = scmp.ne.s32.totalorder %s93, %s95
      %p102 = scmp.eq.s32.totalorder %s22, 1
      %p103 = por %p101, %p102
      %p104 = scmp.ne.s32.totalorder %s95, %s96
      %p105 = scmp.eq.s32.totalorder %s22, 0
      %p106 = por %p104, %p105
      %p107 = scmp.ne.s32.totalorder %s95, %s96
      %p108 = scmp.eq.s32.totalorder %s23, 1
      %p109 = por %p107, %p108
      %p111 = scmp.ne.s32.totalorder %s96, %s110
      %p112 = scmp.eq.s32.totalorder %s23, 0
      %p113 = por %p111, %p112
      %s115 = sadd.s32 %s114, 1
      %p118 = scmp.eq.s32.totalorder %s17, 1
      %p119 = scmp.ne.s32.totalorder %s114, %s116
      %p120 = scmp.eq.s32.totalorder %s17, 0
      %p121 = por %p119, %p120
      %p122 = scmp.ne.s32.totalorder %s114, %s116
      %p123 = scmp.eq.s32.totalorder %s22, 1
      %p124 = por %p122, %p123
      %p125 = scmp.ne.s32.totalorder %s116, %s117
      %p126 = scmp.eq.s32.totalorder %s22, 0
      %p127 = por %p125, %p126
      %p128 = scmp.ne.s32.totalorder %s116, %s117
      %p129 = scmp.eq.s32.totalorder %s23, 1
      %p130 = por %p128, %p129
      %p132 = scmp.ne.s32.totalorder %s117, %s131
      %p133 = scmp.eq.s32.totalorder %s23, 0
      %p134 = por %p132, %p133
      %s136 = sadd.s32 %s135, 1
      %p139 = scmp.eq.s32.totalorder %s17, 1
      %p140 = scmp.ne.s32.totalorder %s135, %s137
      %p141 = scmp.eq.s32.totalorder %s17, 0
      %p142 = por %p140, %p141
      %p143 = scmp.ne.s32.totalorder %s135, %s137
      %p144 = scmp.eq.s32.totalorder %s22, 1
      %p145 = por %p143, %p144
      %p146 = scmp.ne.s32.totalorder %s137, %s138
      %p147 = scmp.eq.s32.totalorder %s22, 0
      %p148 = por %p146, %p147
      %p149 = scmp.ne.s32.totalorder %s137, %s138
      %p150 = scmp.eq.s32.totalorder %s23, 1
      %p151 = por %p149, %p150
      %p153 = scmp.ne.s32.totalorder %s138, %s152
      %p154 = scmp.eq.s32.totalorder %s23, 0
      %p155 = por %p153, %p154
      %s157 = sadd.s32 %s156, 1
      %p160 = scmp.eq.s32.totalorder %s17, 1
      %p161 = scmp.ne.s32.totalorder %s156, %s158
      %p162 = scmp.eq.s32.totalorder %s17, 0
      %p163 = por %p161, %p162
      %p164 = scmp.ne.s32.totalorder %s156, %s158
      %p165 = scmp.eq.s32.totalorder %s22, 1
      %p166 = por %p164, %p165
      %p167 = scmp.ne.s32.totalorder %s158, %s159
      %p168 = scmp.eq.s32.totalorder %s22, 0
      %p169 = por %p167, %p168
      %p170 = scmp.ne.s32.totalorder %s158, %s159
      %p171 = scmp.eq.s32.totalorder %s23, 1
      %p172 = por %p170, %p171
      %p174 = scmp.ne.s32.totalorder %s159, %s173
      %p175 = scmp.eq.s32.totalorder %s23, 0
      %p176 = por %p174, %p175
      %s178 = sadd.s32 %s177, 1
      %p181 = scmp.eq.s32.totalorder %s17, 1
      %p182 = scmp.ne.s32.totalorder %s177, %s179
      %p183 = scmp.eq.s32.totalorder %s17, 0
      %p184 = por %p182, %p183
      %p185 = scmp.ne.s32.totalorder %s177, %s179
      %p186 = scmp.eq.s32.totalorder %s22, 1
      %p187 = por %p185, %p186
      %p188 = scmp.ne.s32.totalorder %s179, %s180
      %p189 = scmp.eq.s32.totalorder %s22, 0
      %p190 = por %p188, %p189
      %p191 = scmp.ne.s32.totalorder %s179, %s180
      %p192 = scmp.eq.s32.totalorder %s23, 1
      %p193 = por %p191, %p192
      %p195 = scmp.ne.s32.totalorder %s180, %s194
      %p196 = scmp.eq.s32.totalorder %s23, 0
      %p197 = por %p195, %p196
      %s198 = ssub.s32 %s17, %s24
      %p199 = scmp.eq.s32.totalorder %s198, 0
      %s201 = sadd.s32 %s200, 1
      %s202 = scalar_select %p199, %s200, %s201
      %p205 = pneg %p199
      %p206 = scmp.eq.s32.totalorder %s17, 1
      %p207 = por %p205, %p206
      %p208 = scmp.ne.s32.totalorder %s200, %s203
      %p209 = scmp.eq.s32.totalorder %s17, 0
      %p210 = por %p208, %p209
      %p211 = scmp.ne.s32.totalorder %s200, %s203
      %p212 = scmp.eq.s32.totalorder %s22, 1
      %p213 = por %p211, %p212
      %p214 = scmp.ne.s32.totalorder %s203, %s204
      %p215 = scmp.eq.s32.totalorder %s22, 0
      %p216 = por %p214, %p215
      %p217 = scmp.ne.s32.totalorder %s203, %s204
      %p218 = scmp.eq.s32.totalorder %s23, 1
      %p219 = por %p217, %p218
      %p221 = scmp.ne.s32.totalorder %s204, %s220
      %p222 = scmp.eq.s32.totalorder %s23, 0
      %p223 = por %p221, %p222
      %p224 = scmp.le.s32.totalorder 1, %s17
      %p225 = scmp.lt.s32.totalorder %s17, 3
      %p226 = pnand %p224, %p225
      %p227 = pneg %p226
      // Predicated region
      $region9: #{net_forward.4} parent=5 // pred_check
        _
      $region10: #{net_forward.4} parent=5 // pred_check_branch
        %229 = sbr.rel (%p226) target = $region12
      $region11: #{net_forward.4} parent=5 // pred_region
        %s230 = ssub.s32 %s17, 1
        // Predicated region
        $region13: #{net_forward.4} parent=11 // pred_check
          %p231 = pneg %p64
        $region14: #{net_forward.4} parent=11 // pred_check_branch
          %233 = sbr.rel (%p231) target = $region16
        $region15: #{net_forward.4} parent=11 // pred_region
          %s235 = ssub.s32 256, 256
          %236 = vsyncadd [#allocation3], %s235
          %s237 = sshll.u32 [#allocation2], 4
          %s238 = int_to_ptr.vmem [resolvable:$true] %s237
          %243 = dma.hbm_to_vmem [thread:$0]  %s1, 256, %s238, [#allocation3], 64, 64, 4
        $region16: #{net_forward.4} parent=11 // pred_fallthru
          _
        // Predicated region
        $region17: #{net_forward.4} parent=11 // pred_check
          %p244 = pneg %p85
        $region18: #{net_forward.4} parent=11 // pred_check_branch
          %246 = sbr.rel (%p244) target = $region20
        $region19: #{net_forward.4} parent=11 // pred_region
          _
        $region20: #{net_forward.4} parent=11 // pred_fallthru
          _
        // Predicated region
        $region21: #{net_forward.4} parent=11 // pred_check
          %p247 = pneg %p106
        $region22: #{net_forward.4} parent=11 // pred_check_branch
          %249 = sbr.rel (%p247) target = $region24
        $region23: #{net_forward.4} parent=11 // pred_region
          %s251 = ssub.s32 16, 16
          %252 = vsyncadd [#allocation5], %s251
          %s254 = sshll.u32 [#allocation4], 4
          %s255 = int_to_ptr.vmem [resolvable:$true] %s254
          %257 = dma.hbm_to_vmem [thread:$0]  %s3, 16, %s255, [#allocation5]
        $region24: #{net_forward.4} parent=11 // pred_fallthru
          _
        // Predicated region
        $region25: #{net_forward.4} parent=11 // pred_check
          %p258 = pneg %p127
        $region26: #{net_forward.4} parent=11 // pred_check_branch
          %260 = sbr.rel (%p258) target = $region28
        $region27: #{net_forward.4} parent=11 // pred_region
          _
        $region28: #{net_forward.4} parent=11 // pred_fallthru
          _
        // Predicated region
        $region29: #{net_forward.4} parent=11 // pred_check
          %p261 = pneg %p148
        $region30: #{net_forward.4} parent=11 // pred_check_branch
          %263 = sbr.rel (%p261) target = $region32
        $region31: #{net_forward.4} parent=11 // pred_region
          %s265 = ssub.s32 16, 16
          %266 = vsyncadd [#allocation5], %s265
          %s268 = sshll.u32 [#allocation6], 4
          %s269 = int_to_ptr.vmem [resolvable:$true] %s268
          %271 = dma.hbm_to_vmem [thread:$0]  %s5, 16, %s269, [#allocation5]
        $region32: #{net_forward.4} parent=11 // pred_fallthru
          _
        // Predicated region
        $region33: #{net_forward.4} parent=11 // pred_check
          %p272 = pneg %p169
        $region34: #{net_forward.4} parent=11 // pred_check_branch
          %274 = sbr.rel (%p272) target = $region36
        $region35: #{net_forward.4} parent=11 // pred_region
          _
        $region36: #{net_forward.4} parent=11 // pred_fallthru
          _
        // Predicated region
        $region37: #{net_forward.4} parent=11 // pred_check
          %p275 = pneg %p190
        $region38: #{net_forward.4} parent=11 // pred_check_branch
          %277 = sbr.rel (%p275) target = $region40
        $region39: #{net_forward.4} parent=11 // pred_region
          %s279 = ssub.s32 16, 16
          %280 = vsyncadd [#allocation8], %s279
          %s282 = sshll.u32 [#allocation7], 4
          %s283 = int_to_ptr.vmem [resolvable:$true] %s282
          %285 = dma.hbm_to_vmem [thread:$0]  %s7, 16, %s283, [#allocation8]
        $region40: #{net_forward.4} parent=11 // pred_fallthru
          _
      $region12: #{net_forward.4} parent=5 // pred_fallthru
        _
      %p286 = scmp.lt.s32.totalorder %s17, 2
      // Predicated region
      $region41: #{net_forward.4} parent=5 // pred_check
        %p287 = pneg %p286
      $region42: #{net_forward.4} parent=5 // pred_check_branch
        %289 = sbr.rel (%p287) target = $region44
      $region43: #{net_forward.4} parent=5 // pred_region
        // Predicated region
        $region45: #{net_forward.4} parent=43 // pred_check
          %p290 = pneg %p37
        $region46: #{net_forward.4} parent=43 // pred_check_branch
          %292 = sbr.rel (%p290) target = $region48
        $region47: #{net_forward.4} parent=43 // pred_region
          %p293 = scmp.lt.s32.totalorder %s17, 1
          %s294 = scalar_select %p293, %s17, 1
          %s295 = smul.addr %s294, 8
          %s296 = smul.addr %s295, 8
          %s297 = scalar_lea.vmem %s0, %s296
        $region48: #{net_forward.4} parent=43 // pred_fallthru
          _
      $region44: #{net_forward.4} parent=5 // pred_fallthru
        _
      %p298 = scmp.le.s32.totalorder 1, %s17
      %p299 = scmp.lt.s32.totalorder %s17, 3
      %p300 = pnand %p298, %p299
      %p301 = pneg %p300
      // Predicated region
      $region49: #{net_forward.4} parent=5 // pred_check
        _
      $region50: #{net_forward.4} parent=5 // pred_check_branch
        %303 = sbr.rel (%p300) target = $region52
      $region51: #{net_forward.4} parent=5 // pred_region
        %s304 = ssub.s32 %s17, 1
        // Predicated region
        $region53: #{net_forward.4} parent=51 // pred_check
          %p305 = pneg %p64
        $region54: #{net_forward.4} parent=51 // pred_check_branch
          %307 = sbr.rel (%p305) target = $region56
        $region55: #{net_forward.4} parent=51 // pred_region
          %308 = dma.done [#allocation3], 256
        $region56: #{net_forward.4} parent=51 // pred_fallthru
          _
        // Predicated region
        $region57: #{net_forward.4} parent=51 // pred_check
          %p309 = pneg %p106
        $region58: #{net_forward.4} parent=51 // pred_check_branch
          %311 = sbr.rel (%p309) target = $region60
        $region59: #{net_forward.4} parent=51 // pred_region
          %312 = dma.done [#allocation5], 16
        $region60: #{net_forward.4} parent=51 // pred_fallthru
          _
        // Predicated region
        $region61: #{net_forward.4} parent=51 // pred_check
          %p313 = pneg %p148
        $region62: #{net_forward.4} parent=51 // pred_check_branch
          %315 = sbr.rel (%p313) target = $region64
        $region63: #{net_forward.4} parent=51 // pred_region
          %316 = dma.done [#allocation5], 16
        $region64: #{net_forward.4} parent=51 // pred_fallthru
          _
        // Predicated region
        $region65: #{net_forward.4} parent=51 // pred_check
          %p317 = pneg %p190
        $region66: #{net_forward.4} parent=51 // pred_check_branch
          %319 = sbr.rel (%p317) target = $region68
        $region67: #{net_forward.4} parent=51 // pred_region
          %320 = dma.done [#allocation8], 16
        $region68: #{net_forward.4} parent=51 // pred_fallthru
          _
        %p321 = scmp.lt.s32.totalorder %s22, 1
        %s322 = scalar_select %p321, %s22, 1
        %s323 = smul.addr %s322, 8
        %s324 = smul.addr %s323, 8
        %s325 = scalar_lea.vmem %s0, %s324
        %p326 = pneg %p43
        %p327 = pneg %p40
        %p328 = pneg %p64
        %p329 = pneg %p61
        %p330 = pneg %p85
        %p331 = pneg %p82
        %p332 = pneg %p106
        %p333 = pneg %p103
        %p334 = pneg %p127
        %p335 = pneg %p124
        %p336 = pneg %p148
        %p337 = pneg %p145
        %p338 = pneg %p169
        %p339 = pneg %p166
        %p340 = pneg %p190
        %p341 = pneg %p187
        %p342 = pneg %p216
        %p343 = pneg %p213
        %p344 = scmp.lt.s32.totalorder %s22, 1
        %s345 = scalar_select %p344, %s22, 1
        %s346 = scalar_lea.vmem %s8, %s345
        %p347 = scmp.lt.s32.totalorder %s22, 1
        %s348 = scalar_select %p347, %s22, 1
        %s349 = smul.addr %s348, 8
        %s350 = smul.addr %s349, 8
        %s351 = scalar_lea.vmem %s0, %s350
        %p352 = scmp.lt.s32.totalorder %s22, 1
        %s353 = scalar_select %p352, %s22, 1
        %s354 = scalar_lea.vmem %s8, %s353
        %v356 = vld [vmem:[%s351] sm:$0xff]
        %v357 = vld [vmem:[%s351 + $0x8] sm:$0xff]
        %v358 = vld [vmem:[%s351 + $0x10] sm:$0xff]
        %v359 = vld [vmem:[%s351 + $0x18] sm:$0xff]
        %v360 = vld [vmem:[%s351 + $0x20] sm:$0xff]
        %v361 = vld [vmem:[%s351 + $0x28] sm:$0xff]
        %v362 = vld [vmem:[%s351 + $0x30] sm:$0xff]
        %v363 = vld [vmem:[%s351 + $0x38] sm:$0xff]
        %v364 = vlaneseq
        %v365 = vand.u32 %v364, 127
        %366 = vset.pattern.permute.xlu0 0
        %367 = vperm.xlu0 %366, %v356
        %v368 = vpop.permute.xlu0 %367
        %369 = vset.pattern.permute.xlu0 0
        %370 = vperm.xlu0 %369, %v357
        %v371 = vpop.permute.xlu0 %370
        %372 = vset.pattern.permute.xlu0 0
        %373 = vperm.xlu0 %372, %v358
        %v374 = vpop.permute.xlu0 %373
        %375 = vset.pattern.permute.xlu0 0
        %376 = vperm.xlu0 %375, %v359
        %v377 = vpop.permute.xlu0 %376
        %378 = vset.pattern.permute.xlu0 0
        %379 = vperm.xlu0 %378, %v360
        %v380 = vpop.permute.xlu0 %379
        %381 = vset.pattern.permute.xlu0 0
        %382 = vperm.xlu0 %381, %v361
        %v383 = vpop.permute.xlu0 %382
        %384 = vset.pattern.permute.xlu0 0
        %385 = vperm.xlu0 %384, %v362
        %v386 = vpop.permute.xlu0 %385
        %387 = vset.pattern.permute.xlu0 0
        %388 = vperm.xlu0 %387, %v363
        %v389 = vpop.permute.xlu0 %388
        %vm390 = vcmp.eq.s32.totalorder %v368, %v365
        %vm391 = vcmp.eq.s32.totalorder %v371, %v365
        %vm392 = vcmp.eq.s32.totalorder %v374, %v365
        %vm393 = vcmp.eq.s32.totalorder %v377, %v365
        %vm394 = vcmp.eq.s32.totalorder %v380, %v365
        %vm395 = vcmp.eq.s32.totalorder %v383, %v365
        %vm396 = vcmp.eq.s32.totalorder %v386, %v365
        %vm397 = vcmp.eq.s32.totalorder %v389, %v365
        %v398 = vsel %vm390, 1, 0
        %v399 = vsel %vm391, 1, 0
        %v400 = vsel %vm392, 1, 0
        %v401 = vsel %vm393, 1, 0
        %v402 = vsel %vm394, 1, 0
        %v403 = vsel %vm395, 1, 0
        %v404 = vsel %vm396, 1, 0
        %v405 = vsel %vm397, 1, 0
        %v406 = vcvt.s32.f32 %v398
        %v407 = vcvt.s32.f32 %v399
        %v408 = vcvt.s32.f32 %v400
        %v409 = vcvt.s32.f32 %v401
        %v410 = vcvt.s32.f32 %v402
        %v411 = vcvt.s32.f32 %v403
        %v412 = vcvt.s32.f32 %v404
        %v413 = vcvt.s32.f32 %v405
        %v414 = vpack.c.bf16 %v407, %v406
        %v415 = vpack.c.bf16 %v409, %v408
        %v416 = vpack.c.bf16 %v411, %v410
        %v417 = vpack.c.bf16 %v413, %v412
        %v418 = vld [vmem:[#allocation2] sm:$0xf]
        %v419 = vld [vmem:[#allocation2 + $0x4] sm:$0xf]
        %v420 = vld [vmem:[#allocation2 + $0x8] sm:$0xf]
        %v421 = vld [vmem:[#allocation2 + $0xc] sm:$0x1]
        %v426 = vunpack.c.l.b16 %v418
        %v427 = vunpack.c.l.b16 %v419
        %v428 = vunpack.c.l.b16 %v420
        %v429 = vunpack.c.l.b16 %v421
        %v430 = vpack.c.b16 %v427, %v426
        %v431 = vpack.c.b16 %v429, %v428
        %vm433 = vcmask 211968
        %v435 = vsel %vm433, %v414, 0
        %v438 = vsel %vm433, %v415, 0
        %v441 = vsel %vm433, %v416, 0
        %v444 = vsel %vm433, %v417, 0
        %vm446 = vcmask 1044480
        %v448 = vsel %vm446, %v431, 0
        %450 = vmatprep.subr.bf16.mxu0 0
        %451 = vmatpush1.bf16.msra.mxu0 0
        %452 = vmatprep.subr.bf16.mxu0 0
        %453 = vmatpush1.bf16.msra.mxu0 0
        %454 = vmatprep.subr.bf16.mxu0 0
        %455 = vmatpush1.bf16.msra.mxu0 0
        %456 = vmatprep.subr.bf16.mxu0 0
        %457 = vmatpush1.bf16.msra.mxu0 0
        %458 = vmatprep.subr.bf16.mxu0 0
        %459 = vmatpush1.bf16.msra.mxu0 0
        %460 = vmatprep.subr.bf16.mxu0 0
        %461 = vmatpush1.bf16.msra.mxu0 0
        %462 = vmatprep.subr.bf16.mxu0 0
        %463 = vmatpush1.bf16.msra.mxu0 %v448
        %464 = vmatprep.subr.bf16.mxu0 0
        %465 = vmatpush1.bf16.msra.mxu0 %v430
        %466 = vmatprep.subr.bf16.mxu0 0
        %467 = vmatpush2.bf16.msra.mxu0 0
        %468 = vmatprep.subr.bf16.mxu0 0
        %469 = vmatpush2.bf16.msra.mxu0 0
        %470 = vmatprep.subr.bf16.mxu0 0
        %471 = vmatpush2.bf16.msra.mxu0 0
        %472 = vmatprep.subr.bf16.mxu0 0
        %473 = vmatpush2.bf16.msra.mxu0 0
        %474 = vmatprep.subr.bf16.mxu0 0
        %475 = vmatpush2.bf16.msra.mxu0 0
        %476 = vmatprep.subr.bf16.mxu0 0
        %477 = vmatpush2.bf16.msra.mxu0 0
        %478 = vmatprep.subr.bf16.mxu0 0
        %479 = vmatpush2.bf16.msra.mxu0 0
        %480 = vmatprep.subr.bf16.mxu0 0
        %481 = vmatpush2.bf16.msra.mxu0 0
        %482 = vmatprep.mubr.bf16.mxu0 0
        %483 = vmatmul.mubr.bf16.gmra.mxu0 %v435
        %v484 = vpop.f32.mrf.mxu0
        %v485 = vadd.f32 0.0, %v484
        %v486 = vpop.f32.mrf.mxu0
        %v487 = vpop.f32.mrf.mxu0
        %v488 = vadd.f32 0.0, %v487
        %v489 = vpop.f32.mrf.mxu0
        %490 = vmatprep.mubr.bf16.mxu0 0
        %491 = vmatmul.mubr.bf16.gmra.mxu0 %v438
        %v492 = vpop.f32.mrf.mxu0
        %v493 = vadd.f32 0.0, %v492
        %v494 = vpop.f32.mrf.mxu0
        %v495 = vpop.f32.mrf.mxu0
        %v496 = vadd.f32 0.0, %v495
        %v497 = vpop.f32.mrf.mxu0
        %498 = vmatprep.mubr.bf16.mxu0 0
        %499 = vmatmul.mubr.bf16.gmra.mxu0 %v441
        %v500 = vpop.f32.mrf.mxu0
        %v501 = vadd.f32 0.0, %v500
        %v502 = vpop.f32.mrf.mxu0
        %v503 = vpop.f32.mrf.mxu0
        %v504 = vadd.f32 0.0, %v503
        %v505 = vpop.f32.mrf.mxu0
        %506 = vmatprep.mubr.bf16.mxu0 0
        %507 = vmatmul.mubr.bf16.gmra.mxu0 %v444
        %v508 = vpop.f32.mrf.mxu0
        %v509 = vadd.f32 0.0, %v508
        %v510 = vpop.f32.mrf.mxu0
        %v511 = vpop.f32.mrf.mxu0
        %v512 = vadd.f32 0.0, %v511
        %v513 = vpop.f32.mrf.mxu0
        %514 = vdwg.mxu0
        %v515 = vpack.c.bf16 %v488, %v485
        %v516 = vpack.c.bf16 %v496, %v493
        %v517 = vpack.c.bf16 %v504, %v501
        %v518 = vpack.c.bf16 %v512, %v509
        %vm519 = vsmask.f32 7424
        %v521 = vshrl.u32 %v515, 16
        %v523 = vshll.u32 %v515, 16
        %v525 = vrot.slane %v523, 1
        %v526 = vor.u32 %v521, %v525
        %v528 = vshll.u32 %v516, 16
        %v530 = vrot.slane %v528, 1
        %v531 = vsel %vm519, %v526, %v530
        %v532 = vshrl.u32 %v516, 16
        %v534 = vor.u32 %v532, %v530
        %v536 = vshll.u32 %v517, 16
        %v538 = vrot.slane %v536, 1
        %v539 = vsel %vm519, %v534, %v538
        %v540 = vshrl.u32 %v517, 16
        %v542 = vor.u32 %v540, %v538
        %v544 = vshll.u32 %v518, 16
        %v546 = vrot.slane %v544, 1
        %v547 = vsel %vm519, %v542, %v546
        %v548 = vshrl.u32 %v518, 16
        %v550 = vor.u32 %v548, %v546
        %vm559 = vcmask 1046528
        %v560 = vrot.slane %v515, 1
        %v561 = vrot.slane %v516, 1
        %v562 = vsel %vm559, %v560, %v561
        %v563 = vrot.slane %v517, 1
        %v564 = vsel %vm559, %v561, %v563
        %v565 = vrot.slane %v518, 1
        %v566 = vsel %vm559, %v563, %v565
        %vm571 = vsmask.f32 6400
        %v572 = vrot.slane %v521, 1
        %v573 = vrot.slane %v523, 2
        %v574 = vor.u32 %v572, %v573
        %v575 = vrot.slane %v532, 1
        %v576 = vrot.slane %v528, 2
        %v577 = vor.u32 %v575, %v576
        %v578 = vsel %vm571, %v574, %v577
        %v579 = vrot.slane %v540, 1
        %v580 = vrot.slane %v536, 2
        %v581 = vor.u32 %v579, %v580
        %v582 = vsel %vm571, %v577, %v581
        %v583 = vrot.slane %v548, 1
        %v584 = vrot.slane %v544, 2
        %v585 = vor.u32 %v583, %v584
        %v586 = vsel %vm571, %v581, %v585
        %vm591 = vcmask 1045504
        %v592 = vrot.slane %v515, 2
        %v593 = vrot.slane %v516, 2
        %v594 = vsel %vm591, %v592, %v593
        %v595 = vrot.slane %v517, 2
        %v596 = vsel %vm591, %v593, %v595
        %v597 = vrot.slane %v518, 2
        %v598 = vsel %vm591, %v595, %v597
        %vm603 = vsmask.f32 5376
        %v604 = vrot.slane %v521, 2
        %v605 = vrot.slane %v523, 3
        %v606 = vor.u32 %v604, %v605
        %v607 = vrot.slane %v532, 2
        %v608 = vrot.slane %v528, 3
        %v609 = vor.u32 %v607, %v608
        %v610 = vsel %vm603, %v606, %v609
        %v611 = vrot.slane %v540, 2
        %v612 = vrot.slane %v536, 3
        %v613 = vor.u32 %v611, %v612
        %v614 = vsel %vm603, %v609, %v613
        %v615 = vrot.slane %v548, 2
        %v616 = vrot.slane %v544, 3
        %v617 = vor.u32 %v615, %v616
        %v618 = vsel %vm603, %v613, %v617
        %vm623 = vcmask 1044480
        %v624 = vrot.slane %v515, 3
        %v625 = vrot.slane %v516, 3
        %v626 = vsel %vm623, %v624, %v625
        %v627 = vrot.slane %v517, 3
        %v628 = vsel %vm623, %v625, %v627
        %v629 = vrot.slane %v518, 3
        %v630 = vsel %vm623, %v627, %v629
        %vm635 = vsmask.f32 4352
        %v636 = vrot.slane %v521, 3
        %v637 = vrot.slane %v523, 4
        %v638 = vor.u32 %v636, %v637
        %v639 = vrot.slane %v532, 3
        %v640 = vrot.slane %v528, 4
        %v641 = vor.u32 %v639, %v640
        %v642 = vsel %vm635, %v638, %v641
        %v643 = vrot.slane %v540, 3
        %v644 = vrot.slane %v536, 4
        %v645 = vor.u32 %v643, %v644
        %v646 = vsel %vm635, %v641, %v645
        %v647 = vrot.slane %v548, 3
        %v648 = vrot.slane %v544, 4
        %v649 = vor.u32 %v647, %v648
        %v650 = vsel %vm635, %v645, %v649
        %v655 = vld [vmem:[%s2] sm:$0xf]
        %v656 = vld [vmem:[%s2 + $0x4] sm:$0xf]
        %v657 = vld [vmem:[%s2 + $0x8] sm:$0xf]
        %v658 = vld [vmem:[%s2 + $0xc] sm:$0xf]
        %v659 = vld [vmem:[%s2 + $0x10] sm:$0xf]
        %v660 = vld [vmem:[%s2 + $0x14] sm:$0xf]
        %v661 = vld [vmem:[%s2 + $0x18] sm:$0xf]
        %v662 = vld [vmem:[%s2 + $0x1c] sm:$0xf]
        %v663 = vld [vmem:[%s2 + $0x20] sm:$0xf]
        %v664 = vld [vmem:[%s2 + $0x24] sm:$0xf]
        %v665 = vld [vmem:[%s2 + $0x28] sm:$0xf]
        %v666 = vld [vmem:[%s2 + $0x2c] sm:$0xf]
        %v667 = vld [vmem:[%s2 + $0x30] sm:$0xf]
        %v668 = vld [vmem:[%s2 + $0x34] sm:$0xf]
        %v669 = vld [vmem:[%s2 + $0x38] sm:$0xf]
        %v670 = vld [vmem:[%s2 + $0x3c] sm:$0xf]
        %v671 = vld [vmem:[%s2 + $0x40] sm:$0xf]
        %v672 = vld [vmem:[%s2 + $0x44] sm:$0xf]
        %v673 = vld [vmem:[%s2 + $0x48] sm:$0xf]
        %v674 = vld [vmem:[%s2 + $0x4c] sm:$0xf]
        %v675 = vld [vmem:[%s2 + $0x50] sm:$0xf]
        %v676 = vld [vmem:[%s2 + $0x54] sm:$0xf]
        %v677 = vld [vmem:[%s2 + $0x58] sm:$0xf]
        %v678 = vld [vmem:[%s2 + $0x5c] sm:$0xf]
        %v679 = vld [vmem:[%s2 + $0x60] sm:$0xf]
        %v680 = vld [vmem:[%s2 + $0x64] sm:$0xf]
        %v681 = vld [vmem:[%s2 + $0x68] sm:$0xf]
        %v682 = vld [vmem:[%s2 + $0x6c] sm:$0xf]
        %v683 = vld [vmem:[%s2 + $0x70] sm:$0xf]
        %v684 = vld [vmem:[%s2 + $0x74] sm:$0xf]
        %v685 = vld [vmem:[%s2 + $0x78] sm:$0xf]
        %v686 = vld [vmem:[%s2 + $0x7c] sm:$0xf]
        %v687 = vld [vmem:[%s2 + $0x80] sm:$0xf]
        %v688 = vld [vmem:[%s2 + $0x84] sm:$0xf]
        %v689 = vld [vmem:[%s2 + $0x88] sm:$0xf]
        %v690 = vld [vmem:[%s2 + $0x8c] sm:$0xf]
        %v691 = vld [vmem:[%s2 + $0x90] sm:$0xf]
        %v692 = vld [vmem:[%s2 + $0x94] sm:$0xf]
        %v693 = vld [vmem:[%s2 + $0x98] sm:$0xf]
        %v694 = vld [vmem:[%s2 + $0x9c] sm:$0xf]
        %v695 = vld [vmem:[%s2 + $0xa0] sm:$0xf]
        %v696 = vld [vmem:[%s2 + $0xa4] sm:$0xf]
        %v697 = vld [vmem:[%s2 + $0xa8] sm:$0xf]
        %v698 = vld [vmem:[%s2 + $0xac] sm:$0xf]
        %v699 = vld [vmem:[%s2 + $0xb0] sm:$0xf]
        %v700 = vld [vmem:[%s2 + $0xb4] sm:$0xf]
        %v701 = vld [vmem:[%s2 + $0xb8] sm:$0xf]
        %v702 = vld [vmem:[%s2 + $0xbc] sm:$0xf]
        %v703 = vld [vmem:[%s2 + $0xc0] sm:$0xf]
        %v704 = vld [vmem:[%s2 + $0xc4] sm:$0xf]
        %v705 = vld [vmem:[%s2 + $0xc8] sm:$0xf]
        %v706 = vld [vmem:[%s2 + $0xcc] sm:$0xf]
        %v707 = vld [vmem:[%s2 + $0xd0] sm:$0xf]
        %v708 = vld [vmem:[%s2 + $0xd4] sm:$0xf]
        %v709 = vld [vmem:[%s2 + $0xd8] sm:$0xf]
        %v710 = vld [vmem:[%s2 + $0xdc] sm:$0xf]
        %v711 = vld [vmem:[%s2 + $0xe0] sm:$0xf]
        %v712 = vld [vmem:[%s2 + $0xe4] sm:$0xf]
        %v713 = vld [vmem:[%s2 + $0xe8] sm:$0xf]
        %v714 = vld [vmem:[%s2 + $0xec] sm:$0xf]
        %v715 = vld [vmem:[%s2 + $0xf0] sm:$0xf]
        %v716 = vld [vmem:[%s2 + $0xf4] sm:$0xf]
        %v717 = vld [vmem:[%s2 + $0xf8] sm:$0xf]
        %v718 = vld [vmem:[%s2 + $0xfc] sm:$0xf]
        %v719 = vld [vmem:[%s2 + $0x100] sm:$0xf]
        %v720 = vld [vmem:[%s2 + $0x104] sm:$0xf]
        %v721 = vld [vmem:[%s2 + $0x108] sm:$0xf]
        %v722 = vld [vmem:[%s2 + $0x10c] sm:$0xf]
        %v723 = vld [vmem:[%s2 + $0x110] sm:$0xf]
        %v724 = vld [vmem:[%s2 + $0x114] sm:$0xf]
        %v725 = vld [vmem:[%s2 + $0x118] sm:$0xf]
        %v726 = vld [vmem:[%s2 + $0x11c] sm:$0xf]
        %v727 = vld [vmem:[%s2 + $0x120] sm:$0xf]
        %v728 = vld [vmem:[%s2 + $0x124] sm:$0xf]
        %v729 = vld [vmem:[%s2 + $0x128] sm:$0xf]
        %v730 = vld [vmem:[%s2 + $0x12c] sm:$0xf]
        %v731 = vld [vmem:[%s2 + $0x130] sm:$0xf]
        %v732 = vld [vmem:[%s2 + $0x134] sm:$0xf]
        %v733 = vld [vmem:[%s2 + $0x138] sm:$0xf]
        %v734 = vld [vmem:[%s2 + $0x13c] sm:$0xf]
        %v735 = vld [vmem:[%s2 + $0x140] sm:$0xf]
        %v736 = vld [vmem:[%s2 + $0x144] sm:$0xf]
        %v737 = vld [vmem:[%s2 + $0x148] sm:$0xf]
        %v738 = vld [vmem:[%s2 + $0x14c] sm:$0xf]
        %v739 = vld [vmem:[%s2 + $0x150] sm:$0xf]
        %v740 = vld [vmem:[%s2 + $0x154] sm:$0xf]
        %v741 = vld [vmem:[%s2 + $0x158] sm:$0xf]
        %v742 = vld [vmem:[%s2 + $0x15c] sm:$0xf]
        %v743 = vld [vmem:[%s2 + $0x160] sm:$0xf]
        %v744 = vld [vmem:[%s2 + $0x164] sm:$0xf]
        %v745 = vld [vmem:[%s2 + $0x168] sm:$0xf]
        %v746 = vld [vmem:[%s2 + $0x16c] sm:$0xf]
        %v747 = vld [vmem:[%s2 + $0x170] sm:$0xf]
        %v748 = vld [vmem:[%s2 + $0x174] sm:$0xf]
        %v749 = vld [vmem:[%s2 + $0x178] sm:$0xf]
        %v750 = vld [vmem:[%s2 + $0x17c] sm:$0xf]
        %v751 = vld [vmem:[%s2 + $0x180] sm:$0xf]
        %v752 = vld [vmem:[%s2 + $0x184] sm:$0xf]
        %v753 = vld [vmem:[%s2 + $0x188] sm:$0xf]
        %v754 = vld [vmem:[%s2 + $0x18c] sm:$0xf]
        %v755 = vld [vmem:[%s2 + $0x190] sm:$0xf]
        %v756 = vld [vmem:[%s2 + $0x194] sm:$0xf]
        %v757 = vld [vmem:[%s2 + $0x198] sm:$0xf]
        %v758 = vld [vmem:[%s2 + $0x19c] sm:$0xf]
        %v759 = vld [vmem:[%s2 + $0x1a0] sm:$0xf]
        %v760 = vld [vmem:[%s2 + $0x1a4] sm:$0xf]
        %v761 = vld [vmem:[%s2 + $0x1a8] sm:$0xf]
        %v762 = vld [vmem:[%s2 + $0x1ac] sm:$0xf]
        %v763 = vld [vmem:[%s2 + $0x1b0] sm:$0xf]
        %v764 = vld [vmem:[%s2 + $0x1b4] sm:$0xf]
        %v765 = vld [vmem:[%s2 + $0x1b8] sm:$0xf]
        %v766 = vld [vmem:[%s2 + $0x1bc] sm:$0xf]
        %v767 = vld [vmem:[%s2 + $0x1c0] sm:$0xf]
        %v768 = vld [vmem:[%s2 + $0x1c4] sm:$0xf]
        %v769 = vld [vmem:[%s2 + $0x1c8] sm:$0xf]
        %v770 = vld [vmem:[%s2 + $0x1cc] sm:$0xf]
        %v771 = vld [vmem:[%s2 + $0x1d0] sm:$0xf]
        %v772 = vld [vmem:[%s2 + $0x1d4] sm:$0xf]
        %v773 = vld [vmem:[%s2 + $0x1d8] sm:$0xf]
        %v774 = vld [vmem:[%s2 + $0x1dc] sm:$0xf]
        %v775 = vld [vmem:[%s2 + $0x1e0] sm:$0xf]
        %v776 = vld [vmem:[%s2 + $0x1e4] sm:$0xf]
        %v777 = vld [vmem:[%s2 + $0x1e8] sm:$0xf]
        %v778 = vld [vmem:[%s2 + $0x1ec] sm:$0xf]
        %v779 = vld [vmem:[%s2 + $0x1f0] sm:$0xf]
        %v780 = vld [vmem:[%s2 + $0x1f4] sm:$0xf]
        %v781 = vld [vmem:[%s2 + $0x1f8] sm:$0xf]
        %v782 = vld [vmem:[%s2 + $0x1fc] sm:$0xf]
        %v783 = vld [vmem:[#allocation4] sm:$0x1]
        %v785 = vlaneseq
        %v786 = vshrl.u32 %v785, 7
        %v787 = vsub.s32 0, %v786
        %v788 = vrot.slane %v783, %v787
        %v918 = vunpack.c.l.b16 %v655
        %v919 = vunpack.c.l.b16 %v656
        %v920 = vunpack.c.l.b16 %v657
        %v921 = vunpack.c.l.b16 %v658
        %v922 = vunpack.c.l.b16 %v659
        %v923 = vunpack.c.l.b16 %v660
        %v924 = vunpack.c.l.b16 %v661
        %v925 = vunpack.c.l.b16 %v662
        %v926 = vunpack.c.l.b16 %v663
        %v927 = vunpack.c.l.b16 %v664
        %v928 = vunpack.c.l.b16 %v665
        %v929 = vunpack.c.l.b16 %v666
        %v930 = vunpack.c.l.b16 %v667
        %v931 = vunpack.c.l.b16 %v668
        %v932 = vunpack.c.l.b16 %v669
        %v933 = vunpack.c.l.b16 %v670
        %v934 = vunpack.c.l.b16 %v671
        %v935 = vunpack.c.l.b16 %v672
        %v936 = vunpack.c.l.b16 %v673
        %v937 = vunpack.c.l.b16 %v674
        %v938 = vunpack.c.l.b16 %v675
        %v939 = vunpack.c.l.b16 %v676
        %v940 = vunpack.c.l.b16 %v677
        %v941 = vunpack.c.l.b16 %v678
        %v942 = vunpack.c.l.b16 %v679
        %v943 = vunpack.c.l.b16 %v680
        %v944 = vunpack.c.l.b16 %v681
        %v945 = vunpack.c.l.b16 %v682
        %v946 = vunpack.c.l.b16 %v683
        %v947 = vunpack.c.l.b16 %v684
        %v948 = vunpack.c.l.b16 %v685
        %v949 = vunpack.c.l.b16 %v686
        %v950 = vunpack.c.l.b16 %v687
        %v951 = vunpack.c.l.b16 %v688
        %v952 = vunpack.c.l.b16 %v689
        %v953 = vunpack.c.l.b16 %v690
        %v954 = vunpack.c.l.b16 %v691
        %v955 = vunpack.c.l.b16 %v692
        %v956 = vunpack.c.l.b16 %v693
        %v957 = vunpack.c.l.b16 %v694
        %v958 = vunpack.c.l.b16 %v695
        %v959 = vunpack.c.l.b16 %v696
        %v960 = vunpack.c.l.b16 %v697
        %v961 = vunpack.c.l.b16 %v698
        %v962 = vunpack.c.l.b16 %v699
        %v963 = vunpack.c.l.b16 %v700
        %v964 = vunpack.c.l.b16 %v701
        %v965 = vunpack.c.l.b16 %v702
        %v966 = vunpack.c.l.b16 %v703
        %v967 = vunpack.c.l.b16 %v704
        %v968 = vunpack.c.l.b16 %v705
        %v969 = vunpack.c.l.b16 %v706
        %v970 = vunpack.c.l.b16 %v707
        %v971 = vunpack.c.l.b16 %v708
        %v972 = vunpack.c.l.b16 %v709
        %v973 = vunpack.c.l.b16 %v710
        %v974 = vunpack.c.l.b16 %v711
        %v975 = vunpack.c.l.b16 %v712
        %v976 = vunpack.c.l.b16 %v713
        %v977 = vunpack.c.l.b16 %v714
        %v978 = vunpack.c.l.b16 %v715
        %v979 = vunpack.c.l.b16 %v716
        %v980 = vunpack.c.l.b16 %v717
        %v981 = vunpack.c.l.b16 %v718
        %v982 = vunpack.c.l.b16 %v719
        %v983 = vunpack.c.l.b16 %v720
        %v984 = vunpack.c.l.b16 %v721
        %v985 = vunpack.c.l.b16 %v722
        %v986 = vunpack.c.l.b16 %v723
        %v987 = vunpack.c.l.b16 %v724
        %v988 = vunpack.c.l.b16 %v725
        %v989 = vunpack.c.l.b16 %v726
        %v990 = vunpack.c.l.b16 %v727
        %v991 = vunpack.c.l.b16 %v728
        %v992 = vunpack.c.l.b16 %v729
        %v993 = vunpack.c.l.b16 %v730
        %v994 = vunpack.c.l.b16 %v731
        %v995 = vunpack.c.l.b16 %v732
        %v996 = vunpack.c.l.b16 %v733
        %v997 = vunpack.c.l.b16 %v734
        %v998 = vunpack.c.l.b16 %v735
        %v999 = vunpack.c.l.b16 %v736
        %v1000 = vunpack.c.l.b16 %v737
        %v1001 = vunpack.c.l.b16 %v738
        %v1002 = vunpack.c.l.b16 %v739
        %v1003 = vunpack.c.l.b16 %v740
        %v1004 = vunpack.c.l.b16 %v741
        %v1005 = vunpack.c.l.b16 %v742
        %v1006 = vunpack.c.l.b16 %v743
        %v1007 = vunpack.c.l.b16 %v744
        %v1008 = vunpack.c.l.b16 %v745
        %v1009 = vunpack.c.l.b16 %v746
        %v1010 = vunpack.c.l.b16 %v747
        %v1011 = vunpack.c.l.b16 %v748
        %v1012 = vunpack.c.l.b16 %v749
        %v1013 = vunpack.c.l.b16 %v750
        %v1014 = vunpack.c.l.b16 %v751
        %v1015 = vunpack.c.l.b16 %v752
        %v1016 = vunpack.c.l.b16 %v753
        %v1017 = vunpack.c.l.b16 %v754
        %v1018 = vunpack.c.l.b16 %v755
        %v1019 = vunpack.c.l.b16 %v756
        %v1020 = vunpack.c.l.b16 %v757
        %v1021 = vunpack.c.l.b16 %v758
        %v1022 = vunpack.c.l.b16 %v759
        %v1023 = vunpack.c.l.b16 %v760
        %v1024 = vunpack.c.l.b16 %v761
        %v1025 = vunpack.c.l.b16 %v762
        %v1026 = vunpack.c.l.b16 %v763
        %v1027 = vunpack.c.l.b16 %v764
        %v1028 = vunpack.c.l.b16 %v765
        %v1029 = vunpack.c.l.b16 %v766
        %v1030 = vunpack.c.l.b16 %v767
        %v1031 = vunpack.c.l.b16 %v768
        %v1032 = vunpack.c.l.b16 %v769
        %v1033 = vunpack.c.l.b16 %v770
        %v1034 = vunpack.c.l.b16 %v771
        %v1035 = vunpack.c.l.b16 %v772
        %v1036 = vunpack.c.l.b16 %v773
        %v1037 = vunpack.c.l.b16 %v774
        %v1038 = vunpack.c.l.b16 %v775
        %v1039 = vunpack.c.l.b16 %v776
        %v1040 = vunpack.c.l.b16 %v777
        %v1041 = vunpack.c.l.b16 %v778
        %v1042 = vunpack.c.l.b16 %v779
        %v1043 = vunpack.c.l.b16 %v780
        %v1044 = vunpack.c.l.b16 %v781
        %v1045 = vunpack.c.l.b16 %v782
        %v1046 = vpack.c.b16 %v919, %v918
        %v1047 = vpack.c.b16 %v921, %v920
        %v1048 = vpack.c.b16 %v923, %v922
        %v1049 = vpack.c.b16 %v925, %v924
        %v1050 = vpack.c.b16 %v927, %v926
        %v1051 = vpack.c.b16 %v929, %v928
        %v1052 = vpack.c.b16 %v931, %v930
        %v1053 = vpack.c.b16 %v933, %v932
        %v1054 = vpack.c.b16 %v935, %v934
        %v1055 = vpack.c.b16 %v937, %v936
        %v1056 = vpack.c.b16 %v939, %v938
        %v1057 = vpack.c.b16 %v941, %v940
        %v1058 = vpack.c.b16 %v943, %v942
        %v1059 = vpack.c.b16 %v945, %v944
        %v1060 = vpack.c.b16 %v947, %v946
        %v1061 = vpack.c.b16 %v949, %v948
        %v1062 = vpack.c.b16 %v951, %v950
        %v1063 = vpack.c.b16 %v953, %v952
        %v1064 = vpack.c.b16 %v955, %v954
        %v1065 = vpack.c.b16 %v957, %v956
        %v1066 = vpack.c.b16 %v959, %v958
        %v1067 = vpack.c.b16 %v961, %v960
        %v1068 = vpack.c.b16 %v963, %v962
        %v1069 = vpack.c.b16 %v965, %v964
        %v1070 = vpack.c.b16 %v967, %v966
        %v1071 = vpack.c.b16 %v969, %v968
        %v1072 = vpack.c.b16 %v971, %v970
        %v1073 = vpack.c.b16 %v973, %v972
        %v1074 = vpack.c.b16 %v975, %v974
        %v1075 = vpack.c.b16 %v977, %v976
        %v1076 = vpack.c.b16 %v979, %v978
        %v1077 = vpack.c.b16 %v981, %v980
        %v1078 = vpack.c.b16 %v983, %v982
        %v1079 = vpack.c.b16 %v985, %v984
        %v1080 = vpack.c.b16 %v987, %v986
        %v1081 = vpack.c.b16 %v989, %v988
        %v1082 = vpack.c.b16 %v991, %v990
        %v1083 = vpack.c.b16 %v993, %v992
        %v1084 = vpack.c.b16 %v995, %v994
        %v1085 = vpack.c.b16 %v997, %v996
        %v1086 = vpack.c.b16 %v999, %v998
        %v1087 = vpack.c.b16 %v1001, %v1000
        %v1088 = vpack.c.b16 %v1003, %v1002
        %v1089 = vpack.c.b16 %v1005, %v1004
        %v1090 = vpack.c.b16 %v1007, %v1006
        %v1091 = vpack.c.b16 %v1009, %v1008
        %v1092 = vpack.c.b16 %v1011, %v1010
        %v1093 = vpack.c.b16 %v1013, %v1012
        %v1094 = vpack.c.b16 %v1015, %v1014
        %v1095 = vpack.c.b16 %v1017, %v1016
        %v1096 = vpack.c.b16 %v1019, %v1018
        %v1097 = vpack.c.b16 %v1021, %v1020
        %v1098 = vpack.c.b16 %v1023, %v1022
        %v1099 = vpack.c.b16 %v1025, %v1024
        %v1100 = vpack.c.b16 %v1027, %v1026
        %v1101 = vpack.c.b16 %v1029, %v1028
        %v1102 = vpack.c.b16 %v1031, %v1030
        %v1103 = vpack.c.b16 %v1033, %v1032
        %v1104 = vpack.c.b16 %v1035, %v1034
        %v1105 = vpack.c.b16 %v1037, %v1036
        %v1106 = vpack.c.b16 %v1039, %v1038
        %v1107 = vpack.c.b16 %v1041, %v1040
        %v1108 = vpack.c.b16 %v1043, %v1042
        %v1109 = vpack.c.b16 %v1045, %v1044
        %1174 = vmatprep.subr.bf16.mxu0 0
        %1175 = vmatpush1.bf16.msra.mxu0 %v1053
        %1176 = vmatprep.subr.bf16.mxu0 0
        %1177 = vmatpush1.bf16.msra.mxu0 %v1052
        %1178 = vmatprep.subr.bf16.mxu0 0
        %1179 = vmatpush1.bf16.msra.mxu0 %v1051
        %1180 = vmatprep.subr.bf16.mxu0 0
        %1181 = vmatpush1.bf16.msra.mxu0 %v1050
        %1182 = vmatprep.subr.bf16.mxu0 0
        %1183 = vmatpush1.bf16.msra.mxu0 %v1049
        %1184 = vmatprep.subr.bf16.mxu0 0
        %1185 = vmatpush1.bf16.msra.mxu0 %v1048
        %1186 = vmatprep.subr.bf16.mxu0 0
        %1187 = vmatpush1.bf16.msra.mxu0 %v1047
        %1188 = vmatprep.subr.bf16.mxu0 0
        %1189 = vmatpush1.bf16.msra.mxu0 %v1046
        %1190 = vmatprep.subr.bf16.mxu0 0
        %1191 = vmatpush2.bf16.msra.mxu0 %v1061
        %1192 = vmatprep.subr.bf16.mxu0 0
        %1193 = vmatpush2.bf16.msra.mxu0 %v1060
        %1194 = vmatprep.subr.bf16.mxu0 0
        %1195 = vmatpush2.bf16.msra.mxu0 %v1059
        %1196 = vmatprep.subr.bf16.mxu0 0
        %1197 = vmatpush2.bf16.msra.mxu0 %v1058
        %1198 = vmatprep.subr.bf16.mxu0 0
        %1199 = vmatpush2.bf16.msra.mxu0 %v1057
        %1200 = vmatprep.subr.bf16.mxu0 0
        %1201 = vmatpush2.bf16.msra.mxu0 %v1056
        %1202 = vmatprep.subr.bf16.mxu0 0
        %1203 = vmatpush2.bf16.msra.mxu0 %v1055
        %1204 = vmatprep.subr.bf16.mxu0 0
        %1205 = vmatpush2.bf16.msra.mxu0 %v1054
        %1206 = vmatprep.mubr.bf16.mxu0 %v531
        %1207 = vmatmul.mubr.bf16.gmra.mxu0 %v515
        %v1208 = vpop.f32.mrf.mxu0
        %v1209 = vadd.f32 %v788, %v1208
        %v1210 = vpop.f32.mrf.mxu0
        %v1211 = vpop.f32.mrf.mxu0
        %v1212 = vadd.f32 %v788, %v1211
        %v1213 = vpop.f32.mrf.mxu0
        %1214 = vmatprep.mubr.bf16.mxu0 %v539
        %1215 = vmatmul.mubr.bf16.gmra.mxu0 %v516
        %v1216 = vpop.f32.mrf.mxu0
        %v1217 = vadd.f32 %v788, %v1216
        %v1218 = vpop.f32.mrf.mxu0
        %v1219 = vpop.f32.mrf.mxu0
        %v1220 = vadd.f32 %v788, %v1219
        %v1221 = vpop.f32.mrf.mxu0
        %1222 = vmatprep.mubr.bf16.mxu0 %v547
        %1223 = vmatmul.mubr.bf16.gmra.mxu0 %v517
        %v1224 = vpop.f32.mrf.mxu0
        %v1225 = vadd.f32 %v788, %v1224
        %v1226 = vpop.f32.mrf.mxu0
        %v1227 = vpop.f32.mrf.mxu0
        %v1228 = vadd.f32 %v788, %v1227
        %v1229 = vpop.f32.mrf.mxu0
        %1230 = vmatprep.mubr.bf16.mxu0 %v550
        %1231 = vmatmul.mubr.bf16.gmra.mxu0 %v518
        %v1232 = vpop.f32.mrf.mxu0
        %v1233 = vadd.f32 %v788, %v1232
        %v1234 = vpop.f32.mrf.mxu0
        %v1235 = vpop.f32.mrf.mxu0
        %v1236 = vadd.f32 %v788, %v1235
        %v1237 = vpop.f32.mrf.mxu0
        %1238 = vdwg.mxu0
        %1239 = vmatprep.subr.bf16.mxu0 0
        %1240 = vmatpush1.bf16.msra.mxu0 %v1069
        %1241 = vmatprep.subr.bf16.mxu0 0
        %1242 = vmatpush1.bf16.msra.mxu0 %v1068
        %1243 = vmatprep.subr.bf16.mxu0 0
        %1244 = vmatpush1.bf16.msra.mxu0 %v1067
        %1245 = vmatprep.subr.bf16.mxu0 0
        %1246 = vmatpush1.bf16.msra.mxu0 %v1066
        %1247 = vmatprep.subr.bf16.mxu0 0
        %1248 = vmatpush1.bf16.msra.mxu0 %v1065
        %1249 = vmatprep.subr.bf16.mxu0 0
        %1250 = vmatpush1.bf16.msra.mxu0 %v1064
        %1251 = vmatprep.subr.bf16.mxu0 0
        %1252 = vmatpush1.bf16.msra.mxu0 %v1063
        %1253 = vmatprep.subr.bf16.mxu0 0
        %1254 = vmatpush1.bf16.msra.mxu0 %v1062
        %1255 = vmatprep.subr.bf16.mxu0 0
        %1256 = vmatpush2.bf16.msra.mxu0 %v1077
        %1257 = vmatprep.subr.bf16.mxu0 0
        %1258 = vmatpush2.bf16.msra.mxu0 %v1076
        %1259 = vmatprep.subr.bf16.mxu0 0
        %1260 = vmatpush2.bf16.msra.mxu0 %v1075
        %1261 = vmatprep.subr.bf16.mxu0 0
        %1262 = vmatpush2.bf16.msra.mxu0 %v1074
        %1263 = vmatprep.subr.bf16.mxu0 0
        %1264 = vmatpush2.bf16.msra.mxu0 %v1073
        %1265 = vmatprep.subr.bf16.mxu0 0
        %1266 = vmatpush2.bf16.msra.mxu0 %v1072
        %1267 = vmatprep.subr.bf16.mxu0 0
        %1268 = vmatpush2.bf16.msra.mxu0 %v1071
        %1269 = vmatprep.subr.bf16.mxu0 0
        %1270 = vmatpush2.bf16.msra.mxu0 %v1070
        %1271 = vmatprep.mubr.bf16.mxu0 %v578
        %1272 = vmatmul.mubr.bf16.gmra.mxu0 %v562
        %v1273 = vpop.f32.mrf.mxu0
        %v1274 = vadd.f32 %v1209, %v1273
        %v1275 = vpop.f32.mrf.mxu0
        %v1276 = vpop.f32.mrf.mxu0
        %v1277 = vadd.f32 %v1212, %v1276
        %v1278 = vpop.f32.mrf.mxu0
        %1279 = vmatprep.mubr.bf16.mxu0 %v582
        %1280 = vmatmul.mubr.bf16.gmra.mxu0 %v564
        %v1281 = vpop.f32.mrf.mxu0
        %v1282 = vadd.f32 %v1217, %v1281
        %v1283 = vpop.f32.mrf.mxu0
        %v1284 = vpop.f32.mrf.mxu0
        %v1285 = vadd.f32 %v1220, %v1284
        %v1286 = vpop.f32.mrf.mxu0
        %1287 = vmatprep.mubr.bf16.mxu0 %v586
        %1288 = vmatmul.mubr.bf16.gmra.mxu0 %v566
        %v1289 = vpop.f32.mrf.mxu0
        %v1290 = vadd.f32 %v1225, %v1289
        %v1291 = vpop.f32.mrf.mxu0
        %v1292 = vpop.f32.mrf.mxu0
        %v1293 = vadd.f32 %v1228, %v1292
        %v1294 = vpop.f32.mrf.mxu0
        %1295 = vmatprep.mubr.bf16.mxu0 %v585
        %1296 = vmatmul.mubr.bf16.gmra.mxu0 %v565
        %v1297 = vpop.f32.mrf.mxu0
        %v1298 = vadd.f32 %v1233, %v1297
        %v1299 = vpop.f32.mrf.mxu0
        %v1300 = vpop.f32.mrf.mxu0
        %v1301 = vadd.f32 %v1236, %v1300
        %v1302 = vpop.f32.mrf.mxu0
        %1303 = vdwg.mxu0
        %1304 = vmatprep.subr.bf16.mxu0 0
        %1305 = vmatpush1.bf16.msra.mxu0 %v1085
        %1306 = vmatprep.subr.bf16.mxu0 0
        %1307 = vmatpush1.bf16.msra.mxu0 %v1084
        %1308 = vmatprep.subr.bf16.mxu0 0
        %1309 = vmatpush1.bf16.msra.mxu0 %v1083
        %1310 = vmatprep.subr.bf16.mxu0 0
        %1311 = vmatpush1.bf16.msra.mxu0 %v1082
        %1312 = vmatprep.subr.bf16.mxu0 0
        %1313 = vmatpush1.bf16.msra.mxu0 %v1081
        %1314 = vmatprep.subr.bf16.mxu0 0
        %1315 = vmatpush1.bf16.msra.mxu0 %v1080
        %1316 = vmatprep.subr.bf16.mxu0 0
        %1317 = vmatpush1.bf16.msra.mxu0 %v1079
        %1318 = vmatprep.subr.bf16.mxu0 0
        %1319 = vmatpush1.bf16.msra.mxu0 %v1078
        %1320 = vmatprep.subr.bf16.mxu0 0
        %1321 = vmatpush2.bf16.msra.mxu0 %v1093
        %1322 = vmatprep.subr.bf16.mxu0 0
        %1323 = vmatpush2.bf16.msra.mxu0 %v1092
        %1324 = vmatprep.subr.bf16.mxu0 0
        %1325 = vmatpush2.bf16.msra.mxu0 %v1091
        %1326 = vmatprep.subr.bf16.mxu0 0
        %1327 = vmatpush2.bf16.msra.mxu0 %v1090
        %1328 = vmatprep.subr.bf16.mxu0 0
        %1329 = vmatpush2.bf16.msra.mxu0 %v1089
        %1330 = vmatprep.subr.bf16.mxu0 0
        %1331 = vmatpush2.bf16.msra.mxu0 %v1088
        %1332 = vmatprep.subr.bf16.mxu0 0
        %1333 = vmatpush2.bf16.msra.mxu0 %v1087
        %1334 = vmatprep.subr.bf16.mxu0 0
        %1335 = vmatpush2.bf16.msra.mxu0 %v1086
        %1336 = vmatprep.mubr.bf16.mxu0 %v610
        %1337 = vmatmul.mubr.bf16.gmra.mxu0 %v594
        %v1338 = vpop.f32.mrf.mxu0
        %v1339 = vadd.f32 %v1274, %v1338
        %v1340 = vpop.f32.mrf.mxu0
        %v1341 = vpop.f32.mrf.mxu0
        %v1342 = vadd.f32 %v1277, %v1341
        %v1343 = vpop.f32.mrf.mxu0
        %1344 = vmatprep.mubr.bf16.mxu0 %v614
        %1345 = vmatmul.mubr.bf16.gmra.mxu0 %v596
        %v1346 = vpop.f32.mrf.mxu0
        %v1347 = vadd.f32 %v1282, %v1346
        %v1348 = vpop.f32.mrf.mxu0
        %v1349 = vpop.f32.mrf.mxu0
        %v1350 = vadd.f32 %v1285, %v1349
        %v1351 = vpop.f32.mrf.mxu0
        %1352 = vmatprep.mubr.bf16.mxu0 %v618
        %1353 = vmatmul.mubr.bf16.gmra.mxu0 %v598
        %v1354 = vpop.f32.mrf.mxu0
        %v1355 = vadd.f32 %v1290, %v1354
        %v1356 = vpop.f32.mrf.mxu0
        %v1357 = vpop.f32.mrf.mxu0
        %v1358 = vadd.f32 %v1293, %v1357
        %v1359 = vpop.f32.mrf.mxu0
        %1360 = vmatprep.mubr.bf16.mxu0 %v617
        %1361 = vmatmul.mubr.bf16.gmra.mxu0 %v597
        %v1362 = vpop.f32.mrf.mxu0
        %v1363 = vadd.f32 %v1298, %v1362
        %v1364 = vpop.f32.mrf.mxu0
        %v1365 = vpop.f32.mrf.mxu0
        %v1366 = vadd.f32 %v1301, %v1365
        %v1367 = vpop.f32.mrf.mxu0
        %1368 = vdwg.mxu0
        %1369 = vmatprep.subr.bf16.mxu0 0
        %1370 = vmatpush1.bf16.msra.mxu0 %v1101
        %1371 = vmatprep.subr.bf16.mxu0 0
        %1372 = vmatpush1.bf16.msra.mxu0 %v1100
        %1373 = vmatprep.subr.bf16.mxu0 0
        %1374 = vmatpush1.bf16.msra.mxu0 %v1099
        %1375 = vmatprep.subr.bf16.mxu0 0
        %1376 = vmatpush1.bf16.msra.mxu0 %v1098
        %1377 = vmatprep.subr.bf16.mxu0 0
        %1378 = vmatpush1.bf16.msra.mxu0 %v1097
        %1379 = vmatprep.subr.bf16.mxu0 0
        %1380 = vmatpush1.bf16.msra.mxu0 %v1096
        %1381 = vmatprep.subr.bf16.mxu0 0
        %1382 = vmatpush1.bf16.msra.mxu0 %v1095
        %1383 = vmatprep.subr.bf16.mxu0 0
        %1384 = vmatpush1.bf16.msra.mxu0 %v1094
        %1385 = vmatprep.subr.bf16.mxu0 0
        %1386 = vmatpush2.bf16.msra.mxu0 %v1109
        %1387 = vmatprep.subr.bf16.mxu0 0
        %1388 = vmatpush2.bf16.msra.mxu0 %v1108
        %1389 = vmatprep.subr.bf16.mxu0 0
        %1390 = vmatpush2.bf16.msra.mxu0 %v1107
        %1391 = vmatprep.subr.bf16.mxu0 0
        %1392 = vmatpush2.bf16.msra.mxu0 %v1106
        %1393 = vmatprep.subr.bf16.mxu0 0
        %1394 = vmatpush2.bf16.msra.mxu0 %v1105
        %1395 = vmatprep.subr.bf16.mxu0 0
        %1396 = vmatpush2.bf16.msra.mxu0 %v1104
        %1397 = vmatprep.subr.bf16.mxu0 0
        %1398 = vmatpush2.bf16.msra.mxu0 %v1103
        %1399 = vmatprep.subr.bf16.mxu0 0
        %1400 = vmatpush2.bf16.msra.mxu0 %v1102
        %1401 = vmatprep.mubr.bf16.mxu0 %v642
        %1402 = vmatmul.mubr.bf16.gmra.mxu0 %v626
        %v1403 = vpop.f32.mrf.mxu0
        %v1404 = vadd.f32 %v1339, %v1403
        %v1405 = vpop.f32.mrf.mxu0
        %v1406 = vpop.f32.mrf.mxu0
        %v1407 = vadd.f32 %v1342, %v1406
        %v1408 = vpop.f32.mrf.mxu0
        %1409 = vmatprep.mubr.bf16.mxu0 %v646
        %1410 = vmatmul.mubr.bf16.gmra.mxu0 %v628
        %v1411 = vpop.f32.mrf.mxu0
        %v1412 = vadd.f32 %v1347, %v1411
        %v1413 = vpop.f32.mrf.mxu0
        %v1414 = vpop.f32.mrf.mxu0
        %v1415 = vadd.f32 %v1350, %v1414
        %v1416 = vpop.f32.mrf.mxu0
        %1417 = vmatprep.mubr.bf16.mxu0 %v650
        %1418 = vmatmul.mubr.bf16.gmra.mxu0 %v630
        %v1419 = vpop.f32.mrf.mxu0
        %v1420 = vadd.f32 %v1355, %v1419
        %v1421 = vpop.f32.mrf.mxu0
        %v1422 = vpop.f32.mrf.mxu0
        %v1423 = vadd.f32 %v1358, %v1422
        %v1424 = vpop.f32.mrf.mxu0
        %1425 = vmatprep.mubr.bf16.mxu0 %v649
        %1426 = vmatmul.mubr.bf16.gmra.mxu0 %v629
        %v1427 = vpop.f32.mrf.mxu0
        %v1428 = vadd.f32 %v1363, %v1427
        %v1429 = vpop.f32.mrf.mxu0
        %v1430 = vpop.f32.mrf.mxu0
        %v1431 = vadd.f32 %v1366, %v1430
        %v1432 = vpop.f32.mrf.mxu0
        %1433 = vdwg.mxu0
        %v1434 = vmax.f32 %v1404, 0.0
        %v1435 = vmax.f32 %v1407, 0.0
        %v1436 = vmax.f32 %v1412, 0.0
        %v1437 = vmax.f32 %v1415, 0.0
        %v1438 = vmax.f32 %v1420, 0.0
        %v1439 = vmax.f32 %v1423, 0.0
        %v1440 = vmax.f32 %v1428, 0.0
        %v1441 = vmax.f32 %v1431, 0.0
        %v1442 = vpack.c.bf16 %v1435, %v1434
        %v1443 = vpack.c.bf16 %v1437, %v1436
        %v1444 = vpack.c.bf16 %v1439, %v1438
        %v1445 = vpack.c.bf16 %v1441, %v1440
        %v1447 = vshrl.u32 %v1442, 16
        %v1449 = vshll.u32 %v1442, 16
        %v1451 = vrot.slane %v1449, 1
        %v1452 = vor.u32 %v1447, %v1451
        %v1454 = vshll.u32 %v1443, 16
        %v1456 = vrot.slane %v1454, 1
        %v1457 = vsel %vm519, %v1452, %v1456
        %v1458 = vshrl.u32 %v1443, 16
        %v1460 = vor.u32 %v1458, %v1456
        %v1462 = vshll.u32 %v1444, 16
        %v1464 = vrot.slane %v1462, 1
        %v1465 = vsel %vm519, %v1460, %v1464
        %v1466 = vshrl.u32 %v1444, 16
        %v1468 = vor.u32 %v1466, %v1464
        %v1470 = vshll.u32 %v1445, 16
        %v1472 = vrot.slane %v1470, 1
        %v1473 = vsel %vm519, %v1468, %v1472
        %v1474 = vshrl.u32 %v1445, 16
        %v1476 = vor.u32 %v1474, %v1472
        %1477 = vrot.lane.b32.xlu0 %v1457, 32
        %v1478 = vpop.permute.xlu0 %1477
        %1479 = vrot.lane.b32.xlu0 %v1465, 32
        %v1480 = vpop.permute.xlu0 %1479
        %1481 = vrot.lane.b32.xlu0 %v1473, 32
        %v1482 = vpop.permute.xlu0 %1481
        %1483 = vrot.lane.b32.xlu0 %v1476, 32
        %v1484 = vpop.permute.xlu0 %1483
        %v1489 = vrot.slane %v1442, 1
        %v1490 = vrot.slane %v1443, 1
        %v1491 = vsel %vm559, %v1489, %v1490
        %v1492 = vrot.slane %v1444, 1
        %v1493 = vsel %vm559, %v1490, %v1492
        %v1494 = vrot.slane %v1445, 1
        %v1495 = vsel %vm559, %v1492, %v1494
        %1496 = vrot.lane.b32.xlu0 %v1491, 64
        %v1497 = vpop.permute.xlu0 %1496
        %1498 = vrot.lane.b32.xlu0 %v1493, 64
        %v1499 = vpop.permute.xlu0 %1498
        %1500 = vrot.lane.b32.xlu0 %v1495, 64
        %v1501 = vpop.permute.xlu0 %1500
        %1502 = vrot.lane.b32.xlu0 %v1494, 64
        %v1503 = vpop.permute.xlu0 %1502
        %v1504 = vrot.slane %v1447, 1
        %v1505 = vrot.slane %v1449, 2
        %v1506 = vor.u32 %v1504, %v1505
        %v1507 = vrot.slane %v1458, 1
        %v1508 = vrot.slane %v1454, 2
        %v1509 = vor.u32 %v1507, %v1508
        %v1510 = vsel %vm571, %v1506, %v1509
        %v1511 = vrot.slane %v1466, 1
        %v1512 = vrot.slane %v1462, 2
        %v1513 = vor.u32 %v1511, %v1512
        %v1514 = vsel %vm571, %v1509, %v1513
        %v1515 = vrot.slane %v1474, 1
        %v1516 = vrot.slane %v1470, 2
        %v1517 = vor.u32 %v1515, %v1516
        %v1518 = vsel %vm571, %v1513, %v1517
        %1519 = vrot.lane.b32.xlu0 %v1510, 96
        %v1520 = vpop.permute.xlu0 %1519
        %1521 = vrot.lane.b32.xlu0 %v1514, 96
        %v1522 = vpop.permute.xlu0 %1521
        %1523 = vrot.lane.b32.xlu0 %v1518, 96
        %v1524 = vpop.permute.xlu0 %1523
        %1525 = vrot.lane.b32.xlu0 %v1517, 96
        %v1526 = vpop.permute.xlu0 %1525
        %v1527 = vrot.slane %v1442, 2
        %v1528 = vrot.slane %v1443, 2
        %v1529 = vsel %vm591, %v1527, %v1528
        %v1530 = vrot.slane %v1444, 2
        %v1531 = vsel %vm591, %v1528, %v1530
        %v1532 = vrot.slane %v1445, 2
        %v1533 = vsel %vm591, %v1530, %v1532
        %v1534 = vrot.slane %v1447, 2
        %v1535 = vrot.slane %v1449, 3
        %v1536 = vor.u32 %v1534, %v1535
        %v1537 = vrot.slane %v1458, 2
        %v1538 = vrot.slane %v1454, 3
        %v1539 = vor.u32 %v1537, %v1538
        %v1540 = vsel %vm603, %v1536, %v1539
        %v1541 = vrot.slane %v1466, 2
        %v1542 = vrot.slane %v1462, 3
        %v1543 = vor.u32 %v1541, %v1542
        %v1544 = vsel %vm603, %v1539, %v1543
        %v1545 = vrot.slane %v1474, 2
        %v1546 = vrot.slane %v1470, 3
        %v1547 = vor.u32 %v1545, %v1546
        %v1548 = vsel %vm603, %v1543, %v1547
        %1549 = vrot.lane.b32.xlu0 %v1540, 32
        %v1550 = vpop.permute.xlu0 %1549
        %1551 = vrot.lane.b32.xlu0 %v1544, 32
        %v1552 = vpop.permute.xlu0 %1551
        %1553 = vrot.lane.b32.xlu0 %v1548, 32
        %v1554 = vpop.permute.xlu0 %1553
        %1555 = vrot.lane.b32.xlu0 %v1547, 32
        %v1556 = vpop.permute.xlu0 %1555
        %v1557 = vrot.slane %v1442, 3
        %v1558 = vrot.slane %v1443, 3
        %v1559 = vsel %vm623, %v1557, %v1558
        %v1560 = vrot.slane %v1444, 3
        %v1561 = vsel %vm623, %v1558, %v1560
        %v1562 = vrot.slane %v1445, 3
        %v1563 = vsel %vm623, %v1560, %v1562
        %1564 = vrot.lane.b32.xlu0 %v1559, 64
        %v1565 = vpop.permute.xlu0 %1564
        %1566 = vrot.lane.b32.xlu0 %v1561, 64
        %v1567 = vpop.permute.xlu0 %1566
        %1568 = vrot.lane.b32.xlu0 %v1563, 64
        %v1569 = vpop.permute.xlu0 %1568
        %1570 = vrot.lane.b32.xlu0 %v1562, 64
        %v1571 = vpop.permute.xlu0 %1570
        %v1572 = vrot.slane %v1447, 3
        %v1573 = vrot.slane %v1449, 4
        %v1574 = vor.u32 %v1572, %v1573
        %v1575 = vrot.slane %v1458, 3
        %v1576 = vrot.slane %v1454, 4
        %v1577 = vor.u32 %v1575, %v1576
        %v1578 = vsel %vm635, %v1574, %v1577
        %v1579 = vrot.slane %v1466, 3
        %v1580 = vrot.slane %v1462, 4
        %v1581 = vor.u32 %v1579, %v1580
        %v1582 = vsel %vm635, %v1577, %v1581
        %v1583 = vrot.slane %v1474, 3
        %v1584 = vrot.slane %v1470, 4
        %v1585 = vor.u32 %v1583, %v1584
        %v1586 = vsel %vm635, %v1581, %v1585
        %1587 = vrot.lane.b32.xlu0 %v1578, 96
        %v1588 = vpop.permute.xlu0 %1587
        %1589 = vrot.lane.b32.xlu0 %v1582, 96
        %v1590 = vpop.permute.xlu0 %1589
        %1591 = vrot.lane.b32.xlu0 %v1586, 96
        %v1592 = vpop.permute.xlu0 %1591
        %1593 = vrot.lane.b32.xlu0 %v1585, 96
        %v1594 = vpop.permute.xlu0 %1593
        %vm1595 = vcmask 261120
        %v1597 = vsel %vm1595, %v1442, %v1478
        %v1599 = vsel %vm1595, %v1443, %v1480
        %v1601 = vsel %vm1595, %v1444, %v1482
        %v1603 = vsel %vm1595, %v1445, %v1484
        %vm1604 = vcmask 523264
        %v1606 = vsel %vm1604, %v1597, %v1497
        %v1608 = vsel %vm1604, %v1599, %v1499
        %v1610 = vsel %vm1604, %v1601, %v1501
        %v1612 = vsel %vm1604, %v1603, %v1503
        %vm1613 = vcmask 785408
        %v1615 = vsel %vm1613, %v1606, %v1520
        %v1618 = vsel %vm1613, %v1608, %v1522
        %v1621 = vsel %vm1613, %v1610, %v1524
        %v1624 = vsel %vm1613, %v1612, %v1526
        %v1628 = vsel %vm1595, %v1529, %v1550
        %v1631 = vsel %vm1595, %v1531, %v1552
        %v1634 = vsel %vm1595, %v1533, %v1554
        %v1637 = vsel %vm1595, %v1532, %v1556
        %v1639 = vsel %vm1604, %v1628, %v1565
        %v1641 = vsel %vm1604, %v1631, %v1567
        %v1643 = vsel %vm1604, %v1634, %v1569
        %v1645 = vsel %vm1604, %v1637, %v1571
        %v1647 = vsel %vm1613, %v1639, %v1588
        %v1650 = vsel %vm1613, %v1641, %v1590
        %v1653 = vsel %vm1613, %v1643, %v1592
        %v1656 = vsel %vm1613, %v1645, %v1594
        %v1658 = vld [vmem:[%s4] sm:$0xf]
        %v1659 = vld [vmem:[%s4 + $0x4] sm:$0xf]
        %v1660 = vld [vmem:[%s4 + $0x8] sm:$0xf]
        %v1661 = vld [vmem:[%s4 + $0xc] sm:$0xf]
        %v1662 = vld [vmem:[%s4 + $0x10] sm:$0xf]
        %v1663 = vld [vmem:[%s4 + $0x14] sm:$0xf]
        %v1664 = vld [vmem:[%s4 + $0x18] sm:$0xf]
        %v1665 = vld [vmem:[%s4 + $0x1c] sm:$0xf]
        %v1666 = vld [vmem:[%s4 + $0x20] sm:$0xf]
        %v1667 = vld [vmem:[%s4 + $0x24] sm:$0xf]
        %v1668 = vld [vmem:[%s4 + $0x28] sm:$0xf]
        %v1669 = vld [vmem:[%s4 + $0x2c] sm:$0xf]
        %v1670 = vld [vmem:[%s4 + $0x30] sm:$0xf]
        %v1671 = vld [vmem:[%s4 + $0x34] sm:$0xf]
        %v1672 = vld [vmem:[%s4 + $0x38] sm:$0xf]
        %v1673 = vld [vmem:[%s4 + $0x3c] sm:$0xf]
        %v1674 = vld [vmem:[%s4 + $0x40] sm:$0xf]
        %v1675 = vld [vmem:[%s4 + $0x44] sm:$0xf]
        %v1676 = vld [vmem:[%s4 + $0x48] sm:$0xf]
        %v1677 = vld [vmem:[%s4 + $0x4c] sm:$0xf]
        %v1678 = vld [vmem:[%s4 + $0x50] sm:$0xf]
        %v1679 = vld [vmem:[%s4 + $0x54] sm:$0xf]
        %v1680 = vld [vmem:[%s4 + $0x58] sm:$0xf]
        %v1681 = vld [vmem:[%s4 + $0x5c] sm:$0xf]
        %v1682 = vld [vmem:[%s4 + $0x60] sm:$0xf]
        %v1683 = vld [vmem:[%s4 + $0x64] sm:$0xf]
        %v1684 = vld [vmem:[%s4 + $0x68] sm:$0xf]
        %v1685 = vld [vmem:[%s4 + $0x6c] sm:$0xf]
        %v1686 = vld [vmem:[%s4 + $0x70] sm:$0xf]
        %v1687 = vld [vmem:[%s4 + $0x74] sm:$0xf]
        %v1688 = vld [vmem:[%s4 + $0x78] sm:$0xf]
        %v1689 = vld [vmem:[%s4 + $0x7c] sm:$0xf]
        %v1690 = vld [vmem:[#allocation6] sm:$0x1]
        %v1692 = vlaneseq
        %v1693 = vshrl.u32 %v1692, 7
        %v1694 = vsub.s32 0, %v1693
        %v1695 = vrot.slane %v1690, %v1694
        %v1729 = vunpack.c.l.b16 %v1658
        %v1730 = vunpack.c.l.b16 %v1659
        %v1731 = vunpack.c.l.b16 %v1660
        %v1732 = vunpack.c.l.b16 %v1661
        %v1733 = vunpack.c.l.b16 %v1662
        %v1734 = vunpack.c.l.b16 %v1663
        %v1735 = vunpack.c.l.b16 %v1664
        %v1736 = vunpack.c.l.b16 %v1665
        %v1737 = vunpack.c.l.b16 %v1666
        %v1738 = vunpack.c.l.b16 %v1667
        %v1739 = vunpack.c.l.b16 %v1668
        %v1740 = vunpack.c.l.b16 %v1669
        %v1741 = vunpack.c.l.b16 %v1670
        %v1742 = vunpack.c.l.b16 %v1671
        %v1743 = vunpack.c.l.b16 %v1672
        %v1744 = vunpack.c.l.b16 %v1673
        %v1745 = vunpack.c.l.b16 %v1674
        %v1746 = vunpack.c.l.b16 %v1675
        %v1747 = vunpack.c.l.b16 %v1676
        %v1748 = vunpack.c.l.b16 %v1677
        %v1749 = vunpack.c.l.b16 %v1678
        %v1750 = vunpack.c.l.b16 %v1679
        %v1751 = vunpack.c.l.b16 %v1680
        %v1752 = vunpack.c.l.b16 %v1681
        %v1753 = vunpack.c.l.b16 %v1682
        %v1754 = vunpack.c.l.b16 %v1683
        %v1755 = vunpack.c.l.b16 %v1684
        %v1756 = vunpack.c.l.b16 %v1685
        %v1757 = vunpack.c.l.b16 %v1686
        %v1758 = vunpack.c.l.b16 %v1687
        %v1759 = vunpack.c.l.b16 %v1688
        %v1760 = vunpack.c.l.b16 %v1689
        %v1761 = vpack.c.b16 %v1730, %v1729
        %v1762 = vpack.c.b16 %v1732, %v1731
        %v1763 = vpack.c.b16 %v1734, %v1733
        %v1764 = vpack.c.b16 %v1736, %v1735
        %v1765 = vpack.c.b16 %v1738, %v1737
        %v1766 = vpack.c.b16 %v1740, %v1739
        %v1767 = vpack.c.b16 %v1742, %v1741
        %v1768 = vpack.c.b16 %v1744, %v1743
        %v1769 = vpack.c.b16 %v1746, %v1745
        %v1770 = vpack.c.b16 %v1748, %v1747
        %v1771 = vpack.c.b16 %v1750, %v1749
        %v1772 = vpack.c.b16 %v1752, %v1751
        %v1773 = vpack.c.b16 %v1754, %v1753
        %v1774 = vpack.c.b16 %v1756, %v1755
        %v1775 = vpack.c.b16 %v1758, %v1757
        %v1776 = vpack.c.b16 %v1760, %v1759
        %1793 = vmatprep.subr.bf16.mxu0 0
        %1794 = vmatpush1.bf16.msra.mxu0 %v1768
        %1795 = vmatprep.subr.bf16.mxu0 0
        %1796 = vmatpush1.bf16.msra.mxu0 %v1767
        %1797 = vmatprep.subr.bf16.mxu0 0
        %1798 = vmatpush1.bf16.msra.mxu0 %v1766
        %1799 = vmatprep.subr.bf16.mxu0 0
        %1800 = vmatpush1.bf16.msra.mxu0 %v1765
        %1801 = vmatprep.subr.bf16.mxu0 0
        %1802 = vmatpush1.bf16.msra.mxu0 %v1764
        %1803 = vmatprep.subr.bf16.mxu0 0
        %1804 = vmatpush1.bf16.msra.mxu0 %v1763
        %1805 = vmatprep.subr.bf16.mxu0 0
        %1806 = vmatpush1.bf16.msra.mxu0 %v1762
        %1807 = vmatprep.subr.bf16.mxu0 0
        %1808 = vmatpush1.bf16.msra.mxu0 %v1761
        %1809 = vmatprep.subr.bf16.mxu0 0
        %1810 = vmatpush2.bf16.msra.mxu0 %v1776
        %1811 = vmatprep.subr.bf16.mxu0 0
        %1812 = vmatpush2.bf16.msra.mxu0 %v1775
        %1813 = vmatprep.subr.bf16.mxu0 0
        %1814 = vmatpush2.bf16.msra.mxu0 %v1774
        %1815 = vmatprep.subr.bf16.mxu0 0
        %1816 = vmatpush2.bf16.msra.mxu0 %v1773
        %1817 = vmatprep.subr.bf16.mxu0 0
        %1818 = vmatpush2.bf16.msra.mxu0 %v1772
        %1819 = vmatprep.subr.bf16.mxu0 0
        %1820 = vmatpush2.bf16.msra.mxu0 %v1771
        %1821 = vmatprep.subr.bf16.mxu0 0
        %1822 = vmatpush2.bf16.msra.mxu0 %v1770
        %1823 = vmatprep.subr.bf16.mxu0 0
        %1824 = vmatpush2.bf16.msra.mxu0 %v1769
        %1825 = vmatprep.mubr.bf16.mxu0 %v1647
        %1826 = vmatmul.mubr.bf16.gmra.mxu0 %v1615
        %v1827 = vpop.f32.mrf.mxu0
        %v1828 = vadd.f32 %v1695, %v1827
        %v1829 = vpop.f32.mrf.mxu0
        %v1830 = vpop.f32.mrf.mxu0
        %v1831 = vadd.f32 %v1695, %v1830
        %v1832 = vpop.f32.mrf.mxu0
        %1833 = vmatprep.mubr.bf16.mxu0 %v1650
        %1834 = vmatmul.mubr.bf16.gmra.mxu0 %v1618
        %v1835 = vpop.f32.mrf.mxu0
        %v1836 = vadd.f32 %v1695, %v1835
        %v1837 = vpop.f32.mrf.mxu0
        %v1838 = vpop.f32.mrf.mxu0
        %v1839 = vadd.f32 %v1695, %v1838
        %v1840 = vpop.f32.mrf.mxu0
        %1841 = vmatprep.mubr.bf16.mxu0 %v1653
        %1842 = vmatmul.mubr.bf16.gmra.mxu0 %v1621
        %v1843 = vpop.f32.mrf.mxu0
        %v1844 = vadd.f32 %v1695, %v1843
        %v1845 = vpop.f32.mrf.mxu0
        %v1846 = vpop.f32.mrf.mxu0
        %v1847 = vadd.f32 %v1695, %v1846
        %v1848 = vpop.f32.mrf.mxu0
        %1849 = vmatprep.mubr.bf16.mxu0 %v1656
        %1850 = vmatmul.mubr.bf16.gmra.mxu0 %v1624
        %v1851 = vpop.f32.mrf.mxu0
        %v1852 = vadd.f32 %v1695, %v1851
        %v1853 = vpop.f32.mrf.mxu0
        %v1854 = vpop.f32.mrf.mxu0
        %v1855 = vpop.f32.mrf.mxu0
        %1856 = vdwg.mxu0
        %v1857 = vmax.f32 %v1828, 0.0
        %v1858 = vmax.f32 %v1831, 0.0
        %v1859 = vmax.f32 %v1836, 0.0
        %v1860 = vmax.f32 %v1839, 0.0
        %v1861 = vmax.f32 %v1844, 0.0
        %v1862 = vmax.f32 %v1847, 0.0
        %v1863 = vmax.f32 %v1852, 0.0
        %v1864 = vpack.c.bf16 %v1858, %v1857
        %v1865 = vpack.c.bf16 %v1860, %v1859
        %v1866 = vpack.c.bf16 %v1862, %v1861
        %v1867 = vpack.c.bf16 %v1863, %v1863
        %v1869 = vshrl.u32 %v1864, 16
        %v1871 = vshll.u32 %v1864, 16
        %v1873 = vrot.slane %v1871, 1
        %v1874 = vor.u32 %v1869, %v1873
        %v1876 = vshll.u32 %v1865, 16
        %v1878 = vrot.slane %v1876, 1
        %v1879 = vsel %vm519, %v1874, %v1878
        %v1880 = vshrl.u32 %v1865, 16
        %v1882 = vor.u32 %v1880, %v1878
        %v1884 = vshll.u32 %v1866, 16
        %v1886 = vrot.slane %v1884, 1
        %v1887 = vsel %vm519, %v1882, %v1886
        %v1888 = vshrl.u32 %v1866, 16
        %v1890 = vor.u32 %v1888, %v1886
        %1891 = vrot.lane.b32.xlu0 %v1879, 64
        %v1892 = vpop.permute.xlu0 %1891
        %1893 = vrot.lane.b32.xlu0 %v1887, 64
        %v1894 = vpop.permute.xlu0 %1893
        %1895 = vrot.lane.b32.xlu0 %v1890, 64
        %v1896 = vpop.permute.xlu0 %1895
        %v1900 = vrot.slane %v1864, 1
        %v1901 = vrot.slane %v1865, 1
        %v1902 = vsel %vm559, %v1900, %v1901
        %v1903 = vrot.slane %v1866, 1
        %v1904 = vsel %vm559, %v1901, %v1903
        %v1905 = vrot.slane %v1869, 1
        %v1906 = vrot.slane %v1871, 2
        %v1907 = vor.u32 %v1905, %v1906
        %v1908 = vrot.slane %v1880, 1
        %v1909 = vrot.slane %v1876, 2
        %v1910 = vor.u32 %v1908, %v1909
        %v1911 = vsel %vm571, %v1907, %v1910
        %v1912 = vrot.slane %v1888, 1
        %v1913 = vrot.slane %v1884, 2
        %v1914 = vor.u32 %v1912, %v1913
        %v1915 = vsel %vm571, %v1910, %v1914
        %1916 = vrot.lane.b32.xlu0 %v1911, 64
        %v1917 = vpop.permute.xlu0 %1916
        %1918 = vrot.lane.b32.xlu0 %v1915, 64
        %v1919 = vpop.permute.xlu0 %1918
        %1920 = vrot.lane.b32.xlu0 %v1914, 64
        %v1921 = vpop.permute.xlu0 %1920
        %v1922 = vrot.slane %v1864, 2
        %v1923 = vrot.slane %v1865, 2
        %v1924 = vsel %vm591, %v1922, %v1923
        %v1925 = vrot.slane %v1866, 2
        %v1926 = vsel %vm591, %v1923, %v1925
        %v1927 = vrot.slane %v1869, 2
        %v1928 = vrot.slane %v1871, 3
        %v1929 = vor.u32 %v1927, %v1928
        %v1930 = vrot.slane %v1880, 2
        %v1931 = vrot.slane %v1876, 3
        %v1932 = vor.u32 %v1930, %v1931
        %v1933 = vsel %vm603, %v1929, %v1932
        %v1934 = vrot.slane %v1888, 2
        %v1935 = vrot.slane %v1884, 3
        %v1936 = vor.u32 %v1934, %v1935
        %v1937 = vsel %vm603, %v1932, %v1936
        %1938 = vrot.lane.b32.xlu0 %v1933, 64
        %v1939 = vpop.permute.xlu0 %1938
        %1940 = vrot.lane.b32.xlu0 %v1937, 64
        %v1941 = vpop.permute.xlu0 %1940
        %1942 = vrot.lane.b32.xlu0 %v1936, 64
        %v1943 = vpop.permute.xlu0 %1942
        %v1945 = vrot.slane %v1864, 3
        %v1946 = vrot.slane %v1865, 3
        %v1947 = vsel %vm623, %v1945, %v1946
        %v1948 = vrot.slane %v1866, 3
        %v1949 = vsel %vm623, %v1946, %v1948
        %v1950 = vrot.slane %v1867, 3
        %v1951 = vsel %vm623, %v1948, %v1950
        %v1952 = vrot.slane %v1869, 3
        %v1953 = vrot.slane %v1871, 4
        %v1954 = vor.u32 %v1952, %v1953
        %v1955 = vrot.slane %v1880, 3
        %v1956 = vrot.slane %v1876, 4
        %v1957 = vor.u32 %v1955, %v1956
        %v1958 = vsel %vm635, %v1954, %v1957
        %v1959 = vrot.slane %v1888, 3
        %v1960 = vrot.slane %v1884, 4
        %v1961 = vor.u32 %v1959, %v1960
        %v1962 = vsel %vm635, %v1957, %v1961
        %v1964 = vshrl.u32 %v1867, 16
        %v1966 = vrot.slane %v1964, 3
        %v1967 = vshll.u32 %v1867, 16
        %v1969 = vrot.slane %v1967, 4
        %v1970 = vor.u32 %v1966, %v1969
        %v1971 = vsel %vm635, %v1961, %v1970
        %1972 = vrot.lane.b32.xlu0 %v1958, 64
        %v1973 = vpop.permute.xlu0 %1972
        %1974 = vrot.lane.b32.xlu0 %v1962, 64
        %v1975 = vpop.permute.xlu0 %1974
        %1976 = vrot.lane.b32.xlu0 %v1971, 64
        %v1977 = vpop.permute.xlu0 %1976
        %v1979 = vsel %vm1604, %v1864, %v1892
        %v1982 = vsel %vm1604, %v1865, %v1894
        %v1985 = vsel %vm1604, %v1866, %v1896
        %v1989 = vsel %vm1604, %v1902, %v1917
        %v1993 = vsel %vm1604, %v1904, %v1919
        %v1997 = vsel %vm1604, %v1903, %v1921
        %v2001 = vsel %vm1604, %v1924, %v1939
        %v2005 = vsel %vm1604, %v1926, %v1941
        %v2009 = vsel %vm1604, %v1925, %v1943
        %v2013 = vsel %vm1604, %v1947, %v1973
        %v2017 = vsel %vm1604, %v1949, %v1975
        %v2021 = vsel %vm1604, %v1951, %v1977
        %v2023 = vld [vmem:[%s6] sm:$0xf]
        %v2024 = vld [vmem:[%s6 + $0x4] sm:$0xf]
        %v2025 = vld [vmem:[%s6 + $0x8] sm:$0xf]
        %v2026 = vld [vmem:[%s6 + $0xc] sm:$0xf]
        %v2027 = vld [vmem:[%s6 + $0x10] sm:$0xf]
        %v2028 = vld [vmem:[%s6 + $0x14] sm:$0xf]
        %v2029 = vld [vmem:[%s6 + $0x18] sm:$0xf]
        %v2030 = vld [vmem:[%s6 + $0x1c] sm:$0xf]
        %v2031 = vld [vmem:[%s6 + $0x20] sm:$0xf]
        %v2032 = vld [vmem:[%s6 + $0x24] sm:$0xf]
        %v2033 = vld [vmem:[%s6 + $0x28] sm:$0xf]
        %v2034 = vld [vmem:[%s6 + $0x2c] sm:$0xf]
        %v2035 = vld [vmem:[%s6 + $0x30] sm:$0xf]
        %v2036 = vld [vmem:[%s6 + $0x34] sm:$0xf]
        %v2037 = vld [vmem:[%s6 + $0x38] sm:$0xf]
        %v2038 = vld [vmem:[%s6 + $0x3c] sm:$0xf]
        %v2039 = vld [vmem:[%s6 + $0x40] sm:$0xf]
        %v2040 = vld [vmem:[%s6 + $0x44] sm:$0xf]
        %v2041 = vld [vmem:[%s6 + $0x48] sm:$0xf]
        %v2042 = vld [vmem:[%s6 + $0x4c] sm:$0xf]
        %v2043 = vld [vmem:[%s6 + $0x50] sm:$0xf]
        %v2044 = vld [vmem:[%s6 + $0x54] sm:$0xf]
        %v2045 = vld [vmem:[%s6 + $0x58] sm:$0xf]
        %v2046 = vld [vmem:[%s6 + $0x5c] sm:$0xf]
        %v2047 = vld [vmem:[%s6 + $0x60] sm:$0xf]
        %v2048 = vld [vmem:[%s6 + $0x64] sm:$0xf]
        %v2049 = vld [vmem:[%s6 + $0x68] sm:$0xf]
        %v2050 = vld [vmem:[%s6 + $0x6c] sm:$0xf]
        %v2051 = vld [vmem:[%s6 + $0x70] sm:$0xf]
        %v2052 = vld [vmem:[%s6 + $0x74] sm:$0xf]
        %v2053 = vld [vmem:[%s6 + $0x78] sm:$0xf]
        %v2054 = vld [vmem:[%s6 + $0x7c] sm:$0xf]
        %v2055 = vld [vmem:[%s6 + $0x80] sm:$0xf]
        %v2056 = vld [vmem:[%s6 + $0x84] sm:$0xf]
        %v2057 = vld [vmem:[%s6 + $0x88] sm:$0xf]
        %v2058 = vld [vmem:[%s6 + $0x8c] sm:$0xf]
        %v2059 = vld [vmem:[%s6 + $0x90] sm:$0xf]
        %v2060 = vld [vmem:[%s6 + $0x94] sm:$0xf]
        %v2061 = vld [vmem:[%s6 + $0x98] sm:$0xf]
        %v2062 = vld [vmem:[%s6 + $0x9c] sm:$0xf]
        %v2063 = vld [vmem:[%s6 + $0xa0] sm:$0xf]
        %v2064 = vld [vmem:[%s6 + $0xa4] sm:$0xf]
        %v2065 = vld [vmem:[%s6 + $0xa8] sm:$0xf]
        %v2066 = vld [vmem:[%s6 + $0xac] sm:$0xf]
        %v2067 = vld [vmem:[%s6 + $0xb0] sm:$0xf]
        %v2068 = vld [vmem:[%s6 + $0xb4] sm:$0xf]
        %v2069 = vld [vmem:[%s6 + $0xb8] sm:$0xf]
        %v2070 = vld [vmem:[%s6 + $0xbc] sm:$0xf]
        %v2071 = vld [vmem:[%s6 + $0xc0] sm:$0xf]
        %v2072 = vld [vmem:[%s6 + $0xc4] sm:$0xf]
        %v2073 = vld [vmem:[%s6 + $0xc8] sm:$0xf]
        %v2074 = vld [vmem:[%s6 + $0xcc] sm:$0xf]
        %v2075 = vld [vmem:[%s6 + $0xd0] sm:$0xf]
        %v2076 = vld [vmem:[%s6 + $0xd4] sm:$0xf]
        %v2077 = vld [vmem:[%s6 + $0xd8] sm:$0xf]
        %v2078 = vld [vmem:[%s6 + $0xdc] sm:$0xf]
        %v2079 = vld [vmem:[%s6 + $0xe0] sm:$0xf]
        %v2080 = vld [vmem:[%s6 + $0xe4] sm:$0xf]
        %v2081 = vld [vmem:[%s6 + $0xe8] sm:$0xf]
        %v2082 = vld [vmem:[%s6 + $0xec] sm:$0xf]
        %v2083 = vld [vmem:[%s6 + $0xf0] sm:$0xf]
        %v2084 = vld [vmem:[%s6 + $0xf4] sm:$0xf]
        %v2085 = vld [vmem:[%s6 + $0xf8] sm:$0xf]
        %v2086 = vld [vmem:[%s6 + $0xfc] sm:$0xf]
        %v2087 = vld [vmem:[#allocation7] sm:$0x1]
        %v2089 = vlaneseq
        %v2090 = vshrl.u32 %v2089, 7
        %v2091 = vsub.s32 0, %v2090
        %v2092 = vrot.slane %v2087, %v2091
        %v2158 = vunpack.c.l.b16 %v2023
        %v2159 = vunpack.c.l.b16 %v2024
        %v2160 = vunpack.c.l.b16 %v2025
        %v2161 = vunpack.c.l.b16 %v2026
        %v2162 = vunpack.c.l.b16 %v2027
        %v2163 = vunpack.c.l.b16 %v2028
        %v2164 = vunpack.c.l.b16 %v2029
        %v2165 = vunpack.c.l.b16 %v2030
        %v2166 = vunpack.c.l.b16 %v2031
        %v2167 = vunpack.c.l.b16 %v2032
        %v2168 = vunpack.c.l.b16 %v2033
        %v2169 = vunpack.c.l.b16 %v2034
        %v2170 = vunpack.c.l.b16 %v2035
        %v2171 = vunpack.c.l.b16 %v2036
        %v2172 = vunpack.c.l.b16 %v2037
        %v2173 = vunpack.c.l.b16 %v2038
        %v2174 = vunpack.c.l.b16 %v2039
        %v2175 = vunpack.c.l.b16 %v2040
        %v2176 = vunpack.c.l.b16 %v2041
        %v2177 = vunpack.c.l.b16 %v2042
        %v2178 = vunpack.c.l.b16 %v2043
        %v2179 = vunpack.c.l.b16 %v2044
        %v2180 = vunpack.c.l.b16 %v2045
        %v2181 = vunpack.c.l.b16 %v2046
        %v2182 = vunpack.c.l.b16 %v2047
        %v2183 = vunpack.c.l.b16 %v2048
        %v2184 = vunpack.c.l.b16 %v2049
        %v2185 = vunpack.c.l.b16 %v2050
        %v2186 = vunpack.c.l.b16 %v2051
        %v2187 = vunpack.c.l.b16 %v2052
        %v2188 = vunpack.c.l.b16 %v2053
        %v2189 = vunpack.c.l.b16 %v2054
        %v2190 = vunpack.c.l.b16 %v2055
        %v2191 = vunpack.c.l.b16 %v2056
        %v2192 = vunpack.c.l.b16 %v2057
        %v2193 = vunpack.c.l.b16 %v2058
        %v2194 = vunpack.c.l.b16 %v2059
        %v2195 = vunpack.c.l.b16 %v2060
        %v2196 = vunpack.c.l.b16 %v2061
        %v2197 = vunpack.c.l.b16 %v2062
        %v2198 = vunpack.c.l.b16 %v2063
        %v2199 = vunpack.c.l.b16 %v2064
        %v2200 = vunpack.c.l.b16 %v2065
        %v2201 = vunpack.c.l.b16 %v2066
        %v2202 = vunpack.c.l.b16 %v2067
        %v2203 = vunpack.c.l.b16 %v2068
        %v2204 = vunpack.c.l.b16 %v2069
        %v2205 = vunpack.c.l.b16 %v2070
        %v2206 = vunpack.c.l.b16 %v2071
        %v2207 = vunpack.c.l.b16 %v2072
        %v2208 = vunpack.c.l.b16 %v2073
        %v2209 = vunpack.c.l.b16 %v2074
        %v2210 = vunpack.c.l.b16 %v2075
        %v2211 = vunpack.c.l.b16 %v2076
        %v2212 = vunpack.c.l.b16 %v2077
        %v2213 = vunpack.c.l.b16 %v2078
        %v2214 = vunpack.c.l.b16 %v2079
        %v2215 = vunpack.c.l.b16 %v2080
        %v2216 = vunpack.c.l.b16 %v2081
        %v2217 = vunpack.c.l.b16 %v2082
        %v2218 = vunpack.c.l.b16 %v2083
        %v2219 = vunpack.c.l.b16 %v2084
        %v2220 = vunpack.c.l.b16 %v2085
        %v2221 = vunpack.c.l.b16 %v2086
        %v2222 = vpack.c.b16 %v2159, %v2158
        %v2223 = vpack.c.b16 %v2161, %v2160
        %v2224 = vpack.c.b16 %v2163, %v2162
        %v2225 = vpack.c.b16 %v2165, %v2164
        %v2226 = vpack.c.b16 %v2167, %v2166
        %v2227 = vpack.c.b16 %v2169, %v2168
        %v2228 = vpack.c.b16 %v2171, %v2170
        %v2229 = vpack.c.b16 %v2173, %v2172
        %v2230 = vpack.c.b16 %v2175, %v2174
        %v2231 = vpack.c.b16 %v2177, %v2176
        %v2232 = vpack.c.b16 %v2179, %v2178
        %v2233 = vpack.c.b16 %v2181, %v2180
        %v2234 = vpack.c.b16 %v2183, %v2182
        %v2235 = vpack.c.b16 %v2185, %v2184
        %v2236 = vpack.c.b16 %v2187, %v2186
        %v2237 = vpack.c.b16 %v2189, %v2188
        %v2238 = vpack.c.b16 %v2191, %v2190
        %v2239 = vpack.c.b16 %v2193, %v2192
        %v2240 = vpack.c.b16 %v2195, %v2194
        %v2241 = vpack.c.b16 %v2197, %v2196
        %v2242 = vpack.c.b16 %v2199, %v2198
        %v2243 = vpack.c.b16 %v2201, %v2200
        %v2244 = vpack.c.b16 %v2203, %v2202
        %v2245 = vpack.c.b16 %v2205, %v2204
        %v2246 = vpack.c.b16 %v2207, %v2206
        %v2247 = vpack.c.b16 %v2209, %v2208
        %v2248 = vpack.c.b16 %v2211, %v2210
        %v2249 = vpack.c.b16 %v2213, %v2212
        %v2250 = vpack.c.b16 %v2215, %v2214
        %v2251 = vpack.c.b16 %v2217, %v2216
        %v2252 = vpack.c.b16 %v2219, %v2218
        %v2253 = vpack.c.b16 %v2221, %v2220
        %2286 = vmatprep.subr.bf16.mxu0 0
        %2287 = vmatpush1.bf16.msra.mxu0 %v2229
        %2288 = vmatprep.subr.bf16.mxu0 0
        %2289 = vmatpush1.bf16.msra.mxu0 %v2228
        %2290 = vmatprep.subr.bf16.mxu0 0
        %2291 = vmatpush1.bf16.msra.mxu0 %v2227
        %2292 = vmatprep.subr.bf16.mxu0 0
        %2293 = vmatpush1.bf16.msra.mxu0 %v2226
        %2294 = vmatprep.subr.bf16.mxu0 0
        %2295 = vmatpush1.bf16.msra.mxu0 %v2225
        %2296 = vmatprep.subr.bf16.mxu0 0
        %2297 = vmatpush1.bf16.msra.mxu0 %v2224
        %2298 = vmatprep.subr.bf16.mxu0 0
        %2299 = vmatpush1.bf16.msra.mxu0 %v2223
        %2300 = vmatprep.subr.bf16.mxu0 0
        %2301 = vmatpush1.bf16.msra.mxu0 %v2222
        %2302 = vmatprep.subr.bf16.mxu0 0
        %2303 = vmatpush2.bf16.msra.mxu0 %v2237
        %2304 = vmatprep.subr.bf16.mxu0 0
        %2305 = vmatpush2.bf16.msra.mxu0 %v2236
        %2306 = vmatprep.subr.bf16.mxu0 0
        %2307 = vmatpush2.bf16.msra.mxu0 %v2235
        %2308 = vmatprep.subr.bf16.mxu0 0
        %2309 = vmatpush2.bf16.msra.mxu0 %v2234
        %2310 = vmatprep.subr.bf16.mxu0 0
        %2311 = vmatpush2.bf16.msra.mxu0 %v2233
        %2312 = vmatprep.subr.bf16.mxu0 0
        %2313 = vmatpush2.bf16.msra.mxu0 %v2232
        %2314 = vmatprep.subr.bf16.mxu0 0
        %2315 = vmatpush2.bf16.msra.mxu0 %v2231
        %2316 = vmatprep.subr.bf16.mxu0 0
        %2317 = vmatpush2.bf16.msra.mxu0 %v2230
        %2318 = vmatprep.mubr.bf16.mxu0 %v1989
        %2319 = vmatmul.mubr.bf16.gmra.mxu0 %v1979
        %v2320 = vpop.f32.mrf.mxu0
        %v2321 = vadd.f32 %v2092, %v2320
        %v2322 = vpop.f32.mrf.mxu0
        %v2323 = vpop.f32.mrf.mxu0
        %v2324 = vadd.f32 %v2092, %v2323
        %v2325 = vpop.f32.mrf.mxu0
        %2326 = vmatprep.mubr.bf16.mxu0 %v1993
        %2327 = vmatmul.mubr.bf16.gmra.mxu0 %v1982
        %v2328 = vpop.f32.mrf.mxu0
        %v2329 = vadd.f32 %v2092, %v2328
        %v2330 = vpop.f32.mrf.mxu0
        %v2331 = vpop.f32.mrf.mxu0
        %v2332 = vadd.f32 %v2092, %v2331
        %v2333 = vpop.f32.mrf.mxu0
        %2334 = vmatprep.mubr.bf16.mxu0 %v1997
        %2335 = vmatmul.mubr.bf16.gmra.mxu0 %v1985
        %v2336 = vpop.f32.mrf.mxu0
        %v2337 = vadd.f32 %v2092, %v2336
        %v2338 = vpop.f32.mrf.mxu0
        %v2339 = vpop.f32.mrf.mxu0
        %v2340 = vadd.f32 %v2092, %v2339
        %v2341 = vpop.f32.mrf.mxu0
        %2342 = vdwg.mxu0
        %2343 = vmatprep.subr.bf16.mxu0 0
        %2344 = vmatpush1.bf16.msra.mxu0 %v2245
        %2345 = vmatprep.subr.bf16.mxu0 0
        %2346 = vmatpush1.bf16.msra.mxu0 %v2244
        %2347 = vmatprep.subr.bf16.mxu0 0
        %2348 = vmatpush1.bf16.msra.mxu0 %v2243
        %2349 = vmatprep.subr.bf16.mxu0 0
        %2350 = vmatpush1.bf16.msra.mxu0 %v2242
        %2351 = vmatprep.subr.bf16.mxu0 0
        %2352 = vmatpush1.bf16.msra.mxu0 %v2241
        %2353 = vmatprep.subr.bf16.mxu0 0
        %2354 = vmatpush1.bf16.msra.mxu0 %v2240
        %2355 = vmatprep.subr.bf16.mxu0 0
        %2356 = vmatpush1.bf16.msra.mxu0 %v2239
        %2357 = vmatprep.subr.bf16.mxu0 0
        %2358 = vmatpush1.bf16.msra.mxu0 %v2238
        %2359 = vmatprep.subr.bf16.mxu0 0
        %2360 = vmatpush2.bf16.msra.mxu0 %v2253
        %2361 = vmatprep.subr.bf16.mxu0 0
        %2362 = vmatpush2.bf16.msra.mxu0 %v2252
        %2363 = vmatprep.subr.bf16.mxu0 0
        %2364 = vmatpush2.bf16.msra.mxu0 %v2251
        %2365 = vmatprep.subr.bf16.mxu0 0
        %2366 = vmatpush2.bf16.msra.mxu0 %v2250
        %2367 = vmatprep.subr.bf16.mxu0 0
        %2368 = vmatpush2.bf16.msra.mxu0 %v2249
        %2369 = vmatprep.subr.bf16.mxu0 0
        %2370 = vmatpush2.bf16.msra.mxu0 %v2248
        %2371 = vmatprep.subr.bf16.mxu0 0
        %2372 = vmatpush2.bf16.msra.mxu0 %v2247
        %2373 = vmatprep.subr.bf16.mxu0 0
        %2374 = vmatpush2.bf16.msra.mxu0 %v2246
        %2375 = vmatprep.mubr.bf16.mxu0 %v2013
        %2376 = vmatmul.mubr.bf16.gmra.mxu0 %v2001
        %v2377 = vpop.f32.mrf.mxu0
        %v2378 = vadd.f32 %v2321, %v2377
        %v2379 = vpop.f32.mrf.mxu0
        %v2380 = vpop.f32.mrf.mxu0
        %v2381 = vadd.f32 %v2324, %v2380
        %v2382 = vpop.f32.mrf.mxu0
        %2383 = vmatprep.mubr.bf16.mxu0 %v2017
        %2384 = vmatmul.mubr.bf16.gmra.mxu0 %v2005
        %v2385 = vpop.f32.mrf.mxu0
        %v2386 = vadd.f32 %v2329, %v2385
        %v2387 = vpop.f32.mrf.mxu0
        %v2388 = vpop.f32.mrf.mxu0
        %v2389 = vadd.f32 %v2332, %v2388
        %v2390 = vpop.f32.mrf.mxu0
        %2391 = vmatprep.mubr.bf16.mxu0 %v2021
        %2392 = vmatmul.mubr.bf16.gmra.mxu0 %v2009
        %v2393 = vpop.f32.mrf.mxu0
        %v2394 = vadd.f32 %v2337, %v2393
        %v2395 = vpop.f32.mrf.mxu0
        %v2396 = vpop.f32.mrf.mxu0
        %v2397 = vadd.f32 %v2340, %v2396
        %v2398 = vpop.f32.mrf.mxu0
        %2399 = vdwg.mxu0
        %v2400 = vmax.f32 %v2378, 0.0
        %v2401 = vmax.f32 %v2381, 0.0
        %v2402 = vmax.f32 %v2386, 0.0
        %v2403 = vmax.f32 %v2389, 0.0
        %v2404 = vmax.f32 %v2394, 0.0
        %v2405 = vmax.f32 %v2397, 0.0
        %v2406 = vsel %vm1613, %v2400, -inf
        %v2407 = vsel %vm1613, %v2401, -inf
        %v2408 = vsel %vm1613, %v2402, -inf
        %v2409 = vsel %vm1613, %v2403, -inf
        %v2410 = vsel %vm1613, %v2404, -inf
        %v2411 = vmax.f32 %v2406, %v2410
        %vm2412 = vcmask 780288
        %v2413 = vsel %vm2412, %v2405, -inf
        %v2414 = vmax.f32 %v2407, %v2413
        %v2415 = vmax.f32 %v2411, %v2414
        %v2416 = vmax.f32 %v2408, %v2409
        %v2417 = vmax.f32 %v2415, %v2416
        %v2418 = vrot.slane %v2417, 4
        %v2419 = vmax.f32 %v2417, %v2418
        %v2420 = vrot.slane %v2419, 2
        %v2421 = vmax.f32 %v2419, %v2420
        %v2422 = vrot.slane %v2421, 1
        %v2423 = vmax.f32 %v2421, %v2422
        %vm2424 = vcmask 778240
        %2425 = vst.msk [vmem:[%s354] sm:$0x1] %vm2424, %v2423
        %p2426 = scmp.lt.s32.totalorder %s22, 1
        %s2427 = scalar_select %p2426, %s22, 1
        %s2428 = scalar_lea.vmem %s8, %s2427
        // Predicated region
        $region69: #{net_forward.4} parent=51 // pred_check
          %p2429 = pneg %p213
        $region70: #{net_forward.4} parent=51 // pred_check_branch
          %2431 = sbr.rel (%p2429) target = $region72
        $region71: #{net_forward.4} parent=51 // pred_region
          _
        $region72: #{net_forward.4} parent=51 // pred_fallthru
          _
      $region52: #{net_forward.4} parent=5 // pred_fallthru
        _
      %p2432 = scmp.le.s32.totalorder 2, %s17
      // Predicated region
      $region73: #{net_forward.4} parent=5 // pred_check
        %p2433 = pneg %p2432
      $region74: #{net_forward.4} parent=5 // pred_check_branch
        %2435 = sbr.rel (%p2433) target = $region76
      $region75: #{net_forward.4} parent=5 // pred_region
        %s2436 = ssub.s32 %s17, 2
        // Predicated region
        $region77: #{net_forward.4} parent=75 // pred_check
          %p2437 = pneg %p219
        $region78: #{net_forward.4} parent=75 // pred_check_branch
          %2439 = sbr.rel (%p2437) target = $region80
        $region79: #{net_forward.4} parent=75 // pred_region
          %p2440 = scmp.lt.s32.totalorder %s23, 1
          %s2441 = scalar_select %p2440, %s23, 1
          %s2442 = scalar_lea.vmem %s8, %s2441
        $region80: #{net_forward.4} parent=75 // pred_fallthru
          _
      $region76: #{net_forward.4} parent=5 // pred_fallthru
        _
    $region6: #{net_forward.4} parent=1 // loop_footer
      %s21 = sadd.s32 1, %s17
    $region7: #{net_forward.4} parent=1 // loop_footer_branch
      %16 = sbr.rel target = $region3
    $region8: #{net_forward.4} parent=1 // loop_exit
      _
    %2443 = vsyncpa [#allocation3], 1
    %s2444 = scalar_lea.sflag [#allocation3], 1
    %2445 = vsyncpa %s2444, 1
    %2446 = vsyncpa [#allocation5], 1
    %2447 = vsyncpa [#allocation8], 1

// kernel: net_forward.5
$region0: #{net_forward.5}
  #allocation0 [shape = 'u32[]', space=smem, size = 0x4, offset = 0x4, fixed_abs, tag = 'smem constant byte address 0x4 - core index']
  #allocation1 [shape = 'u32[144,128]{1,0:T(1,128)}', space=vmem, size = 0x12000, scoped, tag = 'internal scratch']
  #allocation2 [shape = 'f32[1,1]{1,0:T(1,128)S(1)}', space=vmem, size = 0x200, scoped, tag = 'scoped memory for net_forward.5']
  %s0 = inlined_call_operand.vmem [shape: f32[2,96], index: 0, kind: input, shape index: {}]
  %s1 = inlined_call_operand.vmem [shape: f32[2,96], index: 1, kind: input, shape index: {}]
  %s2 = inlined_call_operand.vmem [shape: f32[2,1024], index: 2, kind: input, shape index: {}]
  %s3 = inlined_call_operand.vmem [shape: f32[2,1024], index: 3, kind: input, shape index: {}]
  %s4 = inlined_call_operand.hbm [shape: bf16[96,1024], index: 4, kind: input, shape index: {}]
  %s5 = inlined_call_operand.hbm [shape: bf16[96,1024], index: 5, kind: input, shape index: {}]
  %s6 = inlined_call_operand.vmem [shape: f32[1,1024], index: 6, kind: input, shape index: {}]
  %s7 = inlined_call_operand.vmem [shape: bf16[1024,1024], index: 7, kind: input, shape index: {}]
  %s8 = inlined_call_operand.vmem [shape: f32[1,1024], index: 8, kind: input, shape index: {}]
  %s9 = inlined_call_operand.hbm [shape: bf16[1024,512], index: 9, kind: input, shape index: {}]
  %s10 = inlined_call_operand.vmem [shape: f32[1,512], index: 10, kind: input, shape index: {}]
  %s11 = inlined_call_operand.vmem [shape: bf16[512,1], index: 11, kind: input, shape index: {}]
  %s12 = inlined_call_operand.<no memory space> [shape: f32[1,1], index: 12, kind: input, shape index: {}]
  %s13 = inlined_call_operand.vmem [shape: f32[2,1], index: 13, kind: output, shape index: {}]
  %s14 = sld [smem:[#allocation0]]
  $region74: #{net_forward.5} parent=0
    _
  %s16 = ssub.s32 1, %s14
  %s17 = scalar_select 0, %s16, %s14
  %v18 = vstv %s12
  %19 = vst [vmem:[#allocation2] sm:$0x1] %v18
  $region1: #{net_forward.5} parent=0
    #allocation3 [shape = 'u8[196608]{0}', space=vmem, size = 0x30000, scoped, tag = 'input window, operand 4, single buffered']
    #allocation4 [shape = 's32[1]{0}', space=sflag, size = 0x4, scoped, tag = 'scoped memory for net_forward.5']
    #allocation5 [shape = 'u8[196608]{0}', space=vmem, size = 0x30000, scoped, tag = 'input window, operand 5, single buffered']
    #allocation6 [shape = 's32[1]{0}', space=sflag, size = 0x4, scoped, tag = 'scoped memory for net_forward.5']
    #allocation7 [shape = 'u8[1048576]{0}', space=vmem, size = 0x100000, scoped, tag = 'input window, operand 9, single buffered']
    %20 = vsyncpa [#allocation4], 0
    %21 = vsyncpa [#allocation6], 0
    // Predicated region
    $region2: #{net_forward.5} parent=1 // pred_check
      _
    $region3: #{net_forward.5} parent=1 // pred_check_branch
      %23 = sbr.rel (0) target = $region5
    $region4: #{net_forward.5} parent=1 // pred_region
      _
    $region5: #{net_forward.5} parent=1 // pred_fallthru
      _
    // Predicated region
    $region6: #{net_forward.5} parent=1 // pred_check
      _
    $region7: #{net_forward.5} parent=1 // pred_check_branch
      %25 = sbr.rel (0) target = $region9
    $region8: #{net_forward.5} parent=1 // pred_region
      _
    $region9: #{net_forward.5} parent=1 // pred_fallthru
      _
    // Predicated region
    $region10: #{net_forward.5} parent=1 // pred_check
      _
    $region11: #{net_forward.5} parent=1 // pred_check_branch
      %27 = sbr.rel (0) target = $region13
    $region12: #{net_forward.5} parent=1 // pred_region
      _
    $region13: #{net_forward.5} parent=1 // pred_fallthru
      _
    // Predicated region
    $region14: #{net_forward.5} parent=1 // pred_check
      _
    $region15: #{net_forward.5} parent=1 // pred_check_branch
      %29 = sbr.rel (0) target = $region17
    $region16: #{net_forward.5} parent=1 // pred_region
      _
    $region17: #{net_forward.5} parent=1 // pred_fallthru
      _
    // Predicated region
    $region18: #{net_forward.5} parent=1 // pred_check
      _
    $region19: #{net_forward.5} parent=1 // pred_check_branch
      %31 = sbr.rel (0) target = $region21
    $region20: #{net_forward.5} parent=1 // pred_region
      %s33 = ssub.s32 6144, 6144
      %34 = vsyncadd [#allocation4], %s33
      %s35 = sshll.u32 [#allocation3], 4
      %s36 = int_to_ptr.vmem [resolvable:$true] %s35
      %41 = dma.hbm_to_vmem [thread:$0]  %s4, 6144, %s36, [#allocation4], 512, 512, 32
    $region21: #{net_forward.5} parent=1 // pred_fallthru
      _
    // Predicated region
    $region22: #{net_forward.5} parent=1 // pred_check
      _
    $region23: #{net_forward.5} parent=1 // pred_check_branch
      %43 = sbr.rel (0) target = $region25
    $region24: #{net_forward.5} parent=1 // pred_region
      %s45 = ssub.s32 6144, 6144
      %46 = vsyncadd [#allocation6], %s45
      %s47 = sshll.u32 [#allocation5], 4
      %s48 = int_to_ptr.vmem [resolvable:$true] %s47
      %53 = dma.hbm_to_vmem [thread:$0]  %s5, 6144, %s48, [#allocation6], 512, 512, 32
    $region25: #{net_forward.5} parent=1 // pred_fallthru
      _
    // Predicated region
    $region26: #{net_forward.5} parent=1 // pred_check
      _
    $region27: #{net_forward.5} parent=1 // pred_check_branch
      %55 = sbr.rel (0) target = $region29
    $region28: #{net_forward.5} parent=1 // pred_region
      _
    $region29: #{net_forward.5} parent=1 // pred_fallthru
      _
    // Predicated region
    $region30: #{net_forward.5} parent=1 // pred_check
      _
    $region31: #{net_forward.5} parent=1 // pred_check_branch
      %57 = sbr.rel (0) target = $region33
    $region32: #{net_forward.5} parent=1 // pred_region
      _
    $region33: #{net_forward.5} parent=1 // pred_fallthru
      _
    // Predicated region
    $region34: #{net_forward.5} parent=1 // pred_check
      _
    $region35: #{net_forward.5} parent=1 // pred_check_branch
      %59 = sbr.rel (0) target = $region37
    $region36: #{net_forward.5} parent=1 // pred_region
      _
    $region37: #{net_forward.5} parent=1 // pred_fallthru
      _
    // Predicated region
    $region38: #{net_forward.5} parent=1 // pred_check
      _
    $region39: #{net_forward.5} parent=1 // pred_check_branch
      %61 = sbr.rel (0) target = $region41
    $region40: #{net_forward.5} parent=1 // pred_region
      %s63 = ssub.s32 32768, 32768
      %64 = vsyncadd [#allocation6], %s63
      %s65 = sshll.u32 [#allocation7], 4
      %s66 = int_to_ptr.vmem [resolvable:$true] %s65
      %71 = dma.hbm_to_vmem [thread:$0]  %s9, 32768, %s66, [#allocation6], 256, 256, 16
    $region41: #{net_forward.5} parent=1 // pred_fallthru
      _
    // Predicated region
    $region42: #{net_forward.5} parent=1 // pred_check
      _
    $region43: #{net_forward.5} parent=1 // pred_check_branch
      %73 = sbr.rel (0) target = $region45
    $region44: #{net_forward.5} parent=1 // pred_region
      _
    $region45: #{net_forward.5} parent=1 // pred_fallthru
      _
    // Predicated region
    $region46: #{net_forward.5} parent=1 // pred_check
      _
    $region47: #{net_forward.5} parent=1 // pred_check_branch
      %75 = sbr.rel (0) target = $region49
    $region48: #{net_forward.5} parent=1 // pred_region
      _
    $region49: #{net_forward.5} parent=1 // pred_fallthru
      _
    // Predicated region
    $region50: #{net_forward.5} parent=1 // pred_check
      _
    $region51: #{net_forward.5} parent=1 // pred_check_branch
      %77 = sbr.rel (0) target = $region53
    $region52: #{net_forward.5} parent=1 // pred_region
      _
    $region53: #{net_forward.5} parent=1 // pred_fallthru
      _
    // Predicated region
    $region54: #{net_forward.5} parent=1 // pred_check
      _
    $region55: #{net_forward.5} parent=1 // pred_check_branch
      %79 = sbr.rel (0) target = $region57
    $region56: #{net_forward.5} parent=1 // pred_region
      %80 = dma.done [#allocation4], 6144
    $region57: #{net_forward.5} parent=1 // pred_fallthru
      _
    // Predicated region
    $region58: #{net_forward.5} parent=1 // pred_check
      _
    $region59: #{net_forward.5} parent=1 // pred_check_branch
      %82 = sbr.rel (0) target = $region61
    $region60: #{net_forward.5} parent=1 // pred_region
      %83 = dma.done [#allocation6], 6144
    $region61: #{net_forward.5} parent=1 // pred_fallthru
      _
    // Predicated region
    $region62: #{net_forward.5} parent=1 // pred_check
      _
    $region63: #{net_forward.5} parent=1 // pred_check_branch
      %85 = sbr.rel (0) target = $region65
    $region64: #{net_forward.5} parent=1 // pred_region
      %86 = dma.done [#allocation6], 32768
    $region65: #{net_forward.5} parent=1 // pred_fallthru
      _
    %v88 = vld [vmem:[%s0] sm:$0x3]
    %v89 = vpack.c.bf16 %v88, %v88
    %v90 = vld [vmem:[#allocation3] sm:$0xff]
    %v91 = vld [vmem:[#allocation3 + $0x8] sm:$0xff]
    %v92 = vld [vmem:[#allocation3 + $0x10] sm:$0xff]
    %v93 = vld [vmem:[#allocation3 + $0x18] sm:$0xff]
    %v94 = vld [vmem:[#allocation3 + $0x20] sm:$0xff]
    %v95 = vld [vmem:[#allocation3 + $0x28] sm:$0xff]
    %v96 = vld [vmem:[#allocation3 + $0x30] sm:$0xff]
    %v97 = vld [vmem:[#allocation3 + $0x38] sm:$0xff]
    %v98 = vld [vmem:[#allocation3 + $0x40] sm:$0xff]
    %v99 = vld [vmem:[#allocation3 + $0x48] sm:$0xff]
    %v100 = vld [vmem:[#allocation3 + $0x50] sm:$0xff]
    %v101 = vld [vmem:[#allocation3 + $0x58] sm:$0xff]
    %v102 = vld [vmem:[#allocation3 + $0x60] sm:$0xff]
    %v103 = vld [vmem:[#allocation3 + $0x68] sm:$0xff]
    %v104 = vld [vmem:[#allocation3 + $0x70] sm:$0xff]
    %v105 = vld [vmem:[#allocation3 + $0x78] sm:$0xff]
    %v106 = vld [vmem:[#allocation3 + $0x80] sm:$0xff]
    %v107 = vld [vmem:[#allocation3 + $0x88] sm:$0xff]
    %v108 = vld [vmem:[#allocation3 + $0x90] sm:$0xff]
    %v109 = vld [vmem:[#allocation3 + $0x98] sm:$0xff]
    %v110 = vld [vmem:[#allocation3 + $0xa0] sm:$0xff]
    %v111 = vld [vmem:[#allocation3 + $0xa8] sm:$0xff]
    %v112 = vld [vmem:[#allocation3 + $0xb0] sm:$0xff]
    %v113 = vld [vmem:[#allocation3 + $0xb8] sm:$0xff]
    %v114 = vld [vmem:[#allocation3 + $0xc0] sm:$0xff]
    %v115 = vld [vmem:[#allocation3 + $0xc8] sm:$0xff]
    %v116 = vld [vmem:[#allocation3 + $0xd0] sm:$0xff]
    %v117 = vld [vmem:[#allocation3 + $0xd8] sm:$0xff]
    %v118 = vld [vmem:[#allocation3 + $0xe0] sm:$0xff]
    %v119 = vld [vmem:[#allocation3 + $0xe8] sm:$0xff]
    %v120 = vld [vmem:[#allocation3 + $0xf0] sm:$0xff]
    %v121 = vld [vmem:[#allocation3 + $0xf8] sm:$0xff]
    %v122 = vld [vmem:[#allocation3 + $0x100] sm:$0xff]
    %v123 = vld [vmem:[#allocation3 + $0x108] sm:$0xff]
    %v124 = vld [vmem:[#allocation3 + $0x110] sm:$0xff]
    %v125 = vld [vmem:[#allocation3 + $0x118] sm:$0xff]
    %v126 = vld [vmem:[#allocation3 + $0x120] sm:$0xff]
    %v127 = vld [vmem:[#allocation3 + $0x128] sm:$0xff]
    %v128 = vld [vmem:[#allocation3 + $0x130] sm:$0xff]
    %v129 = vld [vmem:[#allocation3 + $0x138] sm:$0xff]
    %v130 = vld [vmem:[#allocation3 + $0x140] sm:$0xff]
    %v131 = vld [vmem:[#allocation3 + $0x148] sm:$0xff]
    %v132 = vld [vmem:[#allocation3 + $0x150] sm:$0xff]
    %v133 = vld [vmem:[#allocation3 + $0x158] sm:$0xff]
    %v134 = vld [vmem:[#allocation3 + $0x160] sm:$0xff]
    %v135 = vld [vmem:[#allocation3 + $0x168] sm:$0xff]
    %v136 = vld [vmem:[#allocation3 + $0x170] sm:$0xff]
    %v137 = vld [vmem:[#allocation3 + $0x178] sm:$0xff]
    %v138 = vld [vmem:[%s1] sm:$0x3]
    %v139 = vpack.c.bf16 %v138, %v138
    %v140 = vld [vmem:[#allocation5] sm:$0xff]
    %v141 = vld [vmem:[#allocation5 + $0x8] sm:$0xff]
    %v142 = vld [vmem:[#allocation5 + $0x10] sm:$0xff]
    %v143 = vld [vmem:[#allocation5 + $0x18] sm:$0xff]
    %v144 = vld [vmem:[#allocation5 + $0x20] sm:$0xff]
    %v145 = vld [vmem:[#allocation5 + $0x28] sm:$0xff]
    %v146 = vld [vmem:[#allocation5 + $0x30] sm:$0xff]
    %v147 = vld [vmem:[#allocation5 + $0x38] sm:$0xff]
    %v148 = vld [vmem:[#allocation5 + $0x40] sm:$0xff]
    %v149 = vld [vmem:[#allocation5 + $0x48] sm:$0xff]
    %v150 = vld [vmem:[#allocation5 + $0x50] sm:$0xff]
    %v151 = vld [vmem:[#allocation5 + $0x58] sm:$0xff]
    %v152 = vld [vmem:[#allocation5 + $0x60] sm:$0xff]
    %v153 = vld [vmem:[#allocation5 + $0x68] sm:$0xff]
    %v154 = vld [vmem:[#allocation5 + $0x70] sm:$0xff]
    %v155 = vld [vmem:[#allocation5 + $0x78] sm:$0xff]
    %v156 = vld [vmem:[#allocation5 + $0x80] sm:$0xff]
    %v157 = vld [vmem:[#allocation5 + $0x88] sm:$0xff]
    %v158 = vld [vmem:[#allocation5 + $0x90] sm:$0xff]
    %v159 = vld [vmem:[#allocation5 + $0x98] sm:$0xff]
    %v160 = vld [vmem:[#allocation5 + $0xa0] sm:$0xff]
    %v161 = vld [vmem:[#allocation5 + $0xa8] sm:$0xff]
    %v162 = vld [vmem:[#allocation5 + $0xb0] sm:$0xff]
    %v163 = vld [vmem:[#allocation5 + $0xb8] sm:$0xff]
    %v164 = vld [vmem:[#allocation5 + $0xc0] sm:$0xff]
    %v165 = vld [vmem:[#allocation5 + $0xc8] sm:$0xff]
    %v166 = vld [vmem:[#allocation5 + $0xd0] sm:$0xff]
    %v167 = vld [vmem:[#allocation5 + $0xd8] sm:$0xff]
    %v168 = vld [vmem:[#allocation5 + $0xe0] sm:$0xff]
    %v169 = vld [vmem:[#allocation5 + $0xe8] sm:$0xff]
    %v170 = vld [vmem:[#allocation5 + $0xf0] sm:$0xff]
    %v171 = vld [vmem:[#allocation5 + $0xf8] sm:$0xff]
    %v172 = vld [vmem:[#allocation5 + $0x100] sm:$0xff]
    %v173 = vld [vmem:[#allocation5 + $0x108] sm:$0xff]
    %v174 = vld [vmem:[#allocation5 + $0x110] sm:$0xff]
    %v175 = vld [vmem:[#allocation5 + $0x118] sm:$0xff]
    %v176 = vld [vmem:[#allocation5 + $0x120] sm:$0xff]
    %v177 = vld [vmem:[#allocation5 + $0x128] sm:$0xff]
    %v178 = vld [vmem:[#allocation5 + $0x130] sm:$0xff]
    %v179 = vld [vmem:[#allocation5 + $0x138] sm:$0xff]
    %v180 = vld [vmem:[#allocation5 + $0x140] sm:$0xff]
    %v181 = vld [vmem:[#allocation5 + $0x148] sm:$0xff]
    %v182 = vld [vmem:[#allocation5 + $0x150] sm:$0xff]
    %v183 = vld [vmem:[#allocation5 + $0x158] sm:$0xff]
    %v184 = vld [vmem:[#allocation5 + $0x160] sm:$0xff]
    %v185 = vld [vmem:[#allocation5 + $0x168] sm:$0xff]
    %v186 = vld [vmem:[#allocation5 + $0x170] sm:$0xff]
    %v187 = vld [vmem:[#allocation5 + $0x178] sm:$0xff]
    %v236 = vunpack.c.l.b16 %v140
    %v237 = vunpack.c.h.b16 %v140
    %v238 = vunpack.c.l.b16 %v141
    %v239 = vunpack.c.h.b16 %v141
    %v240 = vunpack.c.l.b16 %v142
    %v241 = vunpack.c.h.b16 %v142
    %v242 = vunpack.c.l.b16 %v143
    %v243 = vunpack.c.h.b16 %v143
    %v244 = vunpack.c.l.b16 %v144
    %v245 = vunpack.c.h.b16 %v144
    %v246 = vunpack.c.l.b16 %v145
    %v247 = vunpack.c.h.b16 %v145
    %v248 = vunpack.c.l.b16 %v146
    %v249 = vunpack.c.h.b16 %v146
    %v250 = vunpack.c.l.b16 %v147
    %v251 = vunpack.c.h.b16 %v147
    %v252 = vunpack.c.l.b16 %v148
    %v253 = vunpack.c.h.b16 %v148
    %v254 = vunpack.c.l.b16 %v149
    %v255 = vunpack.c.h.b16 %v149
    %v256 = vunpack.c.l.b16 %v150
    %v257 = vunpack.c.h.b16 %v150
    %v258 = vunpack.c.l.b16 %v151
    %v259 = vunpack.c.h.b16 %v151
    %v260 = vunpack.c.l.b16 %v152
    %v261 = vunpack.c.h.b16 %v152
    %v262 = vunpack.c.l.b16 %v153
    %v263 = vunpack.c.h.b16 %v153
    %v264 = vunpack.c.l.b16 %v154
    %v265 = vunpack.c.h.b16 %v154
    %v266 = vunpack.c.l.b16 %v155
    %v267 = vunpack.c.h.b16 %v155
    %v268 = vunpack.c.l.b16 %v156
    %v269 = vunpack.c.h.b16 %v156
    %v270 = vunpack.c.l.b16 %v157
    %v271 = vunpack.c.h.b16 %v157
    %v272 = vunpack.c.l.b16 %v158
    %v273 = vunpack.c.h.b16 %v158
    %v274 = vunpack.c.l.b16 %v159
    %v275 = vunpack.c.h.b16 %v159
    %v276 = vunpack.c.l.b16 %v160
    %v277 = vunpack.c.h.b16 %v160
    %v278 = vunpack.c.l.b16 %v161
    %v279 = vunpack.c.h.b16 %v161
    %v280 = vunpack.c.l.b16 %v162
    %v281 = vunpack.c.h.b16 %v162
    %v282 = vunpack.c.l.b16 %v163
    %v283 = vunpack.c.h.b16 %v163
    %v284 = vunpack.c.l.b16 %v164
    %v285 = vunpack.c.h.b16 %v164
    %v286 = vunpack.c.l.b16 %v165
    %v287 = vunpack.c.h.b16 %v165
    %v288 = vunpack.c.l.b16 %v166
    %v289 = vunpack.c.h.b16 %v166
    %v290 = vunpack.c.l.b16 %v167
    %v291 = vunpack.c.h.b16 %v167
    %v292 = vunpack.c.l.b16 %v168
    %v293 = vunpack.c.h.b16 %v168
    %v294 = vunpack.c.l.b16 %v169
    %v295 = vunpack.c.h.b16 %v169
    %v296 = vunpack.c.l.b16 %v170
    %v297 = vunpack.c.h.b16 %v170
    %v298 = vunpack.c.l.b16 %v171
    %v299 = vunpack.c.h.b16 %v171
    %v300 = vunpack.c.l.b16 %v172
    %v301 = vunpack.c.h.b16 %v172
    %v302 = vunpack.c.l.b16 %v173
    %v303 = vunpack.c.h.b16 %v173
    %v304 = vunpack.c.l.b16 %v174
    %v305 = vunpack.c.h.b16 %v174
    %v306 = vunpack.c.l.b16 %v175
    %v307 = vunpack.c.h.b16 %v175
    %v308 = vunpack.c.l.b16 %v176
    %v309 = vunpack.c.h.b16 %v176
    %v310 = vunpack.c.l.b16 %v177
    %v311 = vunpack.c.h.b16 %v177
    %v312 = vunpack.c.l.b16 %v178
    %v313 = vunpack.c.h.b16 %v178
    %v314 = vunpack.c.l.b16 %v179
    %v315 = vunpack.c.h.b16 %v179
    %v316 = vunpack.c.l.b16 %v180
    %v317 = vunpack.c.h.b16 %v180
    %v318 = vunpack.c.l.b16 %v181
    %v319 = vunpack.c.h.b16 %v181
    %v320 = vunpack.c.l.b16 %v182
    %v321 = vunpack.c.h.b16 %v182
    %v322 = vunpack.c.l.b16 %v183
    %v323 = vunpack.c.h.b16 %v183
    %v324 = vunpack.c.l.b16 %v184
    %v325 = vunpack.c.h.b16 %v184
    %v326 = vunpack.c.l.b16 %v185
    %v327 = vunpack.c.h.b16 %v185
    %v328 = vunpack.c.l.b16 %v186
    %v329 = vunpack.c.h.b16 %v186
    %v330 = vunpack.c.l.b16 %v187
    %v331 = vunpack.c.h.b16 %v187
    %v332 = vpack.c.b16 %v244, %v236
    %v333 = vpack.c.b16 %v245, %v237
    %v334 = vpack.c.b16 %v246, %v238
    %v335 = vpack.c.b16 %v247, %v239
    %v336 = vpack.c.b16 %v248, %v240
    %v337 = vpack.c.b16 %v249, %v241
    %v338 = vpack.c.b16 %v250, %v242
    %v339 = vpack.c.b16 %v251, %v243
    %v340 = vpack.c.b16 %v260, %v252
    %v341 = vpack.c.b16 %v261, %v253
    %v342 = vpack.c.b16 %v262, %v254
    %v343 = vpack.c.b16 %v263, %v255
    %v344 = vpack.c.b16 %v264, %v256
    %v345 = vpack.c.b16 %v265, %v257
    %v346 = vpack.c.b16 %v266, %v258
    %v347 = vpack.c.b16 %v267, %v259
    %v348 = vpack.c.b16 %v276, %v268
    %v349 = vpack.c.b16 %v277, %v269
    %v350 = vpack.c.b16 %v278, %v270
    %v351 = vpack.c.b16 %v279, %v271
    %v352 = vpack.c.b16 %v280, %v272
    %v353 = vpack.c.b16 %v281, %v273
    %v354 = vpack.c.b16 %v282, %v274
    %v355 = vpack.c.b16 %v283, %v275
    %v356 = vpack.c.b16 %v292, %v284
    %v357 = vpack.c.b16 %v293, %v285
    %v358 = vpack.c.b16 %v294, %v286
    %v359 = vpack.c.b16 %v295, %v287
    %v360 = vpack.c.b16 %v296, %v288
    %v361 = vpack.c.b16 %v297, %v289
    %v362 = vpack.c.b16 %v298, %v290
    %v363 = vpack.c.b16 %v299, %v291
    %v364 = vpack.c.b16 %v308, %v300
    %v365 = vpack.c.b16 %v309, %v301
    %v366 = vpack.c.b16 %v310, %v302
    %v367 = vpack.c.b16 %v311, %v303
    %v368 = vpack.c.b16 %v312, %v304
    %v369 = vpack.c.b16 %v313, %v305
    %v370 = vpack.c.b16 %v314, %v306
    %v371 = vpack.c.b16 %v315, %v307
    %v372 = vpack.c.b16 %v324, %v316
    %v373 = vpack.c.b16 %v325, %v317
    %v374 = vpack.c.b16 %v326, %v318
    %v375 = vpack.c.b16 %v327, %v319
    %v376 = vpack.c.b16 %v328, %v320
    %v377 = vpack.c.b16 %v329, %v321
    %v378 = vpack.c.b16 %v330, %v322
    %v379 = vpack.c.b16 %v331, %v323
    %vm428 = vcmask 785408
    %v430 = vsel %vm428, %v139, 0
    %432 = vmatprep.subr.bf16.mxu0 0
    %433 = vmatpush1.bf16.msra.mxu0 0
    %434 = vmatprep.subr.bf16.mxu0 0
    %435 = vmatpush1.bf16.msra.mxu0 0
    %436 = vmatprep.subr.bf16.mxu0 %v373
    %437 = vmatpush1.bf16.msra.mxu0 %v372
    %438 = vmatprep.subr.bf16.mxu0 %v365
    %439 = vmatpush1.bf16.msra.mxu0 %v364
    %440 = vmatprep.subr.bf16.mxu0 %v357
    %441 = vmatpush1.bf16.msra.mxu0 %v356
    %442 = vmatprep.subr.bf16.mxu0 %v349
    %443 = vmatpush1.bf16.msra.mxu0 %v348
    %444 = vmatprep.subr.bf16.mxu0 %v341
    %445 = vmatpush1.bf16.msra.mxu0 %v340
    %446 = vmatprep.subr.bf16.mxu0 %v333
    %447 = vmatpush1.bf16.msra.mxu0 %v332
    %448 = vmatprep.subr.bf16.mxu0 0
    %449 = vmatpush2.bf16.msra.mxu0 0
    %450 = vmatprep.subr.bf16.mxu0 0
    %451 = vmatpush2.bf16.msra.mxu0 0
    %452 = vmatprep.subr.bf16.mxu0 0
    %453 = vmatpush2.bf16.msra.mxu0 0
    %454 = vmatprep.subr.bf16.mxu0 0
    %455 = vmatpush2.bf16.msra.mxu0 0
    %456 = vmatprep.subr.bf16.mxu0 0
    %457 = vmatpush2.bf16.msra.mxu0 0
    %458 = vmatprep.subr.bf16.mxu0 0
    %459 = vmatpush2.bf16.msra.mxu0 0
    %460 = vmatprep.subr.bf16.mxu0 0
    %461 = vmatpush2.bf16.msra.mxu0 0
    %462 = vmatprep.subr.bf16.mxu0 0
    %463 = vmatpush2.bf16.msra.mxu0 0
    %464 = vmatprep.mubr.bf16.mxu0 0
    %465 = vmatmul.mubr.bf16.gmra.mxu0 %v430
    %v466 = vpop.f32.mrf.mxu0
    %v467 = vadd.f32 0.0, %v466
    %v468 = vpop.f32.mrf.mxu0
    %v469 = vadd.f32 0.0, %v468
    %v470 = vpop.f32.mrf.mxu0
    %v471 = vpop.f32.mrf.mxu0
    %472 = vdwg.mxu0
    %473 = vmatprep.subr.bf16.mxu0 0
    %474 = vmatpush1.bf16.msra.mxu0 0
    %475 = vmatprep.subr.bf16.mxu0 0
    %476 = vmatpush1.bf16.msra.mxu0 0
    %477 = vmatprep.subr.bf16.mxu0 %v375
    %478 = vmatpush1.bf16.msra.mxu0 %v374
    %479 = vmatprep.subr.bf16.mxu0 %v367
    %480 = vmatpush1.bf16.msra.mxu0 %v366
    %481 = vmatprep.subr.bf16.mxu0 %v359
    %482 = vmatpush1.bf16.msra.mxu0 %v358
    %483 = vmatprep.subr.bf16.mxu0 %v351
    %484 = vmatpush1.bf16.msra.mxu0 %v350
    %485 = vmatprep.subr.bf16.mxu0 %v343
    %486 = vmatpush1.bf16.msra.mxu0 %v342
    %487 = vmatprep.subr.bf16.mxu0 %v335
    %488 = vmatpush1.bf16.msra.mxu0 %v334
    %489 = vmatprep.subr.bf16.mxu0 0
    %490 = vmatpush2.bf16.msra.mxu0 0
    %491 = vmatprep.subr.bf16.mxu0 0
    %492 = vmatpush2.bf16.msra.mxu0 0
    %493 = vmatprep.subr.bf16.mxu0 0
    %494 = vmatpush2.bf16.msra.mxu0 0
    %495 = vmatprep.subr.bf16.mxu0 0
    %496 = vmatpush2.bf16.msra.mxu0 0
    %497 = vmatprep.subr.bf16.mxu0 0
    %498 = vmatpush2.bf16.msra.mxu0 0
    %499 = vmatprep.subr.bf16.mxu0 0
    %500 = vmatpush2.bf16.msra.mxu0 0
    %501 = vmatprep.subr.bf16.mxu0 0
    %502 = vmatpush2.bf16.msra.mxu0 0
    %503 = vmatprep.subr.bf16.mxu0 0
    %504 = vmatpush2.bf16.msra.mxu0 0
    %505 = vmatprep.mubr.bf16.mxu0 0
    %506 = vmatmul.mubr.bf16.gmra.mxu0 %v430
    %v507 = vpop.f32.mrf.mxu0
    %v508 = vadd.f32 0.0, %v507
    %v509 = vpop.f32.mrf.mxu0
    %v510 = vadd.f32 0.0, %v509
    %v511 = vpop.f32.mrf.mxu0
    %v512 = vpop.f32.mrf.mxu0
    %513 = vdwg.mxu0
    %514 = vmatprep.subr.bf16.mxu0 0
    %515 = vmatpush1.bf16.msra.mxu0 0
    %516 = vmatprep.subr.bf16.mxu0 0
    %517 = vmatpush1.bf16.msra.mxu0 0
    %518 = vmatprep.subr.bf16.mxu0 %v377
    %519 = vmatpush1.bf16.msra.mxu0 %v376
    %520 = vmatprep.subr.bf16.mxu0 %v369
    %521 = vmatpush1.bf16.msra.mxu0 %v368
    %522 = vmatprep.subr.bf16.mxu0 %v361
    %523 = vmatpush1.bf16.msra.mxu0 %v360
    %524 = vmatprep.subr.bf16.mxu0 %v353
    %525 = vmatpush1.bf16.msra.mxu0 %v352
    %526 = vmatprep.subr.bf16.mxu0 %v345
    %527 = vmatpush1.bf16.msra.mxu0 %v344
    %528 = vmatprep.subr.bf16.mxu0 %v337
    %529 = vmatpush1.bf16.msra.mxu0 %v336
    %530 = vmatprep.subr.bf16.mxu0 0
    %531 = vmatpush2.bf16.msra.mxu0 0
    %532 = vmatprep.subr.bf16.mxu0 0
    %533 = vmatpush2.bf16.msra.mxu0 0
    %534 = vmatprep.subr.bf16.mxu0 0
    %535 = vmatpush2.bf16.msra.mxu0 0
    %536 = vmatprep.subr.bf16.mxu0 0
    %537 = vmatpush2.bf16.msra.mxu0 0
    %538 = vmatprep.subr.bf16.mxu0 0
    %539 = vmatpush2.bf16.msra.mxu0 0
    %540 = vmatprep.subr.bf16.mxu0 0
    %541 = vmatpush2.bf16.msra.mxu0 0
    %542 = vmatprep.subr.bf16.mxu0 0
    %543 = vmatpush2.bf16.msra.mxu0 0
    %544 = vmatprep.subr.bf16.mxu0 0
    %545 = vmatpush2.bf16.msra.mxu0 0
    %546 = vmatprep.mubr.bf16.mxu0 0
    %547 = vmatmul.mubr.bf16.gmra.mxu0 %v430
    %v548 = vpop.f32.mrf.mxu0
    %v549 = vadd.f32 0.0, %v548
    %v550 = vpop.f32.mrf.mxu0
    %v551 = vadd.f32 0.0, %v550
    %v552 = vpop.f32.mrf.mxu0
    %v553 = vpop.f32.mrf.mxu0
    %554 = vdwg.mxu0
    %555 = vmatprep.subr.bf16.mxu0 0
    %556 = vmatpush1.bf16.msra.mxu0 0
    %557 = vmatprep.subr.bf16.mxu0 0
    %558 = vmatpush1.bf16.msra.mxu0 0
    %559 = vmatprep.subr.bf16.mxu0 %v379
    %560 = vmatpush1.bf16.msra.mxu0 %v378
    %561 = vmatprep.subr.bf16.mxu0 %v371
    %562 = vmatpush1.bf16.msra.mxu0 %v370
    %563 = vmatprep.subr.bf16.mxu0 %v363
    %564 = vmatpush1.bf16.msra.mxu0 %v362
    %565 = vmatprep.subr.bf16.mxu0 %v355
    %566 = vmatpush1.bf16.msra.mxu0 %v354
    %567 = vmatprep.subr.bf16.mxu0 %v347
    %568 = vmatpush1.bf16.msra.mxu0 %v346
    %569 = vmatprep.subr.bf16.mxu0 %v339
    %570 = vmatpush1.bf16.msra.mxu0 %v338
    %571 = vmatprep.subr.bf16.mxu0 0
    %572 = vmatpush2.bf16.msra.mxu0 0
    %573 = vmatprep.subr.bf16.mxu0 0
    %574 = vmatpush2.bf16.msra.mxu0 0
    %575 = vmatprep.subr.bf16.mxu0 0
    %576 = vmatpush2.bf16.msra.mxu0 0
    %577 = vmatprep.subr.bf16.mxu0 0
    %578 = vmatpush2.bf16.msra.mxu0 0
    %579 = vmatprep.subr.bf16.mxu0 0
    %580 = vmatpush2.bf16.msra.mxu0 0
    %581 = vmatprep.subr.bf16.mxu0 0
    %582 = vmatpush2.bf16.msra.mxu0 0
    %583 = vmatprep.subr.bf16.mxu0 0
    %584 = vmatpush2.bf16.msra.mxu0 0
    %585 = vmatprep.subr.bf16.mxu0 0
    %586 = vmatpush2.bf16.msra.mxu0 0
    %587 = vmatprep.mubr.bf16.mxu0 0
    %588 = vmatmul.mubr.bf16.gmra.mxu0 %v430
    %v589 = vpop.f32.mrf.mxu0
    %v590 = vadd.f32 0.0, %v589
    %v591 = vpop.f32.mrf.mxu0
    %v592 = vadd.f32 0.0, %v591
    %v593 = vpop.f32.mrf.mxu0
    %v594 = vpop.f32.mrf.mxu0
    %595 = vdwg.mxu0
    %v644 = vunpack.c.l.b16 %v90
    %v645 = vunpack.c.h.b16 %v90
    %v646 = vunpack.c.l.b16 %v91
    %v647 = vunpack.c.h.b16 %v91
    %v648 = vunpack.c.l.b16 %v92
    %v649 = vunpack.c.h.b16 %v92
    %v650 = vunpack.c.l.b16 %v93
    %v651 = vunpack.c.h.b16 %v93
    %v652 = vunpack.c.l.b16 %v94
    %v653 = vunpack.c.h.b16 %v94
    %v654 = vunpack.c.l.b16 %v95
    %v655 = vunpack.c.h.b16 %v95
    %v656 = vunpack.c.l.b16 %v96
    %v657 = vunpack.c.h.b16 %v96
    %v658 = vunpack.c.l.b16 %v97
    %v659 = vunpack.c.h.b16 %v97
    %v660 = vunpack.c.l.b16 %v98
    %v661 = vunpack.c.h.b16 %v98
    %v662 = vunpack.c.l.b16 %v99
    %v663 = vunpack.c.h.b16 %v99
    %v664 = vunpack.c.l.b16 %v100
    %v665 = vunpack.c.h.b16 %v100
    %v666 = vunpack.c.l.b16 %v101
    %v667 = vunpack.c.h.b16 %v101
    %v668 = vunpack.c.l.b16 %v102
    %v669 = vunpack.c.h.b16 %v102
    %v670 = vunpack.c.l.b16 %v103
    %v671 = vunpack.c.h.b16 %v103
    %v672 = vunpack.c.l.b16 %v104
    %v673 = vunpack.c.h.b16 %v104
    %v674 = vunpack.c.l.b16 %v105
    %v675 = vunpack.c.h.b16 %v105
    %v676 = vunpack.c.l.b16 %v106
    %v677 = vunpack.c.h.b16 %v106
    %v678 = vunpack.c.l.b16 %v107
    %v679 = vunpack.c.h.b16 %v107
    %v680 = vunpack.c.l.b16 %v108
    %v681 = vunpack.c.h.b16 %v108
    %v682 = vunpack.c.l.b16 %v109
    %v683 = vunpack.c.h.b16 %v109
    %v684 = vunpack.c.l.b16 %v110
    %v685 = vunpack.c.h.b16 %v110
    %v686 = vunpack.c.l.b16 %v111
    %v687 = vunpack.c.h.b16 %v111
    %v688 = vunpack.c.l.b16 %v112
    %v689 = vunpack.c.h.b16 %v112
    %v690 = vunpack.c.l.b16 %v113
    %v691 = vunpack.c.h.b16 %v113
    %v692 = vunpack.c.l.b16 %v114
    %v693 = vunpack.c.h.b16 %v114
    %v694 = vunpack.c.l.b16 %v115
    %v695 = vunpack.c.h.b16 %v115
    %v696 = vunpack.c.l.b16 %v116
    %v697 = vunpack.c.h.b16 %v116
    %v698 = vunpack.c.l.b16 %v117
    %v699 = vunpack.c.h.b16 %v117
    %v700 = vunpack.c.l.b16 %v118
    %v701 = vunpack.c.h.b16 %v118
    %v702 = vunpack.c.l.b16 %v119
    %v703 = vunpack.c.h.b16 %v119
    %v704 = vunpack.c.l.b16 %v120
    %v705 = vunpack.c.h.b16 %v120
    %v706 = vunpack.c.l.b16 %v121
    %v707 = vunpack.c.h.b16 %v121
    %v708 = vunpack.c.l.b16 %v122
    %v709 = vunpack.c.h.b16 %v122
    %v710 = vunpack.c.l.b16 %v123
    %v711 = vunpack.c.h.b16 %v123
    %v712 = vunpack.c.l.b16 %v124
    %v713 = vunpack.c.h.b16 %v124
    %v714 = vunpack.c.l.b16 %v125
    %v715 = vunpack.c.h.b16 %v125
    %v716 = vunpack.c.l.b16 %v126
    %v717 = vunpack.c.h.b16 %v126
    %v718 = vunpack.c.l.b16 %v127
    %v719 = vunpack.c.h.b16 %v127
    %v720 = vunpack.c.l.b16 %v128
    %v721 = vunpack.c.h.b16 %v128
    %v722 = vunpack.c.l.b16 %v129
    %v723 = vunpack.c.h.b16 %v129
    %v724 = vunpack.c.l.b16 %v130
    %v725 = vunpack.c.h.b16 %v130
    %v726 = vunpack.c.l.b16 %v131
    %v727 = vunpack.c.h.b16 %v131
    %v728 = vunpack.c.l.b16 %v132
    %v729 = vunpack.c.h.b16 %v132
    %v730 = vunpack.c.l.b16 %v133
    %v731 = vunpack.c.h.b16 %v133
    %v732 = vunpack.c.l.b16 %v134
    %v733 = vunpack.c.h.b16 %v134
    %v734 = vunpack.c.l.b16 %v135
    %v735 = vunpack.c.h.b16 %v135
    %v736 = vunpack.c.l.b16 %v136
    %v737 = vunpack.c.h.b16 %v136
    %v738 = vunpack.c.l.b16 %v137
    %v739 = vunpack.c.h.b16 %v137
    %v740 = vpack.c.b16 %v652, %v644
    %v741 = vpack.c.b16 %v653, %v645
    %v742 = vpack.c.b16 %v654, %v646
    %v743 = vpack.c.b16 %v655, %v647
    %v744 = vpack.c.b16 %v656, %v648
    %v745 = vpack.c.b16 %v657, %v649
    %v746 = vpack.c.b16 %v658, %v650
    %v747 = vpack.c.b16 %v659, %v651
    %v748 = vpack.c.b16 %v668, %v660
    %v749 = vpack.c.b16 %v669, %v661
    %v750 = vpack.c.b16 %v670, %v662
    %v751 = vpack.c.b16 %v671, %v663
    %v752 = vpack.c.b16 %v672, %v664
    %v753 = vpack.c.b16 %v673, %v665
    %v754 = vpack.c.b16 %v674, %v666
    %v755 = vpack.c.b16 %v675, %v667
    %v756 = vpack.c.b16 %v684, %v676
    %v757 = vpack.c.b16 %v685, %v677
    %v758 = vpack.c.b16 %v686, %v678
    %v759 = vpack.c.b16 %v687, %v679
    %v760 = vpack.c.b16 %v688, %v680
    %v761 = vpack.c.b16 %v689, %v681
    %v762 = vpack.c.b16 %v690, %v682
    %v763 = vpack.c.b16 %v691, %v683
    %v764 = vpack.c.b16 %v700, %v692
    %v765 = vpack.c.b16 %v701, %v693
    %v766 = vpack.c.b16 %v702, %v694
    %v767 = vpack.c.b16 %v703, %v695
    %v768 = vpack.c.b16 %v704, %v696
    %v769 = vpack.c.b16 %v705, %v697
    %v770 = vpack.c.b16 %v706, %v698
    %v771 = vpack.c.b16 %v707, %v699
    %v772 = vpack.c.b16 %v716, %v708
    %v773 = vpack.c.b16 %v717, %v709
    %v774 = vpack.c.b16 %v718, %v710
    %v775 = vpack.c.b16 %v719, %v711
    %v776 = vpack.c.b16 %v720, %v712
    %v777 = vpack.c.b16 %v721, %v713
    %v778 = vpack.c.b16 %v722, %v714
    %v779 = vpack.c.b16 %v723, %v715
    %v780 = vpack.c.b16 %v732, %v724
    %v781 = vpack.c.b16 %v733, %v725
    %v782 = vpack.c.b16 %v734, %v726
    %v783 = vpack.c.b16 %v735, %v727
    %v784 = vpack.c.b16 %v736, %v728
    %v785 = vpack.c.b16 %v737, %v729
    %v786 = vpack.c.b16 %v738, %v730
    %v787 = vpack.c.b16 %v739, %v731
    %v837 = vsel %vm428, %v89, 0
    %839 = vmatprep.subr.bf16.mxu0 0
    %840 = vmatpush1.bf16.msra.mxu0 0
    %841 = vmatprep.subr.bf16.mxu0 0
    %842 = vmatpush1.bf16.msra.mxu0 0
    %843 = vmatprep.subr.bf16.mxu0 %v781
    %844 = vmatpush1.bf16.msra.mxu0 %v780
    %845 = vmatprep.subr.bf16.mxu0 %v773
    %846 = vmatpush1.bf16.msra.mxu0 %v772
    %847 = vmatprep.subr.bf16.mxu0 %v765
    %848 = vmatpush1.bf16.msra.mxu0 %v764
    %849 = vmatprep.subr.bf16.mxu0 %v757
    %850 = vmatpush1.bf16.msra.mxu0 %v756
    %851 = vmatprep.subr.bf16.mxu0 %v749
    %852 = vmatpush1.bf16.msra.mxu0 %v748
    %853 = vmatprep.subr.bf16.mxu0 %v741
    %854 = vmatpush1.bf16.msra.mxu0 %v740
    %855 = vmatprep.subr.bf16.mxu0 0
    %856 = vmatpush2.bf16.msra.mxu0 0
    %857 = vmatprep.subr.bf16.mxu0 0
    %858 = vmatpush2.bf16.msra.mxu0 0
    %859 = vmatprep.subr.bf16.mxu0 0
    %860 = vmatpush2.bf16.msra.mxu0 0
    %861 = vmatprep.subr.bf16.mxu0 0
    %862 = vmatpush2.bf16.msra.mxu0 0
    %863 = vmatprep.subr.bf16.mxu0 0
    %864 = vmatpush2.bf16.msra.mxu0 0
    %865 = vmatprep.subr.bf16.mxu0 0
    %866 = vmatpush2.bf16.msra.mxu0 0
    %867 = vmatprep.subr.bf16.mxu0 0
    %868 = vmatpush2.bf16.msra.mxu0 0
    %869 = vmatprep.subr.bf16.mxu0 0
    %870 = vmatpush2.bf16.msra.mxu0 0
    %871 = vmatprep.mubr.bf16.mxu0 0
    %872 = vmatmul.mubr.bf16.gmra.mxu0 %v837
    %v873 = vpop.f32.mrf.mxu0
    %v874 = vadd.f32 %v467, %v873
    %v875 = vpop.f32.mrf.mxu0
    %v876 = vadd.f32 %v469, %v875
    %v877 = vpop.f32.mrf.mxu0
    %v878 = vpop.f32.mrf.mxu0
    %879 = vdwg.mxu0
    %880 = vmatprep.subr.bf16.mxu0 0
    %881 = vmatpush1.bf16.msra.mxu0 0
    %882 = vmatprep.subr.bf16.mxu0 0
    %883 = vmatpush1.bf16.msra.mxu0 0
    %884 = vmatprep.subr.bf16.mxu0 %v783
    %885 = vmatpush1.bf16.msra.mxu0 %v782
    %886 = vmatprep.subr.bf16.mxu0 %v775
    %887 = vmatpush1.bf16.msra.mxu0 %v774
    %888 = vmatprep.subr.bf16.mxu0 %v767
    %889 = vmatpush1.bf16.msra.mxu0 %v766
    %890 = vmatprep.subr.bf16.mxu0 %v759
    %891 = vmatpush1.bf16.msra.mxu0 %v758
    %892 = vmatprep.subr.bf16.mxu0 %v751
    %893 = vmatpush1.bf16.msra.mxu0 %v750
    %894 = vmatprep.subr.bf16.mxu0 %v743
    %895 = vmatpush1.bf16.msra.mxu0 %v742
    %896 = vmatprep.subr.bf16.mxu0 0
    %897 = vmatpush2.bf16.msra.mxu0 0
    %898 = vmatprep.subr.bf16.mxu0 0
    %899 = vmatpush2.bf16.msra.mxu0 0
    %900 = vmatprep.subr.bf16.mxu0 0
    %901 = vmatpush2.bf16.msra.mxu0 0
    %902 = vmatprep.subr.bf16.mxu0 0
    %903 = vmatpush2.bf16.msra.mxu0 0
    %904 = vmatprep.subr.bf16.mxu0 0
    %905 = vmatpush2.bf16.msra.mxu0 0
    %906 = vmatprep.subr.bf16.mxu0 0
    %907 = vmatpush2.bf16.msra.mxu0 0
    %908 = vmatprep.subr.bf16.mxu0 0
    %909 = vmatpush2.bf16.msra.mxu0 0
    %910 = vmatprep.subr.bf16.mxu0 0
    %911 = vmatpush2.bf16.msra.mxu0 0
    %912 = vmatprep.mubr.bf16.mxu0 0
    %913 = vmatmul.mubr.bf16.gmra.mxu0 %v837
    %v914 = vpop.f32.mrf.mxu0
    %v915 = vadd.f32 %v508, %v914
    %v916 = vpop.f32.mrf.mxu0
    %v917 = vadd.f32 %v510, %v916
    %v918 = vpop.f32.mrf.mxu0
    %v919 = vpop.f32.mrf.mxu0
    %920 = vdwg.mxu0
    %921 = vmatprep.subr.bf16.mxu0 0
    %922 = vmatpush1.bf16.msra.mxu0 0
    %923 = vmatprep.subr.bf16.mxu0 0
    %924 = vmatpush1.bf16.msra.mxu0 0
    %925 = vmatprep.subr.bf16.mxu0 %v785
    %926 = vmatpush1.bf16.msra.mxu0 %v784
    %927 = vmatprep.subr.bf16.mxu0 %v777
    %928 = vmatpush1.bf16.msra.mxu0 %v776
    %929 = vmatprep.subr.bf16.mxu0 %v769
    %930 = vmatpush1.bf16.msra.mxu0 %v768
    %931 = vmatprep.subr.bf16.mxu0 %v761
    %932 = vmatpush1.bf16.msra.mxu0 %v760
    %933 = vmatprep.subr.bf16.mxu0 %v753
    %934 = vmatpush1.bf16.msra.mxu0 %v752
    %935 = vmatprep.subr.bf16.mxu0 %v745
    %936 = vmatpush1.bf16.msra.mxu0 %v744
    %937 = vmatprep.subr.bf16.mxu0 0
    %938 = vmatpush2.bf16.msra.mxu0 0
    %939 = vmatprep.subr.bf16.mxu0 0
    %940 = vmatpush2.bf16.msra.mxu0 0
    %941 = vmatprep.subr.bf16.mxu0 0
    %942 = vmatpush2.bf16.msra.mxu0 0
    %943 = vmatprep.subr.bf16.mxu0 0
    %944 = vmatpush2.bf16.msra.mxu0 0
    %945 = vmatprep.subr.bf16.mxu0 0
    %946 = vmatpush2.bf16.msra.mxu0 0
    %947 = vmatprep.subr.bf16.mxu0 0
    %948 = vmatpush2.bf16.msra.mxu0 0
    %949 = vmatprep.subr.bf16.mxu0 0
    %950 = vmatpush2.bf16.msra.mxu0 0
    %951 = vmatprep.subr.bf16.mxu0 0
    %952 = vmatpush2.bf16.msra.mxu0 0
    %953 = vmatprep.mubr.bf16.mxu0 0
    %954 = vmatmul.mubr.bf16.gmra.mxu0 %v837
    %v955 = vpop.f32.mrf.mxu0
    %v956 = vadd.f32 %v549, %v955
    %v957 = vpop.f32.mrf.mxu0
    %v958 = vadd.f32 %v551, %v957
    %v959 = vpop.f32.mrf.mxu0
    %v960 = vpop.f32.mrf.mxu0
    %961 = vdwg.mxu0
    %962 = vmatprep.subr.bf16.mxu0 0
    %963 = vmatpush1.bf16.msra.mxu0 0
    %964 = vmatprep.subr.bf16.mxu0 0
    %965 = vmatpush1.bf16.msra.mxu0 0
    %966 = vmatprep.subr.bf16.mxu0 %v787
    %967 = vmatpush1.bf16.msra.mxu0 %v786
    %968 = vmatprep.subr.bf16.mxu0 %v779
    %969 = vmatpush1.bf16.msra.mxu0 %v778
    %970 = vmatprep.subr.bf16.mxu0 %v771
    %971 = vmatpush1.bf16.msra.mxu0 %v770
    %972 = vmatprep.subr.bf16.mxu0 %v763
    %973 = vmatpush1.bf16.msra.mxu0 %v762
    %974 = vmatprep.subr.bf16.mxu0 %v755
    %975 = vmatpush1.bf16.msra.mxu0 %v754
    %976 = vmatprep.subr.bf16.mxu0 %v747
    %977 = vmatpush1.bf16.msra.mxu0 %v746
    %978 = vmatprep.subr.bf16.mxu0 0
    %979 = vmatpush2.bf16.msra.mxu0 0
    %980 = vmatprep.subr.bf16.mxu0 0
    %981 = vmatpush2.bf16.msra.mxu0 0
    %982 = vmatprep.subr.bf16.mxu0 0
    %983 = vmatpush2.bf16.msra.mxu0 0
    %984 = vmatprep.subr.bf16.mxu0 0
    %985 = vmatpush2.bf16.msra.mxu0 0
    %986 = vmatprep.subr.bf16.mxu0 0
    %987 = vmatpush2.bf16.msra.mxu0 0
    %988 = vmatprep.subr.bf16.mxu0 0
    %989 = vmatpush2.bf16.msra.mxu0 0
    %990 = vmatprep.subr.bf16.mxu0 0
    %991 = vmatpush2.bf16.msra.mxu0 0
    %992 = vmatprep.subr.bf16.mxu0 0
    %993 = vmatpush2.bf16.msra.mxu0 0
    %994 = vmatprep.mubr.bf16.mxu0 0
    %995 = vmatmul.mubr.bf16.gmra.mxu0 %v837
    %v996 = vpop.f32.mrf.mxu0
    %v997 = vadd.f32 %v590, %v996
    %v998 = vpop.f32.mrf.mxu0
    %v999 = vadd.f32 %v592, %v998
    %v1000 = vpop.f32.mrf.mxu0
    %v1001 = vpop.f32.mrf.mxu0
    %1002 = vdwg.mxu0
    %v1003 = vld [vmem:[%s6] sm:$0xff]
    %v1005 = vlaneseq
    %v1006 = vshrl.u32 %v1005, 7
    %v1007 = vsub.s32 0, %v1006
    %v1008 = vrot.slane %v1003, %v1007
    %v1009 = vlaneseq
    %v1010 = vshrl.u32 %v1009, 7
    %v1011 = vsub.s32 1, %v1010
    %v1012 = vrot.slane %v1003, %v1011
    %v1013 = vlaneseq
    %v1014 = vshrl.u32 %v1013, 7
    %v1015 = vsub.s32 2, %v1014
    %v1016 = vrot.slane %v1003, %v1015
    %v1017 = vlaneseq
    %v1018 = vshrl.u32 %v1017, 7
    %v1019 = vsub.s32 3, %v1018
    %v1020 = vrot.slane %v1003, %v1019
    %v1021 = vlaneseq
    %v1022 = vshrl.u32 %v1021, 7
    %v1023 = vsub.s32 4, %v1022
    %v1024 = vrot.slane %v1003, %v1023
    %v1025 = vlaneseq
    %v1026 = vshrl.u32 %v1025, 7
    %v1027 = vsub.s32 5, %v1026
    %v1028 = vrot.slane %v1003, %v1027
    %v1029 = vlaneseq
    %v1030 = vshrl.u32 %v1029, 7
    %v1031 = vsub.s32 6, %v1030
    %v1032 = vrot.slane %v1003, %v1031
    %v1033 = vlaneseq
    %v1034 = vshrl.u32 %v1033, 7
    %v1035 = vsub.s32 7, %v1034
    %v1036 = vrot.slane %v1003, %v1035
    %v1045 = vadd.f32 %v874, %v1008
    %v1046 = vadd.f32 %v876, %v1012
    %v1047 = vadd.f32 %v915, %v1016
    %v1048 = vadd.f32 %v917, %v1020
    %v1049 = vadd.f32 %v956, %v1024
    %v1050 = vadd.f32 %v958, %v1028
    %v1051 = vadd.f32 %v997, %v1032
    %v1052 = vadd.f32 %v999, %v1036
    %v1053 = vmax.f32 %v1045, 0.0
    %v1054 = vmax.f32 %v1046, 0.0
    %v1055 = vmax.f32 %v1047, 0.0
    %v1056 = vmax.f32 %v1048, 0.0
    %v1057 = vmax.f32 %v1049, 0.0
    %v1058 = vmax.f32 %v1050, 0.0
    %v1059 = vmax.f32 %v1051, 0.0
    %v1060 = vmax.f32 %v1052, 0.0
    %v1061 = vld [vmem:[%s2] sm:$0xff]
    %v1062 = vld [vmem:[%s2 + $0x8] sm:$0xff]
    %vm1063 = vcmp.ge.f32.partialorder %v1061, 0.1
    %vm1064 = vcmp.ge.f32.partialorder %v1062, 0.1
    %v1065 = vmul.f32 %v1053, 1.1111112
    %v1066 = vmul.f32 %v1054, 1.1111112
    %v1067 = vmul.f32 %v1055, 1.1111112
    %v1068 = vmul.f32 %v1056, 1.1111112
    %v1069 = vmul.f32 %v1057, 1.1111112
    %v1070 = vmul.f32 %v1058, 1.1111112
    %v1071 = vmul.f32 %v1059, 1.1111112
    %v1072 = vmul.f32 %v1060, 1.1111112
    %v1081 = vcombine.low %v1065, %v1066
    %v1082 = vcombine.low %v1067, %v1068
    %v1084 = vunpack.c.l.s4 1983009808
    %v1085 = vunpack.c.0.s8 %v1084
    %v1086 = vlaneseq
    %v1087 = vshrl.u32 %v1086, 7
    %v1088 = vsub.s32 %v1085, %v1087
    %v1089 = vrot.slane %v1081, %v1088
    %v1091 = vunpack.c.l.s4 1983009808
    %v1092 = vunpack.c.0.s8 %v1091
    %v1093 = vlaneseq
    %v1094 = vshrl.u32 %v1093, 7
    %v1095 = vsub.s32 %v1092, %v1094
    %v1096 = vrot.slane %v1082, %v1095
    %v1097 = vcombine.low %v1089, %v1096
    %v1098 = vcombine.low %v1069, %v1070
    %v1099 = vcombine.low %v1071, %v1072
    %v1101 = vunpack.c.l.s4 1983009808
    %v1102 = vunpack.c.0.s8 %v1101
    %v1103 = vlaneseq
    %v1104 = vshrl.u32 %v1103, 7
    %v1105 = vsub.s32 %v1102, %v1104
    %v1106 = vrot.slane %v1098, %v1105
    %v1108 = vunpack.c.l.s4 1983009808
    %v1109 = vunpack.c.0.s8 %v1108
    %v1110 = vlaneseq
    %v1111 = vshrl.u32 %v1110, 7
    %v1112 = vsub.s32 %v1109, %v1111
    %v1113 = vrot.slane %v1099, %v1112
    %v1114 = vcombine.low %v1106, %v1113
    %v1117 = vsel %vm1063, %v1097, 0.0
    %v1118 = vsel %vm1064, %v1114, 0.0
    %v1121 = vcombine.high %v1117, %v1117
    %v1123 = vunpack.c.l.s4 1983009808
    %v1124 = vunpack.c.0.s8 %v1123
    %v1125 = vlaneseq
    %v1126 = vshrl.u32 %v1125, 7
    %v1127 = vsub.s32 %v1124, %v1126
    %v1128 = vrot.slane %v1117, %v1127
    %v1130 = vunpack.c.l.s4 1983009808
    %v1131 = vunpack.c.0.s8 %v1130
    %v1132 = vlaneseq
    %v1133 = vshrl.u32 %v1132, 7
    %v1134 = vsub.s32 %v1131, %v1133
    %v1135 = vrot.slane %v1121, %v1134
    %v1136 = vcombine.high %v1128, %v1128
    %v1137 = vcombine.high %v1135, %v1135
    %v1138 = vcombine.high %v1118, %v1118
    %v1140 = vunpack.c.l.s4 1983009808
    %v1141 = vunpack.c.0.s8 %v1140
    %v1142 = vlaneseq
    %v1143 = vshrl.u32 %v1142, 7
    %v1144 = vsub.s32 %v1141, %v1143
    %v1145 = vrot.slane %v1118, %v1144
    %v1147 = vunpack.c.l.s4 1983009808
    %v1148 = vunpack.c.0.s8 %v1147
    %v1149 = vlaneseq
    %v1150 = vshrl.u32 %v1149, 7
    %v1151 = vsub.s32 %v1148, %v1150
    %v1152 = vrot.slane %v1138, %v1151
    %v1153 = vcombine.high %v1145, %v1145
    %v1154 = vcombine.high %v1152, %v1152
    %v1163 = vpack.c.bf16 %v1128, %v1128
    %v1164 = vpack.c.bf16 %v1136, %v1136
    %v1165 = vpack.c.bf16 %v1135, %v1135
    %v1166 = vpack.c.bf16 %v1137, %v1137
    %v1167 = vpack.c.bf16 %v1145, %v1145
    %v1168 = vpack.c.bf16 %v1153, %v1153
    %v1169 = vpack.c.bf16 %v1152, %v1152
    %v1170 = vpack.c.bf16 %v1154, %v1154
    %v1171 = vld [vmem:[%s7] sm:$0xff]
    %v1172 = vld [vmem:[%s7 + $0x8] sm:$0xff]
    %v1173 = vld [vmem:[%s7 + $0x10] sm:$0xff]
    %v1174 = vld [vmem:[%s7 + $0x18] sm:$0xff]
    %v1175 = vld [vmem:[%s7 + $0x20] sm:$0xff]
    %v1176 = vld [vmem:[%s7 + $0x28] sm:$0xff]
    %v1177 = vld [vmem:[%s7 + $0x30] sm:$0xff]
    %v1178 = vld [vmem:[%s7 + $0x38] sm:$0xff]
    %v1179 = vld [vmem:[%s7 + $0x40] sm:$0xff]
    %v1180 = vld [vmem:[%s7 + $0x48] sm:$0xff]
    %v1181 = vld [vmem:[%s7 + $0x50] sm:$0xff]
    %v1182 = vld [vmem:[%s7 + $0x58] sm:$0xff]
    %v1183 = vld [vmem:[%s7 + $0x60] sm:$0xff]
    %v1184 = vld [vmem:[%s7 + $0x68] sm:$0xff]
    %v1185 = vld [vmem:[%s7 + $0x70] sm:$0xff]
    %v1186 = vld [vmem:[%s7 + $0x78] sm:$0xff]
    %v1187 = vld [vmem:[%s7 + $0x80] sm:$0xff]
    %v1188 = vld [vmem:[%s7 + $0x88] sm:$0xff]
    %v1189 = vld [vmem:[%s7 + $0x90] sm:$0xff]
    %v1190 = vld [vmem:[%s7 + $0x98] sm:$0xff]
    %v1191 = vld [vmem:[%s7 + $0xa0] sm:$0xff]
    %v1192 = vld [vmem:[%s7 + $0xa8] sm:$0xff]
    %v1193 = vld [vmem:[%s7 + $0xb0] sm:$0xff]
    %v1194 = vld [vmem:[%s7 + $0xb8] sm:$0xff]
    %v1195 = vld [vmem:[%s7 + $0xc0] sm:$0xff]
    %v1196 = vld [vmem:[%s7 + $0xc8] sm:$0xff]
    %v1197 = vld [vmem:[%s7 + $0xd0] sm:$0xff]
    %v1198 = vld [vmem:[%s7 + $0xd8] sm:$0xff]
    %v1199 = vld [vmem:[%s7 + $0xe0] sm:$0xff]
    %v1200 = vld [vmem:[%s7 + $0xe8] sm:$0xff]
    %v1201 = vld [vmem:[%s7 + $0xf0] sm:$0xff]
    %v1202 = vld [vmem:[%s7 + $0xf8] sm:$0xff]
    %v1203 = vld [vmem:[%s7 + $0x100] sm:$0xff]
    %v1204 = vld [vmem:[%s7 + $0x108] sm:$0xff]
    %v1205 = vld [vmem:[%s7 + $0x110] sm:$0xff]
    %v1206 = vld [vmem:[%s7 + $0x118] sm:$0xff]
    %v1207 = vld [vmem:[%s7 + $0x120] sm:$0xff]
    %v1208 = vld [vmem:[%s7 + $0x128] sm:$0xff]
    %v1209 = vld [vmem:[%s7 + $0x130] sm:$0xff]
    %v1210 = vld [vmem:[%s7 + $0x138] sm:$0xff]
    %v1211 = vld [vmem:[%s7 + $0x140] sm:$0xff]
    %v1212 = vld [vmem:[%s7 + $0x148] sm:$0xff]
    %v1213 = vld [vmem:[%s7 + $0x150] sm:$0xff]
    %v1214 = vld [vmem:[%s7 + $0x158] sm:$0xff]
    %v1215 = vld [vmem:[%s7 + $0x160] sm:$0xff]
    %v1216 = vld [vmem:[%s7 + $0x168] sm:$0xff]
    %v1217 = vld [vmem:[%s7 + $0x170] sm:$0xff]
    %v1218 = vld [vmem:[%s7 + $0x178] sm:$0xff]
    %v1219 = vld [vmem:[%s7 + $0x180] sm:$0xff]
    %v1220 = vld [vmem:[%s7 + $0x188] sm:$0xff]
    %v1221 = vld [vmem:[%s7 + $0x190] sm:$0xff]
    %v1222 = vld [vmem:[%s7 + $0x198] sm:$0xff]
    %v1223 = vld [vmem:[%s7 + $0x1a0] sm:$0xff]
    %v1224 = vld [vmem:[%s7 + $0x1a8] sm:$0xff]
    %v1225 = vld [vmem:[%s7 + $0x1b0] sm:$0xff]
    %v1226 = vld [vmem:[%s7 + $0x1b8] sm:$0xff]
    %v1227 = vld [vmem:[%s7 + $0x1c0] sm:$0xff]
    %v1228 = vld [vmem:[%s7 + $0x1c8] sm:$0xff]
    %v1229 = vld [vmem:[%s7 + $0x1d0] sm:$0xff]
    %v1230 = vld [vmem:[%s7 + $0x1d8] sm:$0xff]
    %v1231 = vld [vmem:[%s7 + $0x1e0] sm:$0xff]
    %v1232 = vld [vmem:[%s7 + $0x1e8] sm:$0xff]
    %v1233 = vld [vmem:[%s7 + $0x1f0] sm:$0xff]
    %v1234 = vld [vmem:[%s7 + $0x1f8] sm:$0xff]
    %v1235 = vld [vmem:[%s7 + $0x200] sm:$0xff]
    %v1236 = vld [vmem:[%s7 + $0x208] sm:$0xff]
    %v1237 = vld [vmem:[%s7 + $0x210] sm:$0xff]
    %v1238 = vld [vmem:[%s7 + $0x218] sm:$0xff]
    %v1239 = vld [vmem:[%s7 + $0x220] sm:$0xff]
    %v1240 = vld [vmem:[%s7 + $0x228] sm:$0xff]
    %v1241 = vld [vmem:[%s7 + $0x230] sm:$0xff]
    %v1242 = vld [vmem:[%s7 + $0x238] sm:$0xff]
    %v1243 = vld [vmem:[%s7 + $0x240] sm:$0xff]
    %v1244 = vld [vmem:[%s7 + $0x248] sm:$0xff]
    %v1245 = vld [vmem:[%s7 + $0x250] sm:$0xff]
    %v1246 = vld [vmem:[%s7 + $0x258] sm:$0xff]
    %v1247 = vld [vmem:[%s7 + $0x260] sm:$0xff]
    %v1248 = vld [vmem:[%s7 + $0x268] sm:$0xff]
    %v1249 = vld [vmem:[%s7 + $0x270] sm:$0xff]
    %v1250 = vld [vmem:[%s7 + $0x278] sm:$0xff]
    %v1251 = vld [vmem:[%s7 + $0x280] sm:$0xff]
    %v1252 = vld [vmem:[%s7 + $0x288] sm:$0xff]
    %v1253 = vld [vmem:[%s7 + $0x290] sm:$0xff]
    %v1254 = vld [vmem:[%s7 + $0x298] sm:$0xff]
    %v1255 = vld [vmem:[%s7 + $0x2a0] sm:$0xff]
    %v1256 = vld [vmem:[%s7 + $0x2a8] sm:$0xff]
    %v1257 = vld [vmem:[%s7 + $0x2b0] sm:$0xff]
    %v1258 = vld [vmem:[%s7 + $0x2b8] sm:$0xff]
    %v1259 = vld [vmem:[%s7 + $0x2c0] sm:$0xff]
    %v1260 = vld [vmem:[%s7 + $0x2c8] sm:$0xff]
    %v1261 = vld [vmem:[%s7 + $0x2d0] sm:$0xff]
    %v1262 = vld [vmem:[%s7 + $0x2d8] sm:$0xff]
    %v1263 = vld [vmem:[%s7 + $0x2e0] sm:$0xff]
    %v1264 = vld [vmem:[%s7 + $0x2e8] sm:$0xff]
    %v1265 = vld [vmem:[%s7 + $0x2f0] sm:$0xff]
    %v1266 = vld [vmem:[%s7 + $0x2f8] sm:$0xff]
    %v1267 = vld [vmem:[%s7 + $0x300] sm:$0xff]
    %v1268 = vld [vmem:[%s7 + $0x308] sm:$0xff]
    %v1269 = vld [vmem:[%s7 + $0x310] sm:$0xff]
    %v1270 = vld [vmem:[%s7 + $0x318] sm:$0xff]
    %v1271 = vld [vmem:[%s7 + $0x320] sm:$0xff]
    %v1272 = vld [vmem:[%s7 + $0x328] sm:$0xff]
    %v1273 = vld [vmem:[%s7 + $0x330] sm:$0xff]
    %v1274 = vld [vmem:[%s7 + $0x338] sm:$0xff]
    %v1275 = vld [vmem:[%s7 + $0x340] sm:$0xff]
    %v1276 = vld [vmem:[%s7 + $0x348] sm:$0xff]
    %v1277 = vld [vmem:[%s7 + $0x350] sm:$0xff]
    %v1278 = vld [vmem:[%s7 + $0x358] sm:$0xff]
    %v1279 = vld [vmem:[%s7 + $0x360] sm:$0xff]
    %v1280 = vld [vmem:[%s7 + $0x368] sm:$0xff]
    %v1281 = vld [vmem:[%s7 + $0x370] sm:$0xff]
    %v1282 = vld [vmem:[%s7 + $0x378] sm:$0xff]
    %v1283 = vld [vmem:[%s7 + $0x380] sm:$0xff]
    %v1284 = vld [vmem:[%s7 + $0x388] sm:$0xff]
    %v1285 = vld [vmem:[%s7 + $0x390] sm:$0xff]
    %v1286 = vld [vmem:[%s7 + $0x398] sm:$0xff]
    %v1287 = vld [vmem:[%s7 + $0x3a0] sm:$0xff]
    %v1288 = vld [vmem:[%s7 + $0x3a8] sm:$0xff]
    %v1289 = vld [vmem:[%s7 + $0x3b0] sm:$0xff]
    %v1290 = vld [vmem:[%s7 + $0x3b8] sm:$0xff]
    %v1291 = vld [vmem:[%s7 + $0x3c0] sm:$0xff]
    %v1292 = vld [vmem:[%s7 + $0x3c8] sm:$0xff]
    %v1293 = vld [vmem:[%s7 + $0x3d0] sm:$0xff]
    %v1294 = vld [vmem:[%s7 + $0x3d8] sm:$0xff]
    %v1295 = vld [vmem:[%s7 + $0x3e0] sm:$0xff]
    %v1296 = vld [vmem:[%s7 + $0x3e8] sm:$0xff]
    %v1297 = vld [vmem:[%s7 + $0x3f0] sm:$0xff]
    %v1298 = vld [vmem:[%s7 + $0x3f8] sm:$0xff]
    %v1299 = vld [vmem:[%s7 + $0x400] sm:$0xff]
    %v1300 = vld [vmem:[%s7 + $0x408] sm:$0xff]
    %v1301 = vld [vmem:[%s7 + $0x410] sm:$0xff]
    %v1302 = vld [vmem:[%s7 + $0x418] sm:$0xff]
    %v1303 = vld [vmem:[%s7 + $0x420] sm:$0xff]
    %v1304 = vld [vmem:[%s7 + $0x428] sm:$0xff]
    %v1305 = vld [vmem:[%s7 + $0x430] sm:$0xff]
    %v1306 = vld [vmem:[%s7 + $0x438] sm:$0xff]
    %v1307 = vld [vmem:[%s7 + $0x440] sm:$0xff]
    %v1308 = vld [vmem:[%s7 + $0x448] sm:$0xff]
    %v1309 = vld [vmem:[%s7 + $0x450] sm:$0xff]
    %v1310 = vld [vmem:[%s7 + $0x458] sm:$0xff]
    %v1311 = vld [vmem:[%s7 + $0x460] sm:$0xff]
    %v1312 = vld [vmem:[%s7 + $0x468] sm:$0xff]
    %v1313 = vld [vmem:[%s7 + $0x470] sm:$0xff]
    %v1314 = vld [vmem:[%s7 + $0x478] sm:$0xff]
    %v1315 = vld [vmem:[%s7 + $0x480] sm:$0xff]
    %v1316 = vld [vmem:[%s7 + $0x488] sm:$0xff]
    %v1317 = vld [vmem:[%s7 + $0x490] sm:$0xff]
    %v1318 = vld [vmem:[%s7 + $0x498] sm:$0xff]
    %v1319 = vld [vmem:[%s7 + $0x4a0] sm:$0xff]
    %v1320 = vld [vmem:[%s7 + $0x4a8] sm:$0xff]
    %v1321 = vld [vmem:[%s7 + $0x4b0] sm:$0xff]
    %v1322 = vld [vmem:[%s7 + $0x4b8] sm:$0xff]
    %v1323 = vld [vmem:[%s7 + $0x4c0] sm:$0xff]
    %v1324 = vld [vmem:[%s7 + $0x4c8] sm:$0xff]
    %v1325 = vld [vmem:[%s7 + $0x4d0] sm:$0xff]
    %v1326 = vld [vmem:[%s7 + $0x4d8] sm:$0xff]
    %v1327 = vld [vmem:[%s7 + $0x4e0] sm:$0xff]
    %v1328 = vld [vmem:[%s7 + $0x4e8] sm:$0xff]
    %v1329 = vld [vmem:[%s7 + $0x4f0] sm:$0xff]
    %v1330 = vld [vmem:[%s7 + $0x4f8] sm:$0xff]
    %v1331 = vld [vmem:[%s7 + $0x500] sm:$0xff]
    %v1332 = vld [vmem:[%s7 + $0x508] sm:$0xff]
    %v1333 = vld [vmem:[%s7 + $0x510] sm:$0xff]
    %v1334 = vld [vmem:[%s7 + $0x518] sm:$0xff]
    %v1335 = vld [vmem:[%s7 + $0x520] sm:$0xff]
    %v1336 = vld [vmem:[%s7 + $0x528] sm:$0xff]
    %v1337 = vld [vmem:[%s7 + $0x530] sm:$0xff]
    %v1338 = vld [vmem:[%s7 + $0x538] sm:$0xff]
    %v1339 = vld [vmem:[%s7 + $0x540] sm:$0xff]
    %v1340 = vld [vmem:[%s7 + $0x548] sm:$0xff]
    %v1341 = vld [vmem:[%s7 + $0x550] sm:$0xff]
    %v1342 = vld [vmem:[%s7 + $0x558] sm:$0xff]
    %v1343 = vld [vmem:[%s7 + $0x560] sm:$0xff]
    %v1344 = vld [vmem:[%s7 + $0x568] sm:$0xff]
    %v1345 = vld [vmem:[%s7 + $0x570] sm:$0xff]
    %v1346 = vld [vmem:[%s7 + $0x578] sm:$0xff]
    %v1347 = vld [vmem:[%s7 + $0x580] sm:$0xff]
    %v1348 = vld [vmem:[%s7 + $0x588] sm:$0xff]
    %v1349 = vld [vmem:[%s7 + $0x590] sm:$0xff]
    %v1350 = vld [vmem:[%s7 + $0x598] sm:$0xff]
    %v1351 = vld [vmem:[%s7 + $0x5a0] sm:$0xff]
    %v1352 = vld [vmem:[%s7 + $0x5a8] sm:$0xff]
    %v1353 = vld [vmem:[%s7 + $0x5b0] sm:$0xff]
    %v1354 = vld [vmem:[%s7 + $0x5b8] sm:$0xff]
    %v1355 = vld [vmem:[%s7 + $0x5c0] sm:$0xff]
    %v1356 = vld [vmem:[%s7 + $0x5c8] sm:$0xff]
    %v1357 = vld [vmem:[%s7 + $0x5d0] sm:$0xff]
    %v1358 = vld [vmem:[%s7 + $0x5d8] sm:$0xff]
    %v1359 = vld [vmem:[%s7 + $0x5e0] sm:$0xff]
    %v1360 = vld [vmem:[%s7 + $0x5e8] sm:$0xff]
    %v1361 = vld [vmem:[%s7 + $0x5f0] sm:$0xff]
    %v1362 = vld [vmem:[%s7 + $0x5f8] sm:$0xff]
    %v1363 = vld [vmem:[%s7 + $0x600] sm:$0xff]
    %v1364 = vld [vmem:[%s7 + $0x608] sm:$0xff]
    %v1365 = vld [vmem:[%s7 + $0x610] sm:$0xff]
    %v1366 = vld [vmem:[%s7 + $0x618] sm:$0xff]
    %v1367 = vld [vmem:[%s7 + $0x620] sm:$0xff]
    %v1368 = vld [vmem:[%s7 + $0x628] sm:$0xff]
    %v1369 = vld [vmem:[%s7 + $0x630] sm:$0xff]
    %v1370 = vld [vmem:[%s7 + $0x638] sm:$0xff]
    %v1371 = vld [vmem:[%s7 + $0x640] sm:$0xff]
    %v1372 = vld [vmem:[%s7 + $0x648] sm:$0xff]
    %v1373 = vld [vmem:[%s7 + $0x650] sm:$0xff]
    %v1374 = vld [vmem:[%s7 + $0x658] sm:$0xff]
    %v1375 = vld [vmem:[%s7 + $0x660] sm:$0xff]
    %v1376 = vld [vmem:[%s7 + $0x668] sm:$0xff]
    %v1377 = vld [vmem:[%s7 + $0x670] sm:$0xff]
    %v1378 = vld [vmem:[%s7 + $0x678] sm:$0xff]
    %v1379 = vld [vmem:[%s7 + $0x680] sm:$0xff]
    %v1380 = vld [vmem:[%s7 + $0x688] sm:$0xff]
    %v1381 = vld [vmem:[%s7 + $0x690] sm:$0xff]
    %v1382 = vld [vmem:[%s7 + $0x698] sm:$0xff]
    %v1383 = vld [vmem:[%s7 + $0x6a0] sm:$0xff]
    %v1384 = vld [vmem:[%s7 + $0x6a8] sm:$0xff]
    %v1385 = vld [vmem:[%s7 + $0x6b0] sm:$0xff]
    %v1386 = vld [vmem:[%s7 + $0x6b8] sm:$0xff]
    %v1387 = vld [vmem:[%s7 + $0x6c0] sm:$0xff]
    %v1388 = vld [vmem:[%s7 + $0x6c8] sm:$0xff]
    %v1389 = vld [vmem:[%s7 + $0x6d0] sm:$0xff]
    %v1390 = vld [vmem:[%s7 + $0x6d8] sm:$0xff]
    %v1391 = vld [vmem:[%s7 + $0x6e0] sm:$0xff]
    %v1392 = vld [vmem:[%s7 + $0x6e8] sm:$0xff]
    %v1393 = vld [vmem:[%s7 + $0x6f0] sm:$0xff]
    %v1394 = vld [vmem:[%s7 + $0x6f8] sm:$0xff]
    %v1395 = vld [vmem:[%s7 + $0x700] sm:$0xff]
    %v1396 = vld [vmem:[%s7 + $0x708] sm:$0xff]
    %v1397 = vld [vmem:[%s7 + $0x710] sm:$0xff]
    %v1398 = vld [vmem:[%s7 + $0x718] sm:$0xff]
    %v1399 = vld [vmem:[%s7 + $0x720] sm:$0xff]
    %v1400 = vld [vmem:[%s7 + $0x728] sm:$0xff]
    %v1401 = vld [vmem:[%s7 + $0x730] sm:$0xff]
    %v1402 = vld [vmem:[%s7 + $0x738] sm:$0xff]
    %v1403 = vld [vmem:[%s7 + $0x740] sm:$0xff]
    %v1404 = vld [vmem:[%s7 + $0x748] sm:$0xff]
    %v1405 = vld [vmem:[%s7 + $0x750] sm:$0xff]
    %v1406 = vld [vmem:[%s7 + $0x758] sm:$0xff]
    %v1407 = vld [vmem:[%s7 + $0x760] sm:$0xff]
    %v1408 = vld [vmem:[%s7 + $0x768] sm:$0xff]
    %v1409 = vld [vmem:[%s7 + $0x770] sm:$0xff]
    %v1410 = vld [vmem:[%s7 + $0x778] sm:$0xff]
    %v1411 = vld [vmem:[%s7 + $0x780] sm:$0xff]
    %v1412 = vld [vmem:[%s7 + $0x788] sm:$0xff]
    %v1413 = vld [vmem:[%s7 + $0x790] sm:$0xff]
    %v1414 = vld [vmem:[%s7 + $0x798] sm:$0xff]
    %v1415 = vld [vmem:[%s7 + $0x7a0] sm:$0xff]
    %v1416 = vld [vmem:[%s7 + $0x7a8] sm:$0xff]
    %v1417 = vld [vmem:[%s7 + $0x7b0] sm:$0xff]
    %v1418 = vld [vmem:[%s7 + $0x7b8] sm:$0xff]
    %v1419 = vld [vmem:[%s7 + $0x7c0] sm:$0xff]
    %v1420 = vld [vmem:[%s7 + $0x7c8] sm:$0xff]
    %v1421 = vld [vmem:[%s7 + $0x7d0] sm:$0xff]
    %v1422 = vld [vmem:[%s7 + $0x7d8] sm:$0xff]
    %v1423 = vld [vmem:[%s7 + $0x7e0] sm:$0xff]
    %v1424 = vld [vmem:[%s7 + $0x7e8] sm:$0xff]
    %v1425 = vld [vmem:[%s7 + $0x7f0] sm:$0xff]
    %v1426 = vld [vmem:[%s7 + $0x7f8] sm:$0xff]
    %v1427 = vld [vmem:[%s7 + $0x800] sm:$0xff]
    %v1428 = vld [vmem:[%s7 + $0x808] sm:$0xff]
    %v1429 = vld [vmem:[%s7 + $0x810] sm:$0xff]
    %v1430 = vld [vmem:[%s7 + $0x818] sm:$0xff]
    %v1431 = vld [vmem:[%s7 + $0x820] sm:$0xff]
    %v1432 = vld [vmem:[%s7 + $0x828] sm:$0xff]
    %v1433 = vld [vmem:[%s7 + $0x830] sm:$0xff]
    %v1434 = vld [vmem:[%s7 + $0x838] sm:$0xff]
    %v1435 = vld [vmem:[%s7 + $0x840] sm:$0xff]
    %v1436 = vld [vmem:[%s7 + $0x848] sm:$0xff]
    %v1437 = vld [vmem:[%s7 + $0x850] sm:$0xff]
    %v1438 = vld [vmem:[%s7 + $0x858] sm:$0xff]
    %v1439 = vld [vmem:[%s7 + $0x860] sm:$0xff]
    %v1440 = vld [vmem:[%s7 + $0x868] sm:$0xff]
    %v1441 = vld [vmem:[%s7 + $0x870] sm:$0xff]
    %v1442 = vld [vmem:[%s7 + $0x878] sm:$0xff]
    %v1443 = vld [vmem:[%s7 + $0x880] sm:$0xff]
    %v1444 = vld [vmem:[%s7 + $0x888] sm:$0xff]
    %v1445 = vld [vmem:[%s7 + $0x890] sm:$0xff]
    %v1446 = vld [vmem:[%s7 + $0x898] sm:$0xff]
    %v1447 = vld [vmem:[%s7 + $0x8a0] sm:$0xff]
    %v1448 = vld [vmem:[%s7 + $0x8a8] sm:$0xff]
    %v1449 = vld [vmem:[%s7 + $0x8b0] sm:$0xff]
    %v1450 = vld [vmem:[%s7 + $0x8b8] sm:$0xff]
    %v1451 = vld [vmem:[%s7 + $0x8c0] sm:$0xff]
    %v1452 = vld [vmem:[%s7 + $0x8c8] sm:$0xff]
    %v1453 = vld [vmem:[%s7 + $0x8d0] sm:$0xff]
    %v1454 = vld [vmem:[%s7 + $0x8d8] sm:$0xff]
    %v1455 = vld [vmem:[%s7 + $0x8e0] sm:$0xff]
    %v1456 = vld [vmem:[%s7 + $0x8e8] sm:$0xff]
    %v1457 = vld [vmem:[%s7 + $0x8f0] sm:$0xff]
    %v1458 = vld [vmem:[%s7 + $0x8f8] sm:$0xff]
    %v1459 = vld [vmem:[%s7 + $0x900] sm:$0xff]
    %v1460 = vld [vmem:[%s7 + $0x908] sm:$0xff]
    %v1461 = vld [vmem:[%s7 + $0x910] sm:$0xff]
    %v1462 = vld [vmem:[%s7 + $0x918] sm:$0xff]
    %v1463 = vld [vmem:[%s7 + $0x920] sm:$0xff]
    %v1464 = vld [vmem:[%s7 + $0x928] sm:$0xff]
    %v1465 = vld [vmem:[%s7 + $0x930] sm:$0xff]
    %v1466 = vld [vmem:[%s7 + $0x938] sm:$0xff]
    %v1467 = vld [vmem:[%s7 + $0x940] sm:$0xff]
    %v1468 = vld [vmem:[%s7 + $0x948] sm:$0xff]
    %v1469 = vld [vmem:[%s7 + $0x950] sm:$0xff]
    %v1470 = vld [vmem:[%s7 + $0x958] sm:$0xff]
    %v1471 = vld [vmem:[%s7 + $0x960] sm:$0xff]
    %v1472 = vld [vmem:[%s7 + $0x968] sm:$0xff]
    %v1473 = vld [vmem:[%s7 + $0x970] sm:$0xff]
    %v1474 = vld [vmem:[%s7 + $0x978] sm:$0xff]
    %v1475 = vld [vmem:[%s7 + $0x980] sm:$0xff]
    %v1476 = vld [vmem:[%s7 + $0x988] sm:$0xff]
    %v1477 = vld [vmem:[%s7 + $0x990] sm:$0xff]
    %v1478 = vld [vmem:[%s7 + $0x998] sm:$0xff]
    %v1479 = vld [vmem:[%s7 + $0x9a0] sm:$0xff]
    %v1480 = vld [vmem:[%s7 + $0x9a8] sm:$0xff]
    %v1481 = vld [vmem:[%s7 + $0x9b0] sm:$0xff]
    %v1482 = vld [vmem:[%s7 + $0x9b8] sm:$0xff]
    %v1483 = vld [vmem:[%s7 + $0x9c0] sm:$0xff]
    %v1484 = vld [vmem:[%s7 + $0x9c8] sm:$0xff]
    %v1485 = vld [vmem:[%s7 + $0x9d0] sm:$0xff]
    %v1486 = vld [vmem:[%s7 + $0x9d8] sm:$0xff]
    %v1487 = vld [vmem:[%s7 + $0x9e0] sm:$0xff]
    %v1488 = vld [vmem:[%s7 + $0x9e8] sm:$0xff]
    %v1489 = vld [vmem:[%s7 + $0x9f0] sm:$0xff]
    %v1490 = vld [vmem:[%s7 + $0x9f8] sm:$0xff]
    %v1491 = vld [vmem:[%s7 + $0xa00] sm:$0xff]
    %v1492 = vld [vmem:[%s7 + $0xa08] sm:$0xff]
    %v1493 = vld [vmem:[%s7 + $0xa10] sm:$0xff]
    %v1494 = vld [vmem:[%s7 + $0xa18] sm:$0xff]
    %v1495 = vld [vmem:[%s7 + $0xa20] sm:$0xff]
    %v1496 = vld [vmem:[%s7 + $0xa28] sm:$0xff]
    %v1497 = vld [vmem:[%s7 + $0xa30] sm:$0xff]
    %v1498 = vld [vmem:[%s7 + $0xa38] sm:$0xff]
    %v1499 = vld [vmem:[%s7 + $0xa40] sm:$0xff]
    %v1500 = vld [vmem:[%s7 + $0xa48] sm:$0xff]
    %v1501 = vld [vmem:[%s7 + $0xa50] sm:$0xff]
    %v1502 = vld [vmem:[%s7 + $0xa58] sm:$0xff]
    %v1503 = vld [vmem:[%s7 + $0xa60] sm:$0xff]
    %v1504 = vld [vmem:[%s7 + $0xa68] sm:$0xff]
    %v1505 = vld [vmem:[%s7 + $0xa70] sm:$0xff]
    %v1506 = vld [vmem:[%s7 + $0xa78] sm:$0xff]
    %v1507 = vld [vmem:[%s7 + $0xa80] sm:$0xff]
    %v1508 = vld [vmem:[%s7 + $0xa88] sm:$0xff]
    %v1509 = vld [vmem:[%s7 + $0xa90] sm:$0xff]
    %v1510 = vld [vmem:[%s7 + $0xa98] sm:$0xff]
    %v1511 = vld [vmem:[%s7 + $0xaa0] sm:$0xff]
    %v1512 = vld [vmem:[%s7 + $0xaa8] sm:$0xff]
    %v1513 = vld [vmem:[%s7 + $0xab0] sm:$0xff]
    %v1514 = vld [vmem:[%s7 + $0xab8] sm:$0xff]
    %v1515 = vld [vmem:[%s7 + $0xac0] sm:$0xff]
    %v1516 = vld [vmem:[%s7 + $0xac8] sm:$0xff]
    %v1517 = vld [vmem:[%s7 + $0xad0] sm:$0xff]
    %v1518 = vld [vmem:[%s7 + $0xad8] sm:$0xff]
    %v1519 = vld [vmem:[%s7 + $0xae0] sm:$0xff]
    %v1520 = vld [vmem:[%s7 + $0xae8] sm:$0xff]
    %v1521 = vld [vmem:[%s7 + $0xaf0] sm:$0xff]
    %v1522 = vld [vmem:[%s7 + $0xaf8] sm:$0xff]
    %v1523 = vld [vmem:[%s7 + $0xb00] sm:$0xff]
    %v1524 = vld [vmem:[%s7 + $0xb08] sm:$0xff]
    %v1525 = vld [vmem:[%s7 + $0xb10] sm:$0xff]
    %v1526 = vld [vmem:[%s7 + $0xb18] sm:$0xff]
    %v1527 = vld [vmem:[%s7 + $0xb20] sm:$0xff]
    %v1528 = vld [vmem:[%s7 + $0xb28] sm:$0xff]
    %v1529 = vld [vmem:[%s7 + $0xb30] sm:$0xff]
    %v1530 = vld [vmem:[%s7 + $0xb38] sm:$0xff]
    %v1531 = vld [vmem:[%s7 + $0xb40] sm:$0xff]
    %v1532 = vld [vmem:[%s7 + $0xb48] sm:$0xff]
    %v1533 = vld [vmem:[%s7 + $0xb50] sm:$0xff]
    %v1534 = vld [vmem:[%s7 + $0xb58] sm:$0xff]
    %v1535 = vld [vmem:[%s7 + $0xb60] sm:$0xff]
    %v1536 = vld [vmem:[%s7 + $0xb68] sm:$0xff]
    %v1537 = vld [vmem:[%s7 + $0xb70] sm:$0xff]
    %v1538 = vld [vmem:[%s7 + $0xb78] sm:$0xff]
    %v1539 = vld [vmem:[%s7 + $0xb80] sm:$0xff]
    %v1540 = vld [vmem:[%s7 + $0xb88] sm:$0xff]
    %v1541 = vld [vmem:[%s7 + $0xb90] sm:$0xff]
    %v1542 = vld [vmem:[%s7 + $0xb98] sm:$0xff]
    %v1543 = vld [vmem:[%s7 + $0xba0] sm:$0xff]
    %v1544 = vld [vmem:[%s7 + $0xba8] sm:$0xff]
    %v1545 = vld [vmem:[%s7 + $0xbb0] sm:$0xff]
    %v1546 = vld [vmem:[%s7 + $0xbb8] sm:$0xff]
    %v1547 = vld [vmem:[%s7 + $0xbc0] sm:$0xff]
    %v1548 = vld [vmem:[%s7 + $0xbc8] sm:$0xff]
    %v1549 = vld [vmem:[%s7 + $0xbd0] sm:$0xff]
    %v1550 = vld [vmem:[%s7 + $0xbd8] sm:$0xff]
    %v1551 = vld [vmem:[%s7 + $0xbe0] sm:$0xff]
    %v1552 = vld [vmem:[%s7 + $0xbe8] sm:$0xff]
    %v1553 = vld [vmem:[%s7 + $0xbf0] sm:$0xff]
    %v1554 = vld [vmem:[%s7 + $0xbf8] sm:$0xff]
    %v1555 = vld [vmem:[%s7 + $0xc00] sm:$0xff]
    %v1556 = vld [vmem:[%s7 + $0xc08] sm:$0xff]
    %v1557 = vld [vmem:[%s7 + $0xc10] sm:$0xff]
    %v1558 = vld [vmem:[%s7 + $0xc18] sm:$0xff]
    %v1559 = vld [vmem:[%s7 + $0xc20] sm:$0xff]
    %v1560 = vld [vmem:[%s7 + $0xc28] sm:$0xff]
    %v1561 = vld [vmem:[%s7 + $0xc30] sm:$0xff]
    %v1562 = vld [vmem:[%s7 + $0xc38] sm:$0xff]
    %v1563 = vld [vmem:[%s7 + $0xc40] sm:$0xff]
    %v1564 = vld [vmem:[%s7 + $0xc48] sm:$0xff]
    %v1565 = vld [vmem:[%s7 + $0xc50] sm:$0xff]
    %v1566 = vld [vmem:[%s7 + $0xc58] sm:$0xff]
    %v1567 = vld [vmem:[%s7 + $0xc60] sm:$0xff]
    %v1568 = vld [vmem:[%s7 + $0xc68] sm:$0xff]
    %v1569 = vld [vmem:[%s7 + $0xc70] sm:$0xff]
    %v1570 = vld [vmem:[%s7 + $0xc78] sm:$0xff]
    %v1571 = vld [vmem:[%s7 + $0xc80] sm:$0xff]
    %v1572 = vld [vmem:[%s7 + $0xc88] sm:$0xff]
    %v1573 = vld [vmem:[%s7 + $0xc90] sm:$0xff]
    %v1574 = vld [vmem:[%s7 + $0xc98] sm:$0xff]
    %v1575 = vld [vmem:[%s7 + $0xca0] sm:$0xff]
    %v1576 = vld [vmem:[%s7 + $0xca8] sm:$0xff]
    %v1577 = vld [vmem:[%s7 + $0xcb0] sm:$0xff]
    %v1578 = vld [vmem:[%s7 + $0xcb8] sm:$0xff]
    %v1579 = vld [vmem:[%s7 + $0xcc0] sm:$0xff]
    %v1580 = vld [vmem:[%s7 + $0xcc8] sm:$0xff]
    %v1581 = vld [vmem:[%s7 + $0xcd0] sm:$0xff]
    %v1582 = vld [vmem:[%s7 + $0xcd8] sm:$0xff]
    %v1583 = vld [vmem:[%s7 + $0xce0] sm:$0xff]
    %v1584 = vld [vmem:[%s7 + $0xce8] sm:$0xff]
    %v1585 = vld [vmem:[%s7 + $0xcf0] sm:$0xff]
    %v1586 = vld [vmem:[%s7 + $0xcf8] sm:$0xff]
    %v1587 = vld [vmem:[%s7 + $0xd00] sm:$0xff]
    %v1588 = vld [vmem:[%s7 + $0xd08] sm:$0xff]
    %v1589 = vld [vmem:[%s7 + $0xd10] sm:$0xff]
    %v1590 = vld [vmem:[%s7 + $0xd18] sm:$0xff]
    %v1591 = vld [vmem:[%s7 + $0xd20] sm:$0xff]
    %v1592 = vld [vmem:[%s7 + $0xd28] sm:$0xff]
    %v1593 = vld [vmem:[%s7 + $0xd30] sm:$0xff]
    %v1594 = vld [vmem:[%s7 + $0xd38] sm:$0xff]
    %v1595 = vld [vmem:[%s7 + $0xd40] sm:$0xff]
    %v1596 = vld [vmem:[%s7 + $0xd48] sm:$0xff]
    %v1597 = vld [vmem:[%s7 + $0xd50] sm:$0xff]
    %v1598 = vld [vmem:[%s7 + $0xd58] sm:$0xff]
    %v1599 = vld [vmem:[%s7 + $0xd60] sm:$0xff]
    %v1600 = vld [vmem:[%s7 + $0xd68] sm:$0xff]
    %v1601 = vld [vmem:[%s7 + $0xd70] sm:$0xff]
    %v1602 = vld [vmem:[%s7 + $0xd78] sm:$0xff]
    %v1603 = vld [vmem:[%s7 + $0xd80] sm:$0xff]
    %v1604 = vld [vmem:[%s7 + $0xd88] sm:$0xff]
    %v1605 = vld [vmem:[%s7 + $0xd90] sm:$0xff]
    %v1606 = vld [vmem:[%s7 + $0xd98] sm:$0xff]
    %v1607 = vld [vmem:[%s7 + $0xda0] sm:$0xff]
    %v1608 = vld [vmem:[%s7 + $0xda8] sm:$0xff]
    %v1609 = vld [vmem:[%s7 + $0xdb0] sm:$0xff]
    %v1610 = vld [vmem:[%s7 + $0xdb8] sm:$0xff]
    %v1611 = vld [vmem:[%s7 + $0xdc0] sm:$0xff]
    %v1612 = vld [vmem:[%s7 + $0xdc8] sm:$0xff]
    %v1613 = vld [vmem:[%s7 + $0xdd0] sm:$0xff]
    %v1614 = vld [vmem:[%s7 + $0xdd8] sm:$0xff]
    %v1615 = vld [vmem:[%s7 + $0xde0] sm:$0xff]
    %v1616 = vld [vmem:[%s7 + $0xde8] sm:$0xff]
    %v1617 = vld [vmem:[%s7 + $0xdf0] sm:$0xff]
    %v1618 = vld [vmem:[%s7 + $0xdf8] sm:$0xff]
    %v1619 = vld [vmem:[%s7 + $0xe00] sm:$0xff]
    %v1620 = vld [vmem:[%s7 + $0xe08] sm:$0xff]
    %v1621 = vld [vmem:[%s7 + $0xe10] sm:$0xff]
    %v1622 = vld [vmem:[%s7 + $0xe18] sm:$0xff]
    %v1623 = vld [vmem:[%s7 + $0xe20] sm:$0xff]
    %v1624 = vld [vmem:[%s7 + $0xe28] sm:$0xff]
    %v1625 = vld [vmem:[%s7 + $0xe30] sm:$0xff]
    %v1626 = vld [vmem:[%s7 + $0xe38] sm:$0xff]
    %v1627 = vld [vmem:[%s7 + $0xe40] sm:$0xff]
    %v1628 = vld [vmem:[%s7 + $0xe48] sm:$0xff]
    %v1629 = vld [vmem:[%s7 + $0xe50] sm:$0xff]
    %v1630 = vld [vmem:[%s7 + $0xe58] sm:$0xff]
    %v1631 = vld [vmem:[%s7 + $0xe60] sm:$0xff]
    %v1632 = vld [vmem:[%s7 + $0xe68] sm:$0xff]
    %v1633 = vld [vmem:[%s7 + $0xe70] sm:$0xff]
    %v1634 = vld [vmem:[%s7 + $0xe78] sm:$0xff]
    %v1635 = vld [vmem:[%s7 + $0xe80] sm:$0xff]
    %v1636 = vld [vmem:[%s7 + $0xe88] sm:$0xff]
    %v1637 = vld [vmem:[%s7 + $0xe90] sm:$0xff]
    %v1638 = vld [vmem:[%s7 + $0xe98] sm:$0xff]
    %v1639 = vld [vmem:[%s7 + $0xea0] sm:$0xff]
    %v1640 = vld [vmem:[%s7 + $0xea8] sm:$0xff]
    %v1641 = vld [vmem:[%s7 + $0xeb0] sm:$0xff]
    %v1642 = vld [vmem:[%s7 + $0xeb8] sm:$0xff]
    %v1643 = vld [vmem:[%s7 + $0xec0] sm:$0xff]
    %v1644 = vld [vmem:[%s7 + $0xec8] sm:$0xff]
    %v1645 = vld [vmem:[%s7 + $0xed0] sm:$0xff]
    %v1646 = vld [vmem:[%s7 + $0xed8] sm:$0xff]
    %v1647 = vld [vmem:[%s7 + $0xee0] sm:$0xff]
    %v1648 = vld [vmem:[%s7 + $0xee8] sm:$0xff]
    %v1649 = vld [vmem:[%s7 + $0xef0] sm:$0xff]
    %v1650 = vld [vmem:[%s7 + $0xef8] sm:$0xff]
    %v1651 = vld [vmem:[%s7 + $0xf00] sm:$0xff]
    %v1652 = vld [vmem:[%s7 + $0xf08] sm:$0xff]
    %v1653 = vld [vmem:[%s7 + $0xf10] sm:$0xff]
    %v1654 = vld [vmem:[%s7 + $0xf18] sm:$0xff]
    %v1655 = vld [vmem:[%s7 + $0xf20] sm:$0xff]
    %v1656 = vld [vmem:[%s7 + $0xf28] sm:$0xff]
    %v1657 = vld [vmem:[%s7 + $0xf30] sm:$0xff]
    %v1658 = vld [vmem:[%s7 + $0xf38] sm:$0xff]
    %v1659 = vld [vmem:[%s7 + $0xf40] sm:$0xff]
    %v1660 = vld [vmem:[%s7 + $0xf48] sm:$0xff]
    %v1661 = vld [vmem:[%s7 + $0xf50] sm:$0xff]
    %v1662 = vld [vmem:[%s7 + $0xf58] sm:$0xff]
    %v1663 = vld [vmem:[%s7 + $0xf60] sm:$0xff]
    %v1664 = vld [vmem:[%s7 + $0xf68] sm:$0xff]
    %v1665 = vld [vmem:[%s7 + $0xf70] sm:$0xff]
    %v1666 = vld [vmem:[%s7 + $0xf78] sm:$0xff]
    %v1667 = vld [vmem:[%s7 + $0xf80] sm:$0xff]
    %v1668 = vld [vmem:[%s7 + $0xf88] sm:$0xff]
    %v1669 = vld [vmem:[%s7 + $0xf90] sm:$0xff]
    %v1670 = vld [vmem:[%s7 + $0xf98] sm:$0xff]
    %v1671 = vld [vmem:[%s7 + $0xfa0] sm:$0xff]
    %v1672 = vld [vmem:[%s7 + $0xfa8] sm:$0xff]
    %v1673 = vld [vmem:[%s7 + $0xfb0] sm:$0xff]
    %v1674 = vld [vmem:[%s7 + $0xfb8] sm:$0xff]
    %v1675 = vld [vmem:[%s7 + $0xfc0] sm:$0xff]
    %v1676 = vld [vmem:[%s7 + $0xfc8] sm:$0xff]
    %v1677 = vld [vmem:[%s7 + $0xfd0] sm:$0xff]
    %v1678 = vld [vmem:[%s7 + $0xfd8] sm:$0xff]
    %v1679 = vld [vmem:[%s7 + $0xfe0] sm:$0xff]
    %v1680 = vld [vmem:[%s7 + $0xfe8] sm:$0xff]
    %v1681 = vld [vmem:[%s7 + $0xff0] sm:$0xff]
    %v1682 = vld [vmem:[%s7 + $0xff8] sm:$0xff]
    %v1683 = vld [vmem:[%s8] sm:$0xff]
    %v1685 = vlaneseq
    %v1686 = vshrl.u32 %v1685, 7
    %v1687 = vsub.s32 0, %v1686
    %v1688 = vrot.slane %v1683, %v1687
    %v1689 = vlaneseq
    %v1690 = vshrl.u32 %v1689, 7
    %v1691 = vsub.s32 1, %v1690
    %v1692 = vrot.slane %v1683, %v1691
    %v1693 = vlaneseq
    %v1694 = vshrl.u32 %v1693, 7
    %v1695 = vsub.s32 2, %v1694
    %v1696 = vrot.slane %v1683, %v1695
    %v1697 = vlaneseq
    %v1698 = vshrl.u32 %v1697, 7
    %v1699 = vsub.s32 3, %v1698
    %v1700 = vrot.slane %v1683, %v1699
    %v1701 = vlaneseq
    %v1702 = vshrl.u32 %v1701, 7
    %v1703 = vsub.s32 4, %v1702
    %v1704 = vrot.slane %v1683, %v1703
    %v1705 = vlaneseq
    %v1706 = vshrl.u32 %v1705, 7
    %v1707 = vsub.s32 5, %v1706
    %v1708 = vrot.slane %v1683, %v1707
    %v1709 = vlaneseq
    %v1710 = vshrl.u32 %v1709, 7
    %v1711 = vsub.s32 6, %v1710
    %v1712 = vrot.slane %v1683, %v1711
    %v1713 = vlaneseq
    %v1714 = vshrl.u32 %v1713, 7
    %v1715 = vsub.s32 7, %v1714
    %v1716 = vrot.slane %v1683, %v1715
    %v2237 = vunpack.c.l.b16 %v1171
    %v2238 = vunpack.c.h.b16 %v1171
    %v2239 = vunpack.c.l.b16 %v1172
    %v2240 = vunpack.c.h.b16 %v1172
    %v2241 = vunpack.c.l.b16 %v1173
    %v2242 = vunpack.c.h.b16 %v1173
    %v2243 = vunpack.c.l.b16 %v1174
    %v2244 = vunpack.c.h.b16 %v1174
    %v2245 = vunpack.c.l.b16 %v1175
    %v2246 = vunpack.c.h.b16 %v1175
    %v2247 = vunpack.c.l.b16 %v1176
    %v2248 = vunpack.c.h.b16 %v1176
    %v2249 = vunpack.c.l.b16 %v1177
    %v2250 = vunpack.c.h.b16 %v1177
    %v2251 = vunpack.c.l.b16 %v1178
    %v2252 = vunpack.c.h.b16 %v1178
    %v2253 = vunpack.c.l.b16 %v1179
    %v2254 = vunpack.c.h.b16 %v1179
    %v2255 = vunpack.c.l.b16 %v1180
    %v2256 = vunpack.c.h.b16 %v1180
    %v2257 = vunpack.c.l.b16 %v1181
    %v2258 = vunpack.c.h.b16 %v1181
    %v2259 = vunpack.c.l.b16 %v1182
    %v2260 = vunpack.c.h.b16 %v1182
    %v2261 = vunpack.c.l.b16 %v1183
    %v2262 = vunpack.c.h.b16 %v1183
    %v2263 = vunpack.c.l.b16 %v1184
    %v2264 = vunpack.c.h.b16 %v1184
    %v2265 = vunpack.c.l.b16 %v1185
    %v2266 = vunpack.c.h.b16 %v1185
    %v2267 = vunpack.c.l.b16 %v1186
    %v2268 = vunpack.c.h.b16 %v1186
    %v2269 = vunpack.c.l.b16 %v1187
    %v2270 = vunpack.c.h.b16 %v1187
    %v2271 = vunpack.c.l.b16 %v1188
    %v2272 = vunpack.c.h.b16 %v1188
    %v2273 = vunpack.c.l.b16 %v1189
    %v2274 = vunpack.c.h.b16 %v1189
    %v2275 = vunpack.c.l.b16 %v1190
    %v2276 = vunpack.c.h.b16 %v1190
    %v2277 = vunpack.c.l.b16 %v1191
    %v2278 = vunpack.c.h.b16 %v1191
    %v2279 = vunpack.c.l.b16 %v1192
    %v2280 = vunpack.c.h.b16 %v1192
    %v2281 = vunpack.c.l.b16 %v1193
    %v2282 = vunpack.c.h.b16 %v1193
    %v2283 = vunpack.c.l.b16 %v1194
    %v2284 = vunpack.c.h.b16 %v1194
    %v2285 = vunpack.c.l.b16 %v1195
    %v2286 = vunpack.c.h.b16 %v1195
    %v2287 = vunpack.c.l.b16 %v1196
    %v2288 = vunpack.c.h.b16 %v1196
    %v2289 = vunpack.c.l.b16 %v1197
    %v2290 = vunpack.c.h.b16 %v1197
    %v2291 = vunpack.c.l.b16 %v1198
    %v2292 = vunpack.c.h.b16 %v1198
    %v2293 = vunpack.c.l.b16 %v1199
    %v2294 = vunpack.c.h.b16 %v1199
    %v2295 = vunpack.c.l.b16 %v1200
    %v2296 = vunpack.c.h.b16 %v1200
    %v2297 = vunpack.c.l.b16 %v1201
    %v2298 = vunpack.c.h.b16 %v1201
    %v2299 = vunpack.c.l.b16 %v1202
    %v2300 = vunpack.c.h.b16 %v1202
    %v2301 = vunpack.c.l.b16 %v1203
    %v2302 = vunpack.c.h.b16 %v1203
    %v2303 = vunpack.c.l.b16 %v1204
    %v2304 = vunpack.c.h.b16 %v1204
    %v2305 = vunpack.c.l.b16 %v1205
    %v2306 = vunpack.c.h.b16 %v1205
    %v2307 = vunpack.c.l.b16 %v1206
    %v2308 = vunpack.c.h.b16 %v1206
    %v2309 = vunpack.c.l.b16 %v1207
    %v2310 = vunpack.c.h.b16 %v1207
    %v2311 = vunpack.c.l.b16 %v1208
    %v2312 = vunpack.c.h.b16 %v1208
    %v2313 = vunpack.c.l.b16 %v1209
    %v2314 = vunpack.c.h.b16 %v1209
    %v2315 = vunpack.c.l.b16 %v1210
    %v2316 = vunpack.c.h.b16 %v1210
    %v2317 = vunpack.c.l.b16 %v1211
    %v2318 = vunpack.c.h.b16 %v1211
    %v2319 = vunpack.c.l.b16 %v1212
    %v2320 = vunpack.c.h.b16 %v1212
    %v2321 = vunpack.c.l.b16 %v1213
    %v2322 = vunpack.c.h.b16 %v1213
    %v2323 = vunpack.c.l.b16 %v1214
    %v2324 = vunpack.c.h.b16 %v1214
    %v2325 = vunpack.c.l.b16 %v1215
    %v2326 = vunpack.c.h.b16 %v1215
    %v2327 = vunpack.c.l.b16 %v1216
    %v2328 = vunpack.c.h.b16 %v1216
    %v2329 = vunpack.c.l.b16 %v1217
    %v2330 = vunpack.c.h.b16 %v1217
    %v2331 = vunpack.c.l.b16 %v1218
    %v2332 = vunpack.c.h.b16 %v1218
    %v2333 = vunpack.c.l.b16 %v1219
    %v2334 = vunpack.c.h.b16 %v1219
    %v2335 = vunpack.c.l.b16 %v1220
    %v2336 = vunpack.c.h.b16 %v1220
    %v2337 = vunpack.c.l.b16 %v1221
    %v2338 = vunpack.c.h.b16 %v1221
    %v2339 = vunpack.c.l.b16 %v1222
    %v2340 = vunpack.c.h.b16 %v1222
    %v2341 = vunpack.c.l.b16 %v1223
    %v2342 = vunpack.c.h.b16 %v1223
    %v2343 = vunpack.c.l.b16 %v1224
    %v2344 = vunpack.c.h.b16 %v1224
    %v2345 = vunpack.c.l.b16 %v1225
    %v2346 = vunpack.c.h.b16 %v1225
    %v2347 = vunpack.c.l.b16 %v1226
    %v2348 = vunpack.c.h.b16 %v1226
    %v2349 = vunpack.c.l.b16 %v1227
    %v2350 = vunpack.c.h.b16 %v1227
    %v2351 = vunpack.c.l.b16 %v1228
    %v2352 = vunpack.c.h.b16 %v1228
    %v2353 = vunpack.c.l.b16 %v1229
    %v2354 = vunpack.c.h.b16 %v1229
    %v2355 = vunpack.c.l.b16 %v1230
    %v2356 = vunpack.c.h.b16 %v1230
    %v2357 = vunpack.c.l.b16 %v1231
    %v2358 = vunpack.c.h.b16 %v1231
    %v2359 = vunpack.c.l.b16 %v1232
    %v2360 = vunpack.c.h.b16 %v1232
    %v2361 = vunpack.c.l.b16 %v1233
    %v2362 = vunpack.c.h.b16 %v1233
    %v2363 = vunpack.c.l.b16 %v1234
    %v2364 = vunpack.c.h.b16 %v1234
    %v2365 = vunpack.c.l.b16 %v1235
    %v2366 = vunpack.c.h.b16 %v1235
    %v2367 = vunpack.c.l.b16 %v1236
    %v2368 = vunpack.c.h.b16 %v1236
    %v2369 = vunpack.c.l.b16 %v1237
    %v2370 = vunpack.c.h.b16 %v1237
    %v2371 = vunpack.c.l.b16 %v1238
    %v2372 = vunpack.c.h.b16 %v1238
    %v2373 = vunpack.c.l.b16 %v1239
    %v2374 = vunpack.c.h.b16 %v1239
    %v2375 = vunpack.c.l.b16 %v1240
    %v2376 = vunpack.c.h.b16 %v1240
    %v2377 = vunpack.c.l.b16 %v1241
    %v2378 = vunpack.c.h.b16 %v1241
    %v2379 = vunpack.c.l.b16 %v1242
    %v2380 = vunpack.c.h.b16 %v1242
    %v2381 = vunpack.c.l.b16 %v1243
    %v2382 = vunpack.c.h.b16 %v1243
    %v2383 = vunpack.c.l.b16 %v1244
    %v2384 = vunpack.c.h.b16 %v1244
    %v2385 = vunpack.c.l.b16 %v1245
    %v2386 = vunpack.c.h.b16 %v1245
    %v2387 = vunpack.c.l.b16 %v1246
    %v2388 = vunpack.c.h.b16 %v1246
    %v2389 = vunpack.c.l.b16 %v1247
    %v2390 = vunpack.c.h.b16 %v1247
    %v2391 = vunpack.c.l.b16 %v1248
    %v2392 = vunpack.c.h.b16 %v1248
    %v2393 = vunpack.c.l.b16 %v1249
    %v2394 = vunpack.c.h.b16 %v1249
    %v2395 = vunpack.c.l.b16 %v1250
    %v2396 = vunpack.c.h.b16 %v1250
    %v2397 = vunpack.c.l.b16 %v1251
    %v2398 = vunpack.c.h.b16 %v1251
    %v2399 = vunpack.c.l.b16 %v1252
    %v2400 = vunpack.c.h.b16 %v1252
    %v2401 = vunpack.c.l.b16 %v1253
    %v2402 = vunpack.c.h.b16 %v1253
    %v2403 = vunpack.c.l.b16 %v1254
    %v2404 = vunpack.c.h.b16 %v1254
    %v2405 = vunpack.c.l.b16 %v1255
    %v2406 = vunpack.c.h.b16 %v1255
    %v2407 = vunpack.c.l.b16 %v1256
    %v2408 = vunpack.c.h.b16 %v1256
    %v2409 = vunpack.c.l.b16 %v1257
    %v2410 = vunpack.c.h.b16 %v1257
    %v2411 = vunpack.c.l.b16 %v1258
    %v2412 = vunpack.c.h.b16 %v1258
    %v2413 = vunpack.c.l.b16 %v1259
    %v2414 = vunpack.c.h.b16 %v1259
    %v2415 = vunpack.c.l.b16 %v1260
    %v2416 = vunpack.c.h.b16 %v1260
    %v2417 = vunpack.c.l.b16 %v1261
    %v2418 = vunpack.c.h.b16 %v1261
    %v2419 = vunpack.c.l.b16 %v1262
    %v2420 = vunpack.c.h.b16 %v1262
    %v2421 = vunpack.c.l.b16 %v1263
    %v2422 = vunpack.c.h.b16 %v1263
    %v2423 = vunpack.c.l.b16 %v1264
    %v2424 = vunpack.c.h.b16 %v1264
    %v2425 = vunpack.c.l.b16 %v1265
    %v2426 = vunpack.c.h.b16 %v1265
    %v2427 = vunpack.c.l.b16 %v1266
    %v2428 = vunpack.c.h.b16 %v1266
    %v2429 = vunpack.c.l.b16 %v1267
    %v2430 = vunpack.c.h.b16 %v1267
    %v2431 = vunpack.c.l.b16 %v1268
    %v2432 = vunpack.c.h.b16 %v1268
    %v2433 = vunpack.c.l.b16 %v1269
    %v2434 = vunpack.c.h.b16 %v1269
    %v2435 = vunpack.c.l.b16 %v1270
    %v2436 = vunpack.c.h.b16 %v1270
    %v2437 = vunpack.c.l.b16 %v1271
    %v2438 = vunpack.c.h.b16 %v1271
    %v2439 = vunpack.c.l.b16 %v1272
    %v2440 = vunpack.c.h.b16 %v1272
    %v2441 = vunpack.c.l.b16 %v1273
    %v2442 = vunpack.c.h.b16 %v1273
    %v2443 = vunpack.c.l.b16 %v1274
    %v2444 = vunpack.c.h.b16 %v1274
    %v2445 = vunpack.c.l.b16 %v1275
    %v2446 = vunpack.c.h.b16 %v1275
    %v2447 = vunpack.c.l.b16 %v1276
    %v2448 = vunpack.c.h.b16 %v1276
    %v2449 = vunpack.c.l.b16 %v1277
    %v2450 = vunpack.c.h.b16 %v1277
    %v2451 = vunpack.c.l.b16 %v1278
    %v2452 = vunpack.c.h.b16 %v1278
    %v2453 = vunpack.c.l.b16 %v1279
    %v2454 = vunpack.c.h.b16 %v1279
    %v2455 = vunpack.c.l.b16 %v1280
    %v2456 = vunpack.c.h.b16 %v1280
    %v2457 = vunpack.c.l.b16 %v1281
    %v2458 = vunpack.c.h.b16 %v1281
    %v2459 = vunpack.c.l.b16 %v1282
    %v2460 = vunpack.c.h.b16 %v1282
    %v2461 = vunpack.c.l.b16 %v1283
    %v2462 = vunpack.c.h.b16 %v1283
    %v2463 = vunpack.c.l.b16 %v1284
    %v2464 = vunpack.c.h.b16 %v1284
    %v2465 = vunpack.c.l.b16 %v1285
    %v2466 = vunpack.c.h.b16 %v1285
    %v2467 = vunpack.c.l.b16 %v1286
    %v2468 = vunpack.c.h.b16 %v1286
    %v2469 = vunpack.c.l.b16 %v1287
    %v2470 = vunpack.c.h.b16 %v1287
    %v2471 = vunpack.c.l.b16 %v1288
    %v2472 = vunpack.c.h.b16 %v1288
    %v2473 = vunpack.c.l.b16 %v1289
    %v2474 = vunpack.c.h.b16 %v1289
    %v2475 = vunpack.c.l.b16 %v1290
    %v2476 = vunpack.c.h.b16 %v1290
    %v2477 = vunpack.c.l.b16 %v1291
    %v2478 = vunpack.c.h.b16 %v1291
    %v2479 = vunpack.c.l.b16 %v1292
    %v2480 = vunpack.c.h.b16 %v1292
    %v2481 = vunpack.c.l.b16 %v1293
    %v2482 = vunpack.c.h.b16 %v1293
    %v2483 = vunpack.c.l.b16 %v1294
    %v2484 = vunpack.c.h.b16 %v1294
    %v2485 = vunpack.c.l.b16 %v1295
    %v2486 = vunpack.c.h.b16 %v1295
    %v2487 = vunpack.c.l.b16 %v1296
    %v2488 = vunpack.c.h.b16 %v1296
    %v2489 = vunpack.c.l.b16 %v1297
    %v2490 = vunpack.c.h.b16 %v1297
    %v2491 = vunpack.c.l.b16 %v1298
    %v2492 = vunpack.c.h.b16 %v1298
    %v2493 = vunpack.c.l.b16 %v1299
    %v2494 = vunpack.c.h.b16 %v1299
    %v2495 = vunpack.c.l.b16 %v1300
    %v2496 = vunpack.c.h.b16 %v1300
    %v2497 = vunpack.c.l.b16 %v1301
    %v2498 = vunpack.c.h.b16 %v1301
    %v2499 = vunpack.c.l.b16 %v1302
    %v2500 = vunpack.c.h.b16 %v1302
    %v2501 = vunpack.c.l.b16 %v1303
    %v2502 = vunpack.c.h.b16 %v1303
    %v2503 = vunpack.c.l.b16 %v1304
    %v2504 = vunpack.c.h.b16 %v1304
    %v2505 = vunpack.c.l.b16 %v1305
    %v2506 = vunpack.c.h.b16 %v1305
    %v2507 = vunpack.c.l.b16 %v1306
    %v2508 = vunpack.c.h.b16 %v1306
    %v2509 = vunpack.c.l.b16 %v1307
    %v2510 = vunpack.c.h.b16 %v1307
    %v2511 = vunpack.c.l.b16 %v1308
    %v2512 = vunpack.c.h.b16 %v1308
    %v2513 = vunpack.c.l.b16 %v1309
    %v2514 = vunpack.c.h.b16 %v1309
    %v2515 = vunpack.c.l.b16 %v1310
    %v2516 = vunpack.c.h.b16 %v1310
    %v2517 = vunpack.c.l.b16 %v1311
    %v2518 = vunpack.c.h.b16 %v1311
    %v2519 = vunpack.c.l.b16 %v1312
    %v2520 = vunpack.c.h.b16 %v1312
    %v2521 = vunpack.c.l.b16 %v1313
    %v2522 = vunpack.c.h.b16 %v1313
    %v2523 = vunpack.c.l.b16 %v1314
    %v2524 = vunpack.c.h.b16 %v1314
    %v2525 = vunpack.c.l.b16 %v1315
    %v2526 = vunpack.c.h.b16 %v1315
    %v2527 = vunpack.c.l.b16 %v1316
    %v2528 = vunpack.c.h.b16 %v1316
    %v2529 = vunpack.c.l.b16 %v1317
    %v2530 = vunpack.c.h.b16 %v1317
    %v2531 = vunpack.c.l.b16 %v1318
    %v2532 = vunpack.c.h.b16 %v1318
    %v2533 = vunpack.c.l.b16 %v1319
    %v2534 = vunpack.c.h.b16 %v1319
    %v2535 = vunpack.c.l.b16 %v1320
    %v2536 = vunpack.c.h.b16 %v1320
    %v2537 = vunpack.c.l.b16 %v1321
    %v2538 = vunpack.c.h.b16 %v1321
    %v2539 = vunpack.c.l.b16 %v1322
    %v2540 = vunpack.c.h.b16 %v1322
    %v2541 = vunpack.c.l.b16 %v1323
    %v2542 = vunpack.c.h.b16 %v1323
    %v2543 = vunpack.c.l.b16 %v1324
    %v2544 = vunpack.c.h.b16 %v1324
    %v2545 = vunpack.c.l.b16 %v1325
    %v2546 = vunpack.c.h.b16 %v1325
    %v2547 = vunpack.c.l.b16 %v1326
    %v2548 = vunpack.c.h.b16 %v1326
    %v2549 = vunpack.c.l.b16 %v1327
    %v2550 = vunpack.c.h.b16 %v1327
    %v2551 = vunpack.c.l.b16 %v1328
    %v2552 = vunpack.c.h.b16 %v1328
    %v2553 = vunpack.c.l.b16 %v1329
    %v2554 = vunpack.c.h.b16 %v1329
    %v2555 = vunpack.c.l.b16 %v1330
    %v2556 = vunpack.c.h.b16 %v1330
    %v2557 = vunpack.c.l.b16 %v1331
    %v2558 = vunpack.c.h.b16 %v1331
    %v2559 = vunpack.c.l.b16 %v1332
    %v2560 = vunpack.c.h.b16 %v1332
    %v2561 = vunpack.c.l.b16 %v1333
    %v2562 = vunpack.c.h.b16 %v1333
    %v2563 = vunpack.c.l.b16 %v1334
    %v2564 = vunpack.c.h.b16 %v1334
    %v2565 = vunpack.c.l.b16 %v1335
    %v2566 = vunpack.c.h.b16 %v1335
    %v2567 = vunpack.c.l.b16 %v1336
    %v2568 = vunpack.c.h.b16 %v1336
    %v2569 = vunpack.c.l.b16 %v1337
    %v2570 = vunpack.c.h.b16 %v1337
    %v2571 = vunpack.c.l.b16 %v1338
    %v2572 = vunpack.c.h.b16 %v1338
    %v2573 = vunpack.c.l.b16 %v1339
    %v2574 = vunpack.c.h.b16 %v1339
    %v2575 = vunpack.c.l.b16 %v1340
    %v2576 = vunpack.c.h.b16 %v1340
    %v2577 = vunpack.c.l.b16 %v1341
    %v2578 = vunpack.c.h.b16 %v1341
    %v2579 = vunpack.c.l.b16 %v1342
    %v2580 = vunpack.c.h.b16 %v1342
    %v2581 = vunpack.c.l.b16 %v1343
    %v2582 = vunpack.c.h.b16 %v1343
    %v2583 = vunpack.c.l.b16 %v1344
    %v2584 = vunpack.c.h.b16 %v1344
    %v2585 = vunpack.c.l.b16 %v1345
    %v2586 = vunpack.c.h.b16 %v1345
    %v2587 = vunpack.c.l.b16 %v1346
    %v2588 = vunpack.c.h.b16 %v1346
    %v2589 = vunpack.c.l.b16 %v1347
    %v2590 = vunpack.c.h.b16 %v1347
    %v2591 = vunpack.c.l.b16 %v1348
    %v2592 = vunpack.c.h.b16 %v1348
    %v2593 = vunpack.c.l.b16 %v1349
    %v2594 = vunpack.c.h.b16 %v1349
    %v2595 = vunpack.c.l.b16 %v1350
    %v2596 = vunpack.c.h.b16 %v1350
    %v2597 = vunpack.c.l.b16 %v1351
    %v2598 = vunpack.c.h.b16 %v1351
    %v2599 = vunpack.c.l.b16 %v1352
    %v2600 = vunpack.c.h.b16 %v1352
    %v2601 = vunpack.c.l.b16 %v1353
    %v2602 = vunpack.c.h.b16 %v1353
    %v2603 = vunpack.c.l.b16 %v1354
    %v2604 = vunpack.c.h.b16 %v1354
    %v2605 = vunpack.c.l.b16 %v1355
    %v2606 = vunpack.c.h.b16 %v1355
    %v2607 = vunpack.c.l.b16 %v1356
    %v2608 = vunpack.c.h.b16 %v1356
    %v2609 = vunpack.c.l.b16 %v1357
    %v2610 = vunpack.c.h.b16 %v1357
    %v2611 = vunpack.c.l.b16 %v1358
    %v2612 = vunpack.c.h.b16 %v1358
    %v2613 = vunpack.c.l.b16 %v1359
    %v2614 = vunpack.c.h.b16 %v1359
    %v2615 = vunpack.c.l.b16 %v1360
    %v2616 = vunpack.c.h.b16 %v1360
    %v2617 = vunpack.c.l.b16 %v1361
    %v2618 = vunpack.c.h.b16 %v1361
    %v2619 = vunpack.c.l.b16 %v1362
    %v2620 = vunpack.c.h.b16 %v1362
    %v2621 = vunpack.c.l.b16 %v1363
    %v2622 = vunpack.c.h.b16 %v1363
    %v2623 = vunpack.c.l.b16 %v1364
    %v2624 = vunpack.c.h.b16 %v1364
    %v2625 = vunpack.c.l.b16 %v1365
    %v2626 = vunpack.c.h.b16 %v1365
    %v2627 = vunpack.c.l.b16 %v1366
    %v2628 = vunpack.c.h.b16 %v1366
    %v2629 = vunpack.c.l.b16 %v1367
    %v2630 = vunpack.c.h.b16 %v1367
    %v2631 = vunpack.c.l.b16 %v1368
    %v2632 = vunpack.c.h.b16 %v1368
    %v2633 = vunpack.c.l.b16 %v1369
    %v2634 = vunpack.c.h.b16 %v1369
    %v2635 = vunpack.c.l.b16 %v1370
    %v2636 = vunpack.c.h.b16 %v1370
    %v2637 = vunpack.c.l.b16 %v1371
    %v2638 = vunpack.c.h.b16 %v1371
    %v2639 = vunpack.c.l.b16 %v1372
    %v2640 = vunpack.c.h.b16 %v1372
    %v2641 = vunpack.c.l.b16 %v1373
    %v2642 = vunpack.c.h.b16 %v1373
    %v2643 = vunpack.c.l.b16 %v1374
    %v2644 = vunpack.c.h.b16 %v1374
    %v2645 = vunpack.c.l.b16 %v1375
    %v2646 = vunpack.c.h.b16 %v1375
    %v2647 = vunpack.c.l.b16 %v1376
    %v2648 = vunpack.c.h.b16 %v1376
    %v2649 = vunpack.c.l.b16 %v1377
    %v2650 = vunpack.c.h.b16 %v1377
    %v2651 = vunpack.c.l.b16 %v1378
    %v2652 = vunpack.c.h.b16 %v1378
    %v2653 = vunpack.c.l.b16 %v1379
    %v2654 = vunpack.c.h.b16 %v1379
    %v2655 = vunpack.c.l.b16 %v1380
    %v2656 = vunpack.c.h.b16 %v1380
    %v2657 = vunpack.c.l.b16 %v1381
    %v2658 = vunpack.c.h.b16 %v1381
    %v2659 = vunpack.c.l.b16 %v1382
    %v2660 = vunpack.c.h.b16 %v1382
    %v2661 = vunpack.c.l.b16 %v1383
    %v2662 = vunpack.c.h.b16 %v1383
    %v2663 = vunpack.c.l.b16 %v1384
    %v2664 = vunpack.c.h.b16 %v1384
    %v2665 = vunpack.c.l.b16 %v1385
    %v2666 = vunpack.c.h.b16 %v1385
    %v2667 = vunpack.c.l.b16 %v1386
    %v2668 = vunpack.c.h.b16 %v1386
    %v2669 = vunpack.c.l.b16 %v1387
    %v2670 = vunpack.c.h.b16 %v1387
    %v2671 = vunpack.c.l.b16 %v1388
    %v2672 = vunpack.c.h.b16 %v1388
    %v2673 = vunpack.c.l.b16 %v1389
    %v2674 = vunpack.c.h.b16 %v1389
    %v2675 = vunpack.c.l.b16 %v1390
    %v2676 = vunpack.c.h.b16 %v1390
    %v2677 = vunpack.c.l.b16 %v1391
    %v2678 = vunpack.c.h.b16 %v1391
    %v2679 = vunpack.c.l.b16 %v1392
    %v2680 = vunpack.c.h.b16 %v1392
    %v2681 = vunpack.c.l.b16 %v1393
    %v2682 = vunpack.c.h.b16 %v1393
    %v2683 = vunpack.c.l.b16 %v1394
    %v2684 = vunpack.c.h.b16 %v1394
    %v2685 = vunpack.c.l.b16 %v1395
    %v2686 = vunpack.c.h.b16 %v1395
    %v2687 = vunpack.c.l.b16 %v1396
    %v2688 = vunpack.c.h.b16 %v1396
    %v2689 = vunpack.c.l.b16 %v1397
    %v2690 = vunpack.c.h.b16 %v1397
    %v2691 = vunpack.c.l.b16 %v1398
    %v2692 = vunpack.c.h.b16 %v1398
    %v2693 = vunpack.c.l.b16 %v1399
    %v2694 = vunpack.c.h.b16 %v1399
    %v2695 = vunpack.c.l.b16 %v1400
    %v2696 = vunpack.c.h.b16 %v1400
    %v2697 = vunpack.c.l.b16 %v1401
    %v2698 = vunpack.c.h.b16 %v1401
    %v2699 = vunpack.c.l.b16 %v1402
    %v2700 = vunpack.c.h.b16 %v1402
    %v2701 = vunpack.c.l.b16 %v1403
    %v2702 = vunpack.c.h.b16 %v1403
    %v2703 = vunpack.c.l.b16 %v1404
    %v2704 = vunpack.c.h.b16 %v1404
    %v2705 = vunpack.c.l.b16 %v1405
    %v2706 = vunpack.c.h.b16 %v1405
    %v2707 = vunpack.c.l.b16 %v1406
    %v2708 = vunpack.c.h.b16 %v1406
    %v2709 = vunpack.c.l.b16 %v1407
    %v2710 = vunpack.c.h.b16 %v1407
    %v2711 = vunpack.c.l.b16 %v1408
    %v2712 = vunpack.c.h.b16 %v1408
    %v2713 = vunpack.c.l.b16 %v1409
    %v2714 = vunpack.c.h.b16 %v1409
    %v2715 = vunpack.c.l.b16 %v1410
    %v2716 = vunpack.c.h.b16 %v1410
    %v2717 = vunpack.c.l.b16 %v1411
    %v2718 = vunpack.c.h.b16 %v1411
    %v2719 = vunpack.c.l.b16 %v1412
    %v2720 = vunpack.c.h.b16 %v1412
    %v2721 = vunpack.c.l.b16 %v1413
    %v2722 = vunpack.c.h.b16 %v1413
    %v2723 = vunpack.c.l.b16 %v1414
    %v2724 = vunpack.c.h.b16 %v1414
    %v2725 = vunpack.c.l.b16 %v1415
    %v2726 = vunpack.c.h.b16 %v1415
    %v2727 = vunpack.c.l.b16 %v1416
    %v2728 = vunpack.c.h.b16 %v1416
    %v2729 = vunpack.c.l.b16 %v1417
    %v2730 = vunpack.c.h.b16 %v1417
    %v2731 = vunpack.c.l.b16 %v1418
    %v2732 = vunpack.c.h.b16 %v1418
    %v2733 = vunpack.c.l.b16 %v1419
    %v2734 = vunpack.c.h.b16 %v1419
    %v2735 = vunpack.c.l.b16 %v1420
    %v2736 = vunpack.c.h.b16 %v1420
    %v2737 = vunpack.c.l.b16 %v1421
    %v2738 = vunpack.c.h.b16 %v1421
    %v2739 = vunpack.c.l.b16 %v1422
    %v2740 = vunpack.c.h.b16 %v1422
    %v2741 = vunpack.c.l.b16 %v1423
    %v2742 = vunpack.c.h.b16 %v1423
    %v2743 = vunpack.c.l.b16 %v1424
    %v2744 = vunpack.c.h.b16 %v1424
    %v2745 = vunpack.c.l.b16 %v1425
    %v2746 = vunpack.c.h.b16 %v1425
    %v2747 = vunpack.c.l.b16 %v1426
    %v2748 = vunpack.c.h.b16 %v1426
    %v2749 = vunpack.c.l.b16 %v1427
    %v2750 = vunpack.c.h.b16 %v1427
    %v2751 = vunpack.c.l.b16 %v1428
    %v2752 = vunpack.c.h.b16 %v1428
    %v2753 = vunpack.c.l.b16 %v1429
    %v2754 = vunpack.c.h.b16 %v1429
    %v2755 = vunpack.c.l.b16 %v1430
    %v2756 = vunpack.c.h.b16 %v1430
    %v2757 = vunpack.c.l.b16 %v1431
    %v2758 = vunpack.c.h.b16 %v1431
    %v2759 = vunpack.c.l.b16 %v1432
    %v2760 = vunpack.c.h.b16 %v1432
    %v2761 = vunpack.c.l.b16 %v1433
    %v2762 = vunpack.c.h.b16 %v1433
    %v2763 = vunpack.c.l.b16 %v1434
    %v2764 = vunpack.c.h.b16 %v1434
    %v2765 = vunpack.c.l.b16 %v1435
    %v2766 = vunpack.c.h.b16 %v1435
    %v2767 = vunpack.c.l.b16 %v1436
    %v2768 = vunpack.c.h.b16 %v1436
    %v2769 = vunpack.c.l.b16 %v1437
    %v2770 = vunpack.c.h.b16 %v1437
    %v2771 = vunpack.c.l.b16 %v1438
    %v2772 = vunpack.c.h.b16 %v1438
    %v2773 = vunpack.c.l.b16 %v1439
    %v2774 = vunpack.c.h.b16 %v1439
    %v2775 = vunpack.c.l.b16 %v1440
    %v2776 = vunpack.c.h.b16 %v1440
    %v2777 = vunpack.c.l.b16 %v1441
    %v2778 = vunpack.c.h.b16 %v1441
    %v2779 = vunpack.c.l.b16 %v1442
    %v2780 = vunpack.c.h.b16 %v1442
    %v2781 = vunpack.c.l.b16 %v1443
    %v2782 = vunpack.c.h.b16 %v1443
    %v2783 = vunpack.c.l.b16 %v1444
    %v2784 = vunpack.c.h.b16 %v1444
    %v2785 = vunpack.c.l.b16 %v1445
    %v2786 = vunpack.c.h.b16 %v1445
    %v2787 = vunpack.c.l.b16 %v1446
    %v2788 = vunpack.c.h.b16 %v1446
    %v2789 = vunpack.c.l.b16 %v1447
    %v2790 = vunpack.c.h.b16 %v1447
    %v2791 = vunpack.c.l.b16 %v1448
    %v2792 = vunpack.c.h.b16 %v1448
    %v2793 = vunpack.c.l.b16 %v1449
    %v2794 = vunpack.c.h.b16 %v1449
    %v2795 = vunpack.c.l.b16 %v1450
    %v2796 = vunpack.c.h.b16 %v1450
    %v2797 = vunpack.c.l.b16 %v1451
    %v2798 = vunpack.c.h.b16 %v1451
    %v2799 = vunpack.c.l.b16 %v1452
    %v2800 = vunpack.c.h.b16 %v1452
    %v2801 = vunpack.c.l.b16 %v1453
    %v2802 = vunpack.c.h.b16 %v1453
    %v2803 = vunpack.c.l.b16 %v1454
    %v2804 = vunpack.c.h.b16 %v1454
    %v2805 = vunpack.c.l.b16 %v1455
    %v2806 = vunpack.c.h.b16 %v1455
    %v2807 = vunpack.c.l.b16 %v1456
    %v2808 = vunpack.c.h.b16 %v1456
    %v2809 = vunpack.c.l.b16 %v1457
    %v2810 = vunpack.c.h.b16 %v1457
    %v2811 = vunpack.c.l.b16 %v1458
    %v2812 = vunpack.c.h.b16 %v1458
    %v2813 = vunpack.c.l.b16 %v1459
    %v2814 = vunpack.c.h.b16 %v1459
    %v2815 = vunpack.c.l.b16 %v1460
    %v2816 = vunpack.c.h.b16 %v1460
    %v2817 = vunpack.c.l.b16 %v1461
    %v2818 = vunpack.c.h.b16 %v1461
    %v2819 = vunpack.c.l.b16 %v1462
    %v2820 = vunpack.c.h.b16 %v1462
    %v2821 = vunpack.c.l.b16 %v1463
    %v2822 = vunpack.c.h.b16 %v1463
    %v2823 = vunpack.c.l.b16 %v1464
    %v2824 = vunpack.c.h.b16 %v1464
    %v2825 = vunpack.c.l.b16 %v1465
    %v2826 = vunpack.c.h.b16 %v1465
    %v2827 = vunpack.c.l.b16 %v1466
    %v2828 = vunpack.c.h.b16 %v1466
    %v2829 = vunpack.c.l.b16 %v1467
    %v2830 = vunpack.c.h.b16 %v1467
    %v2831 = vunpack.c.l.b16 %v1468
    %v2832 = vunpack.c.h.b16 %v1468
    %v2833 = vunpack.c.l.b16 %v1469
    %v2834 = vunpack.c.h.b16 %v1469
    %v2835 = vunpack.c.l.b16 %v1470
    %v2836 = vunpack.c.h.b16 %v1470
    %v2837 = vunpack.c.l.b16 %v1471
    %v2838 = vunpack.c.h.b16 %v1471
    %v2839 = vunpack.c.l.b16 %v1472
    %v2840 = vunpack.c.h.b16 %v1472
    %v2841 = vunpack.c.l.b16 %v1473
    %v2842 = vunpack.c.h.b16 %v1473
    %v2843 = vunpack.c.l.b16 %v1474
    %v2844 = vunpack.c.h.b16 %v1474
    %v2845 = vunpack.c.l.b16 %v1475
    %v2846 = vunpack.c.h.b16 %v1475
    %v2847 = vunpack.c.l.b16 %v1476
    %v2848 = vunpack.c.h.b16 %v1476
    %v2849 = vunpack.c.l.b16 %v1477
    %v2850 = vunpack.c.h.b16 %v1477
    %v2851 = vunpack.c.l.b16 %v1478
    %v2852 = vunpack.c.h.b16 %v1478
    %v2853 = vunpack.c.l.b16 %v1479
    %v2854 = vunpack.c.h.b16 %v1479
    %v2855 = vunpack.c.l.b16 %v1480
    %v2856 = vunpack.c.h.b16 %v1480
    %v2857 = vunpack.c.l.b16 %v1481
    %v2858 = vunpack.c.h.b16 %v1481
    %v2859 = vunpack.c.l.b16 %v1482
    %v2860 = vunpack.c.h.b16 %v1482
    %v2861 = vunpack.c.l.b16 %v1483
    %v2862 = vunpack.c.h.b16 %v1483
    %v2863 = vunpack.c.l.b16 %v1484
    %v2864 = vunpack.c.h.b16 %v1484
    %v2865 = vunpack.c.l.b16 %v1485
    %v2866 = vunpack.c.h.b16 %v1485
    %v2867 = vunpack.c.l.b16 %v1486
    %v2868 = vunpack.c.h.b16 %v1486
    %v2869 = vunpack.c.l.b16 %v1487
    %v2870 = vunpack.c.h.b16 %v1487
    %v2871 = vunpack.c.l.b16 %v1488
    %v2872 = vunpack.c.h.b16 %v1488
    %v2873 = vunpack.c.l.b16 %v1489
    %v2874 = vunpack.c.h.b16 %v1489
    %v2875 = vunpack.c.l.b16 %v1490
    %v2876 = vunpack.c.h.b16 %v1490
    %v2877 = vunpack.c.l.b16 %v1491
    %v2878 = vunpack.c.h.b16 %v1491
    %v2879 = vunpack.c.l.b16 %v1492
    %v2880 = vunpack.c.h.b16 %v1492
    %v2881 = vunpack.c.l.b16 %v1493
    %v2882 = vunpack.c.h.b16 %v1493
    %v2883 = vunpack.c.l.b16 %v1494
    %v2884 = vunpack.c.h.b16 %v1494
    %v2885 = vunpack.c.l.b16 %v1495
    %v2886 = vunpack.c.h.b16 %v1495
    %v2887 = vunpack.c.l.b16 %v1496
    %v2888 = vunpack.c.h.b16 %v1496
    %v2889 = vunpack.c.l.b16 %v1497
    %v2890 = vunpack.c.h.b16 %v1497
    %v2891 = vunpack.c.l.b16 %v1498
    %v2892 = vunpack.c.h.b16 %v1498
    %v2893 = vunpack.c.l.b16 %v1499
    %v2894 = vunpack.c.h.b16 %v1499
    %v2895 = vunpack.c.l.b16 %v1500
    %v2896 = vunpack.c.h.b16 %v1500
    %v2897 = vunpack.c.l.b16 %v1501
    %v2898 = vunpack.c.h.b16 %v1501
    %v2899 = vunpack.c.l.b16 %v1502
    %v2900 = vunpack.c.h.b16 %v1502
    %v2901 = vunpack.c.l.b16 %v1503
    %v2902 = vunpack.c.h.b16 %v1503
    %v2903 = vunpack.c.l.b16 %v1504
    %v2904 = vunpack.c.h.b16 %v1504
    %v2905 = vunpack.c.l.b16 %v1505
    %v2906 = vunpack.c.h.b16 %v1505
    %v2907 = vunpack.c.l.b16 %v1506
    %v2908 = vunpack.c.h.b16 %v1506
    %v2909 = vunpack.c.l.b16 %v1507
    %v2910 = vunpack.c.h.b16 %v1507
    %v2911 = vunpack.c.l.b16 %v1508
    %v2912 = vunpack.c.h.b16 %v1508
    %v2913 = vunpack.c.l.b16 %v1509
    %v2914 = vunpack.c.h.b16 %v1509
    %v2915 = vunpack.c.l.b16 %v1510
    %v2916 = vunpack.c.h.b16 %v1510
    %v2917 = vunpack.c.l.b16 %v1511
    %v2918 = vunpack.c.h.b16 %v1511
    %v2919 = vunpack.c.l.b16 %v1512
    %v2920 = vunpack.c.h.b16 %v1512
    %v2921 = vunpack.c.l.b16 %v1513
    %v2922 = vunpack.c.h.b16 %v1513
    %v2923 = vunpack.c.l.b16 %v1514
    %v2924 = vunpack.c.h.b16 %v1514
    %v2925 = vunpack.c.l.b16 %v1515
    %v2926 = vunpack.c.h.b16 %v1515
    %v2927 = vunpack.c.l.b16 %v1516
    %v2928 = vunpack.c.h.b16 %v1516
    %v2929 = vunpack.c.l.b16 %v1517
    %v2930 = vunpack.c.h.b16 %v1517
    %v2931 = vunpack.c.l.b16 %v1518
    %v2932 = vunpack.c.h.b16 %v1518
    %v2933 = vunpack.c.l.b16 %v1519
    %v2934 = vunpack.c.h.b16 %v1519
    %v2935 = vunpack.c.l.b16 %v1520
    %v2936 = vunpack.c.h.b16 %v1520
    %v2937 = vunpack.c.l.b16 %v1521
    %v2938 = vunpack.c.h.b16 %v1521
    %v2939 = vunpack.c.l.b16 %v1522
    %v2940 = vunpack.c.h.b16 %v1522
    %v2941 = vunpack.c.l.b16 %v1523
    %v2942 = vunpack.c.h.b16 %v1523
    %v2943 = vunpack.c.l.b16 %v1524
    %v2944 = vunpack.c.h.b16 %v1524
    %v2945 = vunpack.c.l.b16 %v1525
    %v2946 = vunpack.c.h.b16 %v1525
    %v2947 = vunpack.c.l.b16 %v1526
    %v2948 = vunpack.c.h.b16 %v1526
    %v2949 = vunpack.c.l.b16 %v1527
    %v2950 = vunpack.c.h.b16 %v1527
    %v2951 = vunpack.c.l.b16 %v1528
    %v2952 = vunpack.c.h.b16 %v1528
    %v2953 = vunpack.c.l.b16 %v1529
    %v2954 = vunpack.c.h.b16 %v1529
    %v2955 = vunpack.c.l.b16 %v1530
    %v2956 = vunpack.c.h.b16 %v1530
    %v2957 = vunpack.c.l.b16 %v1531
    %v2958 = vunpack.c.h.b16 %v1531
    %v2959 = vunpack.c.l.b16 %v1532
    %v2960 = vunpack.c.h.b16 %v1532
    %v2961 = vunpack.c.l.b16 %v1533
    %v2962 = vunpack.c.h.b16 %v1533
    %v2963 = vunpack.c.l.b16 %v1534
    %v2964 = vunpack.c.h.b16 %v1534
    %v2965 = vunpack.c.l.b16 %v1535
    %v2966 = vunpack.c.h.b16 %v1535
    %v2967 = vunpack.c.l.b16 %v1536
    %v2968 = vunpack.c.h.b16 %v1536
    %v2969 = vunpack.c.l.b16 %v1537
    %v2970 = vunpack.c.h.b16 %v1537
    %v2971 = vunpack.c.l.b16 %v1538
    %v2972 = vunpack.c.h.b16 %v1538
    %v2973 = vunpack.c.l.b16 %v1539
    %v2974 = vunpack.c.h.b16 %v1539
    %v2975 = vunpack.c.l.b16 %v1540
    %v2976 = vunpack.c.h.b16 %v1540
    %v2977 = vunpack.c.l.b16 %v1541
    %v2978 = vunpack.c.h.b16 %v1541
    %v2979 = vunpack.c.l.b16 %v1542
    %v2980 = vunpack.c.h.b16 %v1542
    %v2981 = vunpack.c.l.b16 %v1543
    %v2982 = vunpack.c.h.b16 %v1543
    %v2983 = vunpack.c.l.b16 %v1544
    %v2984 = vunpack.c.h.b16 %v1544
    %v2985 = vunpack.c.l.b16 %v1545
    %v2986 = vunpack.c.h.b16 %v1545
    %v2987 = vunpack.c.l.b16 %v1546
    %v2988 = vunpack.c.h.b16 %v1546
    %v2989 = vunpack.c.l.b16 %v1547
    %v2990 = vunpack.c.h.b16 %v1547
    %v2991 = vunpack.c.l.b16 %v1548
    %v2992 = vunpack.c.h.b16 %v1548
    %v2993 = vunpack.c.l.b16 %v1549
    %v2994 = vunpack.c.h.b16 %v1549
    %v2995 = vunpack.c.l.b16 %v1550
    %v2996 = vunpack.c.h.b16 %v1550
    %v2997 = vunpack.c.l.b16 %v1551
    %v2998 = vunpack.c.h.b16 %v1551
    %v2999 = vunpack.c.l.b16 %v1552
    %v3000 = vunpack.c.h.b16 %v1552
    %v3001 = vunpack.c.l.b16 %v1553
    %v3002 = vunpack.c.h.b16 %v1553
    %v3003 = vunpack.c.l.b16 %v1554
    %v3004 = vunpack.c.h.b16 %v1554
    %v3005 = vunpack.c.l.b16 %v1555
    %v3006 = vunpack.c.h.b16 %v1555
    %v3007 = vunpack.c.l.b16 %v1556
    %v3008 = vunpack.c.h.b16 %v1556
    %v3009 = vunpack.c.l.b16 %v1557
    %v3010 = vunpack.c.h.b16 %v1557
    %v3011 = vunpack.c.l.b16 %v1558
    %v3012 = vunpack.c.h.b16 %v1558
    %v3013 = vunpack.c.l.b16 %v1559
    %v3014 = vunpack.c.h.b16 %v1559
    %v3015 = vunpack.c.l.b16 %v1560
    %v3016 = vunpack.c.h.b16 %v1560
    %v3017 = vunpack.c.l.b16 %v1561
    %v3018 = vunpack.c.h.b16 %v1561
    %v3019 = vunpack.c.l.b16 %v1562
    %v3020 = vunpack.c.h.b16 %v1562
    %v3021 = vunpack.c.l.b16 %v1563
    %v3022 = vunpack.c.h.b16 %v1563
    %v3023 = vunpack.c.l.b16 %v1564
    %v3024 = vunpack.c.h.b16 %v1564
    %v3025 = vunpack.c.l.b16 %v1565
    %v3026 = vunpack.c.h.b16 %v1565
    %v3027 = vunpack.c.l.b16 %v1566
    %v3028 = vunpack.c.h.b16 %v1566
    %v3029 = vunpack.c.l.b16 %v1567
    %v3030 = vunpack.c.h.b16 %v1567
    %v3031 = vunpack.c.l.b16 %v1568
    %v3032 = vunpack.c.h.b16 %v1568
    %v3033 = vunpack.c.l.b16 %v1569
    %v3034 = vunpack.c.h.b16 %v1569
    %v3035 = vunpack.c.l.b16 %v1570
    %v3036 = vunpack.c.h.b16 %v1570
    %v3037 = vunpack.c.l.b16 %v1571
    %v3038 = vunpack.c.h.b16 %v1571
    %v3039 = vunpack.c.l.b16 %v1572
    %v3040 = vunpack.c.h.b16 %v1572
    %v3041 = vunpack.c.l.b16 %v1573
    %v3042 = vunpack.c.h.b16 %v1573
    %v3043 = vunpack.c.l.b16 %v1574
    %v3044 = vunpack.c.h.b16 %v1574
    %v3045 = vunpack.c.l.b16 %v1575
    %v3046 = vunpack.c.h.b16 %v1575
    %v3047 = vunpack.c.l.b16 %v1576
    %v3048 = vunpack.c.h.b16 %v1576
    %v3049 = vunpack.c.l.b16 %v1577
    %v3050 = vunpack.c.h.b16 %v1577
    %v3051 = vunpack.c.l.b16 %v1578
    %v3052 = vunpack.c.h.b16 %v1578
    %v3053 = vunpack.c.l.b16 %v1579
    %v3054 = vunpack.c.h.b16 %v1579
    %v3055 = vunpack.c.l.b16 %v1580
    %v3056 = vunpack.c.h.b16 %v1580
    %v3057 = vunpack.c.l.b16 %v1581
    %v3058 = vunpack.c.h.b16 %v1581
    %v3059 = vunpack.c.l.b16 %v1582
    %v3060 = vunpack.c.h.b16 %v1582
    %v3061 = vunpack.c.l.b16 %v1583
    %v3062 = vunpack.c.h.b16 %v1583
    %v3063 = vunpack.c.l.b16 %v1584
    %v3064 = vunpack.c.h.b16 %v1584
    %v3065 = vunpack.c.l.b16 %v1585
    %v3066 = vunpack.c.h.b16 %v1585
    %v3067 = vunpack.c.l.b16 %v1586
    %v3068 = vunpack.c.h.b16 %v1586
    %v3069 = vunpack.c.l.b16 %v1587
    %v3070 = vunpack.c.h.b16 %v1587
    %v3071 = vunpack.c.l.b16 %v1588
    %v3072 = vunpack.c.h.b16 %v1588
    %v3073 = vunpack.c.l.b16 %v1589
    %v3074 = vunpack.c.h.b16 %v1589
    %v3075 = vunpack.c.l.b16 %v1590
    %v3076 = vunpack.c.h.b16 %v1590
    %v3077 = vunpack.c.l.b16 %v1591
    %v3078 = vunpack.c.h.b16 %v1591
    %v3079 = vunpack.c.l.b16 %v1592
    %v3080 = vunpack.c.h.b16 %v1592
    %v3081 = vunpack.c.l.b16 %v1593
    %v3082 = vunpack.c.h.b16 %v1593
    %v3083 = vunpack.c.l.b16 %v1594
    %v3084 = vunpack.c.h.b16 %v1594
    %v3085 = vunpack.c.l.b16 %v1595
    %v3086 = vunpack.c.h.b16 %v1595
    %v3087 = vunpack.c.l.b16 %v1596
    %v3088 = vunpack.c.h.b16 %v1596
    %v3089 = vunpack.c.l.b16 %v1597
    %v3090 = vunpack.c.h.b16 %v1597
    %v3091 = vunpack.c.l.b16 %v1598
    %v3092 = vunpack.c.h.b16 %v1598
    %v3093 = vunpack.c.l.b16 %v1599
    %v3094 = vunpack.c.h.b16 %v1599
    %v3095 = vunpack.c.l.b16 %v1600
    %v3096 = vunpack.c.h.b16 %v1600
    %v3097 = vunpack.c.l.b16 %v1601
    %v3098 = vunpack.c.h.b16 %v1601
    %v3099 = vunpack.c.l.b16 %v1602
    %v3100 = vunpack.c.h.b16 %v1602
    %v3101 = vunpack.c.l.b16 %v1603
    %v3102 = vunpack.c.h.b16 %v1603
    %v3103 = vunpack.c.l.b16 %v1604
    %v3104 = vunpack.c.h.b16 %v1604
    %v3105 = vunpack.c.l.b16 %v1605
    %v3106 = vunpack.c.h.b16 %v1605
    %v3107 = vunpack.c.l.b16 %v1606
    %v3108 = vunpack.c.h.b16 %v1606
    %v3109 = vunpack.c.l.b16 %v1607
    %v3110 = vunpack.c.h.b16 %v1607
    %v3111 = vunpack.c.l.b16 %v1608
    %v3112 = vunpack.c.h.b16 %v1608
    %v3113 = vunpack.c.l.b16 %v1609
    %v3114 = vunpack.c.h.b16 %v1609
    %v3115 = vunpack.c.l.b16 %v1610
    %v3116 = vunpack.c.h.b16 %v1610
    %v3117 = vunpack.c.l.b16 %v1611
    %v3118 = vunpack.c.h.b16 %v1611
    %v3119 = vunpack.c.l.b16 %v1612
    %v3120 = vunpack.c.h.b16 %v1612
    %v3121 = vunpack.c.l.b16 %v1613
    %v3122 = vunpack.c.h.b16 %v1613
    %v3123 = vunpack.c.l.b16 %v1614
    %v3124 = vunpack.c.h.b16 %v1614
    %v3125 = vunpack.c.l.b16 %v1615
    %v3126 = vunpack.c.h.b16 %v1615
    %v3127 = vunpack.c.l.b16 %v1616
    %v3128 = vunpack.c.h.b16 %v1616
    %v3129 = vunpack.c.l.b16 %v1617
    %v3130 = vunpack.c.h.b16 %v1617
    %v3131 = vunpack.c.l.b16 %v1618
    %v3132 = vunpack.c.h.b16 %v1618
    %v3133 = vunpack.c.l.b16 %v1619
    %v3134 = vunpack.c.h.b16 %v1619
    %v3135 = vunpack.c.l.b16 %v1620
    %v3136 = vunpack.c.h.b16 %v1620
    %v3137 = vunpack.c.l.b16 %v1621
    %v3138 = vunpack.c.h.b16 %v1621
    %v3139 = vunpack.c.l.b16 %v1622
    %v3140 = vunpack.c.h.b16 %v1622
    %v3141 = vunpack.c.l.b16 %v1623
    %v3142 = vunpack.c.h.b16 %v1623
    %v3143 = vunpack.c.l.b16 %v1624
    %v3144 = vunpack.c.h.b16 %v1624
    %v3145 = vunpack.c.l.b16 %v1625
    %v3146 = vunpack.c.h.b16 %v1625
    %v3147 = vunpack.c.l.b16 %v1626
    %v3148 = vunpack.c.h.b16 %v1626
    %v3149 = vunpack.c.l.b16 %v1627
    %v3150 = vunpack.c.h.b16 %v1627
    %v3151 = vunpack.c.l.b16 %v1628
    %v3152 = vunpack.c.h.b16 %v1628
    %v3153 = vunpack.c.l.b16 %v1629
    %v3154 = vunpack.c.h.b16 %v1629
    %v3155 = vunpack.c.l.b16 %v1630
    %v3156 = vunpack.c.h.b16 %v1630
    %v3157 = vunpack.c.l.b16 %v1631
    %v3158 = vunpack.c.h.b16 %v1631
    %v3159 = vunpack.c.l.b16 %v1632
    %v3160 = vunpack.c.h.b16 %v1632
    %v3161 = vunpack.c.l.b16 %v1633
    %v3162 = vunpack.c.h.b16 %v1633
    %v3163 = vunpack.c.l.b16 %v1634
    %v3164 = vunpack.c.h.b16 %v1634
    %v3165 = vunpack.c.l.b16 %v1635
    %v3166 = vunpack.c.h.b16 %v1635
    %v3167 = vunpack.c.l.b16 %v1636
    %v3168 = vunpack.c.h.b16 %v1636
    %v3169 = vunpack.c.l.b16 %v1637
    %v3170 = vunpack.c.h.b16 %v1637
    %v3171 = vunpack.c.l.b16 %v1638
    %v3172 = vunpack.c.h.b16 %v1638
    %v3173 = vunpack.c.l.b16 %v1639
    %v3174 = vunpack.c.h.b16 %v1639
    %v3175 = vunpack.c.l.b16 %v1640
    %v3176 = vunpack.c.h.b16 %v1640
    %v3177 = vunpack.c.l.b16 %v1641
    %v3178 = vunpack.c.h.b16 %v1641
    %v3179 = vunpack.c.l.b16 %v1642
    %v3180 = vunpack.c.h.b16 %v1642
    %v3181 = vunpack.c.l.b16 %v1643
    %v3182 = vunpack.c.h.b16 %v1643
    %v3183 = vunpack.c.l.b16 %v1644
    %v3184 = vunpack.c.h.b16 %v1644
    %v3185 = vunpack.c.l.b16 %v1645
    %v3186 = vunpack.c.h.b16 %v1645
    %v3187 = vunpack.c.l.b16 %v1646
    %v3188 = vunpack.c.h.b16 %v1646
    %v3189 = vunpack.c.l.b16 %v1647
    %v3190 = vunpack.c.h.b16 %v1647
    %v3191 = vunpack.c.l.b16 %v1648
    %v3192 = vunpack.c.h.b16 %v1648
    %v3193 = vunpack.c.l.b16 %v1649
    %v3194 = vunpack.c.h.b16 %v1649
    %v3195 = vunpack.c.l.b16 %v1650
    %v3196 = vunpack.c.h.b16 %v1650
    %v3197 = vunpack.c.l.b16 %v1651
    %v3198 = vunpack.c.h.b16 %v1651
    %v3199 = vunpack.c.l.b16 %v1652
    %v3200 = vunpack.c.h.b16 %v1652
    %v3201 = vunpack.c.l.b16 %v1653
    %v3202 = vunpack.c.h.b16 %v1653
    %v3203 = vunpack.c.l.b16 %v1654
    %v3204 = vunpack.c.h.b16 %v1654
    %v3205 = vunpack.c.l.b16 %v1655
    %v3206 = vunpack.c.h.b16 %v1655
    %v3207 = vunpack.c.l.b16 %v1656
    %v3208 = vunpack.c.h.b16 %v1656
    %v3209 = vunpack.c.l.b16 %v1657
    %v3210 = vunpack.c.h.b16 %v1657
    %v3211 = vunpack.c.l.b16 %v1658
    %v3212 = vunpack.c.h.b16 %v1658
    %v3213 = vunpack.c.l.b16 %v1659
    %v3214 = vunpack.c.h.b16 %v1659
    %v3215 = vunpack.c.l.b16 %v1660
    %v3216 = vunpack.c.h.b16 %v1660
    %v3217 = vunpack.c.l.b16 %v1661
    %v3218 = vunpack.c.h.b16 %v1661
    %v3219 = vunpack.c.l.b16 %v1662
    %v3220 = vunpack.c.h.b16 %v1662
    %v3221 = vunpack.c.l.b16 %v1663
    %v3222 = vunpack.c.h.b16 %v1663
    %v3223 = vunpack.c.l.b16 %v1664
    %v3224 = vunpack.c.h.b16 %v1664
    %v3225 = vunpack.c.l.b16 %v1665
    %v3226 = vunpack.c.h.b16 %v1665
    %v3227 = vunpack.c.l.b16 %v1666
    %v3228 = vunpack.c.h.b16 %v1666
    %v3229 = vunpack.c.l.b16 %v1667
    %v3230 = vunpack.c.h.b16 %v1667
    %v3231 = vunpack.c.l.b16 %v1668
    %v3232 = vunpack.c.h.b16 %v1668
    %v3233 = vunpack.c.l.b16 %v1669
    %v3234 = vunpack.c.h.b16 %v1669
    %v3235 = vunpack.c.l.b16 %v1670
    %v3236 = vunpack.c.h.b16 %v1670
    %v3237 = vunpack.c.l.b16 %v1671
    %v3238 = vunpack.c.h.b16 %v1671
    %v3239 = vunpack.c.l.b16 %v1672
    %v3240 = vunpack.c.h.b16 %v1672
    %v3241 = vunpack.c.l.b16 %v1673
    %v3242 = vunpack.c.h.b16 %v1673
    %v3243 = vunpack.c.l.b16 %v1674
    %v3244 = vunpack.c.h.b16 %v1674
    %v3245 = vunpack.c.l.b16 %v1675
    %v3246 = vunpack.c.h.b16 %v1675
    %v3247 = vunpack.c.l.b16 %v1676
    %v3248 = vunpack.c.h.b16 %v1676
    %v3249 = vunpack.c.l.b16 %v1677
    %v3250 = vunpack.c.h.b16 %v1677
    %v3251 = vunpack.c.l.b16 %v1678
    %v3252 = vunpack.c.h.b16 %v1678
    %v3253 = vunpack.c.l.b16 %v1679
    %v3254 = vunpack.c.h.b16 %v1679
    %v3255 = vunpack.c.l.b16 %v1680
    %v3256 = vunpack.c.h.b16 %v1680
    %v3257 = vunpack.c.l.b16 %v1681
    %v3258 = vunpack.c.h.b16 %v1681
    %v3259 = vunpack.c.l.b16 %v1682
    %v3260 = vunpack.c.h.b16 %v1682
    %v3261 = vpack.c.b16 %v2245, %v2237
    %v3262 = vpack.c.b16 %v2246, %v2238
    %v3263 = vpack.c.b16 %v2247, %v2239
    %v3264 = vpack.c.b16 %v2248, %v2240
    %v3265 = vpack.c.b16 %v2249, %v2241
    %v3266 = vpack.c.b16 %v2250, %v2242
    %v3267 = vpack.c.b16 %v2251, %v2243
    %v3268 = vpack.c.b16 %v2252, %v2244
    %v3269 = vpack.c.b16 %v2261, %v2253
    %v3270 = vpack.c.b16 %v2262, %v2254
    %v3271 = vpack.c.b16 %v2263, %v2255
    %v3272 = vpack.c.b16 %v2264, %v2256
    %v3273 = vpack.c.b16 %v2265, %v2257
    %v3274 = vpack.c.b16 %v2266, %v2258
    %v3275 = vpack.c.b16 %v2267, %v2259
    %v3276 = vpack.c.b16 %v2268, %v2260
    %v3277 = vpack.c.b16 %v2277, %v2269
    %v3278 = vpack.c.b16 %v2278, %v2270
    %v3279 = vpack.c.b16 %v2279, %v2271
    %v3280 = vpack.c.b16 %v2280, %v2272
    %v3281 = vpack.c.b16 %v2281, %v2273
    %v3282 = vpack.c.b16 %v2282, %v2274
    %v3283 = vpack.c.b16 %v2283, %v2275
    %v3284 = vpack.c.b16 %v2284, %v2276
    %v3285 = vpack.c.b16 %v2293, %v2285
    %v3286 = vpack.c.b16 %v2294, %v2286
    %v3287 = vpack.c.b16 %v2295, %v2287
    %v3288 = vpack.c.b16 %v2296, %v2288
    %v3289 = vpack.c.b16 %v2297, %v2289
    %v3290 = vpack.c.b16 %v2298, %v2290
    %v3291 = vpack.c.b16 %v2299, %v2291
    %v3292 = vpack.c.b16 %v2300, %v2292
    %v3293 = vpack.c.b16 %v2309, %v2301
    %v3294 = vpack.c.b16 %v2310, %v2302
    %v3295 = vpack.c.b16 %v2311, %v2303
    %v3296 = vpack.c.b16 %v2312, %v2304
    %v3297 = vpack.c.b16 %v2313, %v2305
    %v3298 = vpack.c.b16 %v2314, %v2306
    %v3299 = vpack.c.b16 %v2315, %v2307
    %v3300 = vpack.c.b16 %v2316, %v2308
    %v3301 = vpack.c.b16 %v2325, %v2317
    %v3302 = vpack.c.b16 %v2326, %v2318
    %v3303 = vpack.c.b16 %v2327, %v2319
    %v3304 = vpack.c.b16 %v2328, %v2320
    %v3305 = vpack.c.b16 %v2329, %v2321
    %v3306 = vpack.c.b16 %v2330, %v2322
    %v3307 = vpack.c.b16 %v2331, %v2323
    %v3308 = vpack.c.b16 %v2332, %v2324
    %v3309 = vpack.c.b16 %v2341, %v2333
    %v3310 = vpack.c.b16 %v2342, %v2334
    %v3311 = vpack.c.b16 %v2343, %v2335
    %v3312 = vpack.c.b16 %v2344, %v2336
    %v3313 = vpack.c.b16 %v2345, %v2337
    %v3314 = vpack.c.b16 %v2346, %v2338
    %v3315 = vpack.c.b16 %v2347, %v2339
    %v3316 = vpack.c.b16 %v2348, %v2340
    %v3317 = vpack.c.b16 %v2357, %v2349
    %v3318 = vpack.c.b16 %v2358, %v2350
    %v3319 = vpack.c.b16 %v2359, %v2351
    %v3320 = vpack.c.b16 %v2360, %v2352
    %v3321 = vpack.c.b16 %v2361, %v2353
    %v3322 = vpack.c.b16 %v2362, %v2354
    %v3323 = vpack.c.b16 %v2363, %v2355
    %v3324 = vpack.c.b16 %v2364, %v2356
    %v3325 = vpack.c.b16 %v2373, %v2365
    %v3326 = vpack.c.b16 %v2374, %v2366
    %v3327 = vpack.c.b16 %v2375, %v2367
    %v3328 = vpack.c.b16 %v2376, %v2368
    %v3329 = vpack.c.b16 %v2377, %v2369
    %v3330 = vpack.c.b16 %v2378, %v2370
    %v3331 = vpack.c.b16 %v2379, %v2371
    %v3332 = vpack.c.b16 %v2380, %v2372
    %v3333 = vpack.c.b16 %v2389, %v2381
    %v3334 = vpack.c.b16 %v2390, %v2382
    %v3335 = vpack.c.b16 %v2391, %v2383
    %v3336 = vpack.c.b16 %v2392, %v2384
    %v3337 = vpack.c.b16 %v2393, %v2385
    %v3338 = vpack.c.b16 %v2394, %v2386
    %v3339 = vpack.c.b16 %v2395, %v2387
    %v3340 = vpack.c.b16 %v2396, %v2388
    %v3341 = vpack.c.b16 %v2405, %v2397
    %v3342 = vpack.c.b16 %v2406, %v2398
    %v3343 = vpack.c.b16 %v2407, %v2399
    %v3344 = vpack.c.b16 %v2408, %v2400
    %v3345 = vpack.c.b16 %v2409, %v2401
    %v3346 = vpack.c.b16 %v2410, %v2402
    %v3347 = vpack.c.b16 %v2411, %v2403
    %v3348 = vpack.c.b16 %v2412, %v2404
    %v3349 = vpack.c.b16 %v2421, %v2413
    %v3350 = vpack.c.b16 %v2422, %v2414
    %v3351 = vpack.c.b16 %v2423, %v2415
    %v3352 = vpack.c.b16 %v2424, %v2416
    %v3353 = vpack.c.b16 %v2425, %v2417
    %v3354 = vpack.c.b16 %v2426, %v2418
    %v3355 = vpack.c.b16 %v2427, %v2419
    %v3356 = vpack.c.b16 %v2428, %v2420
    %v3357 = vpack.c.b16 %v2437, %v2429
    %v3358 = vpack.c.b16 %v2438, %v2430
    %v3359 = vpack.c.b16 %v2439, %v2431
    %v3360 = vpack.c.b16 %v2440, %v2432
    %v3361 = vpack.c.b16 %v2441, %v2433
    %v3362 = vpack.c.b16 %v2442, %v2434
    %v3363 = vpack.c.b16 %v2443, %v2435
    %v3364 = vpack.c.b16 %v2444, %v2436
    %v3365 = vpack.c.b16 %v2453, %v2445
    %v3366 = vpack.c.b16 %v2454, %v2446
    %v3367 = vpack.c.b16 %v2455, %v2447
    %v3368 = vpack.c.b16 %v2456, %v2448
    %v3369 = vpack.c.b16 %v2457, %v2449
    %v3370 = vpack.c.b16 %v2458, %v2450
    %v3371 = vpack.c.b16 %v2459, %v2451
    %v3372 = vpack.c.b16 %v2460, %v2452
    %v3373 = vpack.c.b16 %v2469, %v2461
    %v3374 = vpack.c.b16 %v2470, %v2462
    %v3375 = vpack.c.b16 %v2471, %v2463
    %v3376 = vpack.c.b16 %v2472, %v2464
    %v3377 = vpack.c.b16 %v2473, %v2465
    %v3378 = vpack.c.b16 %v2474, %v2466
    %v3379 = vpack.c.b16 %v2475, %v2467
    %v3380 = vpack.c.b16 %v2476, %v2468
    %v3381 = vpack.c.b16 %v2485, %v2477
    %v3382 = vpack.c.b16 %v2486, %v2478
    %v3383 = vpack.c.b16 %v2487, %v2479
    %v3384 = vpack.c.b16 %v2488, %v2480
    %v3385 = vpack.c.b16 %v2489, %v2481
    %v3386 = vpack.c.b16 %v2490, %v2482
    %v3387 = vpack.c.b16 %v2491, %v2483
    %v3388 = vpack.c.b16 %v2492, %v2484
    %v3389 = vpack.c.b16 %v2501, %v2493
    %v3390 = vpack.c.b16 %v2502, %v2494
    %v3391 = vpack.c.b16 %v2503, %v2495
    %v3392 = vpack.c.b16 %v2504, %v2496
    %v3393 = vpack.c.b16 %v2505, %v2497
    %v3394 = vpack.c.b16 %v2506, %v2498
    %v3395 = vpack.c.b16 %v2507, %v2499
    %v3396 = vpack.c.b16 %v2508, %v2500
    %v3397 = vpack.c.b16 %v2517, %v2509
    %v3398 = vpack.c.b16 %v2518, %v2510
    %v3399 = vpack.c.b16 %v2519, %v2511
    %v3400 = vpack.c.b16 %v2520, %v2512
    %v3401 = vpack.c.b16 %v2521, %v2513
    %v3402 = vpack.c.b16 %v2522, %v2514
    %v3403 = vpack.c.b16 %v2523, %v2515
    %v3404 = vpack.c.b16 %v2524, %v2516
    %v3405 = vpack.c.b16 %v2533, %v2525
    %v3406 = vpack.c.b16 %v2534, %v2526
    %v3407 = vpack.c.b16 %v2535, %v2527
    %v3408 = vpack.c.b16 %v2536, %v2528
    %v3409 = vpack.c.b16 %v2537, %v2529
    %v3410 = vpack.c.b16 %v2538, %v2530
    %v3411 = vpack.c.b16 %v2539, %v2531
    %v3412 = vpack.c.b16 %v2540, %v2532
    %v3413 = vpack.c.b16 %v2549, %v2541
    %v3414 = vpack.c.b16 %v2550, %v2542
    %v3415 = vpack.c.b16 %v2551, %v2543
    %v3416 = vpack.c.b16 %v2552, %v2544
    %v3417 = vpack.c.b16 %v2553, %v2545
    %v3418 = vpack.c.b16 %v2554, %v2546
    %v3419 = vpack.c.b16 %v2555, %v2547
    %v3420 = vpack.c.b16 %v2556, %v2548
    %v3421 = vpack.c.b16 %v2565, %v2557
    %v3422 = vpack.c.b16 %v2566, %v2558
    %v3423 = vpack.c.b16 %v2567, %v2559
    %v3424 = vpack.c.b16 %v2568, %v2560
    %v3425 = vpack.c.b16 %v2569, %v2561
    %v3426 = vpack.c.b16 %v2570, %v2562
    %v3427 = vpack.c.b16 %v2571, %v2563
    %v3428 = vpack.c.b16 %v2572, %v2564
    %v3429 = vpack.c.b16 %v2581, %v2573
    %v3430 = vpack.c.b16 %v2582, %v2574
    %v3431 = vpack.c.b16 %v2583, %v2575
    %v3432 = vpack.c.b16 %v2584, %v2576
    %v3433 = vpack.c.b16 %v2585, %v2577
    %v3434 = vpack.c.b16 %v2586, %v2578
    %v3435 = vpack.c.b16 %v2587, %v2579
    %v3436 = vpack.c.b16 %v2588, %v2580
    %v3437 = vpack.c.b16 %v2597, %v2589
    %v3438 = vpack.c.b16 %v2598, %v2590
    %v3439 = vpack.c.b16 %v2599, %v2591
    %v3440 = vpack.c.b16 %v2600, %v2592
    %v3441 = vpack.c.b16 %v2601, %v2593
    %v3442 = vpack.c.b16 %v2602, %v2594
    %v3443 = vpack.c.b16 %v2603, %v2595
    %v3444 = vpack.c.b16 %v2604, %v2596
    %v3445 = vpack.c.b16 %v2613, %v2605
    %v3446 = vpack.c.b16 %v2614, %v2606
    %v3447 = vpack.c.b16 %v2615, %v2607
    %v3448 = vpack.c.b16 %v2616, %v2608
    %v3449 = vpack.c.b16 %v2617, %v2609
    %v3450 = vpack.c.b16 %v2618, %v2610
    %v3451 = vpack.c.b16 %v2619, %v2611
    %v3452 = vpack.c.b16 %v2620, %v2612
    %v3453 = vpack.c.b16 %v2629, %v2621
    %v3454 = vpack.c.b16 %v2630, %v2622
    %v3455 = vpack.c.b16 %v2631, %v2623
    %v3456 = vpack.c.b16 %v2632, %v2624
    %v3457 = vpack.c.b16 %v2633, %v2625
    %v3458 = vpack.c.b16 %v2634, %v2626
    %v3459 = vpack.c.b16 %v2635, %v2627
    %v3460 = vpack.c.b16 %v2636, %v2628
    %v3461 = vpack.c.b16 %v2645, %v2637
    %v3462 = vpack.c.b16 %v2646, %v2638
    %v3463 = vpack.c.b16 %v2647, %v2639
    %v3464 = vpack.c.b16 %v2648, %v2640
    %v3465 = vpack.c.b16 %v2649, %v2641
    %v3466 = vpack.c.b16 %v2650, %v2642
    %v3467 = vpack.c.b16 %v2651, %v2643
    %v3468 = vpack.c.b16 %v2652, %v2644
    %v3469 = vpack.c.b16 %v2661, %v2653
    %v3470 = vpack.c.b16 %v2662, %v2654
    %v3471 = vpack.c.b16 %v2663, %v2655
    %v3472 = vpack.c.b16 %v2664, %v2656
    %v3473 = vpack.c.b16 %v2665, %v2657
    %v3474 = vpack.c.b16 %v2666, %v2658
    %v3475 = vpack.c.b16 %v2667, %v2659
    %v3476 = vpack.c.b16 %v2668, %v2660
    %v3477 = vpack.c.b16 %v2677, %v2669
    %v3478 = vpack.c.b16 %v2678, %v2670
    %v3479 = vpack.c.b16 %v2679, %v2671
    %v3480 = vpack.c.b16 %v2680, %v2672
    %v3481 = vpack.c.b16 %v2681, %v2673
    %v3482 = vpack.c.b16 %v2682, %v2674
    %v3483 = vpack.c.b16 %v2683, %v2675
    %v3484 = vpack.c.b16 %v2684, %v2676
    %v3485 = vpack.c.b16 %v2693, %v2685
    %v3486 = vpack.c.b16 %v2694, %v2686
    %v3487 = vpack.c.b16 %v2695, %v2687
    %v3488 = vpack.c.b16 %v2696, %v2688
    %v3489 = vpack.c.b16 %v2697, %v2689
    %v3490 = vpack.c.b16 %v2698, %v2690
    %v3491 = vpack.c.b16 %v2699, %v2691
    %v3492 = vpack.c.b16 %v2700, %v2692
    %v3493 = vpack.c.b16 %v2709, %v2701
    %v3494 = vpack.c.b16 %v2710, %v2702
    %v3495 = vpack.c.b16 %v2711, %v2703
    %v3496 = vpack.c.b16 %v2712, %v2704
    %v3497 = vpack.c.b16 %v2713, %v2705
    %v3498 = vpack.c.b16 %v2714, %v2706
    %v3499 = vpack.c.b16 %v2715, %v2707
    %v3500 = vpack.c.b16 %v2716, %v2708
    %v3501 = vpack.c.b16 %v2725, %v2717
    %v3502 = vpack.c.b16 %v2726, %v2718
    %v3503 = vpack.c.b16 %v2727, %v2719
    %v3504 = vpack.c.b16 %v2728, %v2720
    %v3505 = vpack.c.b16 %v2729, %v2721
    %v3506 = vpack.c.b16 %v2730, %v2722
    %v3507 = vpack.c.b16 %v2731, %v2723
    %v3508 = vpack.c.b16 %v2732, %v2724
    %v3509 = vpack.c.b16 %v2741, %v2733
    %v3510 = vpack.c.b16 %v2742, %v2734
    %v3511 = vpack.c.b16 %v2743, %v2735
    %v3512 = vpack.c.b16 %v2744, %v2736
    %v3513 = vpack.c.b16 %v2745, %v2737
    %v3514 = vpack.c.b16 %v2746, %v2738
    %v3515 = vpack.c.b16 %v2747, %v2739
    %v3516 = vpack.c.b16 %v2748, %v2740
    %v3517 = vpack.c.b16 %v2757, %v2749
    %v3518 = vpack.c.b16 %v2758, %v2750
    %v3519 = vpack.c.b16 %v2759, %v2751
    %v3520 = vpack.c.b16 %v2760, %v2752
    %v3521 = vpack.c.b16 %v2761, %v2753
    %v3522 = vpack.c.b16 %v2762, %v2754
    %v3523 = vpack.c.b16 %v2763, %v2755
    %v3524 = vpack.c.b16 %v2764, %v2756
    %v3525 = vpack.c.b16 %v2773, %v2765
    %v3526 = vpack.c.b16 %v2774, %v2766
    %v3527 = vpack.c.b16 %v2775, %v2767
    %v3528 = vpack.c.b16 %v2776, %v2768
    %v3529 = vpack.c.b16 %v2777, %v2769
    %v3530 = vpack.c.b16 %v2778, %v2770
    %v3531 = vpack.c.b16 %v2779, %v2771
    %v3532 = vpack.c.b16 %v2780, %v2772
    %v3533 = vpack.c.b16 %v2789, %v2781
    %v3534 = vpack.c.b16 %v2790, %v2782
    %v3535 = vpack.c.b16 %v2791, %v2783
    %v3536 = vpack.c.b16 %v2792, %v2784
    %v3537 = vpack.c.b16 %v2793, %v2785
    %v3538 = vpack.c.b16 %v2794, %v2786
    %v3539 = vpack.c.b16 %v2795, %v2787
    %v3540 = vpack.c.b16 %v2796, %v2788
    %v3541 = vpack.c.b16 %v2805, %v2797
    %v3542 = vpack.c.b16 %v2806, %v2798
    %v3543 = vpack.c.b16 %v2807, %v2799
    %v3544 = vpack.c.b16 %v2808, %v2800
    %v3545 = vpack.c.b16 %v2809, %v2801
    %v3546 = vpack.c.b16 %v2810, %v2802
    %v3547 = vpack.c.b16 %v2811, %v2803
    %v3548 = vpack.c.b16 %v2812, %v2804
    %v3549 = vpack.c.b16 %v2821, %v2813
    %v3550 = vpack.c.b16 %v2822, %v2814
    %v3551 = vpack.c.b16 %v2823, %v2815
    %v3552 = vpack.c.b16 %v2824, %v2816
    %v3553 = vpack.c.b16 %v2825, %v2817
    %v3554 = vpack.c.b16 %v2826, %v2818
    %v3555 = vpack.c.b16 %v2827, %v2819
    %v3556 = vpack.c.b16 %v2828, %v2820
    %v3557 = vpack.c.b16 %v2837, %v2829
    %v3558 = vpack.c.b16 %v2838, %v2830
    %v3559 = vpack.c.b16 %v2839, %v2831
    %v3560 = vpack.c.b16 %v2840, %v2832
    %v3561 = vpack.c.b16 %v2841, %v2833
    %v3562 = vpack.c.b16 %v2842, %v2834
    %v3563 = vpack.c.b16 %v2843, %v2835
    %v3564 = vpack.c.b16 %v2844, %v2836
    %v3565 = vpack.c.b16 %v2853, %v2845
    %v3566 = vpack.c.b16 %v2854, %v2846
    %v3567 = vpack.c.b16 %v2855, %v2847
    %v3568 = vpack.c.b16 %v2856, %v2848
    %v3569 = vpack.c.b16 %v2857, %v2849
    %v3570 = vpack.c.b16 %v2858, %v2850
    %v3571 = vpack.c.b16 %v2859, %v2851
    %v3572 = vpack.c.b16 %v2860, %v2852
    %v3573 = vpack.c.b16 %v2869, %v2861
    %v3574 = vpack.c.b16 %v2870, %v2862
    %v3575 = vpack.c.b16 %v2871, %v2863
    %v3576 = vpack.c.b16 %v2872, %v2864
    %v3577 = vpack.c.b16 %v2873, %v2865
    %v3578 = vpack.c.b16 %v2874, %v2866
    %v3579 = vpack.c.b16 %v2875, %v2867
    %v3580 = vpack.c.b16 %v2876, %v2868
    %v3581 = vpack.c.b16 %v2885, %v2877
    %v3582 = vpack.c.b16 %v2886, %v2878
    %v3583 = vpack.c.b16 %v2887, %v2879
    %v3584 = vpack.c.b16 %v2888, %v2880
    %v3585 = vpack.c.b16 %v2889, %v2881
    %v3586 = vpack.c.b16 %v2890, %v2882
    %v3587 = vpack.c.b16 %v2891, %v2883
    %v3588 = vpack.c.b16 %v2892, %v2884
    %v3589 = vpack.c.b16 %v2901, %v2893
    %v3590 = vpack.c.b16 %v2902, %v2894
    %v3591 = vpack.c.b16 %v2903, %v2895
    %v3592 = vpack.c.b16 %v2904, %v2896
    %v3593 = vpack.c.b16 %v2905, %v2897
    %v3594 = vpack.c.b16 %v2906, %v2898
    %v3595 = vpack.c.b16 %v2907, %v2899
    %v3596 = vpack.c.b16 %v2908, %v2900
    %v3597 = vpack.c.b16 %v2917, %v2909
    %v3598 = vpack.c.b16 %v2918, %v2910
    %v3599 = vpack.c.b16 %v2919, %v2911
    %v3600 = vpack.c.b16 %v2920, %v2912
    %v3601 = vpack.c.b16 %v2921, %v2913
    %v3602 = vpack.c.b16 %v2922, %v2914
    %v3603 = vpack.c.b16 %v2923, %v2915
    %v3604 = vpack.c.b16 %v2924, %v2916
    %v3605 = vpack.c.b16 %v2933, %v2925
    %v3606 = vpack.c.b16 %v2934, %v2926
    %v3607 = vpack.c.b16 %v2935, %v2927
    %v3608 = vpack.c.b16 %v2936, %v2928
    %v3609 = vpack.c.b16 %v2937, %v2929
    %v3610 = vpack.c.b16 %v2938, %v2930
    %v3611 = vpack.c.b16 %v2939, %v2931
    %v3612 = vpack.c.b16 %v2940, %v2932
    %v3613 = vpack.c.b16 %v2949, %v2941
    %v3614 = vpack.c.b16 %v2950, %v2942
    %v3615 = vpack.c.b16 %v2951, %v2943
    %v3616 = vpack.c.b16 %v2952, %v2944
    %v3617 = vpack.c.b16 %v2953, %v2945
    %v3618 = vpack.c.b16 %v2954, %v2946
    %v3619 = vpack.c.b16 %v2955, %v2947
    %v3620 = vpack.c.b16 %v2956, %v2948
    %v3621 = vpack.c.b16 %v2965, %v2957
    %v3622 = vpack.c.b16 %v2966, %v2958
    %v3623 = vpack.c.b16 %v2967, %v2959
    %v3624 = vpack.c.b16 %v2968, %v2960
    %v3625 = vpack.c.b16 %v2969, %v2961
    %v3626 = vpack.c.b16 %v2970, %v2962
    %v3627 = vpack.c.b16 %v2971, %v2963
    %v3628 = vpack.c.b16 %v2972, %v2964
    %v3629 = vpack.c.b16 %v2981, %v2973
    %v3630 = vpack.c.b16 %v2982, %v2974
    %v3631 = vpack.c.b16 %v2983, %v2975
    %v3632 = vpack.c.b16 %v2984, %v2976
    %v3633 = vpack.c.b16 %v2985, %v2977
    %v3634 = vpack.c.b16 %v2986, %v2978
    %v3635 = vpack.c.b16 %v2987, %v2979
    %v3636 = vpack.c.b16 %v2988, %v2980
    %v3637 = vpack.c.b16 %v2997, %v2989
    %v3638 = vpack.c.b16 %v2998, %v2990
    %v3639 = vpack.c.b16 %v2999, %v2991
    %v3640 = vpack.c.b16 %v3000, %v2992
    %v3641 = vpack.c.b16 %v3001, %v2993
    %v3642 = vpack.c.b16 %v3002, %v2994
    %v3643 = vpack.c.b16 %v3003, %v2995
    %v3644 = vpack.c.b16 %v3004, %v2996
    %v3645 = vpack.c.b16 %v3013, %v3005
    %v3646 = vpack.c.b16 %v3014, %v3006
    %v3647 = vpack.c.b16 %v3015, %v3007
    %v3648 = vpack.c.b16 %v3016, %v3008
    %v3649 = vpack.c.b16 %v3017, %v3009
    %v3650 = vpack.c.b16 %v3018, %v3010
    %v3651 = vpack.c.b16 %v3019, %v3011
    %v3652 = vpack.c.b16 %v3020, %v3012
    %v3653 = vpack.c.b16 %v3029, %v3021
    %v3654 = vpack.c.b16 %v3030, %v3022
    %v3655 = vpack.c.b16 %v3031, %v3023
    %v3656 = vpack.c.b16 %v3032, %v3024
    %v3657 = vpack.c.b16 %v3033, %v3025
    %v3658 = vpack.c.b16 %v3034, %v3026
    %v3659 = vpack.c.b16 %v3035, %v3027
    %v3660 = vpack.c.b16 %v3036, %v3028
    %v3661 = vpack.c.b16 %v3045, %v3037
    %v3662 = vpack.c.b16 %v3046, %v3038
    %v3663 = vpack.c.b16 %v3047, %v3039
    %v3664 = vpack.c.b16 %v3048, %v3040
    %v3665 = vpack.c.b16 %v3049, %v3041
    %v3666 = vpack.c.b16 %v3050, %v3042
    %v3667 = vpack.c.b16 %v3051, %v3043
    %v3668 = vpack.c.b16 %v3052, %v3044
    %v3669 = vpack.c.b16 %v3061, %v3053
    %v3670 = vpack.c.b16 %v3062, %v3054
    %v3671 = vpack.c.b16 %v3063, %v3055
    %v3672 = vpack.c.b16 %v3064, %v3056
    %v3673 = vpack.c.b16 %v3065, %v3057
    %v3674 = vpack.c.b16 %v3066, %v3058
    %v3675 = vpack.c.b16 %v3067, %v3059
    %v3676 = vpack.c.b16 %v3068, %v3060
    %v3677 = vpack.c.b16 %v3077, %v3069
    %v3678 = vpack.c.b16 %v3078, %v3070
    %v3679 = vpack.c.b16 %v3079, %v3071
    %v3680 = vpack.c.b16 %v3080, %v3072
    %v3681 = vpack.c.b16 %v3081, %v3073
    %v3682 = vpack.c.b16 %v3082, %v3074
    %v3683 = vpack.c.b16 %v3083, %v3075
    %v3684 = vpack.c.b16 %v3084, %v3076
    %v3685 = vpack.c.b16 %v3093, %v3085
    %v3686 = vpack.c.b16 %v3094, %v3086
    %v3687 = vpack.c.b16 %v3095, %v3087
    %v3688 = vpack.c.b16 %v3096, %v3088
    %v3689 = vpack.c.b16 %v3097, %v3089
    %v3690 = vpack.c.b16 %v3098, %v3090
    %v3691 = vpack.c.b16 %v3099, %v3091
    %v3692 = vpack.c.b16 %v3100, %v3092
    %v3693 = vpack.c.b16 %v3109, %v3101
    %v3694 = vpack.c.b16 %v3110, %v3102
    %v3695 = vpack.c.b16 %v3111, %v3103
    %v3696 = vpack.c.b16 %v3112, %v3104
    %v3697 = vpack.c.b16 %v3113, %v3105
    %v3698 = vpack.c.b16 %v3114, %v3106
    %v3699 = vpack.c.b16 %v3115, %v3107
    %v3700 = vpack.c.b16 %v3116, %v3108
    %v3701 = vpack.c.b16 %v3125, %v3117
    %v3702 = vpack.c.b16 %v3126, %v3118
    %v3703 = vpack.c.b16 %v3127, %v3119
    %v3704 = vpack.c.b16 %v3128, %v3120
    %v3705 = vpack.c.b16 %v3129, %v3121
    %v3706 = vpack.c.b16 %v3130, %v3122
    %v3707 = vpack.c.b16 %v3131, %v3123
    %v3708 = vpack.c.b16 %v3132, %v3124
    %v3709 = vpack.c.b16 %v3141, %v3133
    %v3710 = vpack.c.b16 %v3142, %v3134
    %v3711 = vpack.c.b16 %v3143, %v3135
    %v3712 = vpack.c.b16 %v3144, %v3136
    %v3713 = vpack.c.b16 %v3145, %v3137
    %v3714 = vpack.c.b16 %v3146, %v3138
    %v3715 = vpack.c.b16 %v3147, %v3139
    %v3716 = vpack.c.b16 %v3148, %v3140
    %v3717 = vpack.c.b16 %v3157, %v3149
    %v3718 = vpack.c.b16 %v3158, %v3150
    %v3719 = vpack.c.b16 %v3159, %v3151
    %v3720 = vpack.c.b16 %v3160, %v3152
    %v3721 = vpack.c.b16 %v3161, %v3153
    %v3722 = vpack.c.b16 %v3162, %v3154
    %v3723 = vpack.c.b16 %v3163, %v3155
    %v3724 = vpack.c.b16 %v3164, %v3156
    %v3725 = vpack.c.b16 %v3173, %v3165
    %v3726 = vpack.c.b16 %v3174, %v3166
    %v3727 = vpack.c.b16 %v3175, %v3167
    %v3728 = vpack.c.b16 %v3176, %v3168
    %v3729 = vpack.c.b16 %v3177, %v3169
    %v3730 = vpack.c.b16 %v3178, %v3170
    %v3731 = vpack.c.b16 %v3179, %v3171
    %v3732 = vpack.c.b16 %v3180, %v3172
    %v3733 = vpack.c.b16 %v3189, %v3181
    %v3734 = vpack.c.b16 %v3190, %v3182
    %v3735 = vpack.c.b16 %v3191, %v3183
    %v3736 = vpack.c.b16 %v3192, %v3184
    %v3737 = vpack.c.b16 %v3193, %v3185
    %v3738 = vpack.c.b16 %v3194, %v3186
    %v3739 = vpack.c.b16 %v3195, %v3187
    %v3740 = vpack.c.b16 %v3196, %v3188
    %v3741 = vpack.c.b16 %v3205, %v3197
    %v3742 = vpack.c.b16 %v3206, %v3198
    %v3743 = vpack.c.b16 %v3207, %v3199
    %v3744 = vpack.c.b16 %v3208, %v3200
    %v3745 = vpack.c.b16 %v3209, %v3201
    %v3746 = vpack.c.b16 %v3210, %v3202
    %v3747 = vpack.c.b16 %v3211, %v3203
    %v3748 = vpack.c.b16 %v3212, %v3204
    %v3749 = vpack.c.b16 %v3221, %v3213
    %v3750 = vpack.c.b16 %v3222, %v3214
    %v3751 = vpack.c.b16 %v3223, %v3215
    %v3752 = vpack.c.b16 %v3224, %v3216
    %v3753 = vpack.c.b16 %v3225, %v3217
    %v3754 = vpack.c.b16 %v3226, %v3218
    %v3755 = vpack.c.b16 %v3227, %v3219
    %v3756 = vpack.c.b16 %v3228, %v3220
    %v3757 = vpack.c.b16 %v3237, %v3229
    %v3758 = vpack.c.b16 %v3238, %v3230
    %v3759 = vpack.c.b16 %v3239, %v3231
    %v3760 = vpack.c.b16 %v3240, %v3232
    %v3761 = vpack.c.b16 %v3241, %v3233
    %v3762 = vpack.c.b16 %v3242, %v3234
    %v3763 = vpack.c.b16 %v3243, %v3235
    %v3764 = vpack.c.b16 %v3244, %v3236
    %v3765 = vpack.c.b16 %v3253, %v3245
    %v3766 = vpack.c.b16 %v3254, %v3246
    %v3767 = vpack.c.b16 %v3255, %v3247
    %v3768 = vpack.c.b16 %v3256, %v3248
    %v3769 = vpack.c.b16 %v3257, %v3249
    %v3770 = vpack.c.b16 %v3258, %v3250
    %v3771 = vpack.c.b16 %v3259, %v3251
    %v3772 = vpack.c.b16 %v3260, %v3252
    %4285 = vmatprep.subr.bf16.mxu0 %v3318
    %4286 = vmatpush1.bf16.msra.mxu0 %v3317
    %4287 = vmatprep.subr.bf16.mxu0 %v3310
    %4288 = vmatpush1.bf16.msra.mxu0 %v3309
    %4289 = vmatprep.subr.bf16.mxu0 %v3302
    %4290 = vmatpush1.bf16.msra.mxu0 %v3301
    %4291 = vmatprep.subr.bf16.mxu0 %v3294
    %4292 = vmatpush1.bf16.msra.mxu0 %v3293
    %4293 = vmatprep.subr.bf16.mxu0 %v3286
    %4294 = vmatpush1.bf16.msra.mxu0 %v3285
    %4295 = vmatprep.subr.bf16.mxu0 %v3278
    %4296 = vmatpush1.bf16.msra.mxu0 %v3277
    %4297 = vmatprep.subr.bf16.mxu0 %v3270
    %4298 = vmatpush1.bf16.msra.mxu0 %v3269
    %4299 = vmatprep.subr.bf16.mxu0 %v3262
    %4300 = vmatpush1.bf16.msra.mxu0 %v3261
    %4301 = vmatprep.subr.bf16.mxu0 %v3382
    %4302 = vmatpush2.bf16.msra.mxu0 %v3381
    %4303 = vmatprep.subr.bf16.mxu0 %v3374
    %4304 = vmatpush2.bf16.msra.mxu0 %v3373
    %4305 = vmatprep.subr.bf16.mxu0 %v3366
    %4306 = vmatpush2.bf16.msra.mxu0 %v3365
    %4307 = vmatprep.subr.bf16.mxu0 %v3358
    %4308 = vmatpush2.bf16.msra.mxu0 %v3357
    %4309 = vmatprep.subr.bf16.mxu0 %v3350
    %4310 = vmatpush2.bf16.msra.mxu0 %v3349
    %4311 = vmatprep.subr.bf16.mxu0 %v3342
    %4312 = vmatpush2.bf16.msra.mxu0 %v3341
    %4313 = vmatprep.subr.bf16.mxu0 %v3334
    %4314 = vmatpush2.bf16.msra.mxu0 %v3333
    %4315 = vmatprep.subr.bf16.mxu0 %v3326
    %4316 = vmatpush2.bf16.msra.mxu0 %v3325
    %4317 = vmatprep.mubr.bf16.mxu0 %v1164
    %4318 = vmatmul.mubr.bf16.gmra.mxu0 %v1163
    %v4319 = vpop.f32.mrf.mxu0
    %v4320 = vadd.f32 %v1688, %v4319
    %v4321 = vpop.f32.mrf.mxu0
    %v4322 = vadd.f32 %v1692, %v4321
    %v4323 = vpop.f32.mrf.mxu0
    %v4324 = vpop.f32.mrf.mxu0
    %4325 = vdwg.mxu0
    %4326 = vmatprep.subr.bf16.mxu0 %v3446
    %4327 = vmatpush1.bf16.msra.mxu0 %v3445
    %4328 = vmatprep.subr.bf16.mxu0 %v3438
    %4329 = vmatpush1.bf16.msra.mxu0 %v3437
    %4330 = vmatprep.subr.bf16.mxu0 %v3430
    %4331 = vmatpush1.bf16.msra.mxu0 %v3429
    %4332 = vmatprep.subr.bf16.mxu0 %v3422
    %4333 = vmatpush1.bf16.msra.mxu0 %v3421
    %4334 = vmatprep.subr.bf16.mxu0 %v3414
    %4335 = vmatpush1.bf16.msra.mxu0 %v3413
    %4336 = vmatprep.subr.bf16.mxu0 %v3406
    %4337 = vmatpush1.bf16.msra.mxu0 %v3405
    %4338 = vmatprep.subr.bf16.mxu0 %v3398
    %4339 = vmatpush1.bf16.msra.mxu0 %v3397
    %4340 = vmatprep.subr.bf16.mxu0 %v3390
    %4341 = vmatpush1.bf16.msra.mxu0 %v3389
    %4342 = vmatprep.subr.bf16.mxu0 %v3510
    %4343 = vmatpush2.bf16.msra.mxu0 %v3509
    %4344 = vmatprep.subr.bf16.mxu0 %v3502
    %4345 = vmatpush2.bf16.msra.mxu0 %v3501
    %4346 = vmatprep.subr.bf16.mxu0 %v3494
    %4347 = vmatpush2.bf16.msra.mxu0 %v3493
    %4348 = vmatprep.subr.bf16.mxu0 %v3486
    %4349 = vmatpush2.bf16.msra.mxu0 %v3485
    %4350 = vmatprep.subr.bf16.mxu0 %v3478
    %4351 = vmatpush2.bf16.msra.mxu0 %v3477
    %4352 = vmatprep.subr.bf16.mxu0 %v3470
    %4353 = vmatpush2.bf16.msra.mxu0 %v3469
    %4354 = vmatprep.subr.bf16.mxu0 %v3462
    %4355 = vmatpush2.bf16.msra.mxu0 %v3461
    %4356 = vmatprep.subr.bf16.mxu0 %v3454
    %4357 = vmatpush2.bf16.msra.mxu0 %v3453
    %4358 = vmatprep.mubr.bf16.mxu0 %v1166
    %4359 = vmatmul.mubr.bf16.gmra.mxu0 %v1165
    %v4360 = vpop.f32.mrf.mxu0
    %v4361 = vadd.f32 %v4320, %v4360
    %v4362 = vpop.f32.mrf.mxu0
    %v4363 = vadd.f32 %v4322, %v4362
    %v4364 = vpop.f32.mrf.mxu0
    %v4365 = vpop.f32.mrf.mxu0
    %4366 = vdwg.mxu0
    %4367 = vmatprep.subr.bf16.mxu0 %v3574
    %4368 = vmatpush1.bf16.msra.mxu0 %v3573
    %4369 = vmatprep.subr.bf16.mxu0 %v3566
    %4370 = vmatpush1.bf16.msra.mxu0 %v3565
    %4371 = vmatprep.subr.bf16.mxu0 %v3558
    %4372 = vmatpush1.bf16.msra.mxu0 %v3557
    %4373 = vmatprep.subr.bf16.mxu0 %v3550
    %4374 = vmatpush1.bf16.msra.mxu0 %v3549
    %4375 = vmatprep.subr.bf16.mxu0 %v3542
    %4376 = vmatpush1.bf16.msra.mxu0 %v3541
    %4377 = vmatprep.subr.bf16.mxu0 %v3534
    %4378 = vmatpush1.bf16.msra.mxu0 %v3533
    %4379 = vmatprep.subr.bf16.mxu0 %v3526
    %4380 = vmatpush1.bf16.msra.mxu0 %v3525
    %4381 = vmatprep.subr.bf16.mxu0 %v3518
    %4382 = vmatpush1.bf16.msra.mxu0 %v3517
    %4383 = vmatprep.subr.bf16.mxu0 %v3638
    %4384 = vmatpush2.bf16.msra.mxu0 %v3637
    %4385 = vmatprep.subr.bf16.mxu0 %v3630
    %4386 = vmatpush2.bf16.msra.mxu0 %v3629
    %4387 = vmatprep.subr.bf16.mxu0 %v3622
    %4388 = vmatpush2.bf16.msra.mxu0 %v3621
    %4389 = vmatprep.subr.bf16.mxu0 %v3614
    %4390 = vmatpush2.bf16.msra.mxu0 %v3613
    %4391 = vmatprep.subr.bf16.mxu0 %v3606
    %4392 = vmatpush2.bf16.msra.mxu0 %v3605
    %4393 = vmatprep.subr.bf16.mxu0 %v3598
    %4394 = vmatpush2.bf16.msra.mxu0 %v3597
    %4395 = vmatprep.subr.bf16.mxu0 %v3590
    %4396 = vmatpush2.bf16.msra.mxu0 %v3589
    %4397 = vmatprep.subr.bf16.mxu0 %v3582
    %4398 = vmatpush2.bf16.msra.mxu0 %v3581
    %4399 = vmatprep.mubr.bf16.mxu0 %v1168
    %4400 = vmatmul.mubr.bf16.gmra.mxu0 %v1167
    %v4401 = vpop.f32.mrf.mxu0
    %v4402 = vadd.f32 %v4361, %v4401
    %v4403 = vpop.f32.mrf.mxu0
    %v4404 = vadd.f32 %v4363, %v4403
    %v4405 = vpop.f32.mrf.mxu0
    %v4406 = vpop.f32.mrf.mxu0
    %4407 = vdwg.mxu0
    %4408 = vmatprep.subr.bf16.mxu0 %v3702
    %4409 = vmatpush1.bf16.msra.mxu0 %v3701
    %4410 = vmatprep.subr.bf16.mxu0 %v3694
    %4411 = vmatpush1.bf16.msra.mxu0 %v3693
    %4412 = vmatprep.subr.bf16.mxu0 %v3686
    %4413 = vmatpush1.bf16.msra.mxu0 %v3685
    %4414 = vmatprep.subr.bf16.mxu0 %v3678
    %4415 = vmatpush1.bf16.msra.mxu0 %v3677
    %4416 = vmatprep.subr.bf16.mxu0 %v3670
    %4417 = vmatpush1.bf16.msra.mxu0 %v3669
    %4418 = vmatprep.subr.bf16.mxu0 %v3662
    %4419 = vmatpush1.bf16.msra.mxu0 %v3661
    %4420 = vmatprep.subr.bf16.mxu0 %v3654
    %4421 = vmatpush1.bf16.msra.mxu0 %v3653
    %4422 = vmatprep.subr.bf16.mxu0 %v3646
    %4423 = vmatpush1.bf16.msra.mxu0 %v3645
    %4424 = vmatprep.subr.bf16.mxu0 %v3766
    %4425 = vmatpush2.bf16.msra.mxu0 %v3765
    %4426 = vmatprep.subr.bf16.mxu0 %v3758
    %4427 = vmatpush2.bf16.msra.mxu0 %v3757
    %4428 = vmatprep.subr.bf16.mxu0 %v3750
    %4429 = vmatpush2.bf16.msra.mxu0 %v3749
    %4430 = vmatprep.subr.bf16.mxu0 %v3742
    %4431 = vmatpush2.bf16.msra.mxu0 %v3741
    %4432 = vmatprep.subr.bf16.mxu0 %v3734
    %4433 = vmatpush2.bf16.msra.mxu0 %v3733
    %4434 = vmatprep.subr.bf16.mxu0 %v3726
    %4435 = vmatpush2.bf16.msra.mxu0 %v3725
    %4436 = vmatprep.subr.bf16.mxu0 %v3718
    %4437 = vmatpush2.bf16.msra.mxu0 %v3717
    %4438 = vmatprep.subr.bf16.mxu0 %v3710
    %4439 = vmatpush2.bf16.msra.mxu0 %v3709
    %4440 = vmatprep.mubr.bf16.mxu0 %v1170
    %4441 = vmatmul.mubr.bf16.gmra.mxu0 %v1169
    %v4442 = vpop.f32.mrf.mxu0
    %v4443 = vadd.f32 %v4402, %v4442
    %v4444 = vpop.f32.mrf.mxu0
    %v4445 = vadd.f32 %v4404, %v4444
    %v4446 = vpop.f32.mrf.mxu0
    %v4447 = vpop.f32.mrf.mxu0
    %4448 = vdwg.mxu0
    %4449 = vmatprep.subr.bf16.mxu0 %v3320
    %4450 = vmatpush1.bf16.msra.mxu0 %v3319
    %4451 = vmatprep.subr.bf16.mxu0 %v3312
    %4452 = vmatpush1.bf16.msra.mxu0 %v3311
    %4453 = vmatprep.subr.bf16.mxu0 %v3304
    %4454 = vmatpush1.bf16.msra.mxu0 %v3303
    %4455 = vmatprep.subr.bf16.mxu0 %v3296
    %4456 = vmatpush1.bf16.msra.mxu0 %v3295
    %4457 = vmatprep.subr.bf16.mxu0 %v3288
    %4458 = vmatpush1.bf16.msra.mxu0 %v3287
    %4459 = vmatprep.subr.bf16.mxu0 %v3280
    %4460 = vmatpush1.bf16.msra.mxu0 %v3279
    %4461 = vmatprep.subr.bf16.mxu0 %v3272
    %4462 = vmatpush1.bf16.msra.mxu0 %v3271
    %4463 = vmatprep.subr.bf16.mxu0 %v3264
    %4464 = vmatpush1.bf16.msra.mxu0 %v3263
    %4465 = vmatprep.subr.bf16.mxu0 %v3384
    %4466 = vmatpush2.bf16.msra.mxu0 %v3383
    %4467 = vmatprep.subr.bf16.mxu0 %v3376
    %4468 = vmatpush2.bf16.msra.mxu0 %v3375
    %4469 = vmatprep.subr.bf16.mxu0 %v3368
    %4470 = vmatpush2.bf16.msra.mxu0 %v3367
    %4471 = vmatprep.subr.bf16.mxu0 %v3360
    %4472 = vmatpush2.bf16.msra.mxu0 %v3359
    %4473 = vmatprep.subr.bf16.mxu0 %v3352
    %4474 = vmatpush2.bf16.msra.mxu0 %v3351
    %4475 = vmatprep.subr.bf16.mxu0 %v3344
    %4476 = vmatpush2.bf16.msra.mxu0 %v3343
    %4477 = vmatprep.subr.bf16.mxu0 %v3336
    %4478 = vmatpush2.bf16.msra.mxu0 %v3335
    %4479 = vmatprep.subr.bf16.mxu0 %v3328
    %4480 = vmatpush2.bf16.msra.mxu0 %v3327
    %4481 = vmatprep.mubr.bf16.mxu0 %v1164
    %4482 = vmatmul.mubr.bf16.gmra.mxu0 %v1163
    %v4483 = vpop.f32.mrf.mxu0
    %v4484 = vadd.f32 %v1696, %v4483
    %v4485 = vpop.f32.mrf.mxu0
    %v4486 = vadd.f32 %v1700, %v4485
    %v4487 = vpop.f32.mrf.mxu0
    %v4488 = vpop.f32.mrf.mxu0
    %4489 = vdwg.mxu0
    %4490 = vmatprep.subr.bf16.mxu0 %v3448
    %4491 = vmatpush1.bf16.msra.mxu0 %v3447
    %4492 = vmatprep.subr.bf16.mxu0 %v3440
    %4493 = vmatpush1.bf16.msra.mxu0 %v3439
    %4494 = vmatprep.subr.bf16.mxu0 %v3432
    %4495 = vmatpush1.bf16.msra.mxu0 %v3431
    %4496 = vmatprep.subr.bf16.mxu0 %v3424
    %4497 = vmatpush1.bf16.msra.mxu0 %v3423
    %4498 = vmatprep.subr.bf16.mxu0 %v3416
    %4499 = vmatpush1.bf16.msra.mxu0 %v3415
    %4500 = vmatprep.subr.bf16.mxu0 %v3408
    %4501 = vmatpush1.bf16.msra.mxu0 %v3407
    %4502 = vmatprep.subr.bf16.mxu0 %v3400
    %4503 = vmatpush1.bf16.msra.mxu0 %v3399
    %4504 = vmatprep.subr.bf16.mxu0 %v3392
    %4505 = vmatpush1.bf16.msra.mxu0 %v3391
    %4506 = vmatprep.subr.bf16.mxu0 %v3512
    %4507 = vmatpush2.bf16.msra.mxu0 %v3511
    %4508 = vmatprep.subr.bf16.mxu0 %v3504
    %4509 = vmatpush2.bf16.msra.mxu0 %v3503
    %4510 = vmatprep.subr.bf16.mxu0 %v3496
    %4511 = vmatpush2.bf16.msra.mxu0 %v3495
    %4512 = vmatprep.subr.bf16.mxu0 %v3488
    %4513 = vmatpush2.bf16.msra.mxu0 %v3487
    %4514 = vmatprep.subr.bf16.mxu0 %v3480
    %4515 = vmatpush2.bf16.msra.mxu0 %v3479
    %4516 = vmatprep.subr.bf16.mxu0 %v3472
    %4517 = vmatpush2.bf16.msra.mxu0 %v3471
    %4518 = vmatprep.subr.bf16.mxu0 %v3464
    %4519 = vmatpush2.bf16.msra.mxu0 %v3463
    %4520 = vmatprep.subr.bf16.mxu0 %v3456
    %4521 = vmatpush2.bf16.msra.mxu0 %v3455
    %4522 = vmatprep.mubr.bf16.mxu0 %v1166
    %4523 = vmatmul.mubr.bf16.gmra.mxu0 %v1165
    %v4524 = vpop.f32.mrf.mxu0
    %v4525 = vadd.f32 %v4484, %v4524
    %v4526 = vpop.f32.mrf.mxu0
    %v4527 = vadd.f32 %v4486, %v4526
    %v4528 = vpop.f32.mrf.mxu0
    %v4529 = vpop.f32.mrf.mxu0
    %4530 = vdwg.mxu0
    %4531 = vmatprep.subr.bf16.mxu0 %v3576
    %4532 = vmatpush1.bf16.msra.mxu0 %v3575
    %4533 = vmatprep.subr.bf16.mxu0 %v3568
    %4534 = vmatpush1.bf16.msra.mxu0 %v3567
    %4535 = vmatprep.subr.bf16.mxu0 %v3560
    %4536 = vmatpush1.bf16.msra.mxu0 %v3559
    %4537 = vmatprep.subr.bf16.mxu0 %v3552
    %4538 = vmatpush1.bf16.msra.mxu0 %v3551
    %4539 = vmatprep.subr.bf16.mxu0 %v3544
    %4540 = vmatpush1.bf16.msra.mxu0 %v3543
    %4541 = vmatprep.subr.bf16.mxu0 %v3536
    %4542 = vmatpush1.bf16.msra.mxu0 %v3535
    %4543 = vmatprep.subr.bf16.mxu0 %v3528
    %4544 = vmatpush1.bf16.msra.mxu0 %v3527
    %4545 = vmatprep.subr.bf16.mxu0 %v3520
    %4546 = vmatpush1.bf16.msra.mxu0 %v3519
    %4547 = vmatprep.subr.bf16.mxu0 %v3640
    %4548 = vmatpush2.bf16.msra.mxu0 %v3639
    %4549 = vmatprep.subr.bf16.mxu0 %v3632
    %4550 = vmatpush2.bf16.msra.mxu0 %v3631
    %4551 = vmatprep.subr.bf16.mxu0 %v3624
    %4552 = vmatpush2.bf16.msra.mxu0 %v3623
    %4553 = vmatprep.subr.bf16.mxu0 %v3616
    %4554 = vmatpush2.bf16.msra.mxu0 %v3615
    %4555 = vmatprep.subr.bf16.mxu0 %v3608
    %4556 = vmatpush2.bf16.msra.mxu0 %v3607
    %4557 = vmatprep.subr.bf16.mxu0 %v3600
    %4558 = vmatpush2.bf16.msra.mxu0 %v3599
    %4559 = vmatprep.subr.bf16.mxu0 %v3592
    %4560 = vmatpush2.bf16.msra.mxu0 %v3591
    %4561 = vmatprep.subr.bf16.mxu0 %v3584
    %4562 = vmatpush2.bf16.msra.mxu0 %v3583
    %4563 = vmatprep.mubr.bf16.mxu0 %v1168
    %4564 = vmatmul.mubr.bf16.gmra.mxu0 %v1167
    %v4565 = vpop.f32.mrf.mxu0
    %v4566 = vadd.f32 %v4525, %v4565
    %v4567 = vpop.f32.mrf.mxu0
    %v4568 = vadd.f32 %v4527, %v4567
    %v4569 = vpop.f32.mrf.mxu0
    %v4570 = vpop.f32.mrf.mxu0
    %4571 = vdwg.mxu0
    %4572 = vmatprep.subr.bf16.mxu0 %v3704
    %4573 = vmatpush1.bf16.msra.mxu0 %v3703
    %4574 = vmatprep.subr.bf16.mxu0 %v3696
    %4575 = vmatpush1.bf16.msra.mxu0 %v3695
    %4576 = vmatprep.subr.bf16.mxu0 %v3688
    %4577 = vmatpush1.bf16.msra.mxu0 %v3687
    %4578 = vmatprep.subr.bf16.mxu0 %v3680
    %4579 = vmatpush1.bf16.msra.mxu0 %v3679
    %4580 = vmatprep.subr.bf16.mxu0 %v3672
    %4581 = vmatpush1.bf16.msra.mxu0 %v3671
    %4582 = vmatprep.subr.bf16.mxu0 %v3664
    %4583 = vmatpush1.bf16.msra.mxu0 %v3663
    %4584 = vmatprep.subr.bf16.mxu0 %v3656
    %4585 = vmatpush1.bf16.msra.mxu0 %v3655
    %4586 = vmatprep.subr.bf16.mxu0 %v3648
    %4587 = vmatpush1.bf16.msra.mxu0 %v3647
    %4588 = vmatprep.subr.bf16.mxu0 %v3768
    %4589 = vmatpush2.bf16.msra.mxu0 %v3767
    %4590 = vmatprep.subr.bf16.mxu0 %v3760
    %4591 = vmatpush2.bf16.msra.mxu0 %v3759
    %4592 = vmatprep.subr.bf16.mxu0 %v3752
    %4593 = vmatpush2.bf16.msra.mxu0 %v3751
    %4594 = vmatprep.subr.bf16.mxu0 %v3744
    %4595 = vmatpush2.bf16.msra.mxu0 %v3743
    %4596 = vmatprep.subr.bf16.mxu0 %v3736
    %4597 = vmatpush2.bf16.msra.mxu0 %v3735
    %4598 = vmatprep.subr.bf16.mxu0 %v3728
    %4599 = vmatpush2.bf16.msra.mxu0 %v3727
    %4600 = vmatprep.subr.bf16.mxu0 %v3720
    %4601 = vmatpush2.bf16.msra.mxu0 %v3719
    %4602 = vmatprep.subr.bf16.mxu0 %v3712
    %4603 = vmatpush2.bf16.msra.mxu0 %v3711
    %4604 = vmatprep.mubr.bf16.mxu0 %v1170
    %4605 = vmatmul.mubr.bf16.gmra.mxu0 %v1169
    %v4606 = vpop.f32.mrf.mxu0
    %v4607 = vadd.f32 %v4566, %v4606
    %v4608 = vpop.f32.mrf.mxu0
    %v4609 = vadd.f32 %v4568, %v4608
    %v4610 = vpop.f32.mrf.mxu0
    %v4611 = vpop.f32.mrf.mxu0
    %4612 = vdwg.mxu0
    %4613 = vmatprep.subr.bf16.mxu0 %v3322
    %4614 = vmatpush1.bf16.msra.mxu0 %v3321
    %4615 = vmatprep.subr.bf16.mxu0 %v3314
    %4616 = vmatpush1.bf16.msra.mxu0 %v3313
    %4617 = vmatprep.subr.bf16.mxu0 %v3306
    %4618 = vmatpush1.bf16.msra.mxu0 %v3305
    %4619 = vmatprep.subr.bf16.mxu0 %v3298
    %4620 = vmatpush1.bf16.msra.mxu0 %v3297
    %4621 = vmatprep.subr.bf16.mxu0 %v3290
    %4622 = vmatpush1.bf16.msra.mxu0 %v3289
    %4623 = vmatprep.subr.bf16.mxu0 %v3282
    %4624 = vmatpush1.bf16.msra.mxu0 %v3281
    %4625 = vmatprep.subr.bf16.mxu0 %v3274
    %4626 = vmatpush1.bf16.msra.mxu0 %v3273
    %4627 = vmatprep.subr.bf16.mxu0 %v3266
    %4628 = vmatpush1.bf16.msra.mxu0 %v3265
    %4629 = vmatprep.subr.bf16.mxu0 %v3386
    %4630 = vmatpush2.bf16.msra.mxu0 %v3385
    %4631 = vmatprep.subr.bf16.mxu0 %v3378
    %4632 = vmatpush2.bf16.msra.mxu0 %v3377
    %4633 = vmatprep.subr.bf16.mxu0 %v3370
    %4634 = vmatpush2.bf16.msra.mxu0 %v3369
    %4635 = vmatprep.subr.bf16.mxu0 %v3362
    %4636 = vmatpush2.bf16.msra.mxu0 %v3361
    %4637 = vmatprep.subr.bf16.mxu0 %v3354
    %4638 = vmatpush2.bf16.msra.mxu0 %v3353
    %4639 = vmatprep.subr.bf16.mxu0 %v3346
    %4640 = vmatpush2.bf16.msra.mxu0 %v3345
    %4641 = vmatprep.subr.bf16.mxu0 %v3338
    %4642 = vmatpush2.bf16.msra.mxu0 %v3337
    %4643 = vmatprep.subr.bf16.mxu0 %v3330
    %4644 = vmatpush2.bf16.msra.mxu0 %v3329
    %4645 = vmatprep.mubr.bf16.mxu0 %v1164
    %4646 = vmatmul.mubr.bf16.gmra.mxu0 %v1163
    %v4647 = vpop.f32.mrf.mxu0
    %v4648 = vadd.f32 %v1704, %v4647
    %v4649 = vpop.f32.mrf.mxu0
    %v4650 = vadd.f32 %v1708, %v4649
    %v4651 = vpop.f32.mrf.mxu0
    %v4652 = vpop.f32.mrf.mxu0
    %4653 = vdwg.mxu0
    %4654 = vmatprep.subr.bf16.mxu0 %v3450
    %4655 = vmatpush1.bf16.msra.mxu0 %v3449
    %4656 = vmatprep.subr.bf16.mxu0 %v3442
    %4657 = vmatpush1.bf16.msra.mxu0 %v3441
    %4658 = vmatprep.subr.bf16.mxu0 %v3434
    %4659 = vmatpush1.bf16.msra.mxu0 %v3433
    %4660 = vmatprep.subr.bf16.mxu0 %v3426
    %4661 = vmatpush1.bf16.msra.mxu0 %v3425
    %4662 = vmatprep.subr.bf16.mxu0 %v3418
    %4663 = vmatpush1.bf16.msra.mxu0 %v3417
    %4664 = vmatprep.subr.bf16.mxu0 %v3410
    %4665 = vmatpush1.bf16.msra.mxu0 %v3409
    %4666 = vmatprep.subr.bf16.mxu0 %v3402
    %4667 = vmatpush1.bf16.msra.mxu0 %v3401
    %4668 = vmatprep.subr.bf16.mxu0 %v3394
    %4669 = vmatpush1.bf16.msra.mxu0 %v3393
    %4670 = vmatprep.subr.bf16.mxu0 %v3514
    %4671 = vmatpush2.bf16.msra.mxu0 %v3513
    %4672 = vmatprep.subr.bf16.mxu0 %v3506
    %4673 = vmatpush2.bf16.msra.mxu0 %v3505
    %4674 = vmatprep.subr.bf16.mxu0 %v3498
    %4675 = vmatpush2.bf16.msra.mxu0 %v3497
    %4676 = vmatprep.subr.bf16.mxu0 %v3490
    %4677 = vmatpush2.bf16.msra.mxu0 %v3489
    %4678 = vmatprep.subr.bf16.mxu0 %v3482
    %4679 = vmatpush2.bf16.msra.mxu0 %v3481
    %4680 = vmatprep.subr.bf16.mxu0 %v3474
    %4681 = vmatpush2.bf16.msra.mxu0 %v3473
    %4682 = vmatprep.subr.bf16.mxu0 %v3466
    %4683 = vmatpush2.bf16.msra.mxu0 %v3465
    %4684 = vmatprep.subr.bf16.mxu0 %v3458
    %4685 = vmatpush2.bf16.msra.mxu0 %v3457
    %4686 = vmatprep.mubr.bf16.mxu0 %v1166
    %4687 = vmatmul.mubr.bf16.gmra.mxu0 %v1165
    %v4688 = vpop.f32.mrf.mxu0
    %v4689 = vadd.f32 %v4648, %v4688
    %v4690 = vpop.f32.mrf.mxu0
    %v4691 = vadd.f32 %v4650, %v4690
    %v4692 = vpop.f32.mrf.mxu0
    %v4693 = vpop.f32.mrf.mxu0
    %4694 = vdwg.mxu0
    %4695 = vmatprep.subr.bf16.mxu0 %v3578
    %4696 = vmatpush1.bf16.msra.mxu0 %v3577
    %4697 = vmatprep.subr.bf16.mxu0 %v3570
    %4698 = vmatpush1.bf16.msra.mxu0 %v3569
    %4699 = vmatprep.subr.bf16.mxu0 %v3562
    %4700 = vmatpush1.bf16.msra.mxu0 %v3561
    %4701 = vmatprep.subr.bf16.mxu0 %v3554
    %4702 = vmatpush1.bf16.msra.mxu0 %v3553
    %4703 = vmatprep.subr.bf16.mxu0 %v3546
    %4704 = vmatpush1.bf16.msra.mxu0 %v3545
    %4705 = vmatprep.subr.bf16.mxu0 %v3538
    %4706 = vmatpush1.bf16.msra.mxu0 %v3537
    %4707 = vmatprep.subr.bf16.mxu0 %v3530
    %4708 = vmatpush1.bf16.msra.mxu0 %v3529
    %4709 = vmatprep.subr.bf16.mxu0 %v3522
    %4710 = vmatpush1.bf16.msra.mxu0 %v3521
    %4711 = vmatprep.subr.bf16.mxu0 %v3642
    %4712 = vmatpush2.bf16.msra.mxu0 %v3641
    %4713 = vmatprep.subr.bf16.mxu0 %v3634
    %4714 = vmatpush2.bf16.msra.mxu0 %v3633
    %4715 = vmatprep.subr.bf16.mxu0 %v3626
    %4716 = vmatpush2.bf16.msra.mxu0 %v3625
    %4717 = vmatprep.subr.bf16.mxu0 %v3618
    %4718 = vmatpush2.bf16.msra.mxu0 %v3617
    %4719 = vmatprep.subr.bf16.mxu0 %v3610
    %4720 = vmatpush2.bf16.msra.mxu0 %v3609
    %4721 = vmatprep.subr.bf16.mxu0 %v3602
    %4722 = vmatpush2.bf16.msra.mxu0 %v3601
    %4723 = vmatprep.subr.bf16.mxu0 %v3594
    %4724 = vmatpush2.bf16.msra.mxu0 %v3593
    %4725 = vmatprep.subr.bf16.mxu0 %v3586
    %4726 = vmatpush2.bf16.msra.mxu0 %v3585
    %4727 = vmatprep.mubr.bf16.mxu0 %v1168
    %4728 = vmatmul.mubr.bf16.gmra.mxu0 %v1167
    %v4729 = vpop.f32.mrf.mxu0
    %v4730 = vadd.f32 %v4689, %v4729
    %v4731 = vpop.f32.mrf.mxu0
    %v4732 = vadd.f32 %v4691, %v4731
    %v4733 = vpop.f32.mrf.mxu0
    %v4734 = vpop.f32.mrf.mxu0
    %4735 = vdwg.mxu0
    %4736 = vmatprep.subr.bf16.mxu0 %v3706
    %4737 = vmatpush1.bf16.msra.mxu0 %v3705
    %4738 = vmatprep.subr.bf16.mxu0 %v3698
    %4739 = vmatpush1.bf16.msra.mxu0 %v3697
    %4740 = vmatprep.subr.bf16.mxu0 %v3690
    %4741 = vmatpush1.bf16.msra.mxu0 %v3689
    %4742 = vmatprep.subr.bf16.mxu0 %v3682
    %4743 = vmatpush1.bf16.msra.mxu0 %v3681
    %4744 = vmatprep.subr.bf16.mxu0 %v3674
    %4745 = vmatpush1.bf16.msra.mxu0 %v3673
    %4746 = vmatprep.subr.bf16.mxu0 %v3666
    %4747 = vmatpush1.bf16.msra.mxu0 %v3665
    %4748 = vmatprep.subr.bf16.mxu0 %v3658
    %4749 = vmatpush1.bf16.msra.mxu0 %v3657
    %4750 = vmatprep.subr.bf16.mxu0 %v3650
    %4751 = vmatpush1.bf16.msra.mxu0 %v3649
    %4752 = vmatprep.subr.bf16.mxu0 %v3770
    %4753 = vmatpush2.bf16.msra.mxu0 %v3769
    %4754 = vmatprep.subr.bf16.mxu0 %v3762
    %4755 = vmatpush2.bf16.msra.mxu0 %v3761
    %4756 = vmatprep.subr.bf16.mxu0 %v3754
    %4757 = vmatpush2.bf16.msra.mxu0 %v3753
    %4758 = vmatprep.subr.bf16.mxu0 %v3746
    %4759 = vmatpush2.bf16.msra.mxu0 %v3745
    %4760 = vmatprep.subr.bf16.mxu0 %v3738
    %4761 = vmatpush2.bf16.msra.mxu0 %v3737
    %4762 = vmatprep.subr.bf16.mxu0 %v3730
    %4763 = vmatpush2.bf16.msra.mxu0 %v3729
    %4764 = vmatprep.subr.bf16.mxu0 %v3722
    %4765 = vmatpush2.bf16.msra.mxu0 %v3721
    %4766 = vmatprep.subr.bf16.mxu0 %v3714
    %4767 = vmatpush2.bf16.msra.mxu0 %v3713
    %4768 = vmatprep.mubr.bf16.mxu0 %v1170
    %4769 = vmatmul.mubr.bf16.gmra.mxu0 %v1169
    %v4770 = vpop.f32.mrf.mxu0
    %v4771 = vadd.f32 %v4730, %v4770
    %v4772 = vpop.f32.mrf.mxu0
    %v4773 = vadd.f32 %v4732, %v4772
    %v4774 = vpop.f32.mrf.mxu0
    %v4775 = vpop.f32.mrf.mxu0
    %4776 = vdwg.mxu0
    %4777 = vmatprep.subr.bf16.mxu0 %v3324
    %4778 = vmatpush1.bf16.msra.mxu0 %v3323
    %4779 = vmatprep.subr.bf16.mxu0 %v3316
    %4780 = vmatpush1.bf16.msra.mxu0 %v3315
    %4781 = vmatprep.subr.bf16.mxu0 %v3308
    %4782 = vmatpush1.bf16.msra.mxu0 %v3307
    %4783 = vmatprep.subr.bf16.mxu0 %v3300
    %4784 = vmatpush1.bf16.msra.mxu0 %v3299
    %4785 = vmatprep.subr.bf16.mxu0 %v3292
    %4786 = vmatpush1.bf16.msra.mxu0 %v3291
    %4787 = vmatprep.subr.bf16.mxu0 %v3284
    %4788 = vmatpush1.bf16.msra.mxu0 %v3283
    %4789 = vmatprep.subr.bf16.mxu0 %v3276
    %4790 = vmatpush1.bf16.msra.mxu0 %v3275
    %4791 = vmatprep.subr.bf16.mxu0 %v3268
    %4792 = vmatpush1.bf16.msra.mxu0 %v3267
    %4793 = vmatprep.subr.bf16.mxu0 %v3388
    %4794 = vmatpush2.bf16.msra.mxu0 %v3387
    %4795 = vmatprep.subr.bf16.mxu0 %v3380
    %4796 = vmatpush2.bf16.msra.mxu0 %v3379
    %4797 = vmatprep.subr.bf16.mxu0 %v3372
    %4798 = vmatpush2.bf16.msra.mxu0 %v3371
    %4799 = vmatprep.subr.bf16.mxu0 %v3364
    %4800 = vmatpush2.bf16.msra.mxu0 %v3363
    %4801 = vmatprep.subr.bf16.mxu0 %v3356
    %4802 = vmatpush2.bf16.msra.mxu0 %v3355
    %4803 = vmatprep.subr.bf16.mxu0 %v3348
    %4804 = vmatpush2.bf16.msra.mxu0 %v3347
    %4805 = vmatprep.subr.bf16.mxu0 %v3340
    %4806 = vmatpush2.bf16.msra.mxu0 %v3339
    %4807 = vmatprep.subr.bf16.mxu0 %v3332
    %4808 = vmatpush2.bf16.msra.mxu0 %v3331
    %4809 = vmatprep.mubr.bf16.mxu0 %v1164
    %4810 = vmatmul.mubr.bf16.gmra.mxu0 %v1163
    %v4811 = vpop.f32.mrf.mxu0
    %v4812 = vadd.f32 %v1712, %v4811
    %v4813 = vpop.f32.mrf.mxu0
    %v4814 = vadd.f32 %v1716, %v4813
    %v4815 = vpop.f32.mrf.mxu0
    %v4816 = vpop.f32.mrf.mxu0
    %4817 = vdwg.mxu0
    %4818 = vmatprep.subr.bf16.mxu0 %v3452
    %4819 = vmatpush1.bf16.msra.mxu0 %v3451
    %4820 = vmatprep.subr.bf16.mxu0 %v3444
    %4821 = vmatpush1.bf16.msra.mxu0 %v3443
    %4822 = vmatprep.subr.bf16.mxu0 %v3436
    %4823 = vmatpush1.bf16.msra.mxu0 %v3435
    %4824 = vmatprep.subr.bf16.mxu0 %v3428
    %4825 = vmatpush1.bf16.msra.mxu0 %v3427
    %4826 = vmatprep.subr.bf16.mxu0 %v3420
    %4827 = vmatpush1.bf16.msra.mxu0 %v3419
    %4828 = vmatprep.subr.bf16.mxu0 %v3412
    %4829 = vmatpush1.bf16.msra.mxu0 %v3411
    %4830 = vmatprep.subr.bf16.mxu0 %v3404
    %4831 = vmatpush1.bf16.msra.mxu0 %v3403
    %4832 = vmatprep.subr.bf16.mxu0 %v3396
    %4833 = vmatpush1.bf16.msra.mxu0 %v3395
    %4834 = vmatprep.subr.bf16.mxu0 %v3516
    %4835 = vmatpush2.bf16.msra.mxu0 %v3515
    %4836 = vmatprep.subr.bf16.mxu0 %v3508
    %4837 = vmatpush2.bf16.msra.mxu0 %v3507
    %4838 = vmatprep.subr.bf16.mxu0 %v3500
    %4839 = vmatpush2.bf16.msra.mxu0 %v3499
    %4840 = vmatprep.subr.bf16.mxu0 %v3492
    %4841 = vmatpush2.bf16.msra.mxu0 %v3491
    %4842 = vmatprep.subr.bf16.mxu0 %v3484
    %4843 = vmatpush2.bf16.msra.mxu0 %v3483
    %4844 = vmatprep.subr.bf16.mxu0 %v3476
    %4845 = vmatpush2.bf16.msra.mxu0 %v3475
    %4846 = vmatprep.subr.bf16.mxu0 %v3468
    %4847 = vmatpush2.bf16.msra.mxu0 %v3467
    %4848 = vmatprep.subr.bf16.mxu0 %v3460
    %4849 = vmatpush2.bf16.msra.mxu0 %v3459
    %4850 = vmatprep.mubr.bf16.mxu0 %v1166
    %4851 = vmatmul.mubr.bf16.gmra.mxu0 %v1165
    %v4852 = vpop.f32.mrf.mxu0
    %v4853 = vadd.f32 %v4812, %v4852
    %v4854 = vpop.f32.mrf.mxu0
    %v4855 = vadd.f32 %v4814, %v4854
    %v4856 = vpop.f32.mrf.mxu0
    %v4857 = vpop.f32.mrf.mxu0
    %4858 = vdwg.mxu0
    %4859 = vmatprep.subr.bf16.mxu0 %v3580
    %4860 = vmatpush1.bf16.msra.mxu0 %v3579
    %4861 = vmatprep.subr.bf16.mxu0 %v3572
    %4862 = vmatpush1.bf16.msra.mxu0 %v3571
    %4863 = vmatprep.subr.bf16.mxu0 %v3564
    %4864 = vmatpush1.bf16.msra.mxu0 %v3563
    %4865 = vmatprep.subr.bf16.mxu0 %v3556
    %4866 = vmatpush1.bf16.msra.mxu0 %v3555
    %4867 = vmatprep.subr.bf16.mxu0 %v3548
    %4868 = vmatpush1.bf16.msra.mxu0 %v3547
    %4869 = vmatprep.subr.bf16.mxu0 %v3540
    %4870 = vmatpush1.bf16.msra.mxu0 %v3539
    %4871 = vmatprep.subr.bf16.mxu0 %v3532
    %4872 = vmatpush1.bf16.msra.mxu0 %v3531
    %4873 = vmatprep.subr.bf16.mxu0 %v3524
    %4874 = vmatpush1.bf16.msra.mxu0 %v3523
    %4875 = vmatprep.subr.bf16.mxu0 %v3644
    %4876 = vmatpush2.bf16.msra.mxu0 %v3643
    %4877 = vmatprep.subr.bf16.mxu0 %v3636
    %4878 = vmatpush2.bf16.msra.mxu0 %v3635
    %4879 = vmatprep.subr.bf16.mxu0 %v3628
    %4880 = vmatpush2.bf16.msra.mxu0 %v3627
    %4881 = vmatprep.subr.bf16.mxu0 %v3620
    %4882 = vmatpush2.bf16.msra.mxu0 %v3619
    %4883 = vmatprep.subr.bf16.mxu0 %v3612
    %4884 = vmatpush2.bf16.msra.mxu0 %v3611
    %4885 = vmatprep.subr.bf16.mxu0 %v3604
    %4886 = vmatpush2.bf16.msra.mxu0 %v3603
    %4887 = vmatprep.subr.bf16.mxu0 %v3596
    %4888 = vmatpush2.bf16.msra.mxu0 %v3595
    %4889 = vmatprep.subr.bf16.mxu0 %v3588
    %4890 = vmatpush2.bf16.msra.mxu0 %v3587
    %4891 = vmatprep.mubr.bf16.mxu0 %v1168
    %4892 = vmatmul.mubr.bf16.gmra.mxu0 %v1167
    %v4893 = vpop.f32.mrf.mxu0
    %v4894 = vadd.f32 %v4853, %v4893
    %v4895 = vpop.f32.mrf.mxu0
    %v4896 = vadd.f32 %v4855, %v4895
    %v4897 = vpop.f32.mrf.mxu0
    %v4898 = vpop.f32.mrf.mxu0
    %4899 = vdwg.mxu0
    %4900 = vmatprep.subr.bf16.mxu0 %v3708
    %4901 = vmatpush1.bf16.msra.mxu0 %v3707
    %4902 = vmatprep.subr.bf16.mxu0 %v3700
    %4903 = vmatpush1.bf16.msra.mxu0 %v3699
    %4904 = vmatprep.subr.bf16.mxu0 %v3692
    %4905 = vmatpush1.bf16.msra.mxu0 %v3691
    %4906 = vmatprep.subr.bf16.mxu0 %v3684
    %4907 = vmatpush1.bf16.msra.mxu0 %v3683
    %4908 = vmatprep.subr.bf16.mxu0 %v3676
    %4909 = vmatpush1.bf16.msra.mxu0 %v3675
    %4910 = vmatprep.subr.bf16.mxu0 %v3668
    %4911 = vmatpush1.bf16.msra.mxu0 %v3667
    %4912 = vmatprep.subr.bf16.mxu0 %v3660
    %4913 = vmatpush1.bf16.msra.mxu0 %v3659
    %4914 = vmatprep.subr.bf16.mxu0 %v3652
    %4915 = vmatpush1.bf16.msra.mxu0 %v3651
    %4916 = vmatprep.subr.bf16.mxu0 %v3772
    %4917 = vmatpush2.bf16.msra.mxu0 %v3771
    %4918 = vmatprep.subr.bf16.mxu0 %v3764
    %4919 = vmatpush2.bf16.msra.mxu0 %v3763
    %4920 = vmatprep.subr.bf16.mxu0 %v3756
    %4921 = vmatpush2.bf16.msra.mxu0 %v3755
    %4922 = vmatprep.subr.bf16.mxu0 %v3748
    %4923 = vmatpush2.bf16.msra.mxu0 %v3747
    %4924 = vmatprep.subr.bf16.mxu0 %v3740
    %4925 = vmatpush2.bf16.msra.mxu0 %v3739
    %4926 = vmatprep.subr.bf16.mxu0 %v3732
    %4927 = vmatpush2.bf16.msra.mxu0 %v3731
    %4928 = vmatprep.subr.bf16.mxu0 %v3724
    %4929 = vmatpush2.bf16.msra.mxu0 %v3723
    %4930 = vmatprep.subr.bf16.mxu0 %v3716
    %4931 = vmatpush2.bf16.msra.mxu0 %v3715
    %4932 = vmatprep.mubr.bf16.mxu0 %v1170
    %4933 = vmatmul.mubr.bf16.gmra.mxu0 %v1169
    %v4934 = vpop.f32.mrf.mxu0
    %v4935 = vadd.f32 %v4894, %v4934
    %v4936 = vpop.f32.mrf.mxu0
    %v4937 = vadd.f32 %v4896, %v4936
    %v4938 = vpop.f32.mrf.mxu0
    %v4939 = vpop.f32.mrf.mxu0
    %4940 = vdwg.mxu0
    %v4941 = vmax.f32 %v4443, 0.0
    %v4942 = vmax.f32 %v4445, 0.0
    %v4943 = vmax.f32 %v4607, 0.0
    %v4944 = vmax.f32 %v4609, 0.0
    %v4945 = vmax.f32 %v4771, 0.0
    %v4946 = vmax.f32 %v4773, 0.0
    %v4947 = vmax.f32 %v4935, 0.0
    %v4948 = vmax.f32 %v4937, 0.0
    %v4949 = vld [vmem:[%s3] sm:$0xff]
    %v4950 = vld [vmem:[%s3 + $0x8] sm:$0xff]
    %vm4951 = vcmp.ge.f32.partialorder %v4949, 0.1
    %vm4952 = vcmp.ge.f32.partialorder %v4950, 0.1
    %v4953 = vmul.f32 %v4941, 1.1111112
    %v4954 = vmul.f32 %v4942, 1.1111112
    %v4955 = vmul.f32 %v4943, 1.1111112
    %v4956 = vmul.f32 %v4944, 1.1111112
    %v4957 = vmul.f32 %v4945, 1.1111112
    %v4958 = vmul.f32 %v4946, 1.1111112
    %v4959 = vmul.f32 %v4947, 1.1111112
    %v4960 = vmul.f32 %v4948, 1.1111112
    %v4969 = vcombine.low %v4953, %v4954
    %v4970 = vcombine.low %v4955, %v4956
    %v4972 = vunpack.c.l.s4 1983009808
    %v4973 = vunpack.c.0.s8 %v4972
    %v4974 = vlaneseq
    %v4975 = vshrl.u32 %v4974, 7
    %v4976 = vsub.s32 %v4973, %v4975
    %v4977 = vrot.slane %v4969, %v4976
    %v4979 = vunpack.c.l.s4 1983009808
    %v4980 = vunpack.c.0.s8 %v4979
    %v4981 = vlaneseq
    %v4982 = vshrl.u32 %v4981, 7
    %v4983 = vsub.s32 %v4980, %v4982
    %v4984 = vrot.slane %v4970, %v4983
    %v4985 = vcombine.low %v4977, %v4984
    %v4986 = vcombine.low %v4957, %v4958
    %v4987 = vcombine.low %v4959, %v4960
    %v4989 = vunpack.c.l.s4 1983009808
    %v4990 = vunpack.c.0.s8 %v4989
    %v4991 = vlaneseq
    %v4992 = vshrl.u32 %v4991, 7
    %v4993 = vsub.s32 %v4990, %v4992
    %v4994 = vrot.slane %v4986, %v4993
    %v4996 = vunpack.c.l.s4 1983009808
    %v4997 = vunpack.c.0.s8 %v4996
    %v4998 = vlaneseq
    %v4999 = vshrl.u32 %v4998, 7
    %v5000 = vsub.s32 %v4997, %v4999
    %v5001 = vrot.slane %v4987, %v5000
    %v5002 = vcombine.low %v4994, %v5001
    %v5005 = vsel %vm4951, %v4985, 0.0
    %v5006 = vsel %vm4952, %v5002, 0.0
    %v5009 = vcombine.high %v5005, %v5005
    %v5011 = vunpack.c.l.s4 1983009808
    %v5012 = vunpack.c.0.s8 %v5011
    %v5013 = vlaneseq
    %v5014 = vshrl.u32 %v5013, 7
    %v5015 = vsub.s32 %v5012, %v5014
    %v5016 = vrot.slane %v5005, %v5015
    %v5018 = vunpack.c.l.s4 1983009808
    %v5019 = vunpack.c.0.s8 %v5018
    %v5020 = vlaneseq
    %v5021 = vshrl.u32 %v5020, 7
    %v5022 = vsub.s32 %v5019, %v5021
    %v5023 = vrot.slane %v5009, %v5022
    %v5024 = vcombine.high %v5016, %v5016
    %v5025 = vcombine.high %v5023, %v5023
    %v5026 = vcombine.high %v5006, %v5006
    %v5028 = vunpack.c.l.s4 1983009808
    %v5029 = vunpack.c.0.s8 %v5028
    %v5030 = vlaneseq
    %v5031 = vshrl.u32 %v5030, 7
    %v5032 = vsub.s32 %v5029, %v5031
    %v5033 = vrot.slane %v5006, %v5032
    %v5035 = vunpack.c.l.s4 1983009808
    %v5036 = vunpack.c.0.s8 %v5035
    %v5037 = vlaneseq
    %v5038 = vshrl.u32 %v5037, 7
    %v5039 = vsub.s32 %v5036, %v5038
    %v5040 = vrot.slane %v5026, %v5039
    %v5041 = vcombine.high %v5033, %v5033
    %v5042 = vcombine.high %v5040, %v5040
    %v5051 = vpack.c.bf16 %v5016, %v5016
    %v5052 = vpack.c.bf16 %v5024, %v5024
    %v5053 = vpack.c.bf16 %v5023, %v5023
    %v5054 = vpack.c.bf16 %v5025, %v5025
    %v5055 = vpack.c.bf16 %v5033, %v5033
    %v5056 = vpack.c.bf16 %v5041, %v5041
    %v5057 = vpack.c.bf16 %v5040, %v5040
    %v5058 = vpack.c.bf16 %v5042, %v5042
    %v5059 = vld [vmem:[#allocation7] sm:$0xff]
    %v5060 = vld [vmem:[#allocation7 + $0x8] sm:$0xff]
    %v5061 = vld [vmem:[#allocation7 + $0x10] sm:$0xff]
    %v5062 = vld [vmem:[#allocation7 + $0x18] sm:$0xff]
    %v5063 = vld [vmem:[#allocation7 + $0x20] sm:$0xff]
    %v5064 = vld [vmem:[#allocation7 + $0x28] sm:$0xff]
    %v5065 = vld [vmem:[#allocation7 + $0x30] sm:$0xff]
    %v5066 = vld [vmem:[#allocation7 + $0x38] sm:$0xff]
    %v5067 = vld [vmem:[#allocation7 + $0x40] sm:$0xff]
    %v5068 = vld [vmem:[#allocation7 + $0x48] sm:$0xff]
    %v5069 = vld [vmem:[#allocation7 + $0x50] sm:$0xff]
    %v5070 = vld [vmem:[#allocation7 + $0x58] sm:$0xff]
    %v5071 = vld [vmem:[#allocation7 + $0x60] sm:$0xff]
    %v5072 = vld [vmem:[#allocation7 + $0x68] sm:$0xff]
    %v5073 = vld [vmem:[#allocation7 + $0x70] sm:$0xff]
    %v5074 = vld [vmem:[#allocation7 + $0x78] sm:$0xff]
    %v5075 = vld [vmem:[#allocation7 + $0x80] sm:$0xff]
    %v5076 = vld [vmem:[#allocation7 + $0x88] sm:$0xff]
    %v5077 = vld [vmem:[#allocation7 + $0x90] sm:$0xff]
    %v5078 = vld [vmem:[#allocation7 + $0x98] sm:$0xff]
    %v5079 = vld [vmem:[#allocation7 + $0xa0] sm:$0xff]
    %v5080 = vld [vmem:[#allocation7 + $0xa8] sm:$0xff]
    %v5081 = vld [vmem:[#allocation7 + $0xb0] sm:$0xff]
    %v5082 = vld [vmem:[#allocation7 + $0xb8] sm:$0xff]
    %v5083 = vld [vmem:[#allocation7 + $0xc0] sm:$0xff]
    %v5084 = vld [vmem:[#allocation7 + $0xc8] sm:$0xff]
    %v5085 = vld [vmem:[#allocation7 + $0xd0] sm:$0xff]
    %v5086 = vld [vmem:[#allocation7 + $0xd8] sm:$0xff]
    %v5087 = vld [vmem:[#allocation7 + $0xe0] sm:$0xff]
    %v5088 = vld [vmem:[#allocation7 + $0xe8] sm:$0xff]
    %v5089 = vld [vmem:[#allocation7 + $0xf0] sm:$0xff]
    %v5090 = vld [vmem:[#allocation7 + $0xf8] sm:$0xff]
    %v5091 = vld [vmem:[#allocation7 + $0x100] sm:$0xff]
    %v5092 = vld [vmem:[#allocation7 + $0x108] sm:$0xff]
    %v5093 = vld [vmem:[#allocation7 + $0x110] sm:$0xff]
    %v5094 = vld [vmem:[#allocation7 + $0x118] sm:$0xff]
    %v5095 = vld [vmem:[#allocation7 + $0x120] sm:$0xff]
    %v5096 = vld [vmem:[#allocation7 + $0x128] sm:$0xff]
    %v5097 = vld [vmem:[#allocation7 + $0x130] sm:$0xff]
    %v5098 = vld [vmem:[#allocation7 + $0x138] sm:$0xff]
    %v5099 = vld [vmem:[#allocation7 + $0x140] sm:$0xff]
    %v5100 = vld [vmem:[#allocation7 + $0x148] sm:$0xff]
    %v5101 = vld [vmem:[#allocation7 + $0x150] sm:$0xff]
    %v5102 = vld [vmem:[#allocation7 + $0x158] sm:$0xff]
    %v5103 = vld [vmem:[#allocation7 + $0x160] sm:$0xff]
    %v5104 = vld [vmem:[#allocation7 + $0x168] sm:$0xff]
    %v5105 = vld [vmem:[#allocation7 + $0x170] sm:$0xff]
    %v5106 = vld [vmem:[#allocation7 + $0x178] sm:$0xff]
    %v5107 = vld [vmem:[#allocation7 + $0x180] sm:$0xff]
    %v5108 = vld [vmem:[#allocation7 + $0x188] sm:$0xff]
    %v5109 = vld [vmem:[#allocation7 + $0x190] sm:$0xff]
    %v5110 = vld [vmem:[#allocation7 + $0x198] sm:$0xff]
    %v5111 = vld [vmem:[#allocation7 + $0x1a0] sm:$0xff]
    %v5112 = vld [vmem:[#allocation7 + $0x1a8] sm:$0xff]
    %v5113 = vld [vmem:[#allocation7 + $0x1b0] sm:$0xff]
    %v5114 = vld [vmem:[#allocation7 + $0x1b8] sm:$0xff]
    %v5115 = vld [vmem:[#allocation7 + $0x1c0] sm:$0xff]
    %v5116 = vld [vmem:[#allocation7 + $0x1c8] sm:$0xff]
    %v5117 = vld [vmem:[#allocation7 + $0x1d0] sm:$0xff]
    %v5118 = vld [vmem:[#allocation7 + $0x1d8] sm:$0xff]
    %v5119 = vld [vmem:[#allocation7 + $0x1e0] sm:$0xff]
    %v5120 = vld [vmem:[#allocation7 + $0x1e8] sm:$0xff]
    %v5121 = vld [vmem:[#allocation7 + $0x1f0] sm:$0xff]
    %v5122 = vld [vmem:[#allocation7 + $0x1f8] sm:$0xff]
    %v5123 = vld [vmem:[#allocation7 + $0x200] sm:$0xff]
    %v5124 = vld [vmem:[#allocation7 + $0x208] sm:$0xff]
    %v5125 = vld [vmem:[#allocation7 + $0x210] sm:$0xff]
    %v5126 = vld [vmem:[#allocation7 + $0x218] sm:$0xff]
    %v5127 = vld [vmem:[#allocation7 + $0x220] sm:$0xff]
    %v5128 = vld [vmem:[#allocation7 + $0x228] sm:$0xff]
    %v5129 = vld [vmem:[#allocation7 + $0x230] sm:$0xff]
    %v5130 = vld [vmem:[#allocation7 + $0x238] sm:$0xff]
    %v5131 = vld [vmem:[#allocation7 + $0x240] sm:$0xff]
    %v5132 = vld [vmem:[#allocation7 + $0x248] sm:$0xff]
    %v5133 = vld [vmem:[#allocation7 + $0x250] sm:$0xff]
    %v5134 = vld [vmem:[#allocation7 + $0x258] sm:$0xff]
    %v5135 = vld [vmem:[#allocation7 + $0x260] sm:$0xff]
    %v5136 = vld [vmem:[#allocation7 + $0x268] sm:$0xff]
    %v5137 = vld [vmem:[#allocation7 + $0x270] sm:$0xff]
    %v5138 = vld [vmem:[#allocation7 + $0x278] sm:$0xff]
    %v5139 = vld [vmem:[#allocation7 + $0x280] sm:$0xff]
    %v5140 = vld [vmem:[#allocation7 + $0x288] sm:$0xff]
    %v5141 = vld [vmem:[#allocation7 + $0x290] sm:$0xff]
    %v5142 = vld [vmem:[#allocation7 + $0x298] sm:$0xff]
    %v5143 = vld [vmem:[#allocation7 + $0x2a0] sm:$0xff]
    %v5144 = vld [vmem:[#allocation7 + $0x2a8] sm:$0xff]
    %v5145 = vld [vmem:[#allocation7 + $0x2b0] sm:$0xff]
    %v5146 = vld [vmem:[#allocation7 + $0x2b8] sm:$0xff]
    %v5147 = vld [vmem:[#allocation7 + $0x2c0] sm:$0xff]
    %v5148 = vld [vmem:[#allocation7 + $0x2c8] sm:$0xff]
    %v5149 = vld [vmem:[#allocation7 + $0x2d0] sm:$0xff]
    %v5150 = vld [vmem:[#allocation7 + $0x2d8] sm:$0xff]
    %v5151 = vld [vmem:[#allocation7 + $0x2e0] sm:$0xff]
    %v5152 = vld [vmem:[#allocation7 + $0x2e8] sm:$0xff]
    %v5153 = vld [vmem:[#allocation7 + $0x2f0] sm:$0xff]
    %v5154 = vld [vmem:[#allocation7 + $0x2f8] sm:$0xff]
    %v5155 = vld [vmem:[#allocation7 + $0x300] sm:$0xff]
    %v5156 = vld [vmem:[#allocation7 + $0x308] sm:$0xff]
    %v5157 = vld [vmem:[#allocation7 + $0x310] sm:$0xff]
    %v5158 = vld [vmem:[#allocation7 + $0x318] sm:$0xff]
    %v5159 = vld [vmem:[#allocation7 + $0x320] sm:$0xff]
    %v5160 = vld [vmem:[#allocation7 + $0x328] sm:$0xff]
    %v5161 = vld [vmem:[#allocation7 + $0x330] sm:$0xff]
    %v5162 = vld [vmem:[#allocation7 + $0x338] sm:$0xff]
    %v5163 = vld [vmem:[#allocation7 + $0x340] sm:$0xff]
    %v5164 = vld [vmem:[#allocation7 + $0x348] sm:$0xff]
    %v5165 = vld [vmem:[#allocation7 + $0x350] sm:$0xff]
    %v5166 = vld [vmem:[#allocation7 + $0x358] sm:$0xff]
    %v5167 = vld [vmem:[#allocation7 + $0x360] sm:$0xff]
    %v5168 = vld [vmem:[#allocation7 + $0x368] sm:$0xff]
    %v5169 = vld [vmem:[#allocation7 + $0x370] sm:$0xff]
    %v5170 = vld [vmem:[#allocation7 + $0x378] sm:$0xff]
    %v5171 = vld [vmem:[#allocation7 + $0x380] sm:$0xff]
    %v5172 = vld [vmem:[#allocation7 + $0x388] sm:$0xff]
    %v5173 = vld [vmem:[#allocation7 + $0x390] sm:$0xff]
    %v5174 = vld [vmem:[#allocation7 + $0x398] sm:$0xff]
    %v5175 = vld [vmem:[#allocation7 + $0x3a0] sm:$0xff]
    %v5176 = vld [vmem:[#allocation7 + $0x3a8] sm:$0xff]
    %v5177 = vld [vmem:[#allocation7 + $0x3b0] sm:$0xff]
    %v5178 = vld [vmem:[#allocation7 + $0x3b8] sm:$0xff]
    %v5179 = vld [vmem:[#allocation7 + $0x3c0] sm:$0xff]
    %v5180 = vld [vmem:[#allocation7 + $0x3c8] sm:$0xff]
    %v5181 = vld [vmem:[#allocation7 + $0x3d0] sm:$0xff]
    %v5182 = vld [vmem:[#allocation7 + $0x3d8] sm:$0xff]
    %v5183 = vld [vmem:[#allocation7 + $0x3e0] sm:$0xff]
    %v5184 = vld [vmem:[#allocation7 + $0x3e8] sm:$0xff]
    %v5185 = vld [vmem:[#allocation7 + $0x3f0] sm:$0xff]
    %v5186 = vld [vmem:[#allocation7 + $0x3f8] sm:$0xff]
    %v5187 = vld [vmem:[#allocation7 + $0x400] sm:$0xff]
    %v5188 = vld [vmem:[#allocation7 + $0x408] sm:$0xff]
    %v5189 = vld [vmem:[#allocation7 + $0x410] sm:$0xff]
    %v5190 = vld [vmem:[#allocation7 + $0x418] sm:$0xff]
    %v5191 = vld [vmem:[#allocation7 + $0x420] sm:$0xff]
    %v5192 = vld [vmem:[#allocation7 + $0x428] sm:$0xff]
    %v5193 = vld [vmem:[#allocation7 + $0x430] sm:$0xff]
    %v5194 = vld [vmem:[#allocation7 + $0x438] sm:$0xff]
    %v5195 = vld [vmem:[#allocation7 + $0x440] sm:$0xff]
    %v5196 = vld [vmem:[#allocation7 + $0x448] sm:$0xff]
    %v5197 = vld [vmem:[#allocation7 + $0x450] sm:$0xff]
    %v5198 = vld [vmem:[#allocation7 + $0x458] sm:$0xff]
    %v5199 = vld [vmem:[#allocation7 + $0x460] sm:$0xff]
    %v5200 = vld [vmem:[#allocation7 + $0x468] sm:$0xff]
    %v5201 = vld [vmem:[#allocation7 + $0x470] sm:$0xff]
    %v5202 = vld [vmem:[#allocation7 + $0x478] sm:$0xff]
    %v5203 = vld [vmem:[#allocation7 + $0x480] sm:$0xff]
    %v5204 = vld [vmem:[#allocation7 + $0x488] sm:$0xff]
    %v5205 = vld [vmem:[#allocation7 + $0x490] sm:$0xff]
    %v5206 = vld [vmem:[#allocation7 + $0x498] sm:$0xff]
    %v5207 = vld [vmem:[#allocation7 + $0x4a0] sm:$0xff]
    %v5208 = vld [vmem:[#allocation7 + $0x4a8] sm:$0xff]
    %v5209 = vld [vmem:[#allocation7 + $0x4b0] sm:$0xff]
    %v5210 = vld [vmem:[#allocation7 + $0x4b8] sm:$0xff]
    %v5211 = vld [vmem:[#allocation7 + $0x4c0] sm:$0xff]
    %v5212 = vld [vmem:[#allocation7 + $0x4c8] sm:$0xff]
    %v5213 = vld [vmem:[#allocation7 + $0x4d0] sm:$0xff]
    %v5214 = vld [vmem:[#allocation7 + $0x4d8] sm:$0xff]
    %v5215 = vld [vmem:[#allocation7 + $0x4e0] sm:$0xff]
    %v5216 = vld [vmem:[#allocation7 + $0x4e8] sm:$0xff]
    %v5217 = vld [vmem:[#allocation7 + $0x4f0] sm:$0xff]
    %v5218 = vld [vmem:[#allocation7 + $0x4f8] sm:$0xff]
    %v5219 = vld [vmem:[#allocation7 + $0x500] sm:$0xff]
    %v5220 = vld [vmem:[#allocation7 + $0x508] sm:$0xff]
    %v5221 = vld [vmem:[#allocation7 + $0x510] sm:$0xff]
    %v5222 = vld [vmem:[#allocation7 + $0x518] sm:$0xff]
    %v5223 = vld [vmem:[#allocation7 + $0x520] sm:$0xff]
    %v5224 = vld [vmem:[#allocation7 + $0x528] sm:$0xff]
    %v5225 = vld [vmem:[#allocation7 + $0x530] sm:$0xff]
    %v5226 = vld [vmem:[#allocation7 + $0x538] sm:$0xff]
    %v5227 = vld [vmem:[#allocation7 + $0x540] sm:$0xff]
    %v5228 = vld [vmem:[#allocation7 + $0x548] sm:$0xff]
    %v5229 = vld [vmem:[#allocation7 + $0x550] sm:$0xff]
    %v5230 = vld [vmem:[#allocation7 + $0x558] sm:$0xff]
    %v5231 = vld [vmem:[#allocation7 + $0x560] sm:$0xff]
    %v5232 = vld [vmem:[#allocation7 + $0x568] sm:$0xff]
    %v5233 = vld [vmem:[#allocation7 + $0x570] sm:$0xff]
    %v5234 = vld [vmem:[#allocation7 + $0x578] sm:$0xff]
    %v5235 = vld [vmem:[#allocation7 + $0x580] sm:$0xff]
    %v5236 = vld [vmem:[#allocation7 + $0x588] sm:$0xff]
    %v5237 = vld [vmem:[#allocation7 + $0x590] sm:$0xff]
    %v5238 = vld [vmem:[#allocation7 + $0x598] sm:$0xff]
    %v5239 = vld [vmem:[#allocation7 + $0x5a0] sm:$0xff]
    %v5240 = vld [vmem:[#allocation7 + $0x5a8] sm:$0xff]
    %v5241 = vld [vmem:[#allocation7 + $0x5b0] sm:$0xff]
    %v5242 = vld [vmem:[#allocation7 + $0x5b8] sm:$0xff]
    %v5243 = vld [vmem:[#allocation7 + $0x5c0] sm:$0xff]
    %v5244 = vld [vmem:[#allocation7 + $0x5c8] sm:$0xff]
    %v5245 = vld [vmem:[#allocation7 + $0x5d0] sm:$0xff]
    %v5246 = vld [vmem:[#allocation7 + $0x5d8] sm:$0xff]
    %v5247 = vld [vmem:[#allocation7 + $0x5e0] sm:$0xff]
    %v5248 = vld [vmem:[#allocation7 + $0x5e8] sm:$0xff]
    %v5249 = vld [vmem:[#allocation7 + $0x5f0] sm:$0xff]
    %v5250 = vld [vmem:[#allocation7 + $0x5f8] sm:$0xff]
    %v5251 = vld [vmem:[#allocation7 + $0x600] sm:$0xff]
    %v5252 = vld [vmem:[#allocation7 + $0x608] sm:$0xff]
    %v5253 = vld [vmem:[#allocation7 + $0x610] sm:$0xff]
    %v5254 = vld [vmem:[#allocation7 + $0x618] sm:$0xff]
    %v5255 = vld [vmem:[#allocation7 + $0x620] sm:$0xff]
    %v5256 = vld [vmem:[#allocation7 + $0x628] sm:$0xff]
    %v5257 = vld [vmem:[#allocation7 + $0x630] sm:$0xff]
    %v5258 = vld [vmem:[#allocation7 + $0x638] sm:$0xff]
    %v5259 = vld [vmem:[#allocation7 + $0x640] sm:$0xff]
    %v5260 = vld [vmem:[#allocation7 + $0x648] sm:$0xff]
    %v5261 = vld [vmem:[#allocation7 + $0x650] sm:$0xff]
    %v5262 = vld [vmem:[#allocation7 + $0x658] sm:$0xff]
    %v5263 = vld [vmem:[#allocation7 + $0x660] sm:$0xff]
    %v5264 = vld [vmem:[#allocation7 + $0x668] sm:$0xff]
    %v5265 = vld [vmem:[#allocation7 + $0x670] sm:$0xff]
    %v5266 = vld [vmem:[#allocation7 + $0x678] sm:$0xff]
    %v5267 = vld [vmem:[#allocation7 + $0x680] sm:$0xff]
    %v5268 = vld [vmem:[#allocation7 + $0x688] sm:$0xff]
    %v5269 = vld [vmem:[#allocation7 + $0x690] sm:$0xff]
    %v5270 = vld [vmem:[#allocation7 + $0x698] sm:$0xff]
    %v5271 = vld [vmem:[#allocation7 + $0x6a0] sm:$0xff]
    %v5272 = vld [vmem:[#allocation7 + $0x6a8] sm:$0xff]
    %v5273 = vld [vmem:[#allocation7 + $0x6b0] sm:$0xff]
    %v5274 = vld [vmem:[#allocation7 + $0x6b8] sm:$0xff]
    %v5275 = vld [vmem:[#allocation7 + $0x6c0] sm:$0xff]
    %v5276 = vld [vmem:[#allocation7 + $0x6c8] sm:$0xff]
    %v5277 = vld [vmem:[#allocation7 + $0x6d0] sm:$0xff]
    %v5278 = vld [vmem:[#allocation7 + $0x6d8] sm:$0xff]
    %v5279 = vld [vmem:[#allocation7 + $0x6e0] sm:$0xff]
    %v5280 = vld [vmem:[#allocation7 + $0x6e8] sm:$0xff]
    %v5281 = vld [vmem:[#allocation7 + $0x6f0] sm:$0xff]
    %v5282 = vld [vmem:[#allocation7 + $0x6f8] sm:$0xff]
    %v5283 = vld [vmem:[#allocation7 + $0x700] sm:$0xff]
    %v5284 = vld [vmem:[#allocation7 + $0x708] sm:$0xff]
    %v5285 = vld [vmem:[#allocation7 + $0x710] sm:$0xff]
    %v5286 = vld [vmem:[#allocation7 + $0x718] sm:$0xff]
    %v5287 = vld [vmem:[#allocation7 + $0x720] sm:$0xff]
    %v5288 = vld [vmem:[#allocation7 + $0x728] sm:$0xff]
    %v5289 = vld [vmem:[#allocation7 + $0x730] sm:$0xff]
    %v5290 = vld [vmem:[#allocation7 + $0x738] sm:$0xff]
    %v5291 = vld [vmem:[#allocation7 + $0x740] sm:$0xff]
    %v5292 = vld [vmem:[#allocation7 + $0x748] sm:$0xff]
    %v5293 = vld [vmem:[#allocation7 + $0x750] sm:$0xff]
    %v5294 = vld [vmem:[#allocation7 + $0x758] sm:$0xff]
    %v5295 = vld [vmem:[#allocation7 + $0x760] sm:$0xff]
    %v5296 = vld [vmem:[#allocation7 + $0x768] sm:$0xff]
    %v5297 = vld [vmem:[#allocation7 + $0x770] sm:$0xff]
    %v5298 = vld [vmem:[#allocation7 + $0x778] sm:$0xff]
    %v5299 = vld [vmem:[#allocation7 + $0x780] sm:$0xff]
    %v5300 = vld [vmem:[#allocation7 + $0x788] sm:$0xff]
    %v5301 = vld [vmem:[#allocation7 + $0x790] sm:$0xff]
    %v5302 = vld [vmem:[#allocation7 + $0x798] sm:$0xff]
    %v5303 = vld [vmem:[#allocation7 + $0x7a0] sm:$0xff]
    %v5304 = vld [vmem:[#allocation7 + $0x7a8] sm:$0xff]
    %v5305 = vld [vmem:[#allocation7 + $0x7b0] sm:$0xff]
    %v5306 = vld [vmem:[#allocation7 + $0x7b8] sm:$0xff]
    %v5307 = vld [vmem:[#allocation7 + $0x7c0] sm:$0xff]
    %v5308 = vld [vmem:[#allocation7 + $0x7c8] sm:$0xff]
    %v5309 = vld [vmem:[#allocation7 + $0x7d0] sm:$0xff]
    %v5310 = vld [vmem:[#allocation7 + $0x7d8] sm:$0xff]
    %v5311 = vld [vmem:[#allocation7 + $0x7e0] sm:$0xff]
    %v5312 = vld [vmem:[#allocation7 + $0x7e8] sm:$0xff]
    %v5313 = vld [vmem:[#allocation7 + $0x7f0] sm:$0xff]
    %v5314 = vld [vmem:[#allocation7 + $0x7f8] sm:$0xff]
    %v5315 = vld [vmem:[%s10] sm:$0xf]
    %v5317 = vlaneseq
    %v5318 = vshrl.u32 %v5317, 7
    %v5319 = vsub.s32 0, %v5318
    %v5320 = vrot.slane %v5315, %v5319
    %v5321 = vlaneseq
    %v5322 = vshrl.u32 %v5321, 7
    %v5323 = vsub.s32 1, %v5322
    %v5324 = vrot.slane %v5315, %v5323
    %v5325 = vlaneseq
    %v5326 = vshrl.u32 %v5325, 7
    %v5327 = vsub.s32 2, %v5326
    %v5328 = vrot.slane %v5315, %v5327
    %v5329 = vlaneseq
    %v5330 = vshrl.u32 %v5329, 7
    %v5331 = vsub.s32 3, %v5330
    %v5332 = vrot.slane %v5315, %v5331
    %v5593 = vunpack.c.l.b16 %v5059
    %v5594 = vunpack.c.h.b16 %v5059
    %v5595 = vunpack.c.l.b16 %v5060
    %v5596 = vunpack.c.h.b16 %v5060
    %v5597 = vunpack.c.l.b16 %v5061
    %v5598 = vunpack.c.h.b16 %v5061
    %v5599 = vunpack.c.l.b16 %v5062
    %v5600 = vunpack.c.h.b16 %v5062
    %v5601 = vunpack.c.l.b16 %v5063
    %v5602 = vunpack.c.h.b16 %v5063
    %v5603 = vunpack.c.l.b16 %v5064
    %v5604 = vunpack.c.h.b16 %v5064
    %v5605 = vunpack.c.l.b16 %v5065
    %v5606 = vunpack.c.h.b16 %v5065
    %v5607 = vunpack.c.l.b16 %v5066
    %v5608 = vunpack.c.h.b16 %v5066
    %v5609 = vunpack.c.l.b16 %v5067
    %v5610 = vunpack.c.h.b16 %v5067
    %v5611 = vunpack.c.l.b16 %v5068
    %v5612 = vunpack.c.h.b16 %v5068
    %v5613 = vunpack.c.l.b16 %v5069
    %v5614 = vunpack.c.h.b16 %v5069
    %v5615 = vunpack.c.l.b16 %v5070
    %v5616 = vunpack.c.h.b16 %v5070
    %v5617 = vunpack.c.l.b16 %v5071
    %v5618 = vunpack.c.h.b16 %v5071
    %v5619 = vunpack.c.l.b16 %v5072
    %v5620 = vunpack.c.h.b16 %v5072
    %v5621 = vunpack.c.l.b16 %v5073
    %v5622 = vunpack.c.h.b16 %v5073
    %v5623 = vunpack.c.l.b16 %v5074
    %v5624 = vunpack.c.h.b16 %v5074
    %v5625 = vunpack.c.l.b16 %v5075
    %v5626 = vunpack.c.h.b16 %v5075
    %v5627 = vunpack.c.l.b16 %v5076
    %v5628 = vunpack.c.h.b16 %v5076
    %v5629 = vunpack.c.l.b16 %v5077
    %v5630 = vunpack.c.h.b16 %v5077
    %v5631 = vunpack.c.l.b16 %v5078
    %v5632 = vunpack.c.h.b16 %v5078
    %v5633 = vunpack.c.l.b16 %v5079
    %v5634 = vunpack.c.h.b16 %v5079
    %v5635 = vunpack.c.l.b16 %v5080
    %v5636 = vunpack.c.h.b16 %v5080
    %v5637 = vunpack.c.l.b16 %v5081
    %v5638 = vunpack.c.h.b16 %v5081
    %v5639 = vunpack.c.l.b16 %v5082
    %v5640 = vunpack.c.h.b16 %v5082
    %v5641 = vunpack.c.l.b16 %v5083
    %v5642 = vunpack.c.h.b16 %v5083
    %v5643 = vunpack.c.l.b16 %v5084
    %v5644 = vunpack.c.h.b16 %v5084
    %v5645 = vunpack.c.l.b16 %v5085
    %v5646 = vunpack.c.h.b16 %v5085
    %v5647 = vunpack.c.l.b16 %v5086
    %v5648 = vunpack.c.h.b16 %v5086
    %v5649 = vunpack.c.l.b16 %v5087
    %v5650 = vunpack.c.h.b16 %v5087
    %v5651 = vunpack.c.l.b16 %v5088
    %v5652 = vunpack.c.h.b16 %v5088
    %v5653 = vunpack.c.l.b16 %v5089
    %v5654 = vunpack.c.h.b16 %v5089
    %v5655 = vunpack.c.l.b16 %v5090
    %v5656 = vunpack.c.h.b16 %v5090
    %v5657 = vunpack.c.l.b16 %v5091
    %v5658 = vunpack.c.h.b16 %v5091
    %v5659 = vunpack.c.l.b16 %v5092
    %v5660 = vunpack.c.h.b16 %v5092
    %v5661 = vunpack.c.l.b16 %v5093
    %v5662 = vunpack.c.h.b16 %v5093
    %v5663 = vunpack.c.l.b16 %v5094
    %v5664 = vunpack.c.h.b16 %v5094
    %v5665 = vunpack.c.l.b16 %v5095
    %v5666 = vunpack.c.h.b16 %v5095
    %v5667 = vunpack.c.l.b16 %v5096
    %v5668 = vunpack.c.h.b16 %v5096
    %v5669 = vunpack.c.l.b16 %v5097
    %v5670 = vunpack.c.h.b16 %v5097
    %v5671 = vunpack.c.l.b16 %v5098
    %v5672 = vunpack.c.h.b16 %v5098
    %v5673 = vunpack.c.l.b16 %v5099
    %v5674 = vunpack.c.h.b16 %v5099
    %v5675 = vunpack.c.l.b16 %v5100
    %v5676 = vunpack.c.h.b16 %v5100
    %v5677 = vunpack.c.l.b16 %v5101
    %v5678 = vunpack.c.h.b16 %v5101
    %v5679 = vunpack.c.l.b16 %v5102
    %v5680 = vunpack.c.h.b16 %v5102
    %v5681 = vunpack.c.l.b16 %v5103
    %v5682 = vunpack.c.h.b16 %v5103
    %v5683 = vunpack.c.l.b16 %v5104
    %v5684 = vunpack.c.h.b16 %v5104
    %v5685 = vunpack.c.l.b16 %v5105
    %v5686 = vunpack.c.h.b16 %v5105
    %v5687 = vunpack.c.l.b16 %v5106
    %v5688 = vunpack.c.h.b16 %v5106
    %v5689 = vunpack.c.l.b16 %v5107
    %v5690 = vunpack.c.h.b16 %v5107
    %v5691 = vunpack.c.l.b16 %v5108
    %v5692 = vunpack.c.h.b16 %v5108
    %v5693 = vunpack.c.l.b16 %v5109
    %v5694 = vunpack.c.h.b16 %v5109
    %v5695 = vunpack.c.l.b16 %v5110
    %v5696 = vunpack.c.h.b16 %v5110
    %v5697 = vunpack.c.l.b16 %v5111
    %v5698 = vunpack.c.h.b16 %v5111
    %v5699 = vunpack.c.l.b16 %v5112
    %v5700 = vunpack.c.h.b16 %v5112
    %v5701 = vunpack.c.l.b16 %v5113
    %v5702 = vunpack.c.h.b16 %v5113
    %v5703 = vunpack.c.l.b16 %v5114
    %v5704 = vunpack.c.h.b16 %v5114
    %v5705 = vunpack.c.l.b16 %v5115
    %v5706 = vunpack.c.h.b16 %v5115
    %v5707 = vunpack.c.l.b16 %v5116
    %v5708 = vunpack.c.h.b16 %v5116
    %v5709 = vunpack.c.l.b16 %v5117
    %v5710 = vunpack.c.h.b16 %v5117
    %v5711 = vunpack.c.l.b16 %v5118
    %v5712 = vunpack.c.h.b16 %v5118
    %v5713 = vunpack.c.l.b16 %v5119
    %v5714 = vunpack.c.h.b16 %v5119
    %v5715 = vunpack.c.l.b16 %v5120
    %v5716 = vunpack.c.h.b16 %v5120
    %v5717 = vunpack.c.l.b16 %v5121
    %v5718 = vunpack.c.h.b16 %v5121
    %v5719 = vunpack.c.l.b16 %v5122
    %v5720 = vunpack.c.h.b16 %v5122
    %v5721 = vunpack.c.l.b16 %v5123
    %v5722 = vunpack.c.h.b16 %v5123
    %v5723 = vunpack.c.l.b16 %v5124
    %v5724 = vunpack.c.h.b16 %v5124
    %v5725 = vunpack.c.l.b16 %v5125
    %v5726 = vunpack.c.h.b16 %v5125
    %v5727 = vunpack.c.l.b16 %v5126
    %v5728 = vunpack.c.h.b16 %v5126
    %v5729 = vunpack.c.l.b16 %v5127
    %v5730 = vunpack.c.h.b16 %v5127
    %v5731 = vunpack.c.l.b16 %v5128
    %v5732 = vunpack.c.h.b16 %v5128
    %v5733 = vunpack.c.l.b16 %v5129
    %v5734 = vunpack.c.h.b16 %v5129
    %v5735 = vunpack.c.l.b16 %v5130
    %v5736 = vunpack.c.h.b16 %v5130
    %v5737 = vunpack.c.l.b16 %v5131
    %v5738 = vunpack.c.h.b16 %v5131
    %v5739 = vunpack.c.l.b16 %v5132
    %v5740 = vunpack.c.h.b16 %v5132
    %v5741 = vunpack.c.l.b16 %v5133
    %v5742 = vunpack.c.h.b16 %v5133
    %v5743 = vunpack.c.l.b16 %v5134
    %v5744 = vunpack.c.h.b16 %v5134
    %v5745 = vunpack.c.l.b16 %v5135
    %v5746 = vunpack.c.h.b16 %v5135
    %v5747 = vunpack.c.l.b16 %v5136
    %v5748 = vunpack.c.h.b16 %v5136
    %v5749 = vunpack.c.l.b16 %v5137
    %v5750 = vunpack.c.h.b16 %v5137
    %v5751 = vunpack.c.l.b16 %v5138
    %v5752 = vunpack.c.h.b16 %v5138
    %v5753 = vunpack.c.l.b16 %v5139
    %v5754 = vunpack.c.h.b16 %v5139
    %v5755 = vunpack.c.l.b16 %v5140
    %v5756 = vunpack.c.h.b16 %v5140
    %v5757 = vunpack.c.l.b16 %v5141
    %v5758 = vunpack.c.h.b16 %v5141
    %v5759 = vunpack.c.l.b16 %v5142
    %v5760 = vunpack.c.h.b16 %v5142
    %v5761 = vunpack.c.l.b16 %v5143
    %v5762 = vunpack.c.h.b16 %v5143
    %v5763 = vunpack.c.l.b16 %v5144
    %v5764 = vunpack.c.h.b16 %v5144
    %v5765 = vunpack.c.l.b16 %v5145
    %v5766 = vunpack.c.h.b16 %v5145
    %v5767 = vunpack.c.l.b16 %v5146
    %v5768 = vunpack.c.h.b16 %v5146
    %v5769 = vunpack.c.l.b16 %v5147
    %v5770 = vunpack.c.h.b16 %v5147
    %v5771 = vunpack.c.l.b16 %v5148
    %v5772 = vunpack.c.h.b16 %v5148
    %v5773 = vunpack.c.l.b16 %v5149
    %v5774 = vunpack.c.h.b16 %v5149
    %v5775 = vunpack.c.l.b16 %v5150
    %v5776 = vunpack.c.h.b16 %v5150
    %v5777 = vunpack.c.l.b16 %v5151
    %v5778 = vunpack.c.h.b16 %v5151
    %v5779 = vunpack.c.l.b16 %v5152
    %v5780 = vunpack.c.h.b16 %v5152
    %v5781 = vunpack.c.l.b16 %v5153
    %v5782 = vunpack.c.h.b16 %v5153
    %v5783 = vunpack.c.l.b16 %v5154
    %v5784 = vunpack.c.h.b16 %v5154
    %v5785 = vunpack.c.l.b16 %v5155
    %v5786 = vunpack.c.h.b16 %v5155
    %v5787 = vunpack.c.l.b16 %v5156
    %v5788 = vunpack.c.h.b16 %v5156
    %v5789 = vunpack.c.l.b16 %v5157
    %v5790 = vunpack.c.h.b16 %v5157
    %v5791 = vunpack.c.l.b16 %v5158
    %v5792 = vunpack.c.h.b16 %v5158
    %v5793 = vunpack.c.l.b16 %v5159
    %v5794 = vunpack.c.h.b16 %v5159
    %v5795 = vunpack.c.l.b16 %v5160
    %v5796 = vunpack.c.h.b16 %v5160
    %v5797 = vunpack.c.l.b16 %v5161
    %v5798 = vunpack.c.h.b16 %v5161
    %v5799 = vunpack.c.l.b16 %v5162
    %v5800 = vunpack.c.h.b16 %v5162
    %v5801 = vunpack.c.l.b16 %v5163
    %v5802 = vunpack.c.h.b16 %v5163
    %v5803 = vunpack.c.l.b16 %v5164
    %v5804 = vunpack.c.h.b16 %v5164
    %v5805 = vunpack.c.l.b16 %v5165
    %v5806 = vunpack.c.h.b16 %v5165
    %v5807 = vunpack.c.l.b16 %v5166
    %v5808 = vunpack.c.h.b16 %v5166
    %v5809 = vunpack.c.l.b16 %v5167
    %v5810 = vunpack.c.h.b16 %v5167
    %v5811 = vunpack.c.l.b16 %v5168
    %v5812 = vunpack.c.h.b16 %v5168
    %v5813 = vunpack.c.l.b16 %v5169
    %v5814 = vunpack.c.h.b16 %v5169
    %v5815 = vunpack.c.l.b16 %v5170
    %v5816 = vunpack.c.h.b16 %v5170
    %v5817 = vunpack.c.l.b16 %v5171
    %v5818 = vunpack.c.h.b16 %v5171
    %v5819 = vunpack.c.l.b16 %v5172
    %v5820 = vunpack.c.h.b16 %v5172
    %v5821 = vunpack.c.l.b16 %v5173
    %v5822 = vunpack.c.h.b16 %v5173
    %v5823 = vunpack.c.l.b16 %v5174
    %v5824 = vunpack.c.h.b16 %v5174
    %v5825 = vunpack.c.l.b16 %v5175
    %v5826 = vunpack.c.h.b16 %v5175
    %v5827 = vunpack.c.l.b16 %v5176
    %v5828 = vunpack.c.h.b16 %v5176
    %v5829 = vunpack.c.l.b16 %v5177
    %v5830 = vunpack.c.h.b16 %v5177
    %v5831 = vunpack.c.l.b16 %v5178
    %v5832 = vunpack.c.h.b16 %v5178
    %v5833 = vunpack.c.l.b16 %v5179
    %v5834 = vunpack.c.h.b16 %v5179
    %v5835 = vunpack.c.l.b16 %v5180
    %v5836 = vunpack.c.h.b16 %v5180
    %v5837 = vunpack.c.l.b16 %v5181
    %v5838 = vunpack.c.h.b16 %v5181
    %v5839 = vunpack.c.l.b16 %v5182
    %v5840 = vunpack.c.h.b16 %v5182
    %v5841 = vunpack.c.l.b16 %v5183
    %v5842 = vunpack.c.h.b16 %v5183
    %v5843 = vunpack.c.l.b16 %v5184
    %v5844 = vunpack.c.h.b16 %v5184
    %v5845 = vunpack.c.l.b16 %v5185
    %v5846 = vunpack.c.h.b16 %v5185
    %v5847 = vunpack.c.l.b16 %v5186
    %v5848 = vunpack.c.h.b16 %v5186
    %v5849 = vunpack.c.l.b16 %v5187
    %v5850 = vunpack.c.h.b16 %v5187
    %v5851 = vunpack.c.l.b16 %v5188
    %v5852 = vunpack.c.h.b16 %v5188
    %v5853 = vunpack.c.l.b16 %v5189
    %v5854 = vunpack.c.h.b16 %v5189
    %v5855 = vunpack.c.l.b16 %v5190
    %v5856 = vunpack.c.h.b16 %v5190
    %v5857 = vunpack.c.l.b16 %v5191
    %v5858 = vunpack.c.h.b16 %v5191
    %v5859 = vunpack.c.l.b16 %v5192
    %v5860 = vunpack.c.h.b16 %v5192
    %v5861 = vunpack.c.l.b16 %v5193
    %v5862 = vunpack.c.h.b16 %v5193
    %v5863 = vunpack.c.l.b16 %v5194
    %v5864 = vunpack.c.h.b16 %v5194
    %v5865 = vunpack.c.l.b16 %v5195
    %v5866 = vunpack.c.h.b16 %v5195
    %v5867 = vunpack.c.l.b16 %v5196
    %v5868 = vunpack.c.h.b16 %v5196
    %v5869 = vunpack.c.l.b16 %v5197
    %v5870 = vunpack.c.h.b16 %v5197
    %v5871 = vunpack.c.l.b16 %v5198
    %v5872 = vunpack.c.h.b16 %v5198
    %v5873 = vunpack.c.l.b16 %v5199
    %v5874 = vunpack.c.h.b16 %v5199
    %v5875 = vunpack.c.l.b16 %v5200
    %v5876 = vunpack.c.h.b16 %v5200
    %v5877 = vunpack.c.l.b16 %v5201
    %v5878 = vunpack.c.h.b16 %v5201
    %v5879 = vunpack.c.l.b16 %v5202
    %v5880 = vunpack.c.h.b16 %v5202
    %v5881 = vunpack.c.l.b16 %v5203
    %v5882 = vunpack.c.h.b16 %v5203
    %v5883 = vunpack.c.l.b16 %v5204
    %v5884 = vunpack.c.h.b16 %v5204
    %v5885 = vunpack.c.l.b16 %v5205
    %v5886 = vunpack.c.h.b16 %v5205
    %v5887 = vunpack.c.l.b16 %v5206
    %v5888 = vunpack.c.h.b16 %v5206
    %v5889 = vunpack.c.l.b16 %v5207
    %v5890 = vunpack.c.h.b16 %v5207
    %v5891 = vunpack.c.l.b16 %v5208
    %v5892 = vunpack.c.h.b16 %v5208
    %v5893 = vunpack.c.l.b16 %v5209
    %v5894 = vunpack.c.h.b16 %v5209
    %v5895 = vunpack.c.l.b16 %v5210
    %v5896 = vunpack.c.h.b16 %v5210
    %v5897 = vunpack.c.l.b16 %v5211
    %v5898 = vunpack.c.h.b16 %v5211
    %v5899 = vunpack.c.l.b16 %v5212
    %v5900 = vunpack.c.h.b16 %v5212
    %v5901 = vunpack.c.l.b16 %v5213
    %v5902 = vunpack.c.h.b16 %v5213
    %v5903 = vunpack.c.l.b16 %v5214
    %v5904 = vunpack.c.h.b16 %v5214
    %v5905 = vunpack.c.l.b16 %v5215
    %v5906 = vunpack.c.h.b16 %v5215
    %v5907 = vunpack.c.l.b16 %v5216
    %v5908 = vunpack.c.h.b16 %v5216
    %v5909 = vunpack.c.l.b16 %v5217
    %v5910 = vunpack.c.h.b16 %v5217
    %v5911 = vunpack.c.l.b16 %v5218
    %v5912 = vunpack.c.h.b16 %v5218
    %v5913 = vunpack.c.l.b16 %v5219
    %v5914 = vunpack.c.h.b16 %v5219
    %v5915 = vunpack.c.l.b16 %v5220
    %v5916 = vunpack.c.h.b16 %v5220
    %v5917 = vunpack.c.l.b16 %v5221
    %v5918 = vunpack.c.h.b16 %v5221
    %v5919 = vunpack.c.l.b16 %v5222
    %v5920 = vunpack.c.h.b16 %v5222
    %v5921 = vunpack.c.l.b16 %v5223
    %v5922 = vunpack.c.h.b16 %v5223
    %v5923 = vunpack.c.l.b16 %v5224
    %v5924 = vunpack.c.h.b16 %v5224
    %v5925 = vunpack.c.l.b16 %v5225
    %v5926 = vunpack.c.h.b16 %v5225
    %v5927 = vunpack.c.l.b16 %v5226
    %v5928 = vunpack.c.h.b16 %v5226
    %v5929 = vunpack.c.l.b16 %v5227
    %v5930 = vunpack.c.h.b16 %v5227
    %v5931 = vunpack.c.l.b16 %v5228
    %v5932 = vunpack.c.h.b16 %v5228
    %v5933 = vunpack.c.l.b16 %v5229
    %v5934 = vunpack.c.h.b16 %v5229
    %v5935 = vunpack.c.l.b16 %v5230
    %v5936 = vunpack.c.h.b16 %v5230
    %v5937 = vunpack.c.l.b16 %v5231
    %v5938 = vunpack.c.h.b16 %v5231
    %v5939 = vunpack.c.l.b16 %v5232
    %v5940 = vunpack.c.h.b16 %v5232
    %v5941 = vunpack.c.l.b16 %v5233
    %v5942 = vunpack.c.h.b16 %v5233
    %v5943 = vunpack.c.l.b16 %v5234
    %v5944 = vunpack.c.h.b16 %v5234
    %v5945 = vunpack.c.l.b16 %v5235
    %v5946 = vunpack.c.h.b16 %v5235
    %v5947 = vunpack.c.l.b16 %v5236
    %v5948 = vunpack.c.h.b16 %v5236
    %v5949 = vunpack.c.l.b16 %v5237
    %v5950 = vunpack.c.h.b16 %v5237
    %v5951 = vunpack.c.l.b16 %v5238
    %v5952 = vunpack.c.h.b16 %v5238
    %v5953 = vunpack.c.l.b16 %v5239
    %v5954 = vunpack.c.h.b16 %v5239
    %v5955 = vunpack.c.l.b16 %v5240
    %v5956 = vunpack.c.h.b16 %v5240
    %v5957 = vunpack.c.l.b16 %v5241
    %v5958 = vunpack.c.h.b16 %v5241
    %v5959 = vunpack.c.l.b16 %v5242
    %v5960 = vunpack.c.h.b16 %v5242
    %v5961 = vunpack.c.l.b16 %v5243
    %v5962 = vunpack.c.h.b16 %v5243
    %v5963 = vunpack.c.l.b16 %v5244
    %v5964 = vunpack.c.h.b16 %v5244
    %v5965 = vunpack.c.l.b16 %v5245
    %v5966 = vunpack.c.h.b16 %v5245
    %v5967 = vunpack.c.l.b16 %v5246
    %v5968 = vunpack.c.h.b16 %v5246
    %v5969 = vunpack.c.l.b16 %v5247
    %v5970 = vunpack.c.h.b16 %v5247
    %v5971 = vunpack.c.l.b16 %v5248
    %v5972 = vunpack.c.h.b16 %v5248
    %v5973 = vunpack.c.l.b16 %v5249
    %v5974 = vunpack.c.h.b16 %v5249
    %v5975 = vunpack.c.l.b16 %v5250
    %v5976 = vunpack.c.h.b16 %v5250
    %v5977 = vunpack.c.l.b16 %v5251
    %v5978 = vunpack.c.h.b16 %v5251
    %v5979 = vunpack.c.l.b16 %v5252
    %v5980 = vunpack.c.h.b16 %v5252
    %v5981 = vunpack.c.l.b16 %v5253
    %v5982 = vunpack.c.h.b16 %v5253
    %v5983 = vunpack.c.l.b16 %v5254
    %v5984 = vunpack.c.h.b16 %v5254
    %v5985 = vunpack.c.l.b16 %v5255
    %v5986 = vunpack.c.h.b16 %v5255
    %v5987 = vunpack.c.l.b16 %v5256
    %v5988 = vunpack.c.h.b16 %v5256
    %v5989 = vunpack.c.l.b16 %v5257
    %v5990 = vunpack.c.h.b16 %v5257
    %v5991 = vunpack.c.l.b16 %v5258
    %v5992 = vunpack.c.h.b16 %v5258
    %v5993 = vunpack.c.l.b16 %v5259
    %v5994 = vunpack.c.h.b16 %v5259
    %v5995 = vunpack.c.l.b16 %v5260
    %v5996 = vunpack.c.h.b16 %v5260
    %v5997 = vunpack.c.l.b16 %v5261
    %v5998 = vunpack.c.h.b16 %v5261
    %v5999 = vunpack.c.l.b16 %v5262
    %v6000 = vunpack.c.h.b16 %v5262
    %v6001 = vunpack.c.l.b16 %v5263
    %v6002 = vunpack.c.h.b16 %v5263
    %v6003 = vunpack.c.l.b16 %v5264
    %v6004 = vunpack.c.h.b16 %v5264
    %v6005 = vunpack.c.l.b16 %v5265
    %v6006 = vunpack.c.h.b16 %v5265
    %v6007 = vunpack.c.l.b16 %v5266
    %v6008 = vunpack.c.h.b16 %v5266
    %v6009 = vunpack.c.l.b16 %v5267
    %v6010 = vunpack.c.h.b16 %v5267
    %v6011 = vunpack.c.l.b16 %v5268
    %v6012 = vunpack.c.h.b16 %v5268
    %v6013 = vunpack.c.l.b16 %v5269
    %v6014 = vunpack.c.h.b16 %v5269
    %v6015 = vunpack.c.l.b16 %v5270
    %v6016 = vunpack.c.h.b16 %v5270
    %v6017 = vunpack.c.l.b16 %v5271
    %v6018 = vunpack.c.h.b16 %v5271
    %v6019 = vunpack.c.l.b16 %v5272
    %v6020 = vunpack.c.h.b16 %v5272
    %v6021 = vunpack.c.l.b16 %v5273
    %v6022 = vunpack.c.h.b16 %v5273
    %v6023 = vunpack.c.l.b16 %v5274
    %v6024 = vunpack.c.h.b16 %v5274
    %v6025 = vunpack.c.l.b16 %v5275
    %v6026 = vunpack.c.h.b16 %v5275
    %v6027 = vunpack.c.l.b16 %v5276
    %v6028 = vunpack.c.h.b16 %v5276
    %v6029 = vunpack.c.l.b16 %v5277
    %v6030 = vunpack.c.h.b16 %v5277
    %v6031 = vunpack.c.l.b16 %v5278
    %v6032 = vunpack.c.h.b16 %v5278
    %v6033 = vunpack.c.l.b16 %v5279
    %v6034 = vunpack.c.h.b16 %v5279
    %v6035 = vunpack.c.l.b16 %v5280
    %v6036 = vunpack.c.h.b16 %v5280
    %v6037 = vunpack.c.l.b16 %v5281
    %v6038 = vunpack.c.h.b16 %v5281
    %v6039 = vunpack.c.l.b16 %v5282
    %v6040 = vunpack.c.h.b16 %v5282
    %v6041 = vunpack.c.l.b16 %v5283
    %v6042 = vunpack.c.h.b16 %v5283
    %v6043 = vunpack.c.l.b16 %v5284
    %v6044 = vunpack.c.h.b16 %v5284
    %v6045 = vunpack.c.l.b16 %v5285
    %v6046 = vunpack.c.h.b16 %v5285
    %v6047 = vunpack.c.l.b16 %v5286
    %v6048 = vunpack.c.h.b16 %v5286
    %v6049 = vunpack.c.l.b16 %v5287
    %v6050 = vunpack.c.h.b16 %v5287
    %v6051 = vunpack.c.l.b16 %v5288
    %v6052 = vunpack.c.h.b16 %v5288
    %v6053 = vunpack.c.l.b16 %v5289
    %v6054 = vunpack.c.h.b16 %v5289
    %v6055 = vunpack.c.l.b16 %v5290
    %v6056 = vunpack.c.h.b16 %v5290
    %v6057 = vunpack.c.l.b16 %v5291
    %v6058 = vunpack.c.h.b16 %v5291
    %v6059 = vunpack.c.l.b16 %v5292
    %v6060 = vunpack.c.h.b16 %v5292
    %v6061 = vunpack.c.l.b16 %v5293
    %v6062 = vunpack.c.h.b16 %v5293
    %v6063 = vunpack.c.l.b16 %v5294
    %v6064 = vunpack.c.h.b16 %v5294
    %v6065 = vunpack.c.l.b16 %v5295
    %v6066 = vunpack.c.h.b16 %v5295
    %v6067 = vunpack.c.l.b16 %v5296
    %v6068 = vunpack.c.h.b16 %v5296
    %v6069 = vunpack.c.l.b16 %v5297
    %v6070 = vunpack.c.h.b16 %v5297
    %v6071 = vunpack.c.l.b16 %v5298
    %v6072 = vunpack.c.h.b16 %v5298
    %v6073 = vunpack.c.l.b16 %v5299
    %v6074 = vunpack.c.h.b16 %v5299
    %v6075 = vunpack.c.l.b16 %v5300
    %v6076 = vunpack.c.h.b16 %v5300
    %v6077 = vunpack.c.l.b16 %v5301
    %v6078 = vunpack.c.h.b16 %v5301
    %v6079 = vunpack.c.l.b16 %v5302
    %v6080 = vunpack.c.h.b16 %v5302
    %v6081 = vunpack.c.l.b16 %v5303
    %v6082 = vunpack.c.h.b16 %v5303
    %v6083 = vunpack.c.l.b16 %v5304
    %v6084 = vunpack.c.h.b16 %v5304
    %v6085 = vunpack.c.l.b16 %v5305
    %v6086 = vunpack.c.h.b16 %v5305
    %v6087 = vunpack.c.l.b16 %v5306
    %v6088 = vunpack.c.h.b16 %v5306
    %v6089 = vunpack.c.l.b16 %v5307
    %v6090 = vunpack.c.h.b16 %v5307
    %v6091 = vunpack.c.l.b16 %v5308
    %v6092 = vunpack.c.h.b16 %v5308
    %v6093 = vunpack.c.l.b16 %v5309
    %v6094 = vunpack.c.h.b16 %v5309
    %v6095 = vunpack.c.l.b16 %v5310
    %v6096 = vunpack.c.h.b16 %v5310
    %v6097 = vunpack.c.l.b16 %v5311
    %v6098 = vunpack.c.h.b16 %v5311
    %v6099 = vunpack.c.l.b16 %v5312
    %v6100 = vunpack.c.h.b16 %v5312
    %v6101 = vunpack.c.l.b16 %v5313
    %v6102 = vunpack.c.h.b16 %v5313
    %v6103 = vunpack.c.l.b16 %v5314
    %v6104 = vunpack.c.h.b16 %v5314
    %v6105 = vpack.c.b16 %v5597, %v5593
    %v6106 = vpack.c.b16 %v5598, %v5594
    %v6107 = vpack.c.b16 %v5599, %v5595
    %v6108 = vpack.c.b16 %v5600, %v5596
    %v6109 = vpack.c.b16 %v5605, %v5601
    %v6110 = vpack.c.b16 %v5606, %v5602
    %v6111 = vpack.c.b16 %v5607, %v5603
    %v6112 = vpack.c.b16 %v5608, %v5604
    %v6113 = vpack.c.b16 %v5613, %v5609
    %v6114 = vpack.c.b16 %v5614, %v5610
    %v6115 = vpack.c.b16 %v5615, %v5611
    %v6116 = vpack.c.b16 %v5616, %v5612
    %v6117 = vpack.c.b16 %v5621, %v5617
    %v6118 = vpack.c.b16 %v5622, %v5618
    %v6119 = vpack.c.b16 %v5623, %v5619
    %v6120 = vpack.c.b16 %v5624, %v5620
    %v6121 = vpack.c.b16 %v5629, %v5625
    %v6122 = vpack.c.b16 %v5630, %v5626
    %v6123 = vpack.c.b16 %v5631, %v5627
    %v6124 = vpack.c.b16 %v5632, %v5628
    %v6125 = vpack.c.b16 %v5637, %v5633
    %v6126 = vpack.c.b16 %v5638, %v5634
    %v6127 = vpack.c.b16 %v5639, %v5635
    %v6128 = vpack.c.b16 %v5640, %v5636
    %v6129 = vpack.c.b16 %v5645, %v5641
    %v6130 = vpack.c.b16 %v5646, %v5642
    %v6131 = vpack.c.b16 %v5647, %v5643
    %v6132 = vpack.c.b16 %v5648, %v5644
    %v6133 = vpack.c.b16 %v5653, %v5649
    %v6134 = vpack.c.b16 %v5654, %v5650
    %v6135 = vpack.c.b16 %v5655, %v5651
    %v6136 = vpack.c.b16 %v5656, %v5652
    %v6137 = vpack.c.b16 %v5661, %v5657
    %v6138 = vpack.c.b16 %v5662, %v5658
    %v6139 = vpack.c.b16 %v5663, %v5659
    %v6140 = vpack.c.b16 %v5664, %v5660
    %v6141 = vpack.c.b16 %v5669, %v5665
    %v6142 = vpack.c.b16 %v5670, %v5666
    %v6143 = vpack.c.b16 %v5671, %v5667
    %v6144 = vpack.c.b16 %v5672, %v5668
    %v6145 = vpack.c.b16 %v5677, %v5673
    %v6146 = vpack.c.b16 %v5678, %v5674
    %v6147 = vpack.c.b16 %v5679, %v5675
    %v6148 = vpack.c.b16 %v5680, %v5676
    %v6149 = vpack.c.b16 %v5685, %v5681
    %v6150 = vpack.c.b16 %v5686, %v5682
    %v6151 = vpack.c.b16 %v5687, %v5683
    %v6152 = vpack.c.b16 %v5688, %v5684
    %v6153 = vpack.c.b16 %v5693, %v5689
    %v6154 = vpack.c.b16 %v5694, %v5690
    %v6155 = vpack.c.b16 %v5695, %v5691
    %v6156 = vpack.c.b16 %v5696, %v5692
    %v6157 = vpack.c.b16 %v5701, %v5697
    %v6158 = vpack.c.b16 %v5702, %v5698
    %v6159 = vpack.c.b16 %v5703, %v5699
    %v6160 = vpack.c.b16 %v5704, %v5700
    %v6161 = vpack.c.b16 %v5709, %v5705
    %v6162 = vpack.c.b16 %v5710, %v5706
    %v6163 = vpack.c.b16 %v5711, %v5707
    %v6164 = vpack.c.b16 %v5712, %v5708
    %v6165 = vpack.c.b16 %v5717, %v5713
    %v6166 = vpack.c.b16 %v5718, %v5714
    %v6167 = vpack.c.b16 %v5719, %v5715
    %v6168 = vpack.c.b16 %v5720, %v5716
    %v6169 = vpack.c.b16 %v5725, %v5721
    %v6170 = vpack.c.b16 %v5726, %v5722
    %v6171 = vpack.c.b16 %v5727, %v5723
    %v6172 = vpack.c.b16 %v5728, %v5724
    %v6173 = vpack.c.b16 %v5733, %v5729
    %v6174 = vpack.c.b16 %v5734, %v5730
    %v6175 = vpack.c.b16 %v5735, %v5731
    %v6176 = vpack.c.b16 %v5736, %v5732
    %v6177 = vpack.c.b16 %v5741, %v5737
    %v6178 = vpack.c.b16 %v5742, %v5738
    %v6179 = vpack.c.b16 %v5743, %v5739
    %v6180 = vpack.c.b16 %v5744, %v5740
    %v6181 = vpack.c.b16 %v5749, %v5745
    %v6182 = vpack.c.b16 %v5750, %v5746
    %v6183 = vpack.c.b16 %v5751, %v5747
    %v6184 = vpack.c.b16 %v5752, %v5748
    %v6185 = vpack.c.b16 %v5757, %v5753
    %v6186 = vpack.c.b16 %v5758, %v5754
    %v6187 = vpack.c.b16 %v5759, %v5755
    %v6188 = vpack.c.b16 %v5760, %v5756
    %v6189 = vpack.c.b16 %v5765, %v5761
    %v6190 = vpack.c.b16 %v5766, %v5762
    %v6191 = vpack.c.b16 %v5767, %v5763
    %v6192 = vpack.c.b16 %v5768, %v5764
    %v6193 = vpack.c.b16 %v5773, %v5769
    %v6194 = vpack.c.b16 %v5774, %v5770
    %v6195 = vpack.c.b16 %v5775, %v5771
    %v6196 = vpack.c.b16 %v5776, %v5772
    %v6197 = vpack.c.b16 %v5781, %v5777
    %v6198 = vpack.c.b16 %v5782, %v5778
    %v6199 = vpack.c.b16 %v5783, %v5779
    %v6200 = vpack.c.b16 %v5784, %v5780
    %v6201 = vpack.c.b16 %v5789, %v5785
    %v6202 = vpack.c.b16 %v5790, %v5786
    %v6203 = vpack.c.b16 %v5791, %v5787
    %v6204 = vpack.c.b16 %v5792, %v5788
    %v6205 = vpack.c.b16 %v5797, %v5793
    %v6206 = vpack.c.b16 %v5798, %v5794
    %v6207 = vpack.c.b16 %v5799, %v5795
    %v6208 = vpack.c.b16 %v5800, %v5796
    %v6209 = vpack.c.b16 %v5805, %v5801
    %v6210 = vpack.c.b16 %v5806, %v5802
    %v6211 = vpack.c.b16 %v5807, %v5803
    %v6212 = vpack.c.b16 %v5808, %v5804
    %v6213 = vpack.c.b16 %v5813, %v5809
    %v6214 = vpack.c.b16 %v5814, %v5810
    %v6215 = vpack.c.b16 %v5815, %v5811
    %v6216 = vpack.c.b16 %v5816, %v5812
    %v6217 = vpack.c.b16 %v5821, %v5817
    %v6218 = vpack.c.b16 %v5822, %v5818
    %v6219 = vpack.c.b16 %v5823, %v5819
    %v6220 = vpack.c.b16 %v5824, %v5820
    %v6221 = vpack.c.b16 %v5829, %v5825
    %v6222 = vpack.c.b16 %v5830, %v5826
    %v6223 = vpack.c.b16 %v5831, %v5827
    %v6224 = vpack.c.b16 %v5832, %v5828
    %v6225 = vpack.c.b16 %v5837, %v5833
    %v6226 = vpack.c.b16 %v5838, %v5834
    %v6227 = vpack.c.b16 %v5839, %v5835
    %v6228 = vpack.c.b16 %v5840, %v5836
    %v6229 = vpack.c.b16 %v5845, %v5841
    %v6230 = vpack.c.b16 %v5846, %v5842
    %v6231 = vpack.c.b16 %v5847, %v5843
    %v6232 = vpack.c.b16 %v5848, %v5844
    %v6233 = vpack.c.b16 %v5853, %v5849
    %v6234 = vpack.c.b16 %v5854, %v5850
    %v6235 = vpack.c.b16 %v5855, %v5851
    %v6236 = vpack.c.b16 %v5856, %v5852
    %v6237 = vpack.c.b16 %v5861, %v5857
    %v6238 = vpack.c.b16 %v5862, %v5858
    %v6239 = vpack.c.b16 %v5863, %v5859
    %v6240 = vpack.c.b16 %v5864, %v5860
    %v6241 = vpack.c.b16 %v5869, %v5865
    %v6242 = vpack.c.b16 %v5870, %v5866
    %v6243 = vpack.c.b16 %v5871, %v5867
    %v6244 = vpack.c.b16 %v5872, %v5868
    %v6245 = vpack.c.b16 %v5877, %v5873
    %v6246 = vpack.c.b16 %v5878, %v5874
    %v6247 = vpack.c.b16 %v5879, %v5875
    %v6248 = vpack.c.b16 %v5880, %v5876
    %v6249 = vpack.c.b16 %v5885, %v5881
    %v6250 = vpack.c.b16 %v5886, %v5882
    %v6251 = vpack.c.b16 %v5887, %v5883
    %v6252 = vpack.c.b16 %v5888, %v5884
    %v6253 = vpack.c.b16 %v5893, %v5889
    %v6254 = vpack.c.b16 %v5894, %v5890
    %v6255 = vpack.c.b16 %v5895, %v5891
    %v6256 = vpack.c.b16 %v5896, %v5892
    %v6257 = vpack.c.b16 %v5901, %v5897
    %v6258 = vpack.c.b16 %v5902, %v5898
    %v6259 = vpack.c.b16 %v5903, %v5899
    %v6260 = vpack.c.b16 %v5904, %v5900
    %v6261 = vpack.c.b16 %v5909, %v5905
    %v6262 = vpack.c.b16 %v5910, %v5906
    %v6263 = vpack.c.b16 %v5911, %v5907
    %v6264 = vpack.c.b16 %v5912, %v5908
    %v6265 = vpack.c.b16 %v5917, %v5913
    %v6266 = vpack.c.b16 %v5918, %v5914
    %v6267 = vpack.c.b16 %v5919, %v5915
    %v6268 = vpack.c.b16 %v5920, %v5916
    %v6269 = vpack.c.b16 %v5925, %v5921
    %v6270 = vpack.c.b16 %v5926, %v5922
    %v6271 = vpack.c.b16 %v5927, %v5923
    %v6272 = vpack.c.b16 %v5928, %v5924
    %v6273 = vpack.c.b16 %v5933, %v5929
    %v6274 = vpack.c.b16 %v5934, %v5930
    %v6275 = vpack.c.b16 %v5935, %v5931
    %v6276 = vpack.c.b16 %v5936, %v5932
    %v6277 = vpack.c.b16 %v5941, %v5937
    %v6278 = vpack.c.b16 %v5942, %v5938
    %v6279 = vpack.c.b16 %v5943, %v5939
    %v6280 = vpack.c.b16 %v5944, %v5940
    %v6281 = vpack.c.b16 %v5949, %v5945
    %v6282 = vpack.c.b16 %v5950, %v5946
    %v6283 = vpack.c.b16 %v5951, %v5947
    %v6284 = vpack.c.b16 %v5952, %v5948
    %v6285 = vpack.c.b16 %v5957, %v5953
    %v6286 = vpack.c.b16 %v5958, %v5954
    %v6287 = vpack.c.b16 %v5959, %v5955
    %v6288 = vpack.c.b16 %v5960, %v5956
    %v6289 = vpack.c.b16 %v5965, %v5961
    %v6290 = vpack.c.b16 %v5966, %v5962
    %v6291 = vpack.c.b16 %v5967, %v5963
    %v6292 = vpack.c.b16 %v5968, %v5964
    %v6293 = vpack.c.b16 %v5973, %v5969
    %v6294 = vpack.c.b16 %v5974, %v5970
    %v6295 = vpack.c.b16 %v5975, %v5971
    %v6296 = vpack.c.b16 %v5976, %v5972
    %v6297 = vpack.c.b16 %v5981, %v5977
    %v6298 = vpack.c.b16 %v5982, %v5978
    %v6299 = vpack.c.b16 %v5983, %v5979
    %v6300 = vpack.c.b16 %v5984, %v5980
    %v6301 = vpack.c.b16 %v5989, %v5985
    %v6302 = vpack.c.b16 %v5990, %v5986
    %v6303 = vpack.c.b16 %v5991, %v5987
    %v6304 = vpack.c.b16 %v5992, %v5988
    %v6305 = vpack.c.b16 %v5997, %v5993
    %v6306 = vpack.c.b16 %v5998, %v5994
    %v6307 = vpack.c.b16 %v5999, %v5995
    %v6308 = vpack.c.b16 %v6000, %v5996
    %v6309 = vpack.c.b16 %v6005, %v6001
    %v6310 = vpack.c.b16 %v6006, %v6002
    %v6311 = vpack.c.b16 %v6007, %v6003
    %v6312 = vpack.c.b16 %v6008, %v6004
    %v6313 = vpack.c.b16 %v6013, %v6009
    %v6314 = vpack.c.b16 %v6014, %v6010
    %v6315 = vpack.c.b16 %v6015, %v6011
    %v6316 = vpack.c.b16 %v6016, %v6012
    %v6317 = vpack.c.b16 %v6021, %v6017
    %v6318 = vpack.c.b16 %v6022, %v6018
    %v6319 = vpack.c.b16 %v6023, %v6019
    %v6320 = vpack.c.b16 %v6024, %v6020
    %v6321 = vpack.c.b16 %v6029, %v6025
    %v6322 = vpack.c.b16 %v6030, %v6026
    %v6323 = vpack.c.b16 %v6031, %v6027
    %v6324 = vpack.c.b16 %v6032, %v6028
    %v6325 = vpack.c.b16 %v6037, %v6033
    %v6326 = vpack.c.b16 %v6038, %v6034
    %v6327 = vpack.c.b16 %v6039, %v6035
    %v6328 = vpack.c.b16 %v6040, %v6036
    %v6329 = vpack.c.b16 %v6045, %v6041
    %v6330 = vpack.c.b16 %v6046, %v6042
    %v6331 = vpack.c.b16 %v6047, %v6043
    %v6332 = vpack.c.b16 %v6048, %v6044
    %v6333 = vpack.c.b16 %v6053, %v6049
    %v6334 = vpack.c.b16 %v6054, %v6050
    %v6335 = vpack.c.b16 %v6055, %v6051
    %v6336 = vpack.c.b16 %v6056, %v6052
    %v6337 = vpack.c.b16 %v6061, %v6057
    %v6338 = vpack.c.b16 %v6062, %v6058
    %v6339 = vpack.c.b16 %v6063, %v6059
    %v6340 = vpack.c.b16 %v6064, %v6060
    %v6341 = vpack.c.b16 %v6069, %v6065
    %v6342 = vpack.c.b16 %v6070, %v6066
    %v6343 = vpack.c.b16 %v6071, %v6067
    %v6344 = vpack.c.b16 %v6072, %v6068
    %v6345 = vpack.c.b16 %v6077, %v6073
    %v6346 = vpack.c.b16 %v6078, %v6074
    %v6347 = vpack.c.b16 %v6079, %v6075
    %v6348 = vpack.c.b16 %v6080, %v6076
    %v6349 = vpack.c.b16 %v6085, %v6081
    %v6350 = vpack.c.b16 %v6086, %v6082
    %v6351 = vpack.c.b16 %v6087, %v6083
    %v6352 = vpack.c.b16 %v6088, %v6084
    %v6353 = vpack.c.b16 %v6093, %v6089
    %v6354 = vpack.c.b16 %v6094, %v6090
    %v6355 = vpack.c.b16 %v6095, %v6091
    %v6356 = vpack.c.b16 %v6096, %v6092
    %v6357 = vpack.c.b16 %v6101, %v6097
    %v6358 = vpack.c.b16 %v6102, %v6098
    %v6359 = vpack.c.b16 %v6103, %v6099
    %v6360 = vpack.c.b16 %v6104, %v6100
    %6617 = vmatprep.subr.bf16.mxu0 %v6134
    %6618 = vmatpush1.bf16.msra.mxu0 %v6133
    %6619 = vmatprep.subr.bf16.mxu0 %v6130
    %6620 = vmatpush1.bf16.msra.mxu0 %v6129
    %6621 = vmatprep.subr.bf16.mxu0 %v6126
    %6622 = vmatpush1.bf16.msra.mxu0 %v6125
    %6623 = vmatprep.subr.bf16.mxu0 %v6122
    %6624 = vmatpush1.bf16.msra.mxu0 %v6121
    %6625 = vmatprep.subr.bf16.mxu0 %v6118
    %6626 = vmatpush1.bf16.msra.mxu0 %v6117
    %6627 = vmatprep.subr.bf16.mxu0 %v6114
    %6628 = vmatpush1.bf16.msra.mxu0 %v6113
    %6629 = vmatprep.subr.bf16.mxu0 %v6110
    %6630 = vmatpush1.bf16.msra.mxu0 %v6109
    %6631 = vmatprep.subr.bf16.mxu0 %v6106
    %6632 = vmatpush1.bf16.msra.mxu0 %v6105
    %6633 = vmatprep.subr.bf16.mxu0 %v6166
    %6634 = vmatpush2.bf16.msra.mxu0 %v6165
    %6635 = vmatprep.subr.bf16.mxu0 %v6162
    %6636 = vmatpush2.bf16.msra.mxu0 %v6161
    %6637 = vmatprep.subr.bf16.mxu0 %v6158
    %6638 = vmatpush2.bf16.msra.mxu0 %v6157
    %6639 = vmatprep.subr.bf16.mxu0 %v6154
    %6640 = vmatpush2.bf16.msra.mxu0 %v6153
    %6641 = vmatprep.subr.bf16.mxu0 %v6150
    %6642 = vmatpush2.bf16.msra.mxu0 %v6149
    %6643 = vmatprep.subr.bf16.mxu0 %v6146
    %6644 = vmatpush2.bf16.msra.mxu0 %v6145
    %6645 = vmatprep.subr.bf16.mxu0 %v6142
    %6646 = vmatpush2.bf16.msra.mxu0 %v6141
    %6647 = vmatprep.subr.bf16.mxu0 %v6138
    %6648 = vmatpush2.bf16.msra.mxu0 %v6137
    %6649 = vmatprep.mubr.bf16.mxu0 %v5052
    %6650 = vmatmul.mubr.bf16.gmra.mxu0 %v5051
    %v6651 = vpop.f32.mrf.mxu0
    %v6652 = vadd.f32 %v5320, %v6651
    %v6653 = vpop.f32.mrf.mxu0
    %v6654 = vadd.f32 %v5324, %v6653
    %v6655 = vpop.f32.mrf.mxu0
    %v6656 = vpop.f32.mrf.mxu0
    %6657 = vdwg.mxu0
    %6658 = vmatprep.subr.bf16.mxu0 %v6198
    %6659 = vmatpush1.bf16.msra.mxu0 %v6197
    %6660 = vmatprep.subr.bf16.mxu0 %v6194
    %6661 = vmatpush1.bf16.msra.mxu0 %v6193
    %6662 = vmatprep.subr.bf16.mxu0 %v6190
    %6663 = vmatpush1.bf16.msra.mxu0 %v6189
    %6664 = vmatprep.subr.bf16.mxu0 %v6186
    %6665 = vmatpush1.bf16.msra.mxu0 %v6185
    %6666 = vmatprep.subr.bf16.mxu0 %v6182
    %6667 = vmatpush1.bf16.msra.mxu0 %v6181
    %6668 = vmatprep.subr.bf16.mxu0 %v6178
    %6669 = vmatpush1.bf16.msra.mxu0 %v6177
    %6670 = vmatprep.subr.bf16.mxu0 %v6174
    %6671 = vmatpush1.bf16.msra.mxu0 %v6173
    %6672 = vmatprep.subr.bf16.mxu0 %v6170
    %6673 = vmatpush1.bf16.msra.mxu0 %v6169
    %6674 = vmatprep.subr.bf16.mxu0 %v6230
    %6675 = vmatpush2.bf16.msra.mxu0 %v6229
    %6676 = vmatprep.subr.bf16.mxu0 %v6226
    %6677 = vmatpush2.bf16.msra.mxu0 %v6225
    %6678 = vmatprep.subr.bf16.mxu0 %v6222
    %6679 = vmatpush2.bf16.msra.mxu0 %v6221
    %6680 = vmatprep.subr.bf16.mxu0 %v6218
    %6681 = vmatpush2.bf16.msra.mxu0 %v6217
    %6682 = vmatprep.subr.bf16.mxu0 %v6214
    %6683 = vmatpush2.bf16.msra.mxu0 %v6213
    %6684 = vmatprep.subr.bf16.mxu0 %v6210
    %6685 = vmatpush2.bf16.msra.mxu0 %v6209
    %6686 = vmatprep.subr.bf16.mxu0 %v6206
    %6687 = vmatpush2.bf16.msra.mxu0 %v6205
    %6688 = vmatprep.subr.bf16.mxu0 %v6202
    %6689 = vmatpush2.bf16.msra.mxu0 %v6201
    %6690 = vmatprep.mubr.bf16.mxu0 %v5054
    %6691 = vmatmul.mubr.bf16.gmra.mxu0 %v5053
    %v6692 = vpop.f32.mrf.mxu0
    %v6693 = vadd.f32 %v6652, %v6692
    %v6694 = vpop.f32.mrf.mxu0
    %v6695 = vadd.f32 %v6654, %v6694
    %v6696 = vpop.f32.mrf.mxu0
    %v6697 = vpop.f32.mrf.mxu0
    %6698 = vdwg.mxu0
    %6699 = vmatprep.subr.bf16.mxu0 %v6262
    %6700 = vmatpush1.bf16.msra.mxu0 %v6261
    %6701 = vmatprep.subr.bf16.mxu0 %v6258
    %6702 = vmatpush1.bf16.msra.mxu0 %v6257
    %6703 = vmatprep.subr.bf16.mxu0 %v6254
    %6704 = vmatpush1.bf16.msra.mxu0 %v6253
    %6705 = vmatprep.subr.bf16.mxu0 %v6250
    %6706 = vmatpush1.bf16.msra.mxu0 %v6249
    %6707 = vmatprep.subr.bf16.mxu0 %v6246
    %6708 = vmatpush1.bf16.msra.mxu0 %v6245
    %6709 = vmatprep.subr.bf16.mxu0 %v6242
    %6710 = vmatpush1.bf16.msra.mxu0 %v6241
    %6711 = vmatprep.subr.bf16.mxu0 %v6238
    %6712 = vmatpush1.bf16.msra.mxu0 %v6237
    %6713 = vmatprep.subr.bf16.mxu0 %v6234
    %6714 = vmatpush1.bf16.msra.mxu0 %v6233
    %6715 = vmatprep.subr.bf16.mxu0 %v6294
    %6716 = vmatpush2.bf16.msra.mxu0 %v6293
    %6717 = vmatprep.subr.bf16.mxu0 %v6290
    %6718 = vmatpush2.bf16.msra.mxu0 %v6289
    %6719 = vmatprep.subr.bf16.mxu0 %v6286
    %6720 = vmatpush2.bf16.msra.mxu0 %v6285
    %6721 = vmatprep.subr.bf16.mxu0 %v6282
    %6722 = vmatpush2.bf16.msra.mxu0 %v6281
    %6723 = vmatprep.subr.bf16.mxu0 %v6278
    %6724 = vmatpush2.bf16.msra.mxu0 %v6277
    %6725 = vmatprep.subr.bf16.mxu0 %v6274
    %6726 = vmatpush2.bf16.msra.mxu0 %v6273
    %6727 = vmatprep.subr.bf16.mxu0 %v6270
    %6728 = vmatpush2.bf16.msra.mxu0 %v6269
    %6729 = vmatprep.subr.bf16.mxu0 %v6266
    %6730 = vmatpush2.bf16.msra.mxu0 %v6265
    %6731 = vmatprep.mubr.bf16.mxu0 %v5056
    %6732 = vmatmul.mubr.bf16.gmra.mxu0 %v5055
    %v6733 = vpop.f32.mrf.mxu0
    %v6734 = vadd.f32 %v6693, %v6733
    %v6735 = vpop.f32.mrf.mxu0
    %v6736 = vadd.f32 %v6695, %v6735
    %v6737 = vpop.f32.mrf.mxu0
    %v6738 = vpop.f32.mrf.mxu0
    %6739 = vdwg.mxu0
    %6740 = vmatprep.subr.bf16.mxu0 %v6326
    %6741 = vmatpush1.bf16.msra.mxu0 %v6325
    %6742 = vmatprep.subr.bf16.mxu0 %v6322
    %6743 = vmatpush1.bf16.msra.mxu0 %v6321
    %6744 = vmatprep.subr.bf16.mxu0 %v6318
    %6745 = vmatpush1.bf16.msra.mxu0 %v6317
    %6746 = vmatprep.subr.bf16.mxu0 %v6314
    %6747 = vmatpush1.bf16.msra.mxu0 %v6313
    %6748 = vmatprep.subr.bf16.mxu0 %v6310
    %6749 = vmatpush1.bf16.msra.mxu0 %v6309
    %6750 = vmatprep.subr.bf16.mxu0 %v6306
    %6751 = vmatpush1.bf16.msra.mxu0 %v6305
    %6752 = vmatprep.subr.bf16.mxu0 %v6302
    %6753 = vmatpush1.bf16.msra.mxu0 %v6301
    %6754 = vmatprep.subr.bf16.mxu0 %v6298
    %6755 = vmatpush1.bf16.msra.mxu0 %v6297
    %6756 = vmatprep.subr.bf16.mxu0 %v6358
    %6757 = vmatpush2.bf16.msra.mxu0 %v6357
    %6758 = vmatprep.subr.bf16.mxu0 %v6354
    %6759 = vmatpush2.bf16.msra.mxu0 %v6353
    %6760 = vmatprep.subr.bf16.mxu0 %v6350
    %6761 = vmatpush2.bf16.msra.mxu0 %v6349
    %6762 = vmatprep.subr.bf16.mxu0 %v6346
    %6763 = vmatpush2.bf16.msra.mxu0 %v6345
    %6764 = vmatprep.subr.bf16.mxu0 %v6342
    %6765 = vmatpush2.bf16.msra.mxu0 %v6341
    %6766 = vmatprep.subr.bf16.mxu0 %v6338
    %6767 = vmatpush2.bf16.msra.mxu0 %v6337
    %6768 = vmatprep.subr.bf16.mxu0 %v6334
    %6769 = vmatpush2.bf16.msra.mxu0 %v6333
    %6770 = vmatprep.subr.bf16.mxu0 %v6330
    %6771 = vmatpush2.bf16.msra.mxu0 %v6329
    %6772 = vmatprep.mubr.bf16.mxu0 %v5058
    %6773 = vmatmul.mubr.bf16.gmra.mxu0 %v5057
    %v6774 = vpop.f32.mrf.mxu0
    %v6775 = vadd.f32 %v6734, %v6774
    %v6776 = vpop.f32.mrf.mxu0
    %v6777 = vadd.f32 %v6736, %v6776
    %v6778 = vpop.f32.mrf.mxu0
    %v6779 = vpop.f32.mrf.mxu0
    %6780 = vdwg.mxu0
    %6781 = vmatprep.subr.bf16.mxu0 %v6136
    %6782 = vmatpush1.bf16.msra.mxu0 %v6135
    %6783 = vmatprep.subr.bf16.mxu0 %v6132
    %6784 = vmatpush1.bf16.msra.mxu0 %v6131
    %6785 = vmatprep.subr.bf16.mxu0 %v6128
    %6786 = vmatpush1.bf16.msra.mxu0 %v6127
    %6787 = vmatprep.subr.bf16.mxu0 %v6124
    %6788 = vmatpush1.bf16.msra.mxu0 %v6123
    %6789 = vmatprep.subr.bf16.mxu0 %v6120
    %6790 = vmatpush1.bf16.msra.mxu0 %v6119
    %6791 = vmatprep.subr.bf16.mxu0 %v6116
    %6792 = vmatpush1.bf16.msra.mxu0 %v6115
    %6793 = vmatprep.subr.bf16.mxu0 %v6112
    %6794 = vmatpush1.bf16.msra.mxu0 %v6111
    %6795 = vmatprep.subr.bf16.mxu0 %v6108
    %6796 = vmatpush1.bf16.msra.mxu0 %v6107
    %6797 = vmatprep.subr.bf16.mxu0 %v6168
    %6798 = vmatpush2.bf16.msra.mxu0 %v6167
    %6799 = vmatprep.subr.bf16.mxu0 %v6164
    %6800 = vmatpush2.bf16.msra.mxu0 %v6163
    %6801 = vmatprep.subr.bf16.mxu0 %v6160
    %6802 = vmatpush2.bf16.msra.mxu0 %v6159
    %6803 = vmatprep.subr.bf16.mxu0 %v6156
    %6804 = vmatpush2.bf16.msra.mxu0 %v6155
    %6805 = vmatprep.subr.bf16.mxu0 %v6152
    %6806 = vmatpush2.bf16.msra.mxu0 %v6151
    %6807 = vmatprep.subr.bf16.mxu0 %v6148
    %6808 = vmatpush2.bf16.msra.mxu0 %v6147
    %6809 = vmatprep.subr.bf16.mxu0 %v6144
    %6810 = vmatpush2.bf16.msra.mxu0 %v6143
    %6811 = vmatprep.subr.bf16.mxu0 %v6140
    %6812 = vmatpush2.bf16.msra.mxu0 %v6139
    %6813 = vmatprep.mubr.bf16.mxu0 %v5052
    %6814 = vmatmul.mubr.bf16.gmra.mxu0 %v5051
    %v6815 = vpop.f32.mrf.mxu0
    %v6816 = vadd.f32 %v5328, %v6815
    %v6817 = vpop.f32.mrf.mxu0
    %v6818 = vadd.f32 %v5332, %v6817
    %v6819 = vpop.f32.mrf.mxu0
    %v6820 = vpop.f32.mrf.mxu0
    %6821 = vdwg.mxu0
    %6822 = vmatprep.subr.bf16.mxu0 %v6200
    %6823 = vmatpush1.bf16.msra.mxu0 %v6199
    %6824 = vmatprep.subr.bf16.mxu0 %v6196
    %6825 = vmatpush1.bf16.msra.mxu0 %v6195
    %6826 = vmatprep.subr.bf16.mxu0 %v6192
    %6827 = vmatpush1.bf16.msra.mxu0 %v6191
    %6828 = vmatprep.subr.bf16.mxu0 %v6188
    %6829 = vmatpush1.bf16.msra.mxu0 %v6187
    %6830 = vmatprep.subr.bf16.mxu0 %v6184
    %6831 = vmatpush1.bf16.msra.mxu0 %v6183
    %6832 = vmatprep.subr.bf16.mxu0 %v6180
    %6833 = vmatpush1.bf16.msra.mxu0 %v6179
    %6834 = vmatprep.subr.bf16.mxu0 %v6176
    %6835 = vmatpush1.bf16.msra.mxu0 %v6175
    %6836 = vmatprep.subr.bf16.mxu0 %v6172
    %6837 = vmatpush1.bf16.msra.mxu0 %v6171
    %6838 = vmatprep.subr.bf16.mxu0 %v6232
    %6839 = vmatpush2.bf16.msra.mxu0 %v6231
    %6840 = vmatprep.subr.bf16.mxu0 %v6228
    %6841 = vmatpush2.bf16.msra.mxu0 %v6227
    %6842 = vmatprep.subr.bf16.mxu0 %v6224
    %6843 = vmatpush2.bf16.msra.mxu0 %v6223
    %6844 = vmatprep.subr.bf16.mxu0 %v6220
    %6845 = vmatpush2.bf16.msra.mxu0 %v6219
    %6846 = vmatprep.subr.bf16.mxu0 %v6216
    %6847 = vmatpush2.bf16.msra.mxu0 %v6215
    %6848 = vmatprep.subr.bf16.mxu0 %v6212
    %6849 = vmatpush2.bf16.msra.mxu0 %v6211
    %6850 = vmatprep.subr.bf16.mxu0 %v6208
    %6851 = vmatpush2.bf16.msra.mxu0 %v6207
    %6852 = vmatprep.subr.bf16.mxu0 %v6204
    %6853 = vmatpush2.bf16.msra.mxu0 %v6203
    %6854 = vmatprep.mubr.bf16.mxu0 %v5054
    %6855 = vmatmul.mubr.bf16.gmra.mxu0 %v5053
    %v6856 = vpop.f32.mrf.mxu0
    %v6857 = vadd.f32 %v6816, %v6856
    %v6858 = vpop.f32.mrf.mxu0
    %v6859 = vadd.f32 %v6818, %v6858
    %v6860 = vpop.f32.mrf.mxu0
    %v6861 = vpop.f32.mrf.mxu0
    %6862 = vdwg.mxu0
    %6863 = vmatprep.subr.bf16.mxu0 %v6264
    %6864 = vmatpush1.bf16.msra.mxu0 %v6263
    %6865 = vmatprep.subr.bf16.mxu0 %v6260
    %6866 = vmatpush1.bf16.msra.mxu0 %v6259
    %6867 = vmatprep.subr.bf16.mxu0 %v6256
    %6868 = vmatpush1.bf16.msra.mxu0 %v6255
    %6869 = vmatprep.subr.bf16.mxu0 %v6252
    %6870 = vmatpush1.bf16.msra.mxu0 %v6251
    %6871 = vmatprep.subr.bf16.mxu0 %v6248
    %6872 = vmatpush1.bf16.msra.mxu0 %v6247
    %6873 = vmatprep.subr.bf16.mxu0 %v6244
    %6874 = vmatpush1.bf16.msra.mxu0 %v6243
    %6875 = vmatprep.subr.bf16.mxu0 %v6240
    %6876 = vmatpush1.bf16.msra.mxu0 %v6239
    %6877 = vmatprep.subr.bf16.mxu0 %v6236
    %6878 = vmatpush1.bf16.msra.mxu0 %v6235
    %6879 = vmatprep.subr.bf16.mxu0 %v6296
    %6880 = vmatpush2.bf16.msra.mxu0 %v6295
    %6881 = vmatprep.subr.bf16.mxu0 %v6292
    %6882 = vmatpush2.bf16.msra.mxu0 %v6291
    %6883 = vmatprep.subr.bf16.mxu0 %v6288
    %6884 = vmatpush2.bf16.msra.mxu0 %v6287
    %6885 = vmatprep.subr.bf16.mxu0 %v6284
    %6886 = vmatpush2.bf16.msra.mxu0 %v6283
    %6887 = vmatprep.subr.bf16.mxu0 %v6280
    %6888 = vmatpush2.bf16.msra.mxu0 %v6279
    %6889 = vmatprep.subr.bf16.mxu0 %v6276
    %6890 = vmatpush2.bf16.msra.mxu0 %v6275
    %6891 = vmatprep.subr.bf16.mxu0 %v6272
    %6892 = vmatpush2.bf16.msra.mxu0 %v6271
    %6893 = vmatprep.subr.bf16.mxu0 %v6268
    %6894 = vmatpush2.bf16.msra.mxu0 %v6267
    %6895 = vmatprep.mubr.bf16.mxu0 %v5056
    %6896 = vmatmul.mubr.bf16.gmra.mxu0 %v5055
    %v6897 = vpop.f32.mrf.mxu0
    %v6898 = vadd.f32 %v6857, %v6897
    %v6899 = vpop.f32.mrf.mxu0
    %v6900 = vadd.f32 %v6859, %v6899
    %v6901 = vpop.f32.mrf.mxu0
    %v6902 = vpop.f32.mrf.mxu0
    %6903 = vdwg.mxu0
    %6904 = vmatprep.subr.bf16.mxu0 %v6328
    %6905 = vmatpush1.bf16.msra.mxu0 %v6327
    %6906 = vmatprep.subr.bf16.mxu0 %v6324
    %6907 = vmatpush1.bf16.msra.mxu0 %v6323
    %6908 = vmatprep.subr.bf16.mxu0 %v6320
    %6909 = vmatpush1.bf16.msra.mxu0 %v6319
    %6910 = vmatprep.subr.bf16.mxu0 %v6316
    %6911 = vmatpush1.bf16.msra.mxu0 %v6315
    %6912 = vmatprep.subr.bf16.mxu0 %v6312
    %6913 = vmatpush1.bf16.msra.mxu0 %v6311
    %6914 = vmatprep.subr.bf16.mxu0 %v6308
    %6915 = vmatpush1.bf16.msra.mxu0 %v6307
    %6916 = vmatprep.subr.bf16.mxu0 %v6304
    %6917 = vmatpush1.bf16.msra.mxu0 %v6303
    %6918 = vmatprep.subr.bf16.mxu0 %v6300
    %6919 = vmatpush1.bf16.msra.mxu0 %v6299
    %6920 = vmatprep.subr.bf16.mxu0 %v6360
    %6921 = vmatpush2.bf16.msra.mxu0 %v6359
    %6922 = vmatprep.subr.bf16.mxu0 %v6356
    %6923 = vmatpush2.bf16.msra.mxu0 %v6355
    %6924 = vmatprep.subr.bf16.mxu0 %v6352
    %6925 = vmatpush2.bf16.msra.mxu0 %v6351
    %6926 = vmatprep.subr.bf16.mxu0 %v6348
    %6927 = vmatpush2.bf16.msra.mxu0 %v6347
    %6928 = vmatprep.subr.bf16.mxu0 %v6344
    %6929 = vmatpush2.bf16.msra.mxu0 %v6343
    %6930 = vmatprep.subr.bf16.mxu0 %v6340
    %6931 = vmatpush2.bf16.msra.mxu0 %v6339
    %6932 = vmatprep.subr.bf16.mxu0 %v6336
    %6933 = vmatpush2.bf16.msra.mxu0 %v6335
    %6934 = vmatprep.subr.bf16.mxu0 %v6332
    %6935 = vmatpush2.bf16.msra.mxu0 %v6331
    %6936 = vmatprep.mubr.bf16.mxu0 %v5058
    %6937 = vmatmul.mubr.bf16.gmra.mxu0 %v5057
    %v6938 = vpop.f32.mrf.mxu0
    %v6939 = vadd.f32 %v6898, %v6938
    %v6940 = vpop.f32.mrf.mxu0
    %v6941 = vadd.f32 %v6900, %v6940
    %v6942 = vpop.f32.mrf.mxu0
    %v6943 = vpop.f32.mrf.mxu0
    %6944 = vdwg.mxu0
    %v6945 = vmax.f32 %v6775, 0.0
    %v6946 = vmax.f32 %v6777, 0.0
    %v6947 = vmax.f32 %v6939, 0.0
    %v6948 = vmax.f32 %v6941, 0.0
    %v6949 = vpack.c.bf16 %v6945, %v6945
    %v6950 = vpack.c.bf16 %v6946, %v6946
    %v6951 = vpack.c.bf16 %v6947, %v6947
    %v6952 = vpack.c.bf16 %v6948, %v6948
    %v6953 = vld [vmem:[%s11] sm:$0xf]
    %v6954 = vld [vmem:[%s11 + $0x4] sm:$0xf]
    %v6955 = vld [vmem:[%s11 + $0x8] sm:$0xf]
    %v6956 = vld [vmem:[%s11 + $0xc] sm:$0xf]
    %v6957 = vld [vmem:[%s11 + $0x10] sm:$0xf]
    %v6958 = vld [vmem:[%s11 + $0x14] sm:$0xf]
    %v6959 = vld [vmem:[%s11 + $0x18] sm:$0xf]
    %v6960 = vld [vmem:[%s11 + $0x1c] sm:$0xf]
    %v6961 = vld [vmem:[%s11 + $0x20] sm:$0xf]
    %v6962 = vld [vmem:[%s11 + $0x24] sm:$0xf]
    %v6963 = vld [vmem:[%s11 + $0x28] sm:$0xf]
    %v6964 = vld [vmem:[%s11 + $0x2c] sm:$0xf]
    %v6965 = vld [vmem:[%s11 + $0x30] sm:$0xf]
    %v6966 = vld [vmem:[%s11 + $0x34] sm:$0xf]
    %v6967 = vld [vmem:[%s11 + $0x38] sm:$0xf]
    %v6968 = vld [vmem:[%s11 + $0x3c] sm:$0xf]
    %v6969 = vld [vmem:[%s11 + $0x40] sm:$0xf]
    %v6970 = vld [vmem:[%s11 + $0x44] sm:$0xf]
    %v6971 = vld [vmem:[%s11 + $0x48] sm:$0xf]
    %v6972 = vld [vmem:[%s11 + $0x4c] sm:$0xf]
    %v6973 = vld [vmem:[%s11 + $0x50] sm:$0xf]
    %v6974 = vld [vmem:[%s11 + $0x54] sm:$0xf]
    %v6975 = vld [vmem:[%s11 + $0x58] sm:$0xf]
    %v6976 = vld [vmem:[%s11 + $0x5c] sm:$0xf]
    %v6977 = vld [vmem:[%s11 + $0x60] sm:$0xf]
    %v6978 = vld [vmem:[%s11 + $0x64] sm:$0xf]
    %v6979 = vld [vmem:[%s11 + $0x68] sm:$0xf]
    %v6980 = vld [vmem:[%s11 + $0x6c] sm:$0xf]
    %v6981 = vld [vmem:[%s11 + $0x70] sm:$0xf]
    %v6982 = vld [vmem:[%s11 + $0x74] sm:$0xf]
    %v6983 = vld [vmem:[%s11 + $0x78] sm:$0xf]
    %v6984 = vld [vmem:[%s11 + $0x7c] sm:$0xf]
    %v6985 = vld [vmem:[%s11 + $0x80] sm:$0xf]
    %v6986 = vld [vmem:[%s11 + $0x84] sm:$0xf]
    %v6987 = vld [vmem:[%s11 + $0x88] sm:$0xf]
    %v6988 = vld [vmem:[%s11 + $0x8c] sm:$0xf]
    %v6989 = vld [vmem:[%s11 + $0x90] sm:$0xf]
    %v6990 = vld [vmem:[%s11 + $0x94] sm:$0xf]
    %v6991 = vld [vmem:[%s11 + $0x98] sm:$0xf]
    %v6992 = vld [vmem:[%s11 + $0x9c] sm:$0xf]
    %v6993 = vld [vmem:[%s11 + $0xa0] sm:$0xf]
    %v6994 = vld [vmem:[%s11 + $0xa4] sm:$0xf]
    %v6995 = vld [vmem:[%s11 + $0xa8] sm:$0xf]
    %v6996 = vld [vmem:[%s11 + $0xac] sm:$0xf]
    %v6997 = vld [vmem:[%s11 + $0xb0] sm:$0xf]
    %v6998 = vld [vmem:[%s11 + $0xb4] sm:$0xf]
    %v6999 = vld [vmem:[%s11 + $0xb8] sm:$0xf]
    %v7000 = vld [vmem:[%s11 + $0xbc] sm:$0xf]
    %v7001 = vld [vmem:[%s11 + $0xc0] sm:$0xf]
    %v7002 = vld [vmem:[%s11 + $0xc4] sm:$0xf]
    %v7003 = vld [vmem:[%s11 + $0xc8] sm:$0xf]
    %v7004 = vld [vmem:[%s11 + $0xcc] sm:$0xf]
    %v7005 = vld [vmem:[%s11 + $0xd0] sm:$0xf]
    %v7006 = vld [vmem:[%s11 + $0xd4] sm:$0xf]
    %v7007 = vld [vmem:[%s11 + $0xd8] sm:$0xf]
    %v7008 = vld [vmem:[%s11 + $0xdc] sm:$0xf]
    %v7009 = vld [vmem:[%s11 + $0xe0] sm:$0xf]
    %v7010 = vld [vmem:[%s11 + $0xe4] sm:$0xf]
    %v7011 = vld [vmem:[%s11 + $0xe8] sm:$0xf]
    %v7012 = vld [vmem:[%s11 + $0xec] sm:$0xf]
    %v7013 = vld [vmem:[%s11 + $0xf0] sm:$0xf]
    %v7014 = vld [vmem:[%s11 + $0xf4] sm:$0xf]
    %v7015 = vld [vmem:[%s11 + $0xf8] sm:$0xf]
    %v7016 = vld [vmem:[%s11 + $0xfc] sm:$0xf]
    %v7017 = vld [vmem:[#allocation2] sm:$0x1]
    %v7019 = vlaneseq
    %v7020 = vshrl.u32 %v7019, 7
    %v7021 = vsub.s32 0, %v7020
    %v7022 = vrot.slane %v7017, %v7021
    %v7088 = vunpack.c.l.b16 %v6953
    %v7089 = vunpack.c.l.b16 %v6954
    %v7090 = vunpack.c.l.b16 %v6955
    %v7091 = vunpack.c.l.b16 %v6956
    %v7092 = vunpack.c.l.b16 %v6957
    %v7093 = vunpack.c.l.b16 %v6958
    %v7094 = vunpack.c.l.b16 %v6959
    %v7095 = vunpack.c.l.b16 %v6960
    %v7096 = vunpack.c.l.b16 %v6961
    %v7097 = vunpack.c.l.b16 %v6962
    %v7098 = vunpack.c.l.b16 %v6963
    %v7099 = vunpack.c.l.b16 %v6964
    %v7100 = vunpack.c.l.b16 %v6965
    %v7101 = vunpack.c.l.b16 %v6966
    %v7102 = vunpack.c.l.b16 %v6967
    %v7103 = vunpack.c.l.b16 %v6968
    %v7104 = vunpack.c.l.b16 %v6969
    %v7105 = vunpack.c.l.b16 %v6970
    %v7106 = vunpack.c.l.b16 %v6971
    %v7107 = vunpack.c.l.b16 %v6972
    %v7108 = vunpack.c.l.b16 %v6973
    %v7109 = vunpack.c.l.b16 %v6974
    %v7110 = vunpack.c.l.b16 %v6975
    %v7111 = vunpack.c.l.b16 %v6976
    %v7112 = vunpack.c.l.b16 %v6977
    %v7113 = vunpack.c.l.b16 %v6978
    %v7114 = vunpack.c.l.b16 %v6979
    %v7115 = vunpack.c.l.b16 %v6980
    %v7116 = vunpack.c.l.b16 %v6981
    %v7117 = vunpack.c.l.b16 %v6982
    %v7118 = vunpack.c.l.b16 %v6983
    %v7119 = vunpack.c.l.b16 %v6984
    %v7120 = vunpack.c.l.b16 %v6985
    %v7121 = vunpack.c.l.b16 %v6986
    %v7122 = vunpack.c.l.b16 %v6987
    %v7123 = vunpack.c.l.b16 %v6988
    %v7124 = vunpack.c.l.b16 %v6989
    %v7125 = vunpack.c.l.b16 %v6990
    %v7126 = vunpack.c.l.b16 %v6991
    %v7127 = vunpack.c.l.b16 %v6992
    %v7128 = vunpack.c.l.b16 %v6993
    %v7129 = vunpack.c.l.b16 %v6994
    %v7130 = vunpack.c.l.b16 %v6995
    %v7131 = vunpack.c.l.b16 %v6996
    %v7132 = vunpack.c.l.b16 %v6997
    %v7133 = vunpack.c.l.b16 %v6998
    %v7134 = vunpack.c.l.b16 %v6999
    %v7135 = vunpack.c.l.b16 %v7000
    %v7136 = vunpack.c.l.b16 %v7001
    %v7137 = vunpack.c.l.b16 %v7002
    %v7138 = vunpack.c.l.b16 %v7003
    %v7139 = vunpack.c.l.b16 %v7004
    %v7140 = vunpack.c.l.b16 %v7005
    %v7141 = vunpack.c.l.b16 %v7006
    %v7142 = vunpack.c.l.b16 %v7007
    %v7143 = vunpack.c.l.b16 %v7008
    %v7144 = vunpack.c.l.b16 %v7009
    %v7145 = vunpack.c.l.b16 %v7010
    %v7146 = vunpack.c.l.b16 %v7011
    %v7147 = vunpack.c.l.b16 %v7012
    %v7148 = vunpack.c.l.b16 %v7013
    %v7149 = vunpack.c.l.b16 %v7014
    %v7150 = vunpack.c.l.b16 %v7015
    %v7151 = vunpack.c.l.b16 %v7016
    %v7152 = vpack.c.b16 %v7089, %v7088
    %v7153 = vpack.c.b16 %v7091, %v7090
    %v7154 = vpack.c.b16 %v7093, %v7092
    %v7155 = vpack.c.b16 %v7095, %v7094
    %v7156 = vpack.c.b16 %v7097, %v7096
    %v7157 = vpack.c.b16 %v7099, %v7098
    %v7158 = vpack.c.b16 %v7101, %v7100
    %v7159 = vpack.c.b16 %v7103, %v7102
    %v7160 = vpack.c.b16 %v7105, %v7104
    %v7161 = vpack.c.b16 %v7107, %v7106
    %v7162 = vpack.c.b16 %v7109, %v7108
    %v7163 = vpack.c.b16 %v7111, %v7110
    %v7164 = vpack.c.b16 %v7113, %v7112
    %v7165 = vpack.c.b16 %v7115, %v7114
    %v7166 = vpack.c.b16 %v7117, %v7116
    %v7167 = vpack.c.b16 %v7119, %v7118
    %v7168 = vpack.c.b16 %v7121, %v7120
    %v7169 = vpack.c.b16 %v7123, %v7122
    %v7170 = vpack.c.b16 %v7125, %v7124
    %v7171 = vpack.c.b16 %v7127, %v7126
    %v7172 = vpack.c.b16 %v7129, %v7128
    %v7173 = vpack.c.b16 %v7131, %v7130
    %v7174 = vpack.c.b16 %v7133, %v7132
    %v7175 = vpack.c.b16 %v7135, %v7134
    %v7176 = vpack.c.b16 %v7137, %v7136
    %v7177 = vpack.c.b16 %v7139, %v7138
    %v7178 = vpack.c.b16 %v7141, %v7140
    %v7179 = vpack.c.b16 %v7143, %v7142
    %v7180 = vpack.c.b16 %v7145, %v7144
    %v7181 = vpack.c.b16 %v7147, %v7146
    %v7182 = vpack.c.b16 %v7149, %v7148
    %v7183 = vpack.c.b16 %v7151, %v7150
    %7216 = vmatprep.subr.bf16.mxu0 0
    %7217 = vmatpush1.bf16.msra.mxu0 %v7159
    %7218 = vmatprep.subr.bf16.mxu0 0
    %7219 = vmatpush1.bf16.msra.mxu0 %v7158
    %7220 = vmatprep.subr.bf16.mxu0 0
    %7221 = vmatpush1.bf16.msra.mxu0 %v7157
    %7222 = vmatprep.subr.bf16.mxu0 0
    %7223 = vmatpush1.bf16.msra.mxu0 %v7156
    %7224 = vmatprep.subr.bf16.mxu0 0
    %7225 = vmatpush1.bf16.msra.mxu0 %v7155
    %7226 = vmatprep.subr.bf16.mxu0 0
    %7227 = vmatpush1.bf16.msra.mxu0 %v7154
    %7228 = vmatprep.subr.bf16.mxu0 0
    %7229 = vmatpush1.bf16.msra.mxu0 %v7153
    %7230 = vmatprep.subr.bf16.mxu0 0
    %7231 = vmatpush1.bf16.msra.mxu0 %v7152
    %7232 = vmatprep.subr.bf16.mxu0 0
    %7233 = vmatpush2.bf16.msra.mxu0 %v7167
    %7234 = vmatprep.subr.bf16.mxu0 0
    %7235 = vmatpush2.bf16.msra.mxu0 %v7166
    %7236 = vmatprep.subr.bf16.mxu0 0
    %7237 = vmatpush2.bf16.msra.mxu0 %v7165
    %7238 = vmatprep.subr.bf16.mxu0 0
    %7239 = vmatpush2.bf16.msra.mxu0 %v7164
    %7240 = vmatprep.subr.bf16.mxu0 0
    %7241 = vmatpush2.bf16.msra.mxu0 %v7163
    %7242 = vmatprep.subr.bf16.mxu0 0
    %7243 = vmatpush2.bf16.msra.mxu0 %v7162
    %7244 = vmatprep.subr.bf16.mxu0 0
    %7245 = vmatpush2.bf16.msra.mxu0 %v7161
    %7246 = vmatprep.subr.bf16.mxu0 0
    %7247 = vmatpush2.bf16.msra.mxu0 %v7160
    %7248 = vmatprep.mubr.bf16.mxu0 %v6950
    %7249 = vmatmul.mubr.bf16.gmra.mxu0 %v6949
    %v7250 = vpop.f32.mrf.mxu0
    %v7251 = vadd.f32 %v7022, %v7250
    %v7252 = vpop.f32.mrf.mxu0
    %v7253 = vpop.f32.mrf.mxu0
    %v7254 = vpop.f32.mrf.mxu0
    %7255 = vdwg.mxu0
    %7256 = vmatprep.subr.bf16.mxu0 0
    %7257 = vmatpush1.bf16.msra.mxu0 %v7175
    %7258 = vmatprep.subr.bf16.mxu0 0
    %7259 = vmatpush1.bf16.msra.mxu0 %v7174
    %7260 = vmatprep.subr.bf16.mxu0 0
    %7261 = vmatpush1.bf16.msra.mxu0 %v7173
    %7262 = vmatprep.subr.bf16.mxu0 0
    %7263 = vmatpush1.bf16.msra.mxu0 %v7172
    %7264 = vmatprep.subr.bf16.mxu0 0
    %7265 = vmatpush1.bf16.msra.mxu0 %v7171
    %7266 = vmatprep.subr.bf16.mxu0 0
    %7267 = vmatpush1.bf16.msra.mxu0 %v7170
    %7268 = vmatprep.subr.bf16.mxu0 0
    %7269 = vmatpush1.bf16.msra.mxu0 %v7169
    %7270 = vmatprep.subr.bf16.mxu0 0
    %7271 = vmatpush1.bf16.msra.mxu0 %v7168
    %7272 = vmatprep.subr.bf16.mxu0 0
    %7273 = vmatpush2.bf16.msra.mxu0 %v7183
    %7274 = vmatprep.subr.bf16.mxu0 0
    %7275 = vmatpush2.bf16.msra.mxu0 %v7182
    %7276 = vmatprep.subr.bf16.mxu0 0
    %7277 = vmatpush2.bf16.msra.mxu0 %v7181
    %7278 = vmatprep.subr.bf16.mxu0 0
    %7279 = vmatpush2.bf16.msra.mxu0 %v7180
    %7280 = vmatprep.subr.bf16.mxu0 0
    %7281 = vmatpush2.bf16.msra.mxu0 %v7179
    %7282 = vmatprep.subr.bf16.mxu0 0
    %7283 = vmatpush2.bf16.msra.mxu0 %v7178
    %7284 = vmatprep.subr.bf16.mxu0 0
    %7285 = vmatpush2.bf16.msra.mxu0 %v7177
    %7286 = vmatprep.subr.bf16.mxu0 0
    %7287 = vmatpush2.bf16.msra.mxu0 %v7176
    %7288 = vmatprep.mubr.bf16.mxu0 %v6952
    %7289 = vmatmul.mubr.bf16.gmra.mxu0 %v6951
    %v7290 = vpop.f32.mrf.mxu0
    %v7291 = vadd.f32 %v7251, %v7290
    %v7292 = vpop.f32.mrf.mxu0
    %v7293 = vpop.f32.mrf.mxu0
    %v7294 = vpop.f32.mrf.mxu0
    %7295 = vdwg.mxu0
    %vm7296 = vcmask 1024
    %7297 = vst.msk [vmem:[%s13] sm:$0x3] %vm7296, %v7291
    // Predicated region
    $region66: #{net_forward.5} parent=1 // pred_check
      _
    $region67: #{net_forward.5} parent=1 // pred_check_branch
      %7299 = sbr.rel (0) target = $region69
    $region68: #{net_forward.5} parent=1 // pred_region
      _
    $region69: #{net_forward.5} parent=1 // pred_fallthru
      _
    // Predicated region
    $region70: #{net_forward.5} parent=1 // pred_check
      _
    $region71: #{net_forward.5} parent=1 // pred_check_branch
      %7301 = sbr.rel (0) target = $region73
    $region72: #{net_forward.5} parent=1 // pred_region
      _
    $region73: #{net_forward.5} parent=1 // pred_fallthru
      _
    %7302 = vsyncpa [#allocation4], 1
    %7303 = vsyncpa [#allocation6], 1

</llo_original>
